<compile_context>
chip_gen: v7x
topology: tpu7x:2x2x1
jax: 0.10.0
libtpu: 0.0.40
codegen_flags: <defaults>
</compile_context>

<pallas_src>
import math

import jax
import jax.numpy as jnp
from jax.experimental import pallas as pl
from jax.experimental.pallas import tpu as pltpu

MODEL_DIM = 64          # d_model
NUM_HEADS = 4
HEAD_DIM = MODEL_DIM // NUM_HEADS
DIM_FF = 2048           # PyTorch TransformerEncoderLayer default dim_feedforward
LN_EPS = 1e-5
INPUT_DIM = 1
NUM_LAYERS = 2


def _layer_norm(x, gamma, beta):
    mu = jnp.mean(x, axis=-1, keepdims=True)
    var = jnp.mean((x - mu) ** 2, axis=-1, keepdims=True)
    return (x - mu) * jax.lax.rsqrt(var + LN_EPS) * gamma + beta


# --------------------------- fused Pallas kernel ---------------------------
def fused_transformer_kernel(x_ref, glue_ref, wqkv_ref, bqkv_ref, wo_ref,
                             vecs_ref, w1_ref, b1_ref, w2_ref, o_ref):
    """Whole TransformerTimeSeries forward (eval mode) in one invocation.

    x_ref    : (S, B, 1)   f32  raw input, sequence-first like PyTorch
    glue_ref : (4, D)      f32  rows [emb_w_col, emb_b, fc_w_row, fc_b/D bcast]
    wqkv_ref : (L, D, 3D)  f32  fused, pre-transposed QKV projection
    bqkv_ref : (L, 1, 3D)  f32
    wo_ref   : (L, D, D)   f32  pre-transposed attention output projection
    vecs_ref : (L, 8, D)   f32  rows [bo, ln1_w, ln1_b, b2, ln2_w, ln2_b, 0, 0]
    w1_ref   : (L, D, F)   bf16 pre-transposed FFN up-projection
    b1_ref   : (L, 1, F)   f32
    w2_ref   : (L, F, D)   bf16 pre-transposed FFN down-projection
    o_ref    : (B, 1)      f32  prediction = fc(last timestep hidden)
    """
    S, B, _ = x_ref.shape
    D, H, HD = MODEL_DIM, NUM_HEADS, HEAD_DIM
    N = S * B
    scale = 1.0 / math.sqrt(HD)

    glue = glue_ref[...]                                        # (4, D)

    # ---- embedding: Linear(1 -> D); rows kept in (seq, batch) order --------
    # row index = s*B + b  (plain reshape of the (S, B, D) slab, no transpose)
    h = (x_ref[...] * glue[0] + glue[1]).reshape(N, D)          # (N, D) f32

    for l in range(NUM_LAYERS):                                 # static unroll
        vec = vecs_ref[l]                                       # (8, D)

        # ---- fused QKV projection: one (N,D)x(D,3D) MXU matmul -------------
        qkv = jnp.dot(h, wqkv_ref[l],
                      preferred_element_type=jnp.float32) + bqkv_ref[l]
        q = (qkv[:, 0:D] * scale).reshape(S, B, H, HD)
        k = qkv[:, D:2 * D].reshape(S, B, H, HD)
        v = qkv[:, 2 * D:3 * D].reshape(S, B, H, HD)

        # ---- multi-head self attention (heads batched per einsum) ----------
        per_batch = []
        for b in range(B):                                      # static unroll
            qb = q[:, b].transpose(1, 0, 2)                     # (H, S, hd)
            kb = k[:, b].transpose(1, 0, 2)
            vb = v[:, b].transpose(1, 0, 2)
            s = jnp.einsum('hqd,hkd->hqk', qb, kb,
                           preferred_element_type=jnp.float32)  # (H, S, S)
            s = s - jnp.max(s, axis=-1, keepdims=True)
            p = jnp.exp(s)
            p = p * pl.reciprocal(jnp.sum(p, axis=-1, keepdims=True),
                                  approx=True)
            ob = jnp.einsum('hqk,hkd->hqd', p, vb,
                            preferred_element_type=jnp.float32)  # (H, S, hd)
            per_batch.append(ob.transpose(1, 0, 2).reshape(S, D))
        attn = jnp.stack(per_batch, axis=1).reshape(N, D)       # back to row = s*B+b

        attn = jnp.dot(attn, wo_ref[l],
                       preferred_element_type=jnp.float32) + vec[0]   # + bo

        # ---- residual + LayerNorm1 (dropout = identity in eval) ------------
        h = _layer_norm(h + attn, vec[1], vec[2])

        # ---- feed forward: bf16 weights, f32 accumulation ------------------
        h1 = jnp.dot(h.astype(jnp.bfloat16), w1_ref[l],
                     preferred_element_type=jnp.float32) + b1_ref[l]
        h1 = jnp.maximum(h1, 0.0)                               # ReLU
        ff = jnp.dot(h1.astype(jnp.bfloat16), w2_ref[l],
                     preferred_element_type=jnp.float32) + vec[3]      # + b2

        # ---- residual + LayerNorm2 -----------------------------------------
        h = _layer_norm(h + ff, vec[4], vec[5])

    # ---- final fc on the last timestep of every batch element --------------
    h_last = h[N - B:, :]                                       # (B, D)
    # glue[2] = fc weight row; glue[3] = fc_b/D replicated over lanes so the
    # lane-sum reduction contributes exactly fc_b.
    o_ref[...] = jnp.sum(h_last * glue[2] + glue[3], axis=-1, keepdims=True)


def transformer_time_series(x, packed):
    """x: (S, B, input_dim) sequence-first like PyTorch. Returns (B, 1)."""
    S, B, _ = x.shape
    vmem = pl.BlockSpec(memory_space=pltpu.MemorySpace.VMEM)
    return pl.pallas_call(
        fused_transformer_kernel,
        out_shape=jax.ShapeDtypeStruct((B, 1), jnp.float32),
        in_specs=[vmem] * 9,
        out_specs=vmem,
    )(x, packed["glue"], packed["wqkv"], packed["bqkv"], packed["wo"],
      packed["vecs"], packed["w1"], packed["b1"], packed["w2"])


# --------------------------- parameter init (PyTorch layout) ---------------
def _dense(key, out_d, in_d):
    scale = 1.0 / math.sqrt(in_d)
    kw, kb = jax.random.split(key)
    w = jax.random.uniform(kw, (out_d, in_d), jnp.float32, -scale, scale)
    b = jax.random.uniform(kb, (out_d,), jnp.float32, -scale, scale)
    return w, b


def init_params(key):
    keys = jax.random.split(key, 2 + NUM_LAYERS)
    emb_w, emb_b = _dense(keys[0], MODEL_DIM, INPUT_DIM)
    fc_w, fc_b = _dense(keys[1], 1, MODEL_DIM)
    layers = []
    for li in range(NUM_LAYERS):
        lk = jax.random.split(keys[2 + li], 6)
        wq, bq = _dense(lk[0], MODEL_DIM, MODEL_DIM)
        wk, bk = _dense(lk[1], MODEL_DIM, MODEL_DIM)
        wv, bv = _dense(lk[2], MODEL_DIM, MODEL_DIM)
        wo, bo = _dense(lk[3], MODEL_DIM, MODEL_DIM)
        w1, b1 = _dense(lk[4], DIM_FF, MODEL_DIM)
        w2, b2 = _dense(lk[5], MODEL_DIM, DIM_FF)
        layers.append(dict(
            wq=wq, bq=bq, wk=wk, bk=bk, wv=wv, bv=bv, wo=wo, bo=bo,
            ln1_w=jnp.ones((MODEL_DIM,), jnp.float32),
            ln1_b=jnp.zeros((MODEL_DIM,), jnp.float32),
            w1=w1, b1=b1, w2=w2, b2=b2,
            ln2_w=jnp.ones((MODEL_DIM,), jnp.float32),
            ln2_b=jnp.zeros((MODEL_DIM,), jnp.float32),
        ))
    return dict(emb_w=emb_w, emb_b=emb_b, fc_w=fc_w, fc_b=fc_b, layers=layers)


def pack_params(p):
    """One-time prep: pre-transpose, fuse QKV, pack small vectors, bf16 FFN."""
    D = MODEL_DIM
    glue = jnp.stack([
        p["emb_w"][:, 0],                       # embedding weight column
        p["emb_b"],                             # embedding bias
        p["fc_w"][0, :],                        # fc weight row
        jnp.full((D,), p["fc_b"][0] / D),       # fc bias spread over D lanes
    ])                                          # (4, D)

    wqkv, bqkv, wo, vecs, w1, b1, w2 = [], [], [], [], [], [], []
    for lp in p["layers"]:
        wqkv.append(jnp.concatenate([lp["wq"].T, lp["wk"].T, lp["wv"].T], axis=1))
        bqkv.append(jnp.concatenate([lp["bq"], lp["bk"], lp["bv"]])[None, :])
        wo.append(lp["wo"].T)
        vecs.append(jnp.stack([lp["bo"], lp["ln1_w"], lp["ln1_b"], lp["b2"],
                               lp["ln2_w"], lp["ln2_b"],
                               jnp.zeros((D,), jnp.float32),
                               jnp.zeros((D,), jnp.float32)]))
        w1.append(lp["w1"].T.astype(jnp.bfloat16))
        b1.append(lp["b1"][None, :])
        w2.append(lp["w2"].T.astype(jnp.bfloat16))
    return dict(
        glue=glue,
        wqkv=jnp.stack(wqkv), bqkv=jnp.stack(bqkv), wo=jnp.stack(wo),
        vecs=jnp.stack(vecs), w1=jnp.stack(w1), b1=jnp.stack(b1),
        w2=jnp.stack(w2),
    )


# --------------------------- pure-JAX reference ----------------------------
def _ref_layer(x, p):
    """Post-norm, eval-mode nn.TransformerEncoderLayer; x: (S, B, D)."""
    hi = jax.lax.Precision.HIGHEST
    xb = jnp.transpose(x, (1, 0, 2))                            # (B, S, D)
    B, S, D = xb.shape
    q = jnp.dot(xb, p["wq"].T, precision=hi) + p["bq"]
    k = jnp.dot(xb, p["wk"].T, precision=hi) + p["bk"]
    v = jnp.dot(xb, p["wv"].T, precision=hi) + p["bv"]
    qh = q.reshape(B, S, NUM_HEADS, HEAD_DIM).transpose(0, 2, 1, 3) / math.sqrt(HEAD_DIM)
    kh = k.reshape(B, S, NUM_HEADS, HEAD_DIM).transpose(0, 2, 1, 3)
    vh = v.reshape(B, S, NUM_HEADS, HEAD_DIM).transpose(0, 2, 1, 3)
    s = jnp.einsum("bhqd,bhkd->bhqk", qh, kh, precision=hi)
    a = jax.nn.softmax(s, axis=-1)
    o = jnp.einsum("bhqk,bhkd->bhqd", a, vh, precision=hi)
    o = o.transpose(0, 2, 1, 3).reshape(B, S, D)
    attn = jnp.dot(o, p["wo"].T, precision=hi) + p["bo"]
    xb = _layer_norm(xb + attn, p["ln1_w"], p["ln1_b"])
    ff = jnp.maximum(jnp.dot(xb, p["w1"].T, precision=hi) + p["b1"], 0.0)
    ff = jnp.dot(ff, p["w2"].T, precision=hi) + p["b2"]
    xb = _layer_norm(xb + ff, p["ln2_w"], p["ln2_b"])
    return jnp.transpose(xb, (1, 0, 2))


def reference_forward(x, params):
    hi = jax.lax.Precision.HIGHEST
    h = jnp.dot(x, params["emb_w"].T, precision=hi) + params["emb_b"]   # (S, B, D)
    for lp in params["layers"]:
        h = _ref_layer(h, lp)
    return jnp.dot(h[-1], params["fc_w"].T, precision=hi) + params["fc_b"]


if __name__ == "__main__":
    key = jax.random.PRNGKey(0)
    k_param, k_x = jax.random.split(key)
    params = init_params(k_param)
    packed = pack_params(params)          # one-time weight prep, outside hot path

    S, B = 8, 2                           # seq_len=8, batch=2
    x = jax.random.normal(k_x, (S, B, INPUT_DIM), jnp.float32)

    out = jax.jit(transformer_time_series)(x, packed)
    out = jax.block_until_ready(out)
    assert out.shape == (B, 1), out.shape

    ref = jax.block_until_ready(reference_forward(x, params))
    # FF weights are stored/consumed as bf16 (halves dominant HBM traffic) and
    # the softmax uses an approximate reciprocal, so the tolerance vs. the
    # f32-HIGHEST reference is documented at 2e-2.
    assert jnp.allclose(out, ref, atol=2e-2, rtol=2e-2), (out, ref)

    print("KERNEL_OK")
</pallas_src>

<mosaic_0001>
module attributes {stable_mosaic.version = 11 : i64} {
  func.func @fused_transformer_kernel(%arg0: memref<8x2x1xf32, #tpu.memory_space<vmem>>, %arg1: memref<4x64xf32, #tpu.memory_space<vmem>>, %arg2: memref<2x64x192xf32, #tpu.memory_space<vmem>>, %arg3: memref<2x1x192xf32, #tpu.memory_space<vmem>>, %arg4: memref<2x64x64xf32, #tpu.memory_space<vmem>>, %arg5: memref<2x8x64xf32, #tpu.memory_space<vmem>>, %arg6: memref<2x64x2048xbf16, #tpu.memory_space<vmem>>, %arg7: memref<2x1x2048xf32, #tpu.memory_space<vmem>>, %arg8: memref<2x2048x64xbf16, #tpu.memory_space<vmem>>, %arg9: memref<2x1xf32, #tpu.memory_space<vmem>>) attributes {dimension_semantics = [], scalar_prefetch = 0 : i64, scratch_operands = 0 : i64, tpu.core_type = #tpu.core_type<tc>} {
    %c0 = arith.constant 0 : index
    %c0_0 = arith.constant 0 : index
    %0 = vector.load %arg1[%c0, %c0_0] : memref<4x64xf32, #tpu.memory_space<vmem>>, vector<4x64xf32>
    %c0_1 = arith.constant 0 : index
    %c0_2 = arith.constant 0 : index
    %c0_3 = arith.constant 0 : index
    %1 = vector.load %arg0[%c0_1, %c0_2, %c0_3] : memref<8x2x1xf32, #tpu.memory_space<vmem>>, vector<8x2x1xf32>
    %2 = vector.extract_strided_slice %0 {offsets = [0, 0], sizes = [1, 64], strides = [1, 1]} : vector<4x64xf32> to vector<1x64xf32>
    %3 = vector.shape_cast %2 : vector<1x64xf32> to vector<64xf32>
    %4 = vector.shape_cast %3 : vector<64xf32> to vector<1x1x64xf32>
    %5 = vector.broadcast %1 : vector<8x2x1xf32> to vector<8x2x64xf32>
    %6 = vector.broadcast %4 : vector<1x1x64xf32> to vector<8x2x64xf32>
    %7 = arith.mulf %5, %6 : vector<8x2x64xf32>
    %8 = vector.extract_strided_slice %0 {offsets = [1, 0], sizes = [1, 64], strides = [1, 1]} : vector<4x64xf32> to vector<1x64xf32>
    %9 = vector.shape_cast %8 : vector<1x64xf32> to vector<64xf32>
    %10 = vector.shape_cast %9 : vector<64xf32> to vector<1x1x64xf32>
    %11 = vector.broadcast %10 : vector<1x1x64xf32> to vector<8x2x64xf32>
    %12 = arith.addf %7, %11 : vector<8x2x64xf32>
    %13 = vector.shape_cast %12 : vector<8x2x64xf32> to vector<16x64xf32>
    %c0_4 = arith.constant 0 : index
    %c0_5 = arith.constant 0 : index
    %c0_6 = arith.constant 0 : index
    %14 = vector.load %arg5[%c0_4, %c0_5, %c0_6] : memref<2x8x64xf32, #tpu.memory_space<vmem>>, vector<1x8x64xf32>
    %15 = vector.shape_cast %14 : vector<1x8x64xf32> to vector<8x64xf32>
    %c0_7 = arith.constant 0 : index
    %c0_8 = arith.constant 0 : index
    %c0_9 = arith.constant 0 : index
    %16 = vector.load %arg2[%c0_7, %c0_8, %c0_9] : memref<2x64x192xf32, #tpu.memory_space<vmem>>, vector<1x64x192xf32>
    %17 = vector.shape_cast %16 : vector<1x64x192xf32> to vector<64x192xf32>
    %cst = arith.constant dense<0.000000e+00> : vector<16x192xf32>
    %18 = tpu.matmul %13, %17, %cst {dimension_numbers = #tpu.dot_dimension_numbers<[1], [0], [0], [1], [0, 0, 1, 1], [], []>} : vector<16x64xf32>, vector<64x192xf32>, vector<16x192xf32> -> vector<16x192xf32>
    %c0_10 = arith.constant 0 : index
    %c0_11 = arith.constant 0 : index
    %c0_12 = arith.constant 0 : index
    %19 = vector.load %arg3[%c0_10, %c0_11, %c0_12] : memref<2x1x192xf32, #tpu.memory_space<vmem>>, vector<1x1x192xf32>
    %20 = vector.shape_cast %19 : vector<1x1x192xf32> to vector<1x192xf32>
    %21 = vector.broadcast %20 : vector<1x192xf32> to vector<16x192xf32>
    %22 = arith.addf %18, %21 : vector<16x192xf32>
    %23 = vector.extract_strided_slice %22 {offsets = [0, 0], sizes = [16, 64], strides = [1, 1]} : vector<16x192xf32> to vector<16x64xf32>
    %cst_13 = arith.constant 2.500000e-01 : f32
    %24 = vector.broadcast %cst_13 : f32 to vector<16x64xf32>
    %25 = arith.mulf %23, %24 : vector<16x64xf32>
    %26 = vector.shape_cast %25 : vector<16x64xf32> to vector<8x2x4x16xf32>
    %27 = vector.extract_strided_slice %22 {offsets = [0, 64], sizes = [16, 64], strides = [1, 1]} : vector<16x192xf32> to vector<16x64xf32>
    %28 = vector.shape_cast %27 : vector<16x64xf32> to vector<8x2x4x16xf32>
    %29 = vector.extract_strided_slice %22 {offsets = [0, 128], sizes = [16, 64], strides = [1, 1]} : vector<16x192xf32> to vector<16x64xf32>
    %30 = vector.shape_cast %29 : vector<16x64xf32> to vector<8x2x4x16xf32>
    %31 = vector.extract_strided_slice %26 {offsets = [0, 0, 0, 0], sizes = [8, 1, 4, 16], strides = [1, 1, 1, 1]} : vector<8x2x4x16xf32> to vector<8x1x4x16xf32>
    %32 = vector.shape_cast %31 : vector<8x1x4x16xf32> to vector<8x4x16xf32>
    %33 = tpu.transpose %32, [1, 0, 2] : vector<8x4x16xf32> -> vector<4x8x16xf32>
    %34 = vector.extract_strided_slice %28 {offsets = [0, 0, 0, 0], sizes = [8, 1, 4, 16], strides = [1, 1, 1, 1]} : vector<8x2x4x16xf32> to vector<8x1x4x16xf32>
    %35 = vector.shape_cast %34 : vector<8x1x4x16xf32> to vector<8x4x16xf32>
    %36 = tpu.transpose %35, [1, 0, 2] : vector<8x4x16xf32> -> vector<4x8x16xf32>
    %37 = vector.extract_strided_slice %30 {offsets = [0, 0, 0, 0], sizes = [8, 1, 4, 16], strides = [1, 1, 1, 1]} : vector<8x2x4x16xf32> to vector<8x1x4x16xf32>
    %38 = vector.shape_cast %37 : vector<8x1x4x16xf32> to vector<8x4x16xf32>
    %39 = tpu.transpose %38, [1, 0, 2] : vector<8x4x16xf32> -> vector<4x8x16xf32>
    "tpu.trace_start"() <{level = 10 : i32, message = "hqd,hkd->hqk"}> : () -> ()
    %cst_14 = arith.constant dense<0.000000e+00> : vector<4x8x8xf32>
    %40 = tpu.matmul %33, %36, %cst_14 {dimension_numbers = #tpu.dot_dimension_numbers<[2], [2], [1], [1], [0, 0, 0, 1, 1, 1], [0], [0]>} : vector<4x8x16xf32>, vector<4x8x16xf32>, vector<4x8x8xf32> -> vector<4x8x8xf32>
    "tpu.trace_stop"() : () -> ()
    %cst_15 = arith.constant dense<0xFF800000> : vector<4x8xf32>
    %41 = vector.multi_reduction <maximumf>, %40, %cst_15 [2] : vector<4x8x8xf32> to vector<4x8xf32>
    %42 = vector.shape_cast %41 : vector<4x8xf32> to vector<4x8x1xf32>
    %43 = vector.broadcast %42 : vector<4x8x1xf32> to vector<4x8x8xf32>
    %44 = arith.subf %40, %43 : vector<4x8x8xf32>
    %45 = math.exp %44 : vector<4x8x8xf32>
    %cst_16 = arith.constant dense<0.000000e+00> : vector<4x8xf32>
    %46 = vector.multi_reduction <add>, %45, %cst_16 [2] : vector<4x8x8xf32> to vector<4x8xf32>
    %47 = vector.shape_cast %46 : vector<4x8xf32> to vector<4x8x1xf32>
    %48 = tpu.reciprocal %47 {approx = true} : vector<4x8x1xf32> -> vector<4x8x1xf32>
    %49 = vector.broadcast %48 : vector<4x8x1xf32> to vector<4x8x8xf32>
    %50 = arith.mulf %45, %49 : vector<4x8x8xf32>
    "tpu.trace_start"() <{level = 10 : i32, message = "hqk,hkd->hqd"}> : () -> ()
    %cst_17 = arith.constant dense<0.000000e+00> : vector<4x8x16xf32>
    %51 = tpu.matmul %50, %39, %cst_17 {dimension_numbers = #tpu.dot_dimension_numbers<[2], [1], [1], [2], [0, 0, 0, 1, 1, 2], [0], [0]>} : vector<4x8x8xf32>, vector<4x8x16xf32>, vector<4x8x16xf32> -> vector<4x8x16xf32>
    "tpu.trace_stop"() : () -> ()
    %52 = tpu.transpose %51, [1, 0, 2] : vector<4x8x16xf32> -> vector<8x4x16xf32>
    %53 = vector.shape_cast %52 : vector<8x4x16xf32> to vector<8x64xf32>
    %54 = vector.extract_strided_slice %26 {offsets = [0, 1, 0, 0], sizes = [8, 1, 4, 16], strides = [1, 1, 1, 1]} : vector<8x2x4x16xf32> to vector<8x1x4x16xf32>
    %55 = vector.shape_cast %54 : vector<8x1x4x16xf32> to vector<8x4x16xf32>
    %56 = tpu.transpose %55, [1, 0, 2] : vector<8x4x16xf32> -> vector<4x8x16xf32>
    %57 = vector.extract_strided_slice %28 {offsets = [0, 1, 0, 0], sizes = [8, 1, 4, 16], strides = [1, 1, 1, 1]} : vector<8x2x4x16xf32> to vector<8x1x4x16xf32>
    %58 = vector.shape_cast %57 : vector<8x1x4x16xf32> to vector<8x4x16xf32>
    %59 = tpu.transpose %58, [1, 0, 2] : vector<8x4x16xf32> -> vector<4x8x16xf32>
    %60 = vector.extract_strided_slice %30 {offsets = [0, 1, 0, 0], sizes = [8, 1, 4, 16], strides = [1, 1, 1, 1]} : vector<8x2x4x16xf32> to vector<8x1x4x16xf32>
    %61 = vector.shape_cast %60 : vector<8x1x4x16xf32> to vector<8x4x16xf32>
    %62 = tpu.transpose %61, [1, 0, 2] : vector<8x4x16xf32> -> vector<4x8x16xf32>
    "tpu.trace_start"() <{level = 10 : i32, message = "hqd,hkd->hqk"}> : () -> ()
    %cst_18 = arith.constant dense<0.000000e+00> : vector<4x8x8xf32>
    %63 = tpu.matmul %56, %59, %cst_18 {dimension_numbers = #tpu.dot_dimension_numbers<[2], [2], [1], [1], [0, 0, 0, 1, 1, 1], [0], [0]>} : vector<4x8x16xf32>, vector<4x8x16xf32>, vector<4x8x8xf32> -> vector<4x8x8xf32>
    "tpu.trace_stop"() : () -> ()
    %cst_19 = arith.constant dense<0xFF800000> : vector<4x8xf32>
    %64 = vector.multi_reduction <maximumf>, %63, %cst_19 [2] : vector<4x8x8xf32> to vector<4x8xf32>
    %65 = vector.shape_cast %64 : vector<4x8xf32> to vector<4x8x1xf32>
    %66 = vector.broadcast %65 : vector<4x8x1xf32> to vector<4x8x8xf32>
    %67 = arith.subf %63, %66 : vector<4x8x8xf32>
    %68 = math.exp %67 : vector<4x8x8xf32>
    %cst_20 = arith.constant dense<0.000000e+00> : vector<4x8xf32>
    %69 = vector.multi_reduction <add>, %68, %cst_20 [2] : vector<4x8x8xf32> to vector<4x8xf32>
    %70 = vector.shape_cast %69 : vector<4x8xf32> to vector<4x8x1xf32>
    %71 = tpu.reciprocal %70 {approx = true} : vector<4x8x1xf32> -> vector<4x8x1xf32>
    %72 = vector.broadcast %71 : vector<4x8x1xf32> to vector<4x8x8xf32>
    %73 = arith.mulf %68, %72 : vector<4x8x8xf32>
    "tpu.trace_start"() <{level = 10 : i32, message = "hqk,hkd->hqd"}> : () -> ()
    %cst_21 = arith.constant dense<0.000000e+00> : vector<4x8x16xf32>
    %74 = tpu.matmul %73, %62, %cst_21 {dimension_numbers = #tpu.dot_dimension_numbers<[2], [1], [1], [2], [0, 0, 0, 1, 1, 2], [0], [0]>} : vector<4x8x8xf32>, vector<4x8x16xf32>, vector<4x8x16xf32> -> vector<4x8x16xf32>
    "tpu.trace_stop"() : () -> ()
    %75 = tpu.transpose %74, [1, 0, 2] : vector<4x8x16xf32> -> vector<8x4x16xf32>
    %76 = vector.shape_cast %75 : vector<8x4x16xf32> to vector<8x64xf32>
    %77 = vector.shape_cast %53 : vector<8x64xf32> to vector<8x1x64xf32>
    %78 = vector.shape_cast %76 : vector<8x64xf32> to vector<8x1x64xf32>
    %79 = tpu.concatenate %77, %78 in 1 : vector<8x1x64xf32>, vector<8x1x64xf32> -> vector<8x2x64xf32>
    %80 = vector.shape_cast %79 : vector<8x2x64xf32> to vector<16x64xf32>
    %c0_22 = arith.constant 0 : index
    %c0_23 = arith.constant 0 : index
    %c0_24 = arith.constant 0 : index
    %81 = vector.load %arg4[%c0_22, %c0_23, %c0_24] : memref<2x64x64xf32, #tpu.memory_space<vmem>>, vector<1x64x64xf32>
    %82 = vector.shape_cast %81 : vector<1x64x64xf32> to vector<64x64xf32>
    %cst_25 = arith.constant dense<0.000000e+00> : vector<16x64xf32>
    %83 = tpu.matmul %80, %82, %cst_25 {dimension_numbers = #tpu.dot_dimension_numbers<[1], [0], [0], [1], [0, 0, 1, 1], [], []>} : vector<16x64xf32>, vector<64x64xf32>, vector<16x64xf32> -> vector<16x64xf32>
    %84 = vector.extract_strided_slice %15 {offsets = [0, 0], sizes = [1, 64], strides = [1, 1]} : vector<8x64xf32> to vector<1x64xf32>
    %85 = vector.shape_cast %84 : vector<1x64xf32> to vector<64xf32>
    %86 = vector.shape_cast %85 : vector<64xf32> to vector<1x64xf32>
    %87 = vector.broadcast %86 : vector<1x64xf32> to vector<16x64xf32>
    %88 = arith.addf %83, %87 : vector<16x64xf32>
    %89 = arith.addf %13, %88 : vector<16x64xf32>
    %90 = vector.extract_strided_slice %15 {offsets = [1, 0], sizes = [1, 64], strides = [1, 1]} : vector<8x64xf32> to vector<1x64xf32>
    %91 = vector.shape_cast %90 : vector<1x64xf32> to vector<64xf32>
    %92 = vector.extract_strided_slice %15 {offsets = [2, 0], sizes = [1, 64], strides = [1, 1]} : vector<8x64xf32> to vector<1x64xf32>
    %93 = vector.shape_cast %92 : vector<1x64xf32> to vector<64xf32>
    %cst_26 = arith.constant dense<0.000000e+00> : vector<16xf32>
    %94 = vector.multi_reduction <add>, %89, %cst_26 [1] : vector<16x64xf32> to vector<16xf32>
    %95 = vector.shape_cast %94 : vector<16xf32> to vector<16x1xf32>
    %cst_27 = arith.constant 6.400000e+01 : f32
    %96 = vector.broadcast %cst_27 : f32 to vector<16x1xf32>
    %97 = arith.divf %95, %96 : vector<16x1xf32>
    %98 = vector.broadcast %97 : vector<16x1xf32> to vector<16x64xf32>
    %99 = arith.subf %89, %98 : vector<16x64xf32>
    %100 = arith.mulf %99, %99 : vector<16x64xf32>
    %cst_28 = arith.constant dense<0.000000e+00> : vector<16xf32>
    %101 = vector.multi_reduction <add>, %100, %cst_28 [1] : vector<16x64xf32> to vector<16xf32>
    %102 = vector.shape_cast %101 : vector<16xf32> to vector<16x1xf32>
    %cst_29 = arith.constant 6.400000e+01 : f32
    %103 = vector.broadcast %cst_29 : f32 to vector<16x1xf32>
    %104 = arith.divf %102, %103 : vector<16x1xf32>
    %105 = vector.broadcast %97 : vector<16x1xf32> to vector<16x64xf32>
    %106 = arith.subf %89, %105 : vector<16x64xf32>
    %cst_30 = arith.constant 9.99999974E-6 : f32
    %107 = vector.broadcast %cst_30 : f32 to vector<16x1xf32>
    %108 = arith.addf %104, %107 : vector<16x1xf32>
    %109 = math.rsqrt %108 : vector<16x1xf32>
    %110 = vector.broadcast %109 : vector<16x1xf32> to vector<16x64xf32>
    %111 = arith.mulf %106, %110 : vector<16x64xf32>
    %112 = vector.shape_cast %91 : vector<64xf32> to vector<1x64xf32>
    %113 = vector.broadcast %112 : vector<1x64xf32> to vector<16x64xf32>
    %114 = arith.mulf %111, %113 : vector<16x64xf32>
    %115 = vector.shape_cast %93 : vector<64xf32> to vector<1x64xf32>
    %116 = vector.broadcast %115 : vector<1x64xf32> to vector<16x64xf32>
    %117 = arith.addf %114, %116 : vector<16x64xf32>
    %118 = arith.truncf %117 : vector<16x64xf32> to vector<16x64xbf16>
    %c0_31 = arith.constant 0 : index
    %c0_32 = arith.constant 0 : index
    %c0_33 = arith.constant 0 : index
    %119 = vector.load %arg6[%c0_31, %c0_32, %c0_33] : memref<2x64x2048xbf16, #tpu.memory_space<vmem>>, vector<1x64x2048xbf16>
    %120 = vector.shape_cast %119 : vector<1x64x2048xbf16> to vector<64x2048xbf16>
    %cst_34 = arith.constant dense<0.000000e+00> : vector<16x2048xf32>
    %121 = tpu.matmul %118, %120, %cst_34 {dimension_numbers = #tpu.dot_dimension_numbers<[1], [0], [0], [1], [0, 0, 1, 1], [], []>} : vector<16x64xbf16>, vector<64x2048xbf16>, vector<16x2048xf32> -> vector<16x2048xf32>
    %c0_35 = arith.constant 0 : index
    %c0_36 = arith.constant 0 : index
    %c0_37 = arith.constant 0 : index
    %122 = vector.load %arg7[%c0_35, %c0_36, %c0_37] : memref<2x1x2048xf32, #tpu.memory_space<vmem>>, vector<1x1x2048xf32>
    %123 = vector.shape_cast %122 : vector<1x1x2048xf32> to vector<1x2048xf32>
    %124 = vector.broadcast %123 : vector<1x2048xf32> to vector<16x2048xf32>
    %125 = arith.addf %121, %124 : vector<16x2048xf32>
    %cst_38 = arith.constant 0.000000e+00 : f32
    %126 = vector.broadcast %cst_38 : f32 to vector<16x2048xf32>
    %127 = arith.maximumf %125, %126 : vector<16x2048xf32>
    %128 = arith.truncf %127 : vector<16x2048xf32> to vector<16x2048xbf16>
    %c0_39 = arith.constant 0 : index
    %c0_40 = arith.constant 0 : index
    %c0_41 = arith.constant 0 : index
    %129 = vector.load %arg8[%c0_39, %c0_40, %c0_41] : memref<2x2048x64xbf16, #tpu.memory_space<vmem>>, vector<1x2048x64xbf16>
    %130 = vector.shape_cast %129 : vector<1x2048x64xbf16> to vector<2048x64xbf16>
    %cst_42 = arith.constant dense<0.000000e+00> : vector<16x64xf32>
    %131 = tpu.matmul %128, %130, %cst_42 {dimension_numbers = #tpu.dot_dimension_numbers<[1], [0], [0], [1], [0, 0, 1, 1], [], []>} : vector<16x2048xbf16>, vector<2048x64xbf16>, vector<16x64xf32> -> vector<16x64xf32>
    %132 = vector.extract_strided_slice %15 {offsets = [3, 0], sizes = [1, 64], strides = [1, 1]} : vector<8x64xf32> to vector<1x64xf32>
    %133 = vector.shape_cast %132 : vector<1x64xf32> to vector<64xf32>
    %134 = vector.shape_cast %133 : vector<64xf32> to vector<1x64xf32>
    %135 = vector.broadcast %134 : vector<1x64xf32> to vector<16x64xf32>
    %136 = arith.addf %131, %135 : vector<16x64xf32>
    %137 = arith.addf %117, %136 : vector<16x64xf32>
    %138 = vector.extract_strided_slice %15 {offsets = [4, 0], sizes = [1, 64], strides = [1, 1]} : vector<8x64xf32> to vector<1x64xf32>
    %139 = vector.shape_cast %138 : vector<1x64xf32> to vector<64xf32>
    %140 = vector.extract_strided_slice %15 {offsets = [5, 0], sizes = [1, 64], strides = [1, 1]} : vector<8x64xf32> to vector<1x64xf32>
    %141 = vector.shape_cast %140 : vector<1x64xf32> to vector<64xf32>
    %cst_43 = arith.constant dense<0.000000e+00> : vector<16xf32>
    %142 = vector.multi_reduction <add>, %137, %cst_43 [1] : vector<16x64xf32> to vector<16xf32>
    %143 = vector.shape_cast %142 : vector<16xf32> to vector<16x1xf32>
    %cst_44 = arith.constant 6.400000e+01 : f32
    %144 = vector.broadcast %cst_44 : f32 to vector<16x1xf32>
    %145 = arith.divf %143, %144 : vector<16x1xf32>
    %146 = vector.broadcast %145 : vector<16x1xf32> to vector<16x64xf32>
    %147 = arith.subf %137, %146 : vector<16x64xf32>
    %148 = arith.mulf %147, %147 : vector<16x64xf32>
    %cst_45 = arith.constant dense<0.000000e+00> : vector<16xf32>
    %149 = vector.multi_reduction <add>, %148, %cst_45 [1] : vector<16x64xf32> to vector<16xf32>
    %150 = vector.shape_cast %149 : vector<16xf32> to vector<16x1xf32>
    %cst_46 = arith.constant 6.400000e+01 : f32
    %151 = vector.broadcast %cst_46 : f32 to vector<16x1xf32>
    %152 = arith.divf %150, %151 : vector<16x1xf32>
    %153 = vector.broadcast %145 : vector<16x1xf32> to vector<16x64xf32>
    %154 = arith.subf %137, %153 : vector<16x64xf32>
    %cst_47 = arith.constant 9.99999974E-6 : f32
    %155 = vector.broadcast %cst_47 : f32 to vector<16x1xf32>
    %156 = arith.addf %152, %155 : vector<16x1xf32>
    %157 = math.rsqrt %156 : vector<16x1xf32>
    %158 = vector.broadcast %157 : vector<16x1xf32> to vector<16x64xf32>
    %159 = arith.mulf %154, %158 : vector<16x64xf32>
    %160 = vector.shape_cast %139 : vector<64xf32> to vector<1x64xf32>
    %161 = vector.broadcast %160 : vector<1x64xf32> to vector<16x64xf32>
    %162 = arith.mulf %159, %161 : vector<16x64xf32>
    %163 = vector.shape_cast %141 : vector<64xf32> to vector<1x64xf32>
    %164 = vector.broadcast %163 : vector<1x64xf32> to vector<16x64xf32>
    %165 = arith.addf %162, %164 : vector<16x64xf32>
    %c1 = arith.constant 1 : index
    %c0_48 = arith.constant 0 : index
    %c0_49 = arith.constant 0 : index
    %166 = vector.load %arg5[%c1, %c0_48, %c0_49] : memref<2x8x64xf32, #tpu.memory_space<vmem>>, vector<1x8x64xf32>
    %167 = vector.shape_cast %166 : vector<1x8x64xf32> to vector<8x64xf32>
    %c1_50 = arith.constant 1 : index
    %c0_51 = arith.constant 0 : index
    %c0_52 = arith.constant 0 : index
    %168 = vector.load %arg2[%c1_50, %c0_51, %c0_52] : memref<2x64x192xf32, #tpu.memory_space<vmem>>, vector<1x64x192xf32>
    %169 = vector.shape_cast %168 : vector<1x64x192xf32> to vector<64x192xf32>
    %cst_53 = arith.constant dense<0.000000e+00> : vector<16x192xf32>
    %170 = tpu.matmul %165, %169, %cst_53 {dimension_numbers = #tpu.dot_dimension_numbers<[1], [0], [0], [1], [0, 0, 1, 1], [], []>} : vector<16x64xf32>, vector<64x192xf32>, vector<16x192xf32> -> vector<16x192xf32>
    %c1_54 = arith.constant 1 : index
    %c0_55 = arith.constant 0 : index
    %c0_56 = arith.constant 0 : index
    %171 = vector.load %arg3[%c1_54, %c0_55, %c0_56] : memref<2x1x192xf32, #tpu.memory_space<vmem>>, vector<1x1x192xf32>
    %172 = vector.shape_cast %171 : vector<1x1x192xf32> to vector<1x192xf32>
    %173 = vector.broadcast %172 : vector<1x192xf32> to vector<16x192xf32>
    %174 = arith.addf %170, %173 : vector<16x192xf32>
    %175 = vector.extract_strided_slice %174 {offsets = [0, 0], sizes = [16, 64], strides = [1, 1]} : vector<16x192xf32> to vector<16x64xf32>
    %cst_57 = arith.constant 2.500000e-01 : f32
    %176 = vector.broadcast %cst_57 : f32 to vector<16x64xf32>
    %177 = arith.mulf %175, %176 : vector<16x64xf32>
    %178 = vector.shape_cast %177 : vector<16x64xf32> to vector<8x2x4x16xf32>
    %179 = vector.extract_strided_slice %174 {offsets = [0, 64], sizes = [16, 64], strides = [1, 1]} : vector<16x192xf32> to vector<16x64xf32>
    %180 = vector.shape_cast %179 : vector<16x64xf32> to vector<8x2x4x16xf32>
    %181 = vector.extract_strided_slice %174 {offsets = [0, 128], sizes = [16, 64], strides = [1, 1]} : vector<16x192xf32> to vector<16x64xf32>
    %182 = vector.shape_cast %181 : vector<16x64xf32> to vector<8x2x4x16xf32>
    %183 = vector.extract_strided_slice %178 {offsets = [0, 0, 0, 0], sizes = [8, 1, 4, 16], strides = [1, 1, 1, 1]} : vector<8x2x4x16xf32> to vector<8x1x4x16xf32>
    %184 = vector.shape_cast %183 : vector<8x1x4x16xf32> to vector<8x4x16xf32>
    %185 = tpu.transpose %184, [1, 0, 2] : vector<8x4x16xf32> -> vector<4x8x16xf32>
    %186 = vector.extract_strided_slice %180 {offsets = [0, 0, 0, 0], sizes = [8, 1, 4, 16], strides = [1, 1, 1, 1]} : vector<8x2x4x16xf32> to vector<8x1x4x16xf32>
    %187 = vector.shape_cast %186 : vector<8x1x4x16xf32> to vector<8x4x16xf32>
    %188 = tpu.transpose %187, [1, 0, 2] : vector<8x4x16xf32> -> vector<4x8x16xf32>
    %189 = vector.extract_strided_slice %182 {offsets = [0, 0, 0, 0], sizes = [8, 1, 4, 16], strides = [1, 1, 1, 1]} : vector<8x2x4x16xf32> to vector<8x1x4x16xf32>
    %190 = vector.shape_cast %189 : vector<8x1x4x16xf32> to vector<8x4x16xf32>
    %191 = tpu.transpose %190, [1, 0, 2] : vector<8x4x16xf32> -> vector<4x8x16xf32>
    "tpu.trace_start"() <{level = 10 : i32, message = "hqd,hkd->hqk"}> : () -> ()
    %cst_58 = arith.constant dense<0.000000e+00> : vector<4x8x8xf32>
    %192 = tpu.matmul %185, %188, %cst_58 {dimension_numbers = #tpu.dot_dimension_numbers<[2], [2], [1], [1], [0, 0, 0, 1, 1, 1], [0], [0]>} : vector<4x8x16xf32>, vector<4x8x16xf32>, vector<4x8x8xf32> -> vector<4x8x8xf32>
    "tpu.trace_stop"() : () -> ()
    %cst_59 = arith.constant dense<0xFF800000> : vector<4x8xf32>
    %193 = vector.multi_reduction <maximumf>, %192, %cst_59 [2] : vector<4x8x8xf32> to vector<4x8xf32>
    %194 = vector.shape_cast %193 : vector<4x8xf32> to vector<4x8x1xf32>
    %195 = vector.broadcast %194 : vector<4x8x1xf32> to vector<4x8x8xf32>
    %196 = arith.subf %192, %195 : vector<4x8x8xf32>
    %197 = math.exp %196 : vector<4x8x8xf32>
    %cst_60 = arith.constant dense<0.000000e+00> : vector<4x8xf32>
    %198 = vector.multi_reduction <add>, %197, %cst_60 [2] : vector<4x8x8xf32> to vector<4x8xf32>
    %199 = vector.shape_cast %198 : vector<4x8xf32> to vector<4x8x1xf32>
    %200 = tpu.reciprocal %199 {approx = true} : vector<4x8x1xf32> -> vector<4x8x1xf32>
    %201 = vector.broadcast %200 : vector<4x8x1xf32> to vector<4x8x8xf32>
    %202 = arith.mulf %197, %201 : vector<4x8x8xf32>
    "tpu.trace_start"() <{level = 10 : i32, message = "hqk,hkd->hqd"}> : () -> ()
    %cst_61 = arith.constant dense<0.000000e+00> : vector<4x8x16xf32>
    %203 = tpu.matmul %202, %191, %cst_61 {dimension_numbers = #tpu.dot_dimension_numbers<[2], [1], [1], [2], [0, 0, 0, 1, 1, 2], [0], [0]>} : vector<4x8x8xf32>, vector<4x8x16xf32>, vector<4x8x16xf32> -> vector<4x8x16xf32>
    "tpu.trace_stop"() : () -> ()
    %204 = tpu.transpose %203, [1, 0, 2] : vector<4x8x16xf32> -> vector<8x4x16xf32>
    %205 = vector.shape_cast %204 : vector<8x4x16xf32> to vector<8x64xf32>
    %206 = vector.extract_strided_slice %178 {offsets = [0, 1, 0, 0], sizes = [8, 1, 4, 16], strides = [1, 1, 1, 1]} : vector<8x2x4x16xf32> to vector<8x1x4x16xf32>
    %207 = vector.shape_cast %206 : vector<8x1x4x16xf32> to vector<8x4x16xf32>
    %208 = tpu.transpose %207, [1, 0, 2] : vector<8x4x16xf32> -> vector<4x8x16xf32>
    %209 = vector.extract_strided_slice %180 {offsets = [0, 1, 0, 0], sizes = [8, 1, 4, 16], strides = [1, 1, 1, 1]} : vector<8x2x4x16xf32> to vector<8x1x4x16xf32>
    %210 = vector.shape_cast %209 : vector<8x1x4x16xf32> to vector<8x4x16xf32>
    %211 = tpu.transpose %210, [1, 0, 2] : vector<8x4x16xf32> -> vector<4x8x16xf32>
    %212 = vector.extract_strided_slice %182 {offsets = [0, 1, 0, 0], sizes = [8, 1, 4, 16], strides = [1, 1, 1, 1]} : vector<8x2x4x16xf32> to vector<8x1x4x16xf32>
    %213 = vector.shape_cast %212 : vector<8x1x4x16xf32> to vector<8x4x16xf32>
    %214 = tpu.transpose %213, [1, 0, 2] : vector<8x4x16xf32> -> vector<4x8x16xf32>
    "tpu.trace_start"() <{level = 10 : i32, message = "hqd,hkd->hqk"}> : () -> ()
    %cst_62 = arith.constant dense<0.000000e+00> : vector<4x8x8xf32>
    %215 = tpu.matmul %208, %211, %cst_62 {dimension_numbers = #tpu.dot_dimension_numbers<[2], [2], [1], [1], [0, 0, 0, 1, 1, 1], [0], [0]>} : vector<4x8x16xf32>, vector<4x8x16xf32>, vector<4x8x8xf32> -> vector<4x8x8xf32>
    "tpu.trace_stop"() : () -> ()
    %cst_63 = arith.constant dense<0xFF800000> : vector<4x8xf32>
    %216 = vector.multi_reduction <maximumf>, %215, %cst_63 [2] : vector<4x8x8xf32> to vector<4x8xf32>
    %217 = vector.shape_cast %216 : vector<4x8xf32> to vector<4x8x1xf32>
    %218 = vector.broadcast %217 : vector<4x8x1xf32> to vector<4x8x8xf32>
    %219 = arith.subf %215, %218 : vector<4x8x8xf32>
    %220 = math.exp %219 : vector<4x8x8xf32>
    %cst_64 = arith.constant dense<0.000000e+00> : vector<4x8xf32>
    %221 = vector.multi_reduction <add>, %220, %cst_64 [2] : vector<4x8x8xf32> to vector<4x8xf32>
    %222 = vector.shape_cast %221 : vector<4x8xf32> to vector<4x8x1xf32>
    %223 = tpu.reciprocal %222 {approx = true} : vector<4x8x1xf32> -> vector<4x8x1xf32>
    %224 = vector.broadcast %223 : vector<4x8x1xf32> to vector<4x8x8xf32>
    %225 = arith.mulf %220, %224 : vector<4x8x8xf32>
    "tpu.trace_start"() <{level = 10 : i32, message = "hqk,hkd->hqd"}> : () -> ()
    %cst_65 = arith.constant dense<0.000000e+00> : vector<4x8x16xf32>
    %226 = tpu.matmul %225, %214, %cst_65 {dimension_numbers = #tpu.dot_dimension_numbers<[2], [1], [1], [2], [0, 0, 0, 1, 1, 2], [0], [0]>} : vector<4x8x8xf32>, vector<4x8x16xf32>, vector<4x8x16xf32> -> vector<4x8x16xf32>
    "tpu.trace_stop"() : () -> ()
    %227 = tpu.transpose %226, [1, 0, 2] : vector<4x8x16xf32> -> vector<8x4x16xf32>
    %228 = vector.shape_cast %227 : vector<8x4x16xf32> to vector<8x64xf32>
    %229 = vector.shape_cast %205 : vector<8x64xf32> to vector<8x1x64xf32>
    %230 = vector.shape_cast %228 : vector<8x64xf32> to vector<8x1x64xf32>
    %231 = tpu.concatenate %229, %230 in 1 : vector<8x1x64xf32>, vector<8x1x64xf32> -> vector<8x2x64xf32>
    %232 = vector.shape_cast %231 : vector<8x2x64xf32> to vector<16x64xf32>
    %c1_66 = arith.constant 1 : index
    %c0_67 = arith.constant 0 : index
    %c0_68 = arith.constant 0 : index
    %233 = vector.load %arg4[%c1_66, %c0_67, %c0_68] : memref<2x64x64xf32, #tpu.memory_space<vmem>>, vector<1x64x64xf32>
    %234 = vector.shape_cast %233 : vector<1x64x64xf32> to vector<64x64xf32>
    %cst_69 = arith.constant dense<0.000000e+00> : vector<16x64xf32>
    %235 = tpu.matmul %232, %234, %cst_69 {dimension_numbers = #tpu.dot_dimension_numbers<[1], [0], [0], [1], [0, 0, 1, 1], [], []>} : vector<16x64xf32>, vector<64x64xf32>, vector<16x64xf32> -> vector<16x64xf32>
    %236 = vector.extract_strided_slice %167 {offsets = [0, 0], sizes = [1, 64], strides = [1, 1]} : vector<8x64xf32> to vector<1x64xf32>
    %237 = vector.shape_cast %236 : vector<1x64xf32> to vector<64xf32>
    %238 = vector.shape_cast %237 : vector<64xf32> to vector<1x64xf32>
    %239 = vector.broadcast %238 : vector<1x64xf32> to vector<16x64xf32>
    %240 = arith.addf %235, %239 : vector<16x64xf32>
    %241 = arith.addf %165, %240 : vector<16x64xf32>
    %242 = vector.extract_strided_slice %167 {offsets = [1, 0], sizes = [1, 64], strides = [1, 1]} : vector<8x64xf32> to vector<1x64xf32>
    %243 = vector.shape_cast %242 : vector<1x64xf32> to vector<64xf32>
    %244 = vector.extract_strided_slice %167 {offsets = [2, 0], sizes = [1, 64], strides = [1, 1]} : vector<8x64xf32> to vector<1x64xf32>
    %245 = vector.shape_cast %244 : vector<1x64xf32> to vector<64xf32>
    %cst_70 = arith.constant dense<0.000000e+00> : vector<16xf32>
    %246 = vector.multi_reduction <add>, %241, %cst_70 [1] : vector<16x64xf32> to vector<16xf32>
    %247 = vector.shape_cast %246 : vector<16xf32> to vector<16x1xf32>
    %cst_71 = arith.constant 6.400000e+01 : f32
    %248 = vector.broadcast %cst_71 : f32 to vector<16x1xf32>
    %249 = arith.divf %247, %248 : vector<16x1xf32>
    %250 = vector.broadcast %249 : vector<16x1xf32> to vector<16x64xf32>
    %251 = arith.subf %241, %250 : vector<16x64xf32>
    %252 = arith.mulf %251, %251 : vector<16x64xf32>
    %cst_72 = arith.constant dense<0.000000e+00> : vector<16xf32>
    %253 = vector.multi_reduction <add>, %252, %cst_72 [1] : vector<16x64xf32> to vector<16xf32>
    %254 = vector.shape_cast %253 : vector<16xf32> to vector<16x1xf32>
    %cst_73 = arith.constant 6.400000e+01 : f32
    %255 = vector.broadcast %cst_73 : f32 to vector<16x1xf32>
    %256 = arith.divf %254, %255 : vector<16x1xf32>
    %257 = vector.broadcast %249 : vector<16x1xf32> to vector<16x64xf32>
    %258 = arith.subf %241, %257 : vector<16x64xf32>
    %cst_74 = arith.constant 9.99999974E-6 : f32
    %259 = vector.broadcast %cst_74 : f32 to vector<16x1xf32>
    %260 = arith.addf %256, %259 : vector<16x1xf32>
    %261 = math.rsqrt %260 : vector<16x1xf32>
    %262 = vector.broadcast %261 : vector<16x1xf32> to vector<16x64xf32>
    %263 = arith.mulf %258, %262 : vector<16x64xf32>
    %264 = vector.shape_cast %243 : vector<64xf32> to vector<1x64xf32>
    %265 = vector.broadcast %264 : vector<1x64xf32> to vector<16x64xf32>
    %266 = arith.mulf %263, %265 : vector<16x64xf32>
    %267 = vector.shape_cast %245 : vector<64xf32> to vector<1x64xf32>
    %268 = vector.broadcast %267 : vector<1x64xf32> to vector<16x64xf32>
    %269 = arith.addf %266, %268 : vector<16x64xf32>
    %270 = arith.truncf %269 : vector<16x64xf32> to vector<16x64xbf16>
    %c1_75 = arith.constant 1 : index
    %c0_76 = arith.constant 0 : index
    %c0_77 = arith.constant 0 : index
    %271 = vector.load %arg6[%c1_75, %c0_76, %c0_77] : memref<2x64x2048xbf16, #tpu.memory_space<vmem>>, vector<1x64x2048xbf16>
    %272 = vector.shape_cast %271 : vector<1x64x2048xbf16> to vector<64x2048xbf16>
    %cst_78 = arith.constant dense<0.000000e+00> : vector<16x2048xf32>
    %273 = tpu.matmul %270, %272, %cst_78 {dimension_numbers = #tpu.dot_dimension_numbers<[1], [0], [0], [1], [0, 0, 1, 1], [], []>} : vector<16x64xbf16>, vector<64x2048xbf16>, vector<16x2048xf32> -> vector<16x2048xf32>
    %c1_79 = arith.constant 1 : index
    %c0_80 = arith.constant 0 : index
    %c0_81 = arith.constant 0 : index
    %274 = vector.load %arg7[%c1_79, %c0_80, %c0_81] : memref<2x1x2048xf32, #tpu.memory_space<vmem>>, vector<1x1x2048xf32>
    %275 = vector.shape_cast %274 : vector<1x1x2048xf32> to vector<1x2048xf32>
    %276 = vector.broadcast %275 : vector<1x2048xf32> to vector<16x2048xf32>
    %277 = arith.addf %273, %276 : vector<16x2048xf32>
    %cst_82 = arith.constant 0.000000e+00 : f32
    %278 = vector.broadcast %cst_82 : f32 to vector<16x2048xf32>
    %279 = arith.maximumf %277, %278 : vector<16x2048xf32>
    %280 = arith.truncf %279 : vector<16x2048xf32> to vector<16x2048xbf16>
    %c1_83 = arith.constant 1 : index
    %c0_84 = arith.constant 0 : index
    %c0_85 = arith.constant 0 : index
    %281 = vector.load %arg8[%c1_83, %c0_84, %c0_85] : memref<2x2048x64xbf16, #tpu.memory_space<vmem>>, vector<1x2048x64xbf16>
    %282 = vector.shape_cast %281 : vector<1x2048x64xbf16> to vector<2048x64xbf16>
    %cst_86 = arith.constant dense<0.000000e+00> : vector<16x64xf32>
    %283 = tpu.matmul %280, %282, %cst_86 {dimension_numbers = #tpu.dot_dimension_numbers<[1], [0], [0], [1], [0, 0, 1, 1], [], []>} : vector<16x2048xbf16>, vector<2048x64xbf16>, vector<16x64xf32> -> vector<16x64xf32>
    %284 = vector.extract_strided_slice %167 {offsets = [3, 0], sizes = [1, 64], strides = [1, 1]} : vector<8x64xf32> to vector<1x64xf32>
    %285 = vector.shape_cast %284 : vector<1x64xf32> to vector<64xf32>
    %286 = vector.shape_cast %285 : vector<64xf32> to vector<1x64xf32>
    %287 = vector.broadcast %286 : vector<1x64xf32> to vector<16x64xf32>
    %288 = arith.addf %283, %287 : vector<16x64xf32>
    %289 = arith.addf %269, %288 : vector<16x64xf32>
    %290 = vector.extract_strided_slice %167 {offsets = [4, 0], sizes = [1, 64], strides = [1, 1]} : vector<8x64xf32> to vector<1x64xf32>
    %291 = vector.shape_cast %290 : vector<1x64xf32> to vector<64xf32>
    %292 = vector.extract_strided_slice %167 {offsets = [5, 0], sizes = [1, 64], strides = [1, 1]} : vector<8x64xf32> to vector<1x64xf32>
    %293 = vector.shape_cast %292 : vector<1x64xf32> to vector<64xf32>
    %cst_87 = arith.constant dense<0.000000e+00> : vector<16xf32>
    %294 = vector.multi_reduction <add>, %289, %cst_87 [1] : vector<16x64xf32> to vector<16xf32>
    %295 = vector.shape_cast %294 : vector<16xf32> to vector<16x1xf32>
    %cst_88 = arith.constant 6.400000e+01 : f32
    %296 = vector.broadcast %cst_88 : f32 to vector<16x1xf32>
    %297 = arith.divf %295, %296 : vector<16x1xf32>
    %298 = vector.broadcast %297 : vector<16x1xf32> to vector<16x64xf32>
    %299 = arith.subf %289, %298 : vector<16x64xf32>
    %300 = arith.mulf %299, %299 : vector<16x64xf32>
    %cst_89 = arith.constant dense<0.000000e+00> : vector<16xf32>
    %301 = vector.multi_reduction <add>, %300, %cst_89 [1] : vector<16x64xf32> to vector<16xf32>
    %302 = vector.shape_cast %301 : vector<16xf32> to vector<16x1xf32>
    %cst_90 = arith.constant 6.400000e+01 : f32
    %303 = vector.broadcast %cst_90 : f32 to vector<16x1xf32>
    %304 = arith.divf %302, %303 : vector<16x1xf32>
    %305 = vector.broadcast %297 : vector<16x1xf32> to vector<16x64xf32>
    %306 = arith.subf %289, %305 : vector<16x64xf32>
    %cst_91 = arith.constant 9.99999974E-6 : f32
    %307 = vector.broadcast %cst_91 : f32 to vector<16x1xf32>
    %308 = arith.addf %304, %307 : vector<16x1xf32>
    %309 = math.rsqrt %308 : vector<16x1xf32>
    %310 = vector.broadcast %309 : vector<16x1xf32> to vector<16x64xf32>
    %311 = arith.mulf %306, %310 : vector<16x64xf32>
    %312 = vector.shape_cast %291 : vector<64xf32> to vector<1x64xf32>
    %313 = vector.broadcast %312 : vector<1x64xf32> to vector<16x64xf32>
    %314 = arith.mulf %311, %313 : vector<16x64xf32>
    %315 = vector.shape_cast %293 : vector<64xf32> to vector<1x64xf32>
    %316 = vector.broadcast %315 : vector<1x64xf32> to vector<16x64xf32>
    %317 = arith.addf %314, %316 : vector<16x64xf32>
    %318 = vector.extract_strided_slice %317 {offsets = [14, 0], sizes = [2, 64], strides = [1, 1]} : vector<16x64xf32> to vector<2x64xf32>
    %319 = vector.extract_strided_slice %0 {offsets = [2, 0], sizes = [1, 64], strides = [1, 1]} : vector<4x64xf32> to vector<1x64xf32>
    %320 = vector.shape_cast %319 : vector<1x64xf32> to vector<64xf32>
    %321 = vector.shape_cast %320 : vector<64xf32> to vector<1x64xf32>
    %322 = vector.broadcast %321 : vector<1x64xf32> to vector<2x64xf32>
    %323 = arith.mulf %318, %322 : vector<2x64xf32>
    %324 = vector.extract_strided_slice %0 {offsets = [3, 0], sizes = [1, 64], strides = [1, 1]} : vector<4x64xf32> to vector<1x64xf32>
    %325 = vector.shape_cast %324 : vector<1x64xf32> to vector<64xf32>
    %326 = vector.shape_cast %325 : vector<64xf32> to vector<1x64xf32>
    %327 = vector.broadcast %326 : vector<1x64xf32> to vector<2x64xf32>
    %328 = arith.addf %323, %327 : vector<2x64xf32>
    %cst_92 = arith.constant dense<0.000000e+00> : vector<2xf32>
    %329 = vector.multi_reduction <add>, %328, %cst_92 [1] : vector<2x64xf32> to vector<2xf32>
    %330 = vector.shape_cast %329 : vector<2xf32> to vector<2x1xf32>
    %c0_93 = arith.constant 0 : index
    %c0_94 = arith.constant 0 : index
    %331 = vector.load %arg9[%c0_93, %c0_94] : memref<2x1xf32, #tpu.memory_space<vmem>>, vector<2x1xf32>
    tpu.vector_store %arg9[%c0_93, %c0_94], %330 {strides = array<i32>} : memref<2x1xf32, #tpu.memory_space<vmem>>, vector<2x1xf32>,
    return
  }
}

</mosaic_0001>

<llo_original>
// kernel: transformer_time_series.1
$region0: #{transformer_time_series.1}
  #allocation0 [shape = 'u32[]', space=smem, size = 0x4, offset = 0x4, fixed_abs, tag = 'smem constant byte address 0x4 - core index']
  #allocation1 [shape = 'u32[144,128]{1,0:T(1,128)}', space=vmem, size = 0x12000, scoped, tag = 'internal scratch']
  %s0 = inlined_call_operand.vmem [shape: f32[8,2,1], index: 0, kind: input, shape index: {}]
  %s1 = inlined_call_operand.vmem [shape: f32[4,64], index: 1, kind: input, shape index: {}]
  %s2 = inlined_call_operand.vmem [shape: f32[2,64,192], index: 2, kind: input, shape index: {}]
  %s3 = inlined_call_operand.vmem [shape: f32[2,1,192], index: 3, kind: input, shape index: {}]
  %s4 = inlined_call_operand.vmem [shape: f32[2,64,64], index: 4, kind: input, shape index: {}]
  %s5 = inlined_call_operand.vmem [shape: f32[2,8,64], index: 5, kind: input, shape index: {}]
  %s6 = inlined_call_operand.vmem [shape: bf16[2,64,2048], index: 6, kind: input, shape index: {}]
  %s7 = inlined_call_operand.vmem [shape: f32[2,1,2048], index: 7, kind: input, shape index: {}]
  %s8 = inlined_call_operand.vmem [shape: bf16[2,2048,64], index: 8, kind: input, shape index: {}]
  %s9 = inlined_call_operand.vmem [shape: f32[2,1], index: 9, kind: output, shape index: {}]
  %s10 = sld [smem:[#allocation0]]
  $region46: #{transformer_time_series.1} parent=0
    _
  %s12 = ssub.s32 1, %s10
  %s13 = scalar_select 0, %s12, %s10
  // Predicated region
  $region2: #{transformer_time_series.1} parent=0 // pred_check
    _
  $region3: #{transformer_time_series.1} parent=0 // pred_check_branch
    %15 = sbr.rel (0) target = $region5
  $region4: #{transformer_time_series.1} parent=0 // pred_region
    _
  $region5: #{transformer_time_series.1} parent=0 // pred_fallthru
    _
  // Predicated region
  $region6: #{transformer_time_series.1} parent=0 // pred_check
    _
  $region7: #{transformer_time_series.1} parent=0 // pred_check_branch
    %17 = sbr.rel (0) target = $region9
  $region8: #{transformer_time_series.1} parent=0 // pred_region
    _
  $region9: #{transformer_time_series.1} parent=0 // pred_fallthru
    _
  // Predicated region
  $region10: #{transformer_time_series.1} parent=0 // pred_check
    _
  $region11: #{transformer_time_series.1} parent=0 // pred_check_branch
    %19 = sbr.rel (0) target = $region13
  $region12: #{transformer_time_series.1} parent=0 // pred_region
    _
  $region13: #{transformer_time_series.1} parent=0 // pred_fallthru
    _
  // Predicated region
  $region14: #{transformer_time_series.1} parent=0 // pred_check
    _
  $region15: #{transformer_time_series.1} parent=0 // pred_check_branch
    %21 = sbr.rel (0) target = $region17
  $region16: #{transformer_time_series.1} parent=0 // pred_region
    _
  $region17: #{transformer_time_series.1} parent=0 // pred_fallthru
    _
  // Predicated region
  $region18: #{transformer_time_series.1} parent=0 // pred_check
    _
  $region19: #{transformer_time_series.1} parent=0 // pred_check_branch
    %23 = sbr.rel (0) target = $region21
  $region20: #{transformer_time_series.1} parent=0 // pred_region
    _
  $region21: #{transformer_time_series.1} parent=0 // pred_fallthru
    _
  // Predicated region
  $region22: #{transformer_time_series.1} parent=0 // pred_check
    _
  $region23: #{transformer_time_series.1} parent=0 // pred_check_branch
    %25 = sbr.rel (0) target = $region25
  $region24: #{transformer_time_series.1} parent=0 // pred_region
    _
  $region25: #{transformer_time_series.1} parent=0 // pred_fallthru
    _
  // Predicated region
  $region26: #{transformer_time_series.1} parent=0 // pred_check
    _
  $region27: #{transformer_time_series.1} parent=0 // pred_check_branch
    %27 = sbr.rel (0) target = $region29
  $region28: #{transformer_time_series.1} parent=0 // pred_region
    _
  $region29: #{transformer_time_series.1} parent=0 // pred_fallthru
    _
  // Predicated region
  $region30: #{transformer_time_series.1} parent=0 // pred_check
    _
  $region31: #{transformer_time_series.1} parent=0 // pred_check_branch
    %29 = sbr.rel (0) target = $region33
  $region32: #{transformer_time_series.1} parent=0 // pred_region
    _
  $region33: #{transformer_time_series.1} parent=0 // pred_fallthru
    _
  // Predicated region
  $region34: #{transformer_time_series.1} parent=0 // pred_check
    _
  $region35: #{transformer_time_series.1} parent=0 // pred_check_branch
    %31 = sbr.rel (0) target = $region37
  $region36: #{transformer_time_series.1} parent=0 // pred_region
    _
  $region37: #{transformer_time_series.1} parent=0 // pred_fallthru
    _
  %v33 = vld [vmem:[%s1] sm:$0xf]
  %v34 = vld [vmem:[%s0] sm:$0x3]
  %v35 = vld [vmem:[%s0 + $0x2] sm:$0x3]
  %v36 = vld [vmem:[%s0 + $0x4] sm:$0x3]
  %v37 = vld [vmem:[%s0 + $0x6] sm:$0x3]
  %v38 = vld [vmem:[%s0 + $0x8] sm:$0x3]
  %v39 = vld [vmem:[%s0 + $0xa] sm:$0x3]
  %v40 = vld [vmem:[%s0 + $0xc] sm:$0x3]
  %v41 = vld [vmem:[%s0 + $0xe] sm:$0x3]
  %43 = vset.pattern.permute.xlu0 0
  %44 = vperm.xlu0 %43, %v34
  %v45 = vpop.permute.xlu0 %44
  %48 = vset.pattern.permute.xlu0 0
  %49 = vperm.xlu0 %48, %v35
  %v50 = vpop.permute.xlu0 %49
  %53 = vset.pattern.permute.xlu0 0
  %54 = vperm.xlu0 %53, %v36
  %v55 = vpop.permute.xlu0 %54
  %58 = vset.pattern.permute.xlu0 0
  %59 = vperm.xlu0 %58, %v37
  %v60 = vpop.permute.xlu0 %59
  %63 = vset.pattern.permute.xlu0 0
  %64 = vperm.xlu0 %63, %v38
  %v65 = vpop.permute.xlu0 %64
  %68 = vset.pattern.permute.xlu0 0
  %69 = vperm.xlu0 %68, %v39
  %v70 = vpop.permute.xlu0 %69
  %73 = vset.pattern.permute.xlu0 0
  %74 = vperm.xlu0 %73, %v40
  %v75 = vpop.permute.xlu0 %74
  %78 = vset.pattern.permute.xlu0 0
  %79 = vperm.xlu0 %78, %v41
  %v80 = vpop.permute.xlu0 %79
  %v82 = vlaneseq
  %v83 = vshrl.u32 %v82, 7
  %v84 = vsub.s32 0, %v83
  %v85 = vrot.slane %v33, %v84
  %v86 = vmul.f32 %v45, %v85
  %v87 = vmul.f32 %v50, %v85
  %v88 = vmul.f32 %v55, %v85
  %v89 = vmul.f32 %v60, %v85
  %v90 = vmul.f32 %v65, %v85
  %v91 = vmul.f32 %v70, %v85
  %v92 = vmul.f32 %v75, %v85
  %v93 = vmul.f32 %v80, %v85
  %v94 = vlaneseq
  %v95 = vshrl.u32 %v94, 7
  %v96 = vsub.s32 1, %v95
  %v97 = vrot.slane %v33, %v96
  %v98 = vadd.f32 %v86, %v97
  %v99 = vadd.f32 %v87, %v97
  %v100 = vadd.f32 %v88, %v97
  %v101 = vadd.f32 %v89, %v97
  %v102 = vadd.f32 %v90, %v97
  %v103 = vadd.f32 %v91, %v97
  %v104 = vadd.f32 %v92, %v97
  %v105 = vadd.f32 %v93, %v97
  %v106 = vld [vmem:[%s5] sm:$0xff]
  %v107 = vld [vmem:[%s2] sm:$0xff]
  %v108 = vld [vmem:[%s2 + $0x8] sm:$0xff]
  %v109 = vld [vmem:[%s2 + $0x10] sm:$0xff]
  %v110 = vld [vmem:[%s2 + $0x18] sm:$0xff]
  %v111 = vld [vmem:[%s2 + $0x20] sm:$0xff]
  %v112 = vld [vmem:[%s2 + $0x28] sm:$0xff]
  %v113 = vld [vmem:[%s2 + $0x30] sm:$0xff]
  %v114 = vld [vmem:[%s2 + $0x38] sm:$0xff]
  %v115 = vld [vmem:[%s2 + $0x40] sm:$0xff]
  %v116 = vld [vmem:[%s2 + $0x48] sm:$0xff]
  %v117 = vld [vmem:[%s2 + $0x50] sm:$0xff]
  %v118 = vld [vmem:[%s2 + $0x58] sm:$0xff]
  %v119 = vld [vmem:[%s2 + $0x60] sm:$0xff]
  %v120 = vld [vmem:[%s2 + $0x68] sm:$0xff]
  %v121 = vld [vmem:[%s2 + $0x70] sm:$0xff]
  %v122 = vld [vmem:[%s2 + $0x78] sm:$0xff]
  %v123 = vld [vmem:[%s3] sm:$0x3]
  %v125 = vlaneseq
  %v126 = vshrl.u32 %v125, 7
  %v127 = vsub.s32 0, %v126
  %v128 = vrot.slane %v123, %v127
  %v129 = vlaneseq
  %v130 = vshrl.u32 %v129, 7
  %v131 = vsub.s32 1, %v130
  %v132 = vrot.slane %v123, %v131
  %v143 = vcombine.low %v98, %v99
  %v144 = vcombine.low %v100, %v101
  %v146 = vunpack.c.l.s4 1983009808
  %v147 = vunpack.c.0.s8 %v146
  %v148 = vlaneseq
  %v149 = vshrl.u32 %v148, 7
  %v150 = vsub.s32 %v147, %v149
  %v151 = vrot.slane %v143, %v150
  %v153 = vunpack.c.l.s4 1983009808
  %v154 = vunpack.c.0.s8 %v153
  %v155 = vlaneseq
  %v156 = vshrl.u32 %v155, 7
  %v157 = vsub.s32 %v154, %v156
  %v158 = vrot.slane %v144, %v157
  %v159 = vcombine.low %v151, %v158
  %v160 = vcombine.low %v102, %v103
  %v161 = vcombine.low %v104, %v105
  %v163 = vunpack.c.l.s4 1983009808
  %v164 = vunpack.c.0.s8 %v163
  %v165 = vlaneseq
  %v166 = vshrl.u32 %v165, 7
  %v167 = vsub.s32 %v164, %v166
  %v168 = vrot.slane %v160, %v167
  %v170 = vunpack.c.l.s4 1983009808
  %v171 = vunpack.c.0.s8 %v170
  %v172 = vlaneseq
  %v173 = vshrl.u32 %v172, 7
  %v174 = vsub.s32 %v171, %v173
  %v175 = vrot.slane %v161, %v174
  %v176 = vcombine.low %v168, %v175
  %vm177 = vcmask 523264
  %v178 = vsel %vm177, %v159, 0
  %v180 = vsel %vm177, %v176, 0
  %182 = vmatprep.subr.mxu0 %v108
  %183 = vmatpush1.msra.mxu0 %v107
  %184 = vmatprep.subr.mxu0 %v110
  %185 = vmatpush1.msra.mxu0 %v109
  %186 = vmatprep.subr.mxu0 %v112
  %187 = vmatpush1.msra.mxu0 %v111
  %188 = vmatprep.subr.mxu0 %v114
  %189 = vmatpush1.msra.mxu0 %v113
  %190 = vmatprep.subr.mxu0 %v116
  %191 = vmatpush1.msra.mxu0 %v115
  %192 = vmatprep.subr.mxu0 %v118
  %193 = vmatpush1.msra.mxu0 %v117
  %194 = vmatprep.subr.mxu0 %v120
  %195 = vmatpush1.msra.mxu0 %v119
  %196 = vmatprep.subr.mxu0 %v122
  %197 = vmatpush1.msra.mxu0 %v121
  %198 = vmatprep.subr.mxu0 0.0
  %199 = vmatpush1.msra.mxu0 0.0
  %200 = vmatprep.subr.mxu0 0.0
  %201 = vmatpush1.msra.mxu0 0.0
  %202 = vmatprep.subr.mxu0 0.0
  %203 = vmatpush1.msra.mxu0 0.0
  %204 = vmatprep.subr.mxu0 0.0
  %205 = vmatpush1.msra.mxu0 0.0
  %206 = vmatprep.subr.mxu0 0.0
  %207 = vmatpush1.msra.mxu0 0.0
  %208 = vmatprep.subr.mxu0 0.0
  %209 = vmatpush1.msra.mxu0 0.0
  %210 = vmatprep.subr.mxu0 0.0
  %211 = vmatpush1.msra.mxu0 0.0
  %212 = vmatprep.subr.mxu0 0.0
  %213 = vmatpush1.msra.mxu0 0.0
  %214 = vmatprep.subr.mxu0 0.0
  %215 = vmatpush1.msra.mxu0 0.0
  %216 = vmatprep.subr.mxu0 0.0
  %217 = vmatpush1.msra.mxu0 0.0
  %218 = vmatprep.subr.mxu0 0.0
  %219 = vmatpush1.msra.mxu0 0.0
  %220 = vmatprep.subr.mxu0 0.0
  %221 = vmatpush1.msra.mxu0 0.0
  %222 = vmatprep.subr.mxu0 0.0
  %223 = vmatpush1.msra.mxu0 0.0
  %224 = vmatprep.subr.mxu0 0.0
  %225 = vmatpush1.msra.mxu0 0.0
  %226 = vmatprep.subr.mxu0 0.0
  %227 = vmatpush1.msra.mxu0 0.0
  %228 = vmatprep.subr.mxu0 0.0
  %229 = vmatpush1.msra.mxu0 0.0
  %230 = vmatprep.subr.mxu0 0.0
  %231 = vmatpush1.msra.mxu0 0.0
  %232 = vmatprep.subr.mxu0 0.0
  %233 = vmatpush1.msra.mxu0 0.0
  %234 = vmatprep.subr.mxu0 0.0
  %235 = vmatpush1.msra.mxu0 0.0
  %236 = vmatprep.subr.mxu0 0.0
  %237 = vmatpush1.msra.mxu0 0.0
  %238 = vmatprep.subr.mxu0 0.0
  %239 = vmatpush1.msra.mxu0 0.0
  %240 = vmatprep.subr.mxu0 0.0
  %241 = vmatpush1.msra.mxu0 0.0
  %242 = vmatprep.subr.mxu0 0.0
  %243 = vmatpush1.msra.mxu0 0.0
  %244 = vmatprep.subr.mxu0 0.0
  %245 = vmatpush1.msra.mxu0 0.0
  %246 = vmatprep.mubr.f32.mxu0 0.0
  %247 = vmatmul.mubr.f32.gmra.mrb[0].mxu0 %v178
  %v248 = vpop.f32.mrb[0].mxu0
  %v249 = vadd.f32 %v128, %v248
  %v250 = vpop.f32.mrb[0].mxu0
  %v251 = vadd.f32 %v132, %v250
  %252 = vmatprep.mubr.f32.mxu0 0.0
  %253 = vmatmul.mubr.f32.gmra.mrb[0].mxu0 %v180
  %v254 = vpop.f32.mrb[0].mxu0
  %v255 = vadd.f32 %v128, %v254
  %v256 = vpop.f32.mrb[0].mxu0
  %v257 = vadd.f32 %v132, %v256
  %258 = vdwg.mxu0
  %v259 = vmul.f32 %v249, 0.25
  %v260 = vmul.f32 %v255, 0.25
  %263 = vrot.lane.b32.xlu0 %v259, 112
  %v264 = vpop.permute.xlu0 %263
  %265 = vrot.lane.b32.xlu0 %v260, 112
  %v266 = vpop.permute.xlu0 %265
  %269 = vrot.lane.b32.xlu0 %v259, 96
  %v270 = vpop.permute.xlu0 %269
  %271 = vrot.lane.b32.xlu0 %v260, 96
  %v272 = vpop.permute.xlu0 %271
  %275 = vrot.lane.b32.xlu0 %v259, 80
  %v276 = vpop.permute.xlu0 %275
  %277 = vrot.lane.b32.xlu0 %v260, 80
  %v278 = vpop.permute.xlu0 %277
  %v281 = vcombine.low %v259, %v270
  %v282 = vcombine.high %v259, %v270
  %v284 = vunpack.c.l.s4 1983009808
  %v285 = vunpack.c.0.s8 %v284
  %v286 = vlaneseq
  %v287 = vshrl.u32 %v286, 7
  %v288 = vsub.s32 %v285, %v287
  %v289 = vrot.slane %v281, %v288
  %v291 = vunpack.c.l.s4 1983009808
  %v292 = vunpack.c.0.s8 %v291
  %v293 = vlaneseq
  %v294 = vshrl.u32 %v293, 7
  %v295 = vsub.s32 %v292, %v294
  %v296 = vrot.slane %v282, %v295
  %v297 = vcombine.low %v264, %v276
  %v298 = vcombine.high %v264, %v276
  %v300 = vunpack.c.l.s4 1983009808
  %v301 = vunpack.c.0.s8 %v300
  %v302 = vlaneseq
  %v303 = vshrl.u32 %v302, 7
  %v304 = vsub.s32 %v301, %v303
  %v305 = vrot.slane %v297, %v304
  %v307 = vunpack.c.l.s4 1983009808
  %v308 = vunpack.c.0.s8 %v307
  %v309 = vlaneseq
  %v310 = vshrl.u32 %v309, 7
  %v311 = vsub.s32 %v308, %v310
  %v312 = vrot.slane %v298, %v311
  %v313 = vcombine.low %v289, %v305
  %v314 = vcombine.high %v289, %v305
  %v316 = vunpack.c.l.s4 1934713408
  %v317 = vunpack.c.0.s8 %v316
  %v318 = vlaneseq
  %v319 = vshrl.u32 %v318, 7
  %v320 = vsub.s32 %v317, %v319
  %v321 = vrot.slane %v313, %v320
  %v323 = vunpack.c.l.s4 1934713408
  %v324 = vunpack.c.0.s8 %v323
  %v325 = vlaneseq
  %v326 = vshrl.u32 %v325, 7
  %v327 = vsub.s32 %v324, %v326
  %v328 = vrot.slane %v314, %v327
  %v329 = vcombine.low %v296, %v312
  %v330 = vcombine.high %v296, %v312
  %v332 = vunpack.c.l.s4 1934713408
  %v333 = vunpack.c.0.s8 %v332
  %v334 = vlaneseq
  %v335 = vshrl.u32 %v334, 7
  %v336 = vsub.s32 %v333, %v335
  %v337 = vrot.slane %v329, %v336
  %v339 = vunpack.c.l.s4 1934713408
  %v340 = vunpack.c.0.s8 %v339
  %v341 = vlaneseq
  %v342 = vshrl.u32 %v341, 7
  %v343 = vsub.s32 %v340, %v342
  %v344 = vrot.slane %v330, %v343
  %v345 = vcombine.high %v321, 0.0
  %v346 = vcombine.high %v328, 0.0
  %v347 = vcombine.high %v337, 0.0
  %v348 = vcombine.high %v344, 0.0
  %v349 = vcombine.low %v260, %v272
  %v350 = vcombine.high %v260, %v272
  %v352 = vunpack.c.l.s4 1983009808
  %v353 = vunpack.c.0.s8 %v352
  %v354 = vlaneseq
  %v355 = vshrl.u32 %v354, 7
  %v356 = vsub.s32 %v353, %v355
  %v357 = vrot.slane %v349, %v356
  %v359 = vunpack.c.l.s4 1983009808
  %v360 = vunpack.c.0.s8 %v359
  %v361 = vlaneseq
  %v362 = vshrl.u32 %v361, 7
  %v363 = vsub.s32 %v360, %v362
  %v364 = vrot.slane %v350, %v363
  %v365 = vcombine.low %v266, %v278
  %v366 = vcombine.high %v266, %v278
  %v368 = vunpack.c.l.s4 1983009808
  %v369 = vunpack.c.0.s8 %v368
  %v370 = vlaneseq
  %v371 = vshrl.u32 %v370, 7
  %v372 = vsub.s32 %v369, %v371
  %v373 = vrot.slane %v365, %v372
  %v375 = vunpack.c.l.s4 1983009808
  %v376 = vunpack.c.0.s8 %v375
  %v377 = vlaneseq
  %v378 = vshrl.u32 %v377, 7
  %v379 = vsub.s32 %v376, %v378
  %v380 = vrot.slane %v366, %v379
  %v381 = vcombine.low %v357, %v373
  %v382 = vcombine.high %v357, %v373
  %v384 = vunpack.c.l.s4 1934713408
  %v385 = vunpack.c.0.s8 %v384
  %v386 = vlaneseq
  %v387 = vshrl.u32 %v386, 7
  %v388 = vsub.s32 %v385, %v387
  %v389 = vrot.slane %v381, %v388
  %v391 = vunpack.c.l.s4 1934713408
  %v392 = vunpack.c.0.s8 %v391
  %v393 = vlaneseq
  %v394 = vshrl.u32 %v393, 7
  %v395 = vsub.s32 %v392, %v394
  %v396 = vrot.slane %v382, %v395
  %v397 = vcombine.low %v364, %v380
  %v398 = vcombine.high %v364, %v380
  %v400 = vunpack.c.l.s4 1934713408
  %v401 = vunpack.c.0.s8 %v400
  %v402 = vlaneseq
  %v403 = vshrl.u32 %v402, 7
  %v404 = vsub.s32 %v401, %v403
  %v405 = vrot.slane %v397, %v404
  %v407 = vunpack.c.l.s4 1934713408
  %v408 = vunpack.c.0.s8 %v407
  %v409 = vlaneseq
  %v410 = vshrl.u32 %v409, 7
  %v411 = vsub.s32 %v408, %v410
  %v412 = vrot.slane %v398, %v411
  %v413 = vcombine.high %v389, 0.0
  %v414 = vcombine.high %v396, 0.0
  %v415 = vcombine.high %v405, 0.0
  %v416 = vcombine.high %v412, 0.0
  %419 = vrot.lane.b32.xlu0 %v249, 112
  %v420 = vpop.permute.xlu0 %419
  %421 = vrot.lane.b32.xlu0 %v255, 112
  %v422 = vpop.permute.xlu0 %421
  %423 = vrot.lane.b32.xlu0 %v249, 96
  %v424 = vpop.permute.xlu0 %423
  %425 = vrot.lane.b32.xlu0 %v255, 96
  %v426 = vpop.permute.xlu0 %425
  %427 = vrot.lane.b32.xlu0 %v249, 80
  %v428 = vpop.permute.xlu0 %427
  %429 = vrot.lane.b32.xlu0 %v255, 80
  %v430 = vpop.permute.xlu0 %429
  %431 = vrot.lane.b32.xlu0 %v249, 64
  %v432 = vpop.permute.xlu0 %431
  %433 = vrot.lane.b32.xlu0 %v255, 64
  %v434 = vpop.permute.xlu0 %433
  %435 = vrot.lane.b32.xlu0 %v420, 64
  %v436 = vpop.permute.xlu0 %435
  %437 = vrot.lane.b32.xlu0 %v422, 64
  %v438 = vpop.permute.xlu0 %437
  %439 = vrot.lane.b32.xlu0 %v424, 64
  %v440 = vpop.permute.xlu0 %439
  %441 = vrot.lane.b32.xlu0 %v426, 64
  %v442 = vpop.permute.xlu0 %441
  %443 = vrot.lane.b32.xlu0 %v428, 64
  %v444 = vpop.permute.xlu0 %443
  %445 = vrot.lane.b32.xlu0 %v430, 64
  %v446 = vpop.permute.xlu0 %445
  %v455 = vcombine.low %v432, %v440
  %v456 = vcombine.high %v432, %v440
  %v458 = vunpack.c.l.s4 1983009808
  %v459 = vunpack.c.0.s8 %v458
  %v460 = vlaneseq
  %v461 = vshrl.u32 %v460, 7
  %v462 = vsub.s32 %v459, %v461
  %v463 = vrot.slane %v455, %v462
  %v465 = vunpack.c.l.s4 1983009808
  %v466 = vunpack.c.0.s8 %v465
  %v467 = vlaneseq
  %v468 = vshrl.u32 %v467, 7
  %v469 = vsub.s32 %v466, %v468
  %v470 = vrot.slane %v456, %v469
  %v471 = vcombine.low %v436, %v444
  %v472 = vcombine.high %v436, %v444
  %v474 = vunpack.c.l.s4 1983009808
  %v475 = vunpack.c.0.s8 %v474
  %v476 = vlaneseq
  %v477 = vshrl.u32 %v476, 7
  %v478 = vsub.s32 %v475, %v477
  %v479 = vrot.slane %v471, %v478
  %v481 = vunpack.c.l.s4 1983009808
  %v482 = vunpack.c.0.s8 %v481
  %v483 = vlaneseq
  %v484 = vshrl.u32 %v483, 7
  %v485 = vsub.s32 %v482, %v484
  %v486 = vrot.slane %v472, %v485
  %v487 = vcombine.low %v463, %v479
  %v488 = vcombine.high %v463, %v479
  %v490 = vunpack.c.l.s4 1934713408
  %v491 = vunpack.c.0.s8 %v490
  %v492 = vlaneseq
  %v493 = vshrl.u32 %v492, 7
  %v494 = vsub.s32 %v491, %v493
  %v495 = vrot.slane %v487, %v494
  %v497 = vunpack.c.l.s4 1934713408
  %v498 = vunpack.c.0.s8 %v497
  %v499 = vlaneseq
  %v500 = vshrl.u32 %v499, 7
  %v501 = vsub.s32 %v498, %v500
  %v502 = vrot.slane %v488, %v501
  %v503 = vcombine.low %v470, %v486
  %v504 = vcombine.high %v470, %v486
  %v506 = vunpack.c.l.s4 1934713408
  %v507 = vunpack.c.0.s8 %v506
  %v508 = vlaneseq
  %v509 = vshrl.u32 %v508, 7
  %v510 = vsub.s32 %v507, %v509
  %v511 = vrot.slane %v503, %v510
  %v513 = vunpack.c.l.s4 1934713408
  %v514 = vunpack.c.0.s8 %v513
  %v515 = vlaneseq
  %v516 = vshrl.u32 %v515, 7
  %v517 = vsub.s32 %v514, %v516
  %v518 = vrot.slane %v504, %v517
  %v519 = vcombine.high %v495, 0.0
  %v520 = vcombine.high %v502, 0.0
  %v521 = vcombine.high %v511, 0.0
  %v522 = vcombine.high %v518, 0.0
  %v523 = vcombine.low %v434, %v442
  %v524 = vcombine.high %v434, %v442
  %v526 = vunpack.c.l.s4 1983009808
  %v527 = vunpack.c.0.s8 %v526
  %v528 = vlaneseq
  %v529 = vshrl.u32 %v528, 7
  %v530 = vsub.s32 %v527, %v529
  %v531 = vrot.slane %v523, %v530
  %v533 = vunpack.c.l.s4 1983009808
  %v534 = vunpack.c.0.s8 %v533
  %v535 = vlaneseq
  %v536 = vshrl.u32 %v535, 7
  %v537 = vsub.s32 %v534, %v536
  %v538 = vrot.slane %v524, %v537
  %v539 = vcombine.low %v438, %v446
  %v540 = vcombine.high %v438, %v446
  %v542 = vunpack.c.l.s4 1983009808
  %v543 = vunpack.c.0.s8 %v542
  %v544 = vlaneseq
  %v545 = vshrl.u32 %v544, 7
  %v546 = vsub.s32 %v543, %v545
  %v547 = vrot.slane %v539, %v546
  %v549 = vunpack.c.l.s4 1983009808
  %v550 = vunpack.c.0.s8 %v549
  %v551 = vlaneseq
  %v552 = vshrl.u32 %v551, 7
  %v553 = vsub.s32 %v550, %v552
  %v554 = vrot.slane %v540, %v553
  %v555 = vcombine.low %v531, %v547
  %v556 = vcombine.high %v531, %v547
  %v558 = vunpack.c.l.s4 1934713408
  %v559 = vunpack.c.0.s8 %v558
  %v560 = vlaneseq
  %v561 = vshrl.u32 %v560, 7
  %v562 = vsub.s32 %v559, %v561
  %v563 = vrot.slane %v555, %v562
  %v565 = vunpack.c.l.s4 1934713408
  %v566 = vunpack.c.0.s8 %v565
  %v567 = vlaneseq
  %v568 = vshrl.u32 %v567, 7
  %v569 = vsub.s32 %v566, %v568
  %v570 = vrot.slane %v556, %v569
  %v571 = vcombine.low %v538, %v554
  %v572 = vcombine.high %v538, %v554
  %v574 = vunpack.c.l.s4 1934713408
  %v575 = vunpack.c.0.s8 %v574
  %v576 = vlaneseq
  %v577 = vshrl.u32 %v576, 7
  %v578 = vsub.s32 %v575, %v577
  %v579 = vrot.slane %v571, %v578
  %v581 = vunpack.c.l.s4 1934713408
  %v582 = vunpack.c.0.s8 %v581
  %v583 = vlaneseq
  %v584 = vshrl.u32 %v583, 7
  %v585 = vsub.s32 %v582, %v584
  %v586 = vrot.slane %v572, %v585
  %v587 = vcombine.high %v563, 0.0
  %v588 = vcombine.high %v570, 0.0
  %v589 = vcombine.high %v579, 0.0
  %v590 = vcombine.high %v586, 0.0
  %593 = vrot.lane.b32.xlu0 %v251, 112
  %v594 = vpop.permute.xlu0 %593
  %595 = vrot.lane.b32.xlu0 %v257, 112
  %v596 = vpop.permute.xlu0 %595
  %599 = vrot.lane.b32.xlu0 %v251, 96
  %v600 = vpop.permute.xlu0 %599
  %601 = vrot.lane.b32.xlu0 %v257, 96
  %v602 = vpop.permute.xlu0 %601
  %605 = vrot.lane.b32.xlu0 %v251, 80
  %v606 = vpop.permute.xlu0 %605
  %607 = vrot.lane.b32.xlu0 %v257, 80
  %v608 = vpop.permute.xlu0 %607
  %v611 = vcombine.low %v251, %v600
  %v612 = vcombine.high %v251, %v600
  %v614 = vunpack.c.l.s4 1983009808
  %v615 = vunpack.c.0.s8 %v614
  %v616 = vlaneseq
  %v617 = vshrl.u32 %v616, 7
  %v618 = vsub.s32 %v615, %v617
  %v619 = vrot.slane %v611, %v618
  %v621 = vunpack.c.l.s4 1983009808
  %v622 = vunpack.c.0.s8 %v621
  %v623 = vlaneseq
  %v624 = vshrl.u32 %v623, 7
  %v625 = vsub.s32 %v622, %v624
  %v626 = vrot.slane %v612, %v625
  %v627 = vcombine.low %v594, %v606
  %v628 = vcombine.high %v594, %v606
  %v630 = vunpack.c.l.s4 1983009808
  %v631 = vunpack.c.0.s8 %v630
  %v632 = vlaneseq
  %v633 = vshrl.u32 %v632, 7
  %v634 = vsub.s32 %v631, %v633
  %v635 = vrot.slane %v627, %v634
  %v637 = vunpack.c.l.s4 1983009808
  %v638 = vunpack.c.0.s8 %v637
  %v639 = vlaneseq
  %v640 = vshrl.u32 %v639, 7
  %v641 = vsub.s32 %v638, %v640
  %v642 = vrot.slane %v628, %v641
  %v643 = vcombine.low %v619, %v635
  %v644 = vcombine.high %v619, %v635
  %v646 = vunpack.c.l.s4 1934713408
  %v647 = vunpack.c.0.s8 %v646
  %v648 = vlaneseq
  %v649 = vshrl.u32 %v648, 7
  %v650 = vsub.s32 %v647, %v649
  %v651 = vrot.slane %v643, %v650
  %v653 = vunpack.c.l.s4 1934713408
  %v654 = vunpack.c.0.s8 %v653
  %v655 = vlaneseq
  %v656 = vshrl.u32 %v655, 7
  %v657 = vsub.s32 %v654, %v656
  %v658 = vrot.slane %v644, %v657
  %v659 = vcombine.low %v626, %v642
  %v660 = vcombine.high %v626, %v642
  %v662 = vunpack.c.l.s4 1934713408
  %v663 = vunpack.c.0.s8 %v662
  %v664 = vlaneseq
  %v665 = vshrl.u32 %v664, 7
  %v666 = vsub.s32 %v663, %v665
  %v667 = vrot.slane %v659, %v666
  %v669 = vunpack.c.l.s4 1934713408
  %v670 = vunpack.c.0.s8 %v669
  %v671 = vlaneseq
  %v672 = vshrl.u32 %v671, 7
  %v673 = vsub.s32 %v670, %v672
  %v674 = vrot.slane %v660, %v673
  %v675 = vcombine.high %v651, 0.0
  %v676 = vcombine.high %v658, 0.0
  %v677 = vcombine.high %v667, 0.0
  %v678 = vcombine.high %v674, 0.0
  %v679 = vcombine.low %v257, %v602
  %v680 = vcombine.high %v257, %v602
  %v682 = vunpack.c.l.s4 1983009808
  %v683 = vunpack.c.0.s8 %v682
  %v684 = vlaneseq
  %v685 = vshrl.u32 %v684, 7
  %v686 = vsub.s32 %v683, %v685
  %v687 = vrot.slane %v679, %v686
  %v689 = vunpack.c.l.s4 1983009808
  %v690 = vunpack.c.0.s8 %v689
  %v691 = vlaneseq
  %v692 = vshrl.u32 %v691, 7
  %v693 = vsub.s32 %v690, %v692
  %v694 = vrot.slane %v680, %v693
  %v695 = vcombine.low %v596, %v608
  %v696 = vcombine.high %v596, %v608
  %v698 = vunpack.c.l.s4 1983009808
  %v699 = vunpack.c.0.s8 %v698
  %v700 = vlaneseq
  %v701 = vshrl.u32 %v700, 7
  %v702 = vsub.s32 %v699, %v701
  %v703 = vrot.slane %v695, %v702
  %v705 = vunpack.c.l.s4 1983009808
  %v706 = vunpack.c.0.s8 %v705
  %v707 = vlaneseq
  %v708 = vshrl.u32 %v707, 7
  %v709 = vsub.s32 %v706, %v708
  %v710 = vrot.slane %v696, %v709
  %v711 = vcombine.low %v687, %v703
  %v712 = vcombine.high %v687, %v703
  %v714 = vunpack.c.l.s4 1934713408
  %v715 = vunpack.c.0.s8 %v714
  %v716 = vlaneseq
  %v717 = vshrl.u32 %v716, 7
  %v718 = vsub.s32 %v715, %v717
  %v719 = vrot.slane %v711, %v718
  %v721 = vunpack.c.l.s4 1934713408
  %v722 = vunpack.c.0.s8 %v721
  %v723 = vlaneseq
  %v724 = vshrl.u32 %v723, 7
  %v725 = vsub.s32 %v722, %v724
  %v726 = vrot.slane %v712, %v725
  %v727 = vcombine.low %v694, %v710
  %v728 = vcombine.high %v694, %v710
  %v730 = vunpack.c.l.s4 1934713408
  %v731 = vunpack.c.0.s8 %v730
  %v732 = vlaneseq
  %v733 = vshrl.u32 %v732, 7
  %v734 = vsub.s32 %v731, %v733
  %v735 = vrot.slane %v727, %v734
  %v737 = vunpack.c.l.s4 1934713408
  %v738 = vunpack.c.0.s8 %v737
  %v739 = vlaneseq
  %v740 = vshrl.u32 %v739, 7
  %v741 = vsub.s32 %v738, %v740
  %v742 = vrot.slane %v728, %v741
  %v743 = vcombine.high %v719, 0.0
  %v744 = vcombine.high %v726, 0.0
  %v745 = vcombine.high %v735, 0.0
  %v746 = vcombine.high %v742, 0.0
  %v747 = vcombine.low %v321, %v337
  %v749 = vunpack.c.l.s4 1983009808
  %v750 = vunpack.c.0.s8 %v749
  %v751 = vlaneseq
  %v752 = vshrl.u32 %v751, 7
  %v753 = vsub.s32 %v750, %v752
  %v754 = vrot.slane %v747, %v753
  %v755 = vcombine.low %v328, %v344
  %v757 = vunpack.c.l.s4 1983009808
  %v758 = vunpack.c.0.s8 %v757
  %v759 = vlaneseq
  %v760 = vshrl.u32 %v759, 7
  %v761 = vsub.s32 %v758, %v760
  %v762 = vrot.slane %v755, %v761
  %v763 = vcombine.low %v389, %v405
  %v765 = vunpack.c.l.s4 1983009808
  %v766 = vunpack.c.0.s8 %v765
  %v767 = vlaneseq
  %v768 = vshrl.u32 %v767, 7
  %v769 = vsub.s32 %v766, %v768
  %v770 = vrot.slane %v763, %v769
  %v771 = vcombine.low %v396, %v412
  %v773 = vunpack.c.l.s4 1983009808
  %v774 = vunpack.c.0.s8 %v773
  %v775 = vlaneseq
  %v776 = vshrl.u32 %v775, 7
  %v777 = vsub.s32 %v774, %v776
  %v778 = vrot.slane %v771, %v777
  %v779 = vcombine.low %v754, %v762
  %v780 = vcombine.high %v754, %v762
  %v782 = vunpack.c.l.s4 1934713408
  %v783 = vunpack.c.0.s8 %v782
  %v784 = vlaneseq
  %v785 = vshrl.u32 %v784, 7
  %v786 = vsub.s32 %v783, %v785
  %v787 = vrot.slane %v779, %v786
  %v789 = vunpack.c.l.s4 1934713408
  %v790 = vunpack.c.0.s8 %v789
  %v791 = vlaneseq
  %v792 = vshrl.u32 %v791, 7
  %v793 = vsub.s32 %v790, %v792
  %v794 = vrot.slane %v780, %v793
  %v795 = vcombine.low %v770, %v778
  %v796 = vcombine.high %v770, %v778
  %v798 = vunpack.c.l.s4 1934713408
  %v799 = vunpack.c.0.s8 %v798
  %v800 = vlaneseq
  %v801 = vshrl.u32 %v800, 7
  %v802 = vsub.s32 %v799, %v801
  %v803 = vrot.slane %v795, %v802
  %v805 = vunpack.c.l.s4 1934713408
  %v806 = vunpack.c.0.s8 %v805
  %v807 = vlaneseq
  %v808 = vshrl.u32 %v807, 7
  %v809 = vsub.s32 %v806, %v808
  %v810 = vrot.slane %v796, %v809
  %v811 = vcombine.low %v787, %v803
  %v812 = vcombine.high %v787, %v803
  %v813 = vcombine.low %v794, %v810
  %v814 = vcombine.high %v794, %v810
  %v815 = vcombine.low %v495, %v511
  %v817 = vunpack.c.l.s4 1983009808
  %v818 = vunpack.c.0.s8 %v817
  %v819 = vlaneseq
  %v820 = vshrl.u32 %v819, 7
  %v821 = vsub.s32 %v818, %v820
  %v822 = vrot.slane %v815, %v821
  %v823 = vcombine.low %v502, %v518
  %v825 = vunpack.c.l.s4 1983009808
  %v826 = vunpack.c.0.s8 %v825
  %v827 = vlaneseq
  %v828 = vshrl.u32 %v827, 7
  %v829 = vsub.s32 %v826, %v828
  %v830 = vrot.slane %v823, %v829
  %v831 = vcombine.low %v563, %v579
  %v833 = vunpack.c.l.s4 1983009808
  %v834 = vunpack.c.0.s8 %v833
  %v835 = vlaneseq
  %v836 = vshrl.u32 %v835, 7
  %v837 = vsub.s32 %v834, %v836
  %v838 = vrot.slane %v831, %v837
  %v839 = vcombine.low %v570, %v586
  %v841 = vunpack.c.l.s4 1983009808
  %v842 = vunpack.c.0.s8 %v841
  %v843 = vlaneseq
  %v844 = vshrl.u32 %v843, 7
  %v845 = vsub.s32 %v842, %v844
  %v846 = vrot.slane %v839, %v845
  %v847 = vcombine.low %v822, %v830
  %v848 = vcombine.high %v822, %v830
  %v850 = vunpack.c.l.s4 1934713408
  %v851 = vunpack.c.0.s8 %v850
  %v852 = vlaneseq
  %v853 = vshrl.u32 %v852, 7
  %v854 = vsub.s32 %v851, %v853
  %v855 = vrot.slane %v847, %v854
  %v857 = vunpack.c.l.s4 1934713408
  %v858 = vunpack.c.0.s8 %v857
  %v859 = vlaneseq
  %v860 = vshrl.u32 %v859, 7
  %v861 = vsub.s32 %v858, %v860
  %v862 = vrot.slane %v848, %v861
  %v863 = vcombine.low %v838, %v846
  %v864 = vcombine.high %v838, %v846
  %v866 = vunpack.c.l.s4 1934713408
  %v867 = vunpack.c.0.s8 %v866
  %v868 = vlaneseq
  %v869 = vshrl.u32 %v868, 7
  %v870 = vsub.s32 %v867, %v869
  %v871 = vrot.slane %v863, %v870
  %v873 = vunpack.c.l.s4 1934713408
  %v874 = vunpack.c.0.s8 %v873
  %v875 = vlaneseq
  %v876 = vshrl.u32 %v875, 7
  %v877 = vsub.s32 %v874, %v876
  %v878 = vrot.slane %v864, %v877
  %v879 = vcombine.low %v855, %v871
  %v880 = vcombine.high %v855, %v871
  %v881 = vcombine.low %v862, %v878
  %v882 = vcombine.high %v862, %v878
  %v883 = vcombine.low %v651, %v667
  %v885 = vunpack.c.l.s4 1983009808
  %v886 = vunpack.c.0.s8 %v885
  %v887 = vlaneseq
  %v888 = vshrl.u32 %v887, 7
  %v889 = vsub.s32 %v886, %v888
  %v890 = vrot.slane %v883, %v889
  %v891 = vcombine.low %v658, %v674
  %v893 = vunpack.c.l.s4 1983009808
  %v894 = vunpack.c.0.s8 %v893
  %v895 = vlaneseq
  %v896 = vshrl.u32 %v895, 7
  %v897 = vsub.s32 %v894, %v896
  %v898 = vrot.slane %v891, %v897
  %v899 = vcombine.low %v719, %v735
  %v901 = vunpack.c.l.s4 1983009808
  %v902 = vunpack.c.0.s8 %v901
  %v903 = vlaneseq
  %v904 = vshrl.u32 %v903, 7
  %v905 = vsub.s32 %v902, %v904
  %v906 = vrot.slane %v899, %v905
  %v907 = vcombine.low %v726, %v742
  %v909 = vunpack.c.l.s4 1983009808
  %v910 = vunpack.c.0.s8 %v909
  %v911 = vlaneseq
  %v912 = vshrl.u32 %v911, 7
  %v913 = vsub.s32 %v910, %v912
  %v914 = vrot.slane %v907, %v913
  %v915 = vcombine.low %v890, %v898
  %v916 = vcombine.high %v890, %v898
  %v918 = vunpack.c.l.s4 1934713408
  %v919 = vunpack.c.0.s8 %v918
  %v920 = vlaneseq
  %v921 = vshrl.u32 %v920, 7
  %v922 = vsub.s32 %v919, %v921
  %v923 = vrot.slane %v915, %v922
  %v925 = vunpack.c.l.s4 1934713408
  %v926 = vunpack.c.0.s8 %v925
  %v927 = vlaneseq
  %v928 = vshrl.u32 %v927, 7
  %v929 = vsub.s32 %v926, %v928
  %v930 = vrot.slane %v916, %v929
  %v931 = vcombine.low %v906, %v914
  %v932 = vcombine.high %v906, %v914
  %v934 = vunpack.c.l.s4 1934713408
  %v935 = vunpack.c.0.s8 %v934
  %v936 = vlaneseq
  %v937 = vshrl.u32 %v936, 7
  %v938 = vsub.s32 %v935, %v937
  %v939 = vrot.slane %v931, %v938
  %v941 = vunpack.c.l.s4 1934713408
  %v942 = vunpack.c.0.s8 %v941
  %v943 = vlaneseq
  %v944 = vshrl.u32 %v943, 7
  %v945 = vsub.s32 %v942, %v944
  %v946 = vrot.slane %v932, %v945
  %v947 = vcombine.low %v923, %v939
  %v948 = vcombine.high %v923, %v939
  %v949 = vcombine.low %v930, %v946
  %v950 = vcombine.high %v930, %v946
  %vm951 = vcmask 130048
  %v953 = vsel %vm951, %v811, 0
  %v956 = vsel %vm951, %v879, 0
  %958 = vmatprep.subr.mxu0 0.0
  %959 = vmatpush1.xpose.msra.mxu0 %v956
  %960 = vmatprep.subr.mxu0 0.0
  %961 = vmatpush1.xpose.msra.mxu0 0.0
  %962 = vmatprep.subr.mxu0 0.0
  %963 = vmatpush1.xpose.msra.mxu0 0.0
  %964 = vmatprep.subr.mxu0 0.0
  %965 = vmatpush1.xpose.msra.mxu0 0.0
  %966 = vmatprep.subr.mxu0 0.0
  %967 = vmatpush1.xpose.msra.mxu0 0.0
  %968 = vmatprep.subr.mxu0 0.0
  %969 = vmatpush1.xpose.msra.mxu0 0.0
  %970 = vmatprep.subr.mxu0 0.0
  %971 = vmatpush1.xpose.msra.mxu0 0.0
  %972 = vmatprep.subr.mxu0 0.0
  %973 = vmatpush1.xpose.msra.mxu0 0.0
  %974 = vmatprep.subr.mxu0 0.0
  %975 = vmatpush1.xpose.msra.mxu0 0.0
  %976 = vmatprep.subr.mxu0 0.0
  %977 = vmatpush1.xpose.msra.mxu0 0.0
  %978 = vmatprep.subr.mxu0 0.0
  %979 = vmatpush1.xpose.msra.mxu0 0.0
  %980 = vmatprep.subr.mxu0 0.0
  %981 = vmatpush1.xpose.msra.mxu0 0.0
  %982 = vmatprep.subr.mxu0 0.0
  %983 = vmatpush1.xpose.msra.mxu0 0.0
  %984 = vmatprep.subr.mxu0 0.0
  %985 = vmatpush1.xpose.msra.mxu0 0.0
  %986 = vmatprep.subr.mxu0 0.0
  %987 = vmatpush1.xpose.msra.mxu0 0.0
  %988 = vmatprep.subr.mxu0 0.0
  %989 = vmatpush1.xpose.msra.mxu0 0.0
  %990 = vmatprep.subr.mxu0 0.0
  %991 = vmatpush1.xpose.msra.mxu0 0.0
  %992 = vmatprep.subr.mxu0 0.0
  %993 = vmatpush1.xpose.msra.mxu0 0.0
  %994 = vmatprep.subr.mxu0 0.0
  %995 = vmatpush1.xpose.msra.mxu0 0.0
  %996 = vmatprep.subr.mxu0 0.0
  %997 = vmatpush1.xpose.msra.mxu0 0.0
  %998 = vmatprep.subr.mxu0 0.0
  %999 = vmatpush1.xpose.msra.mxu0 0.0
  %1000 = vmatprep.subr.mxu0 0.0
  %1001 = vmatpush1.xpose.msra.mxu0 0.0
  %1002 = vmatprep.subr.mxu0 0.0
  %1003 = vmatpush1.xpose.msra.mxu0 0.0
  %1004 = vmatprep.subr.mxu0 0.0
  %1005 = vmatpush1.xpose.msra.mxu0 0.0
  %1006 = vmatprep.subr.mxu0 0.0
  %1007 = vmatpush1.xpose.msra.mxu0 0.0
  %1008 = vmatprep.subr.mxu0 0.0
  %1009 = vmatpush1.xpose.msra.mxu0 0.0
  %1010 = vmatprep.subr.mxu0 0.0
  %1011 = vmatpush1.xpose.msra.mxu0 0.0
  %1012 = vmatprep.subr.mxu0 0.0
  %1013 = vmatpush1.xpose.msra.mxu0 0.0
  %1014 = vmatprep.subr.mxu0 0.0
  %1015 = vmatpush1.xpose.msra.mxu0 0.0
  %1016 = vmatprep.subr.mxu0 0.0
  %1017 = vmatpush1.xpose.msra.mxu0 0.0
  %1018 = vmatprep.subr.mxu0 0.0
  %1019 = vmatpush1.xpose.msra.mxu0 0.0
  %1020 = vmatprep.subr.mxu0 0.0
  %1021 = vmatpush1.xpose.msra.mxu0 0.0
  %1022 = vmatprep.mubr.f32.mxu0 0.0
  %1023 = vmatmul.mubr.f32.gmra.mrb[0].mxu0 %v953
  %v1024 = vpop.f32.mrb[0].mxu0
  %v1025 = vadd.f32 0.0, %v1024
  %v1026 = vpop.f32.mrb[0].mxu0
  %1027 = vdwg.mxu0
  %v1029 = vsel %vm951, %v812, 0
  %v1032 = vsel %vm951, %v880, 0
  %1034 = vmatprep.subr.mxu0 0.0
  %1035 = vmatpush1.xpose.msra.mxu0 %v1032
  %1036 = vmatprep.subr.mxu0 0.0
  %1037 = vmatpush1.xpose.msra.mxu0 0.0
  %1038 = vmatprep.subr.mxu0 0.0
  %1039 = vmatpush1.xpose.msra.mxu0 0.0
  %1040 = vmatprep.subr.mxu0 0.0
  %1041 = vmatpush1.xpose.msra.mxu0 0.0
  %1042 = vmatprep.subr.mxu0 0.0
  %1043 = vmatpush1.xpose.msra.mxu0 0.0
  %1044 = vmatprep.subr.mxu0 0.0
  %1045 = vmatpush1.xpose.msra.mxu0 0.0
  %1046 = vmatprep.subr.mxu0 0.0
  %1047 = vmatpush1.xpose.msra.mxu0 0.0
  %1048 = vmatprep.subr.mxu0 0.0
  %1049 = vmatpush1.xpose.msra.mxu0 0.0
  %1050 = vmatprep.subr.mxu0 0.0
  %1051 = vmatpush1.xpose.msra.mxu0 0.0
  %1052 = vmatprep.subr.mxu0 0.0
  %1053 = vmatpush1.xpose.msra.mxu0 0.0
  %1054 = vmatprep.subr.mxu0 0.0
  %1055 = vmatpush1.xpose.msra.mxu0 0.0
  %1056 = vmatprep.subr.mxu0 0.0
  %1057 = vmatpush1.xpose.msra.mxu0 0.0
  %1058 = vmatprep.subr.mxu0 0.0
  %1059 = vmatpush1.xpose.msra.mxu0 0.0
  %1060 = vmatprep.subr.mxu0 0.0
  %1061 = vmatpush1.xpose.msra.mxu0 0.0
  %1062 = vmatprep.subr.mxu0 0.0
  %1063 = vmatpush1.xpose.msra.mxu0 0.0
  %1064 = vmatprep.subr.mxu0 0.0
  %1065 = vmatpush1.xpose.msra.mxu0 0.0
  %1066 = vmatprep.subr.mxu0 0.0
  %1067 = vmatpush1.xpose.msra.mxu0 0.0
  %1068 = vmatprep.subr.mxu0 0.0
  %1069 = vmatpush1.xpose.msra.mxu0 0.0
  %1070 = vmatprep.subr.mxu0 0.0
  %1071 = vmatpush1.xpose.msra.mxu0 0.0
  %1072 = vmatprep.subr.mxu0 0.0
  %1073 = vmatpush1.xpose.msra.mxu0 0.0
  %1074 = vmatprep.subr.mxu0 0.0
  %1075 = vmatpush1.xpose.msra.mxu0 0.0
  %1076 = vmatprep.subr.mxu0 0.0
  %1077 = vmatpush1.xpose.msra.mxu0 0.0
  %1078 = vmatprep.subr.mxu0 0.0
  %1079 = vmatpush1.xpose.msra.mxu0 0.0
  %1080 = vmatprep.subr.mxu0 0.0
  %1081 = vmatpush1.xpose.msra.mxu0 0.0
  %1082 = vmatprep.subr.mxu0 0.0
  %1083 = vmatpush1.xpose.msra.mxu0 0.0
  %1084 = vmatprep.subr.mxu0 0.0
  %1085 = vmatpush1.xpose.msra.mxu0 0.0
  %1086 = vmatprep.subr.mxu0 0.0
  %1087 = vmatpush1.xpose.msra.mxu0 0.0
  %1088 = vmatprep.subr.mxu0 0.0
  %1089 = vmatpush1.xpose.msra.mxu0 0.0
  %1090 = vmatprep.subr.mxu0 0.0
  %1091 = vmatpush1.xpose.msra.mxu0 0.0
  %1092 = vmatprep.subr.mxu0 0.0
  %1093 = vmatpush1.xpose.msra.mxu0 0.0
  %1094 = vmatprep.subr.mxu0 0.0
  %1095 = vmatpush1.xpose.msra.mxu0 0.0
  %1096 = vmatprep.subr.mxu0 0.0
  %1097 = vmatpush1.xpose.msra.mxu0 0.0
  %1098 = vmatprep.mubr.f32.mxu0 0.0
  %1099 = vmatmul.mubr.f32.gmra.mrb[0].mxu0 %v1029
  %v1100 = vpop.f32.mrb[0].mxu0
  %v1101 = vadd.f32 0.0, %v1100
  %v1102 = vpop.f32.mrb[0].mxu0
  %1103 = vdwg.mxu0
  %v1105 = vsel %vm951, %v813, 0
  %v1108 = vsel %vm951, %v881, 0
  %1110 = vmatprep.subr.mxu0 0.0
  %1111 = vmatpush1.xpose.msra.mxu0 %v1108
  %1112 = vmatprep.subr.mxu0 0.0
  %1113 = vmatpush1.xpose.msra.mxu0 0.0
  %1114 = vmatprep.subr.mxu0 0.0
  %1115 = vmatpush1.xpose.msra.mxu0 0.0
  %1116 = vmatprep.subr.mxu0 0.0
  %1117 = vmatpush1.xpose.msra.mxu0 0.0
  %1118 = vmatprep.subr.mxu0 0.0
  %1119 = vmatpush1.xpose.msra.mxu0 0.0
  %1120 = vmatprep.subr.mxu0 0.0
  %1121 = vmatpush1.xpose.msra.mxu0 0.0
  %1122 = vmatprep.subr.mxu0 0.0
  %1123 = vmatpush1.xpose.msra.mxu0 0.0
  %1124 = vmatprep.subr.mxu0 0.0
  %1125 = vmatpush1.xpose.msra.mxu0 0.0
  %1126 = vmatprep.subr.mxu0 0.0
  %1127 = vmatpush1.xpose.msra.mxu0 0.0
  %1128 = vmatprep.subr.mxu0 0.0
  %1129 = vmatpush1.xpose.msra.mxu0 0.0
  %1130 = vmatprep.subr.mxu0 0.0
  %1131 = vmatpush1.xpose.msra.mxu0 0.0
  %1132 = vmatprep.subr.mxu0 0.0
  %1133 = vmatpush1.xpose.msra.mxu0 0.0
  %1134 = vmatprep.subr.mxu0 0.0
  %1135 = vmatpush1.xpose.msra.mxu0 0.0
  %1136 = vmatprep.subr.mxu0 0.0
  %1137 = vmatpush1.xpose.msra.mxu0 0.0
  %1138 = vmatprep.subr.mxu0 0.0
  %1139 = vmatpush1.xpose.msra.mxu0 0.0
  %1140 = vmatprep.subr.mxu0 0.0
  %1141 = vmatpush1.xpose.msra.mxu0 0.0
  %1142 = vmatprep.subr.mxu0 0.0
  %1143 = vmatpush1.xpose.msra.mxu0 0.0
  %1144 = vmatprep.subr.mxu0 0.0
  %1145 = vmatpush1.xpose.msra.mxu0 0.0
  %1146 = vmatprep.subr.mxu0 0.0
  %1147 = vmatpush1.xpose.msra.mxu0 0.0
  %1148 = vmatprep.subr.mxu0 0.0
  %1149 = vmatpush1.xpose.msra.mxu0 0.0
  %1150 = vmatprep.subr.mxu0 0.0
  %1151 = vmatpush1.xpose.msra.mxu0 0.0
  %1152 = vmatprep.subr.mxu0 0.0
  %1153 = vmatpush1.xpose.msra.mxu0 0.0
  %1154 = vmatprep.subr.mxu0 0.0
  %1155 = vmatpush1.xpose.msra.mxu0 0.0
  %1156 = vmatprep.subr.mxu0 0.0
  %1157 = vmatpush1.xpose.msra.mxu0 0.0
  %1158 = vmatprep.subr.mxu0 0.0
  %1159 = vmatpush1.xpose.msra.mxu0 0.0
  %1160 = vmatprep.subr.mxu0 0.0
  %1161 = vmatpush1.xpose.msra.mxu0 0.0
  %1162 = vmatprep.subr.mxu0 0.0
  %1163 = vmatpush1.xpose.msra.mxu0 0.0
  %1164 = vmatprep.subr.mxu0 0.0
  %1165 = vmatpush1.xpose.msra.mxu0 0.0
  %1166 = vmatprep.subr.mxu0 0.0
  %1167 = vmatpush1.xpose.msra.mxu0 0.0
  %1168 = vmatprep.subr.mxu0 0.0
  %1169 = vmatpush1.xpose.msra.mxu0 0.0
  %1170 = vmatprep.subr.mxu0 0.0
  %1171 = vmatpush1.xpose.msra.mxu0 0.0
  %1172 = vmatprep.subr.mxu0 0.0
  %1173 = vmatpush1.xpose.msra.mxu0 0.0
  %1174 = vmatprep.mubr.f32.mxu0 0.0
  %1175 = vmatmul.mubr.f32.gmra.mrb[0].mxu0 %v1105
  %v1176 = vpop.f32.mrb[0].mxu0
  %v1177 = vadd.f32 0.0, %v1176
  %v1178 = vpop.f32.mrb[0].mxu0
  %1179 = vdwg.mxu0
  %v1181 = vsel %vm951, %v814, 0
  %v1184 = vsel %vm951, %v882, 0
  %1186 = vmatprep.subr.mxu0 0.0
  %1187 = vmatpush1.xpose.msra.mxu0 %v1184
  %1188 = vmatprep.subr.mxu0 0.0
  %1189 = vmatpush1.xpose.msra.mxu0 0.0
  %1190 = vmatprep.subr.mxu0 0.0
  %1191 = vmatpush1.xpose.msra.mxu0 0.0
  %1192 = vmatprep.subr.mxu0 0.0
  %1193 = vmatpush1.xpose.msra.mxu0 0.0
  %1194 = vmatprep.subr.mxu0 0.0
  %1195 = vmatpush1.xpose.msra.mxu0 0.0
  %1196 = vmatprep.subr.mxu0 0.0
  %1197 = vmatpush1.xpose.msra.mxu0 0.0
  %1198 = vmatprep.subr.mxu0 0.0
  %1199 = vmatpush1.xpose.msra.mxu0 0.0
  %1200 = vmatprep.subr.mxu0 0.0
  %1201 = vmatpush1.xpose.msra.mxu0 0.0
  %1202 = vmatprep.subr.mxu0 0.0
  %1203 = vmatpush1.xpose.msra.mxu0 0.0
  %1204 = vmatprep.subr.mxu0 0.0
  %1205 = vmatpush1.xpose.msra.mxu0 0.0
  %1206 = vmatprep.subr.mxu0 0.0
  %1207 = vmatpush1.xpose.msra.mxu0 0.0
  %1208 = vmatprep.subr.mxu0 0.0
  %1209 = vmatpush1.xpose.msra.mxu0 0.0
  %1210 = vmatprep.subr.mxu0 0.0
  %1211 = vmatpush1.xpose.msra.mxu0 0.0
  %1212 = vmatprep.subr.mxu0 0.0
  %1213 = vmatpush1.xpose.msra.mxu0 0.0
  %1214 = vmatprep.subr.mxu0 0.0
  %1215 = vmatpush1.xpose.msra.mxu0 0.0
  %1216 = vmatprep.subr.mxu0 0.0
  %1217 = vmatpush1.xpose.msra.mxu0 0.0
  %1218 = vmatprep.subr.mxu0 0.0
  %1219 = vmatpush1.xpose.msra.mxu0 0.0
  %1220 = vmatprep.subr.mxu0 0.0
  %1221 = vmatpush1.xpose.msra.mxu0 0.0
  %1222 = vmatprep.subr.mxu0 0.0
  %1223 = vmatpush1.xpose.msra.mxu0 0.0
  %1224 = vmatprep.subr.mxu0 0.0
  %1225 = vmatpush1.xpose.msra.mxu0 0.0
  %1226 = vmatprep.subr.mxu0 0.0
  %1227 = vmatpush1.xpose.msra.mxu0 0.0
  %1228 = vmatprep.subr.mxu0 0.0
  %1229 = vmatpush1.xpose.msra.mxu0 0.0
  %1230 = vmatprep.subr.mxu0 0.0
  %1231 = vmatpush1.xpose.msra.mxu0 0.0
  %1232 = vmatprep.subr.mxu0 0.0
  %1233 = vmatpush1.xpose.msra.mxu0 0.0
  %1234 = vmatprep.subr.mxu0 0.0
  %1235 = vmatpush1.xpose.msra.mxu0 0.0
  %1236 = vmatprep.subr.mxu0 0.0
  %1237 = vmatpush1.xpose.msra.mxu0 0.0
  %1238 = vmatprep.subr.mxu0 0.0
  %1239 = vmatpush1.xpose.msra.mxu0 0.0
  %1240 = vmatprep.subr.mxu0 0.0
  %1241 = vmatpush1.xpose.msra.mxu0 0.0
  %1242 = vmatprep.subr.mxu0 0.0
  %1243 = vmatpush1.xpose.msra.mxu0 0.0
  %1244 = vmatprep.subr.mxu0 0.0
  %1245 = vmatpush1.xpose.msra.mxu0 0.0
  %1246 = vmatprep.subr.mxu0 0.0
  %1247 = vmatpush1.xpose.msra.mxu0 0.0
  %1248 = vmatprep.subr.mxu0 0.0
  %1249 = vmatpush1.xpose.msra.mxu0 0.0
  %1250 = vmatprep.mubr.f32.mxu0 0.0
  %1251 = vmatmul.mubr.f32.gmra.mrb[0].mxu0 %v1181
  %v1252 = vpop.f32.mrb[0].mxu0
  %v1253 = vadd.f32 0.0, %v1252
  %v1254 = vpop.f32.mrb[0].mxu0
  %1255 = vdwg.mxu0
  %vm1256 = vcmask 64512
  %v1257 = vsel %vm1256, %v1025, -inf
  %1258 = vmax.xlane.f32.xlu0 %v1257
  %v1259 = vpop.xlane.xlu0 %1258
  %v1260 = vsel %vm1256, %v1101, -inf
  %1261 = vmax.xlane.f32.xlu0 %v1260
  %v1262 = vpop.xlane.xlu0 %1261
  %v1263 = vsel %vm1256, %v1177, -inf
  %1264 = vmax.xlane.f32.xlu0 %v1263
  %v1265 = vpop.xlane.xlu0 %1264
  %v1266 = vsel %vm1256, %v1253, -inf
  %1267 = vmax.xlane.f32.xlu0 %v1266
  %v1268 = vpop.xlane.xlu0 %1267
  %v1269 = vsub.f32 %v1025, %v1259
  %v1270 = vsub.f32 %v1101, %v1262
  %v1271 = vsub.f32 %v1177, %v1265
  %v1272 = vsub.f32 %v1253, %v1268
  %v1273 = vmul.f32 %v1269, 1.442695
  %v1274 = vpow.pop %v1273
  %v1275 = vmul.f32 %v1270, 1.442695
  %v1276 = vpow.pop %v1275
  %v1277 = vmul.f32 %v1271, 1.442695
  %v1278 = vpow.pop %v1277
  %v1279 = vmul.f32 %v1272, 1.442695
  %v1280 = vpow.pop %v1279
  %v1281 = vsel %vm1256, %v1274, 0.0
  %1282 = vadd.xlane.f32.xlu0 %v1281
  %v1283 = vpop.xlane.xlu0 %1282
  %v1284 = vsel %vm1256, %v1276, 0.0
  %1285 = vadd.xlane.f32.xlu0 %v1284
  %v1286 = vpop.xlane.xlu0 %1285
  %v1287 = vsel %vm1256, %v1278, 0.0
  %1288 = vadd.xlane.f32.xlu0 %v1287
  %v1289 = vpop.xlane.xlu0 %1288
  %v1290 = vsel %vm1256, %v1280, 0.0
  %1291 = vadd.xlane.f32.xlu0 %v1290
  %v1292 = vpop.xlane.xlu0 %1291
  %v1293 = vrcp.pop %v1283
  %v1294 = vrcp.pop %v1286
  %v1295 = vrcp.pop %v1289
  %v1296 = vrcp.pop %v1292
  %v1297 = vmul.f32 %v1274, %v1293
  %v1298 = vmul.f32 %v1276, %v1294
  %v1299 = vmul.f32 %v1278, %v1295
  %v1300 = vmul.f32 %v1280, %v1296
  %v1302 = vsel %vm1256, %v1297, 0
  %1304 = vmatprep.subr.mxu0 0.0
  %1305 = vmatpush1.msra.mxu0 %v947
  %1306 = vmatprep.subr.mxu0 0.0
  %1307 = vmatpush1.msra.mxu0 0.0
  %1308 = vmatprep.subr.mxu0 0.0
  %1309 = vmatpush1.msra.mxu0 0.0
  %1310 = vmatprep.subr.mxu0 0.0
  %1311 = vmatpush1.msra.mxu0 0.0
  %1312 = vmatprep.subr.mxu0 0.0
  %1313 = vmatpush1.msra.mxu0 0.0
  %1314 = vmatprep.subr.mxu0 0.0
  %1315 = vmatpush1.msra.mxu0 0.0
  %1316 = vmatprep.subr.mxu0 0.0
  %1317 = vmatpush1.msra.mxu0 0.0
  %1318 = vmatprep.subr.mxu0 0.0
  %1319 = vmatpush1.msra.mxu0 0.0
  %1320 = vmatprep.subr.mxu0 0.0
  %1321 = vmatpush1.msra.mxu0 0.0
  %1322 = vmatprep.subr.mxu0 0.0
  %1323 = vmatpush1.msra.mxu0 0.0
  %1324 = vmatprep.subr.mxu0 0.0
  %1325 = vmatpush1.msra.mxu0 0.0
  %1326 = vmatprep.subr.mxu0 0.0
  %1327 = vmatpush1.msra.mxu0 0.0
  %1328 = vmatprep.subr.mxu0 0.0
  %1329 = vmatpush1.msra.mxu0 0.0
  %1330 = vmatprep.subr.mxu0 0.0
  %1331 = vmatpush1.msra.mxu0 0.0
  %1332 = vmatprep.subr.mxu0 0.0
  %1333 = vmatpush1.msra.mxu0 0.0
  %1334 = vmatprep.subr.mxu0 0.0
  %1335 = vmatpush1.msra.mxu0 0.0
  %1336 = vmatprep.subr.mxu0 0.0
  %1337 = vmatpush1.msra.mxu0 0.0
  %1338 = vmatprep.subr.mxu0 0.0
  %1339 = vmatpush1.msra.mxu0 0.0
  %1340 = vmatprep.subr.mxu0 0.0
  %1341 = vmatpush1.msra.mxu0 0.0
  %1342 = vmatprep.subr.mxu0 0.0
  %1343 = vmatpush1.msra.mxu0 0.0
  %1344 = vmatprep.subr.mxu0 0.0
  %1345 = vmatpush1.msra.mxu0 0.0
  %1346 = vmatprep.subr.mxu0 0.0
  %1347 = vmatpush1.msra.mxu0 0.0
  %1348 = vmatprep.subr.mxu0 0.0
  %1349 = vmatpush1.msra.mxu0 0.0
  %1350 = vmatprep.subr.mxu0 0.0
  %1351 = vmatpush1.msra.mxu0 0.0
  %1352 = vmatprep.subr.mxu0 0.0
  %1353 = vmatpush1.msra.mxu0 0.0
  %1354 = vmatprep.subr.mxu0 0.0
  %1355 = vmatpush1.msra.mxu0 0.0
  %1356 = vmatprep.subr.mxu0 0.0
  %1357 = vmatpush1.msra.mxu0 0.0
  %1358 = vmatprep.subr.mxu0 0.0
  %1359 = vmatpush1.msra.mxu0 0.0
  %1360 = vmatprep.subr.mxu0 0.0
  %1361 = vmatpush1.msra.mxu0 0.0
  %1362 = vmatprep.subr.mxu0 0.0
  %1363 = vmatpush1.msra.mxu0 0.0
  %1364 = vmatprep.subr.mxu0 0.0
  %1365 = vmatpush1.msra.mxu0 0.0
  %1366 = vmatprep.subr.mxu0 0.0
  %1367 = vmatpush1.msra.mxu0 0.0
  %1368 = vmatprep.mubr.f32.mxu0 0.0
  %1369 = vmatmul.mubr.f32.gmra.mrb[0].mxu0 %v1302
  %v1370 = vpop.f32.mrb[0].mxu0
  %v1371 = vadd.f32 0.0, %v1370
  %v1372 = vpop.f32.mrb[0].mxu0
  %1373 = vdwg.mxu0
  %v1375 = vsel %vm1256, %v1298, 0
  %1377 = vmatprep.subr.mxu0 0.0
  %1378 = vmatpush1.msra.mxu0 %v948
  %1379 = vmatprep.subr.mxu0 0.0
  %1380 = vmatpush1.msra.mxu0 0.0
  %1381 = vmatprep.subr.mxu0 0.0
  %1382 = vmatpush1.msra.mxu0 0.0
  %1383 = vmatprep.subr.mxu0 0.0
  %1384 = vmatpush1.msra.mxu0 0.0
  %1385 = vmatprep.subr.mxu0 0.0
  %1386 = vmatpush1.msra.mxu0 0.0
  %1387 = vmatprep.subr.mxu0 0.0
  %1388 = vmatpush1.msra.mxu0 0.0
  %1389 = vmatprep.subr.mxu0 0.0
  %1390 = vmatpush1.msra.mxu0 0.0
  %1391 = vmatprep.subr.mxu0 0.0
  %1392 = vmatpush1.msra.mxu0 0.0
  %1393 = vmatprep.subr.mxu0 0.0
  %1394 = vmatpush1.msra.mxu0 0.0
  %1395 = vmatprep.subr.mxu0 0.0
  %1396 = vmatpush1.msra.mxu0 0.0
  %1397 = vmatprep.subr.mxu0 0.0
  %1398 = vmatpush1.msra.mxu0 0.0
  %1399 = vmatprep.subr.mxu0 0.0
  %1400 = vmatpush1.msra.mxu0 0.0
  %1401 = vmatprep.subr.mxu0 0.0
  %1402 = vmatpush1.msra.mxu0 0.0
  %1403 = vmatprep.subr.mxu0 0.0
  %1404 = vmatpush1.msra.mxu0 0.0
  %1405 = vmatprep.subr.mxu0 0.0
  %1406 = vmatpush1.msra.mxu0 0.0
  %1407 = vmatprep.subr.mxu0 0.0
  %1408 = vmatpush1.msra.mxu0 0.0
  %1409 = vmatprep.subr.mxu0 0.0
  %1410 = vmatpush1.msra.mxu0 0.0
  %1411 = vmatprep.subr.mxu0 0.0
  %1412 = vmatpush1.msra.mxu0 0.0
  %1413 = vmatprep.subr.mxu0 0.0
  %1414 = vmatpush1.msra.mxu0 0.0
  %1415 = vmatprep.subr.mxu0 0.0
  %1416 = vmatpush1.msra.mxu0 0.0
  %1417 = vmatprep.subr.mxu0 0.0
  %1418 = vmatpush1.msra.mxu0 0.0
  %1419 = vmatprep.subr.mxu0 0.0
  %1420 = vmatpush1.msra.mxu0 0.0
  %1421 = vmatprep.subr.mxu0 0.0
  %1422 = vmatpush1.msra.mxu0 0.0
  %1423 = vmatprep.subr.mxu0 0.0
  %1424 = vmatpush1.msra.mxu0 0.0
  %1425 = vmatprep.subr.mxu0 0.0
  %1426 = vmatpush1.msra.mxu0 0.0
  %1427 = vmatprep.subr.mxu0 0.0
  %1428 = vmatpush1.msra.mxu0 0.0
  %1429 = vmatprep.subr.mxu0 0.0
  %1430 = vmatpush1.msra.mxu0 0.0
  %1431 = vmatprep.subr.mxu0 0.0
  %1432 = vmatpush1.msra.mxu0 0.0
  %1433 = vmatprep.subr.mxu0 0.0
  %1434 = vmatpush1.msra.mxu0 0.0
  %1435 = vmatprep.subr.mxu0 0.0
  %1436 = vmatpush1.msra.mxu0 0.0
  %1437 = vmatprep.subr.mxu0 0.0
  %1438 = vmatpush1.msra.mxu0 0.0
  %1439 = vmatprep.subr.mxu0 0.0
  %1440 = vmatpush1.msra.mxu0 0.0
  %1441 = vmatprep.mubr.f32.mxu0 0.0
  %1442 = vmatmul.mubr.f32.gmra.mrb[0].mxu0 %v1375
  %v1443 = vpop.f32.mrb[0].mxu0
  %v1444 = vadd.f32 0.0, %v1443
  %v1445 = vpop.f32.mrb[0].mxu0
  %1446 = vdwg.mxu0
  %v1448 = vsel %vm1256, %v1299, 0
  %1450 = vmatprep.subr.mxu0 0.0
  %1451 = vmatpush1.msra.mxu0 %v949
  %1452 = vmatprep.subr.mxu0 0.0
  %1453 = vmatpush1.msra.mxu0 0.0
  %1454 = vmatprep.subr.mxu0 0.0
  %1455 = vmatpush1.msra.mxu0 0.0
  %1456 = vmatprep.subr.mxu0 0.0
  %1457 = vmatpush1.msra.mxu0 0.0
  %1458 = vmatprep.subr.mxu0 0.0
  %1459 = vmatpush1.msra.mxu0 0.0
  %1460 = vmatprep.subr.mxu0 0.0
  %1461 = vmatpush1.msra.mxu0 0.0
  %1462 = vmatprep.subr.mxu0 0.0
  %1463 = vmatpush1.msra.mxu0 0.0
  %1464 = vmatprep.subr.mxu0 0.0
  %1465 = vmatpush1.msra.mxu0 0.0
  %1466 = vmatprep.subr.mxu0 0.0
  %1467 = vmatpush1.msra.mxu0 0.0
  %1468 = vmatprep.subr.mxu0 0.0
  %1469 = vmatpush1.msra.mxu0 0.0
  %1470 = vmatprep.subr.mxu0 0.0
  %1471 = vmatpush1.msra.mxu0 0.0
  %1472 = vmatprep.subr.mxu0 0.0
  %1473 = vmatpush1.msra.mxu0 0.0
  %1474 = vmatprep.subr.mxu0 0.0
  %1475 = vmatpush1.msra.mxu0 0.0
  %1476 = vmatprep.subr.mxu0 0.0
  %1477 = vmatpush1.msra.mxu0 0.0
  %1478 = vmatprep.subr.mxu0 0.0
  %1479 = vmatpush1.msra.mxu0 0.0
  %1480 = vmatprep.subr.mxu0 0.0
  %1481 = vmatpush1.msra.mxu0 0.0
  %1482 = vmatprep.subr.mxu0 0.0
  %1483 = vmatpush1.msra.mxu0 0.0
  %1484 = vmatprep.subr.mxu0 0.0
  %1485 = vmatpush1.msra.mxu0 0.0
  %1486 = vmatprep.subr.mxu0 0.0
  %1487 = vmatpush1.msra.mxu0 0.0
  %1488 = vmatprep.subr.mxu0 0.0
  %1489 = vmatpush1.msra.mxu0 0.0
  %1490 = vmatprep.subr.mxu0 0.0
  %1491 = vmatpush1.msra.mxu0 0.0
  %1492 = vmatprep.subr.mxu0 0.0
  %1493 = vmatpush1.msra.mxu0 0.0
  %1494 = vmatprep.subr.mxu0 0.0
  %1495 = vmatpush1.msra.mxu0 0.0
  %1496 = vmatprep.subr.mxu0 0.0
  %1497 = vmatpush1.msra.mxu0 0.0
  %1498 = vmatprep.subr.mxu0 0.0
  %1499 = vmatpush1.msra.mxu0 0.0
  %1500 = vmatprep.subr.mxu0 0.0
  %1501 = vmatpush1.msra.mxu0 0.0
  %1502 = vmatprep.subr.mxu0 0.0
  %1503 = vmatpush1.msra.mxu0 0.0
  %1504 = vmatprep.subr.mxu0 0.0
  %1505 = vmatpush1.msra.mxu0 0.0
  %1506 = vmatprep.subr.mxu0 0.0
  %1507 = vmatpush1.msra.mxu0 0.0
  %1508 = vmatprep.subr.mxu0 0.0
  %1509 = vmatpush1.msra.mxu0 0.0
  %1510 = vmatprep.subr.mxu0 0.0
  %1511 = vmatpush1.msra.mxu0 0.0
  %1512 = vmatprep.subr.mxu0 0.0
  %1513 = vmatpush1.msra.mxu0 0.0
  %1514 = vmatprep.mubr.f32.mxu0 0.0
  %1515 = vmatmul.mubr.f32.gmra.mrb[0].mxu0 %v1448
  %v1516 = vpop.f32.mrb[0].mxu0
  %v1517 = vadd.f32 0.0, %v1516
  %v1518 = vpop.f32.mrb[0].mxu0
  %1519 = vdwg.mxu0
  %v1521 = vsel %vm1256, %v1300, 0
  %1523 = vmatprep.subr.mxu0 0.0
  %1524 = vmatpush1.msra.mxu0 %v950
  %1525 = vmatprep.subr.mxu0 0.0
  %1526 = vmatpush1.msra.mxu0 0.0
  %1527 = vmatprep.subr.mxu0 0.0
  %1528 = vmatpush1.msra.mxu0 0.0
  %1529 = vmatprep.subr.mxu0 0.0
  %1530 = vmatpush1.msra.mxu0 0.0
  %1531 = vmatprep.subr.mxu0 0.0
  %1532 = vmatpush1.msra.mxu0 0.0
  %1533 = vmatprep.subr.mxu0 0.0
  %1534 = vmatpush1.msra.mxu0 0.0
  %1535 = vmatprep.subr.mxu0 0.0
  %1536 = vmatpush1.msra.mxu0 0.0
  %1537 = vmatprep.subr.mxu0 0.0
  %1538 = vmatpush1.msra.mxu0 0.0
  %1539 = vmatprep.subr.mxu0 0.0
  %1540 = vmatpush1.msra.mxu0 0.0
  %1541 = vmatprep.subr.mxu0 0.0
  %1542 = vmatpush1.msra.mxu0 0.0
  %1543 = vmatprep.subr.mxu0 0.0
  %1544 = vmatpush1.msra.mxu0 0.0
  %1545 = vmatprep.subr.mxu0 0.0
  %1546 = vmatpush1.msra.mxu0 0.0
  %1547 = vmatprep.subr.mxu0 0.0
  %1548 = vmatpush1.msra.mxu0 0.0
  %1549 = vmatprep.subr.mxu0 0.0
  %1550 = vmatpush1.msra.mxu0 0.0
  %1551 = vmatprep.subr.mxu0 0.0
  %1552 = vmatpush1.msra.mxu0 0.0
  %1553 = vmatprep.subr.mxu0 0.0
  %1554 = vmatpush1.msra.mxu0 0.0
  %1555 = vmatprep.subr.mxu0 0.0
  %1556 = vmatpush1.msra.mxu0 0.0
  %1557 = vmatprep.subr.mxu0 0.0
  %1558 = vmatpush1.msra.mxu0 0.0
  %1559 = vmatprep.subr.mxu0 0.0
  %1560 = vmatpush1.msra.mxu0 0.0
  %1561 = vmatprep.subr.mxu0 0.0
  %1562 = vmatpush1.msra.mxu0 0.0
  %1563 = vmatprep.subr.mxu0 0.0
  %1564 = vmatpush1.msra.mxu0 0.0
  %1565 = vmatprep.subr.mxu0 0.0
  %1566 = vmatpush1.msra.mxu0 0.0
  %1567 = vmatprep.subr.mxu0 0.0
  %1568 = vmatpush1.msra.mxu0 0.0
  %1569 = vmatprep.subr.mxu0 0.0
  %1570 = vmatpush1.msra.mxu0 0.0
  %1571 = vmatprep.subr.mxu0 0.0
  %1572 = vmatpush1.msra.mxu0 0.0
  %1573 = vmatprep.subr.mxu0 0.0
  %1574 = vmatpush1.msra.mxu0 0.0
  %1575 = vmatprep.subr.mxu0 0.0
  %1576 = vmatpush1.msra.mxu0 0.0
  %1577 = vmatprep.subr.mxu0 0.0
  %1578 = vmatpush1.msra.mxu0 0.0
  %1579 = vmatprep.subr.mxu0 0.0
  %1580 = vmatpush1.msra.mxu0 0.0
  %1581 = vmatprep.subr.mxu0 0.0
  %1582 = vmatpush1.msra.mxu0 0.0
  %1583 = vmatprep.subr.mxu0 0.0
  %1584 = vmatpush1.msra.mxu0 0.0
  %1585 = vmatprep.subr.mxu0 0.0
  %1586 = vmatpush1.msra.mxu0 0.0
  %1587 = vmatprep.mubr.f32.mxu0 0.0
  %1588 = vmatmul.mubr.f32.gmra.mrb[0].mxu0 %v1521
  %v1589 = vpop.f32.mrb[0].mxu0
  %v1590 = vadd.f32 0.0, %v1589
  %v1591 = vpop.f32.mrb[0].mxu0
  %1592 = vdwg.mxu0
  %v1593 = vcombine.low %v1371, %v1517
  %v1594 = vcombine.high %v1371, %v1517
  %v1596 = vunpack.c.l.s4 1983009808
  %v1597 = vunpack.c.0.s8 %v1596
  %v1598 = vlaneseq
  %v1599 = vshrl.u32 %v1598, 7
  %v1600 = vsub.s32 %v1597, %v1599
  %v1601 = vrot.slane %v1593, %v1600
  %v1603 = vunpack.c.l.s4 1983009808
  %v1604 = vunpack.c.0.s8 %v1603
  %v1605 = vlaneseq
  %v1606 = vshrl.u32 %v1605, 7
  %v1607 = vsub.s32 %v1604, %v1606
  %v1608 = vrot.slane %v1594, %v1607
  %v1609 = vcombine.low %v1444, %v1590
  %v1610 = vcombine.high %v1444, %v1590
  %v1612 = vunpack.c.l.s4 1983009808
  %v1613 = vunpack.c.0.s8 %v1612
  %v1614 = vlaneseq
  %v1615 = vshrl.u32 %v1614, 7
  %v1616 = vsub.s32 %v1613, %v1615
  %v1617 = vrot.slane %v1609, %v1616
  %v1619 = vunpack.c.l.s4 1983009808
  %v1620 = vunpack.c.0.s8 %v1619
  %v1621 = vlaneseq
  %v1622 = vshrl.u32 %v1621, 7
  %v1623 = vsub.s32 %v1620, %v1622
  %v1624 = vrot.slane %v1610, %v1623
  %v1625 = vcombine.low %v1601, %v1617
  %v1626 = vcombine.high %v1601, %v1617
  %v1628 = vunpack.c.l.s4 1934713408
  %v1629 = vunpack.c.0.s8 %v1628
  %v1630 = vlaneseq
  %v1631 = vshrl.u32 %v1630, 7
  %v1632 = vsub.s32 %v1629, %v1631
  %v1633 = vrot.slane %v1625, %v1632
  %v1635 = vunpack.c.l.s4 1934713408
  %v1636 = vunpack.c.0.s8 %v1635
  %v1637 = vlaneseq
  %v1638 = vshrl.u32 %v1637, 7
  %v1639 = vsub.s32 %v1636, %v1638
  %v1640 = vrot.slane %v1626, %v1639
  %v1641 = vcombine.low %v1608, %v1624
  %v1642 = vcombine.high %v1608, %v1624
  %v1644 = vunpack.c.l.s4 1934713408
  %v1645 = vunpack.c.0.s8 %v1644
  %v1646 = vlaneseq
  %v1647 = vshrl.u32 %v1646, 7
  %v1648 = vsub.s32 %v1645, %v1647
  %v1649 = vrot.slane %v1641, %v1648
  %v1651 = vunpack.c.l.s4 1934713408
  %v1652 = vunpack.c.0.s8 %v1651
  %v1653 = vlaneseq
  %v1654 = vshrl.u32 %v1653, 7
  %v1655 = vsub.s32 %v1652, %v1654
  %v1656 = vrot.slane %v1642, %v1655
  %v1657 = vcombine.low %v345, %v347
  %v1659 = vunpack.c.l.s4 1983009808
  %v1660 = vunpack.c.0.s8 %v1659
  %v1661 = vlaneseq
  %v1662 = vshrl.u32 %v1661, 7
  %v1663 = vsub.s32 %v1660, %v1662
  %v1664 = vrot.slane %v1657, %v1663
  %v1665 = vcombine.low %v346, %v348
  %v1667 = vunpack.c.l.s4 1983009808
  %v1668 = vunpack.c.0.s8 %v1667
  %v1669 = vlaneseq
  %v1670 = vshrl.u32 %v1669, 7
  %v1671 = vsub.s32 %v1668, %v1670
  %v1672 = vrot.slane %v1665, %v1671
  %v1673 = vcombine.low %v413, %v415
  %v1675 = vunpack.c.l.s4 1983009808
  %v1676 = vunpack.c.0.s8 %v1675
  %v1677 = vlaneseq
  %v1678 = vshrl.u32 %v1677, 7
  %v1679 = vsub.s32 %v1676, %v1678
  %v1680 = vrot.slane %v1673, %v1679
  %v1681 = vcombine.low %v414, %v416
  %v1683 = vunpack.c.l.s4 1983009808
  %v1684 = vunpack.c.0.s8 %v1683
  %v1685 = vlaneseq
  %v1686 = vshrl.u32 %v1685, 7
  %v1687 = vsub.s32 %v1684, %v1686
  %v1688 = vrot.slane %v1681, %v1687
  %v1689 = vcombine.low %v1664, %v1672
  %v1690 = vcombine.high %v1664, %v1672
  %v1692 = vunpack.c.l.s4 1934713408
  %v1693 = vunpack.c.0.s8 %v1692
  %v1694 = vlaneseq
  %v1695 = vshrl.u32 %v1694, 7
  %v1696 = vsub.s32 %v1693, %v1695
  %v1697 = vrot.slane %v1689, %v1696
  %v1699 = vunpack.c.l.s4 1934713408
  %v1700 = vunpack.c.0.s8 %v1699
  %v1701 = vlaneseq
  %v1702 = vshrl.u32 %v1701, 7
  %v1703 = vsub.s32 %v1700, %v1702
  %v1704 = vrot.slane %v1690, %v1703
  %v1705 = vcombine.low %v1680, %v1688
  %v1706 = vcombine.high %v1680, %v1688
  %v1708 = vunpack.c.l.s4 1934713408
  %v1709 = vunpack.c.0.s8 %v1708
  %v1710 = vlaneseq
  %v1711 = vshrl.u32 %v1710, 7
  %v1712 = vsub.s32 %v1709, %v1711
  %v1713 = vrot.slane %v1705, %v1712
  %v1715 = vunpack.c.l.s4 1934713408
  %v1716 = vunpack.c.0.s8 %v1715
  %v1717 = vlaneseq
  %v1718 = vshrl.u32 %v1717, 7
  %v1719 = vsub.s32 %v1716, %v1718
  %v1720 = vrot.slane %v1706, %v1719
  %v1721 = vcombine.low %v1697, %v1713
  %v1722 = vcombine.high %v1697, %v1713
  %v1723 = vcombine.low %v1704, %v1720
  %v1724 = vcombine.high %v1704, %v1720
  %v1725 = vcombine.low %v519, %v521
  %v1727 = vunpack.c.l.s4 1983009808
  %v1728 = vunpack.c.0.s8 %v1727
  %v1729 = vlaneseq
  %v1730 = vshrl.u32 %v1729, 7
  %v1731 = vsub.s32 %v1728, %v1730
  %v1732 = vrot.slane %v1725, %v1731
  %v1733 = vcombine.low %v520, %v522
  %v1735 = vunpack.c.l.s4 1983009808
  %v1736 = vunpack.c.0.s8 %v1735
  %v1737 = vlaneseq
  %v1738 = vshrl.u32 %v1737, 7
  %v1739 = vsub.s32 %v1736, %v1738
  %v1740 = vrot.slane %v1733, %v1739
  %v1741 = vcombine.low %v587, %v589
  %v1743 = vunpack.c.l.s4 1983009808
  %v1744 = vunpack.c.0.s8 %v1743
  %v1745 = vlaneseq
  %v1746 = vshrl.u32 %v1745, 7
  %v1747 = vsub.s32 %v1744, %v1746
  %v1748 = vrot.slane %v1741, %v1747
  %v1749 = vcombine.low %v588, %v590
  %v1751 = vunpack.c.l.s4 1983009808
  %v1752 = vunpack.c.0.s8 %v1751
  %v1753 = vlaneseq
  %v1754 = vshrl.u32 %v1753, 7
  %v1755 = vsub.s32 %v1752, %v1754
  %v1756 = vrot.slane %v1749, %v1755
  %v1757 = vcombine.low %v1732, %v1740
  %v1758 = vcombine.high %v1732, %v1740
  %v1760 = vunpack.c.l.s4 1934713408
  %v1761 = vunpack.c.0.s8 %v1760
  %v1762 = vlaneseq
  %v1763 = vshrl.u32 %v1762, 7
  %v1764 = vsub.s32 %v1761, %v1763
  %v1765 = vrot.slane %v1757, %v1764
  %v1767 = vunpack.c.l.s4 1934713408
  %v1768 = vunpack.c.0.s8 %v1767
  %v1769 = vlaneseq
  %v1770 = vshrl.u32 %v1769, 7
  %v1771 = vsub.s32 %v1768, %v1770
  %v1772 = vrot.slane %v1758, %v1771
  %v1773 = vcombine.low %v1748, %v1756
  %v1774 = vcombine.high %v1748, %v1756
  %v1776 = vunpack.c.l.s4 1934713408
  %v1777 = vunpack.c.0.s8 %v1776
  %v1778 = vlaneseq
  %v1779 = vshrl.u32 %v1778, 7
  %v1780 = vsub.s32 %v1777, %v1779
  %v1781 = vrot.slane %v1773, %v1780
  %v1783 = vunpack.c.l.s4 1934713408
  %v1784 = vunpack.c.0.s8 %v1783
  %v1785 = vlaneseq
  %v1786 = vshrl.u32 %v1785, 7
  %v1787 = vsub.s32 %v1784, %v1786
  %v1788 = vrot.slane %v1774, %v1787
  %v1789 = vcombine.low %v1765, %v1781
  %v1790 = vcombine.high %v1765, %v1781
  %v1791 = vcombine.low %v1772, %v1788
  %v1792 = vcombine.high %v1772, %v1788
  %v1793 = vcombine.low %v675, %v677
  %v1795 = vunpack.c.l.s4 1983009808
  %v1796 = vunpack.c.0.s8 %v1795
  %v1797 = vlaneseq
  %v1798 = vshrl.u32 %v1797, 7
  %v1799 = vsub.s32 %v1796, %v1798
  %v1800 = vrot.slane %v1793, %v1799
  %v1801 = vcombine.low %v676, %v678
  %v1803 = vunpack.c.l.s4 1983009808
  %v1804 = vunpack.c.0.s8 %v1803
  %v1805 = vlaneseq
  %v1806 = vshrl.u32 %v1805, 7
  %v1807 = vsub.s32 %v1804, %v1806
  %v1808 = vrot.slane %v1801, %v1807
  %v1809 = vcombine.low %v743, %v745
  %v1811 = vunpack.c.l.s4 1983009808
  %v1812 = vunpack.c.0.s8 %v1811
  %v1813 = vlaneseq
  %v1814 = vshrl.u32 %v1813, 7
  %v1815 = vsub.s32 %v1812, %v1814
  %v1816 = vrot.slane %v1809, %v1815
  %v1817 = vcombine.low %v744, %v746
  %v1819 = vunpack.c.l.s4 1983009808
  %v1820 = vunpack.c.0.s8 %v1819
  %v1821 = vlaneseq
  %v1822 = vshrl.u32 %v1821, 7
  %v1823 = vsub.s32 %v1820, %v1822
  %v1824 = vrot.slane %v1817, %v1823
  %v1825 = vcombine.low %v1800, %v1808
  %v1826 = vcombine.high %v1800, %v1808
  %v1828 = vunpack.c.l.s4 1934713408
  %v1829 = vunpack.c.0.s8 %v1828
  %v1830 = vlaneseq
  %v1831 = vshrl.u32 %v1830, 7
  %v1832 = vsub.s32 %v1829, %v1831
  %v1833 = vrot.slane %v1825, %v1832
  %v1835 = vunpack.c.l.s4 1934713408
  %v1836 = vunpack.c.0.s8 %v1835
  %v1837 = vlaneseq
  %v1838 = vshrl.u32 %v1837, 7
  %v1839 = vsub.s32 %v1836, %v1838
  %v1840 = vrot.slane %v1826, %v1839
  %v1841 = vcombine.low %v1816, %v1824
  %v1842 = vcombine.high %v1816, %v1824
  %v1844 = vunpack.c.l.s4 1934713408
  %v1845 = vunpack.c.0.s8 %v1844
  %v1846 = vlaneseq
  %v1847 = vshrl.u32 %v1846, 7
  %v1848 = vsub.s32 %v1845, %v1847
  %v1849 = vrot.slane %v1841, %v1848
  %v1851 = vunpack.c.l.s4 1934713408
  %v1852 = vunpack.c.0.s8 %v1851
  %v1853 = vlaneseq
  %v1854 = vshrl.u32 %v1853, 7
  %v1855 = vsub.s32 %v1852, %v1854
  %v1856 = vrot.slane %v1842, %v1855
  %v1857 = vcombine.low %v1833, %v1849
  %v1858 = vcombine.high %v1833, %v1849
  %v1859 = vcombine.low %v1840, %v1856
  %v1860 = vcombine.high %v1840, %v1856
  %v1862 = vsel %vm951, %v1721, 0
  %v1865 = vsel %vm951, %v1789, 0
  %1867 = vmatprep.subr.mxu0 0.0
  %1868 = vmatpush1.xpose.msra.mxu0 %v1865
  %1869 = vmatprep.subr.mxu0 0.0
  %1870 = vmatpush1.xpose.msra.mxu0 0.0
  %1871 = vmatprep.subr.mxu0 0.0
  %1872 = vmatpush1.xpose.msra.mxu0 0.0
  %1873 = vmatprep.subr.mxu0 0.0
  %1874 = vmatpush1.xpose.msra.mxu0 0.0
  %1875 = vmatprep.subr.mxu0 0.0
  %1876 = vmatpush1.xpose.msra.mxu0 0.0
  %1877 = vmatprep.subr.mxu0 0.0
  %1878 = vmatpush1.xpose.msra.mxu0 0.0
  %1879 = vmatprep.subr.mxu0 0.0
  %1880 = vmatpush1.xpose.msra.mxu0 0.0
  %1881 = vmatprep.subr.mxu0 0.0
  %1882 = vmatpush1.xpose.msra.mxu0 0.0
  %1883 = vmatprep.subr.mxu0 0.0
  %1884 = vmatpush1.xpose.msra.mxu0 0.0
  %1885 = vmatprep.subr.mxu0 0.0
  %1886 = vmatpush1.xpose.msra.mxu0 0.0
  %1887 = vmatprep.subr.mxu0 0.0
  %1888 = vmatpush1.xpose.msra.mxu0 0.0
  %1889 = vmatprep.subr.mxu0 0.0
  %1890 = vmatpush1.xpose.msra.mxu0 0.0
  %1891 = vmatprep.subr.mxu0 0.0
  %1892 = vmatpush1.xpose.msra.mxu0 0.0
  %1893 = vmatprep.subr.mxu0 0.0
  %1894 = vmatpush1.xpose.msra.mxu0 0.0
  %1895 = vmatprep.subr.mxu0 0.0
  %1896 = vmatpush1.xpose.msra.mxu0 0.0
  %1897 = vmatprep.subr.mxu0 0.0
  %1898 = vmatpush1.xpose.msra.mxu0 0.0
  %1899 = vmatprep.subr.mxu0 0.0
  %1900 = vmatpush1.xpose.msra.mxu0 0.0
  %1901 = vmatprep.subr.mxu0 0.0
  %1902 = vmatpush1.xpose.msra.mxu0 0.0
  %1903 = vmatprep.subr.mxu0 0.0
  %1904 = vmatpush1.xpose.msra.mxu0 0.0
  %1905 = vmatprep.subr.mxu0 0.0
  %1906 = vmatpush1.xpose.msra.mxu0 0.0
  %1907 = vmatprep.subr.mxu0 0.0
  %1908 = vmatpush1.xpose.msra.mxu0 0.0
  %1909 = vmatprep.subr.mxu0 0.0
  %1910 = vmatpush1.xpose.msra.mxu0 0.0
  %1911 = vmatprep.subr.mxu0 0.0
  %1912 = vmatpush1.xpose.msra.mxu0 0.0
  %1913 = vmatprep.subr.mxu0 0.0
  %1914 = vmatpush1.xpose.msra.mxu0 0.0
  %1915 = vmatprep.subr.mxu0 0.0
  %1916 = vmatpush1.xpose.msra.mxu0 0.0
  %1917 = vmatprep.subr.mxu0 0.0
  %1918 = vmatpush1.xpose.msra.mxu0 0.0
  %1919 = vmatprep.subr.mxu0 0.0
  %1920 = vmatpush1.xpose.msra.mxu0 0.0
  %1921 = vmatprep.subr.mxu0 0.0
  %1922 = vmatpush1.xpose.msra.mxu0 0.0
  %1923 = vmatprep.subr.mxu0 0.0
  %1924 = vmatpush1.xpose.msra.mxu0 0.0
  %1925 = vmatprep.subr.mxu0 0.0
  %1926 = vmatpush1.xpose.msra.mxu0 0.0
  %1927 = vmatprep.subr.mxu0 0.0
  %1928 = vmatpush1.xpose.msra.mxu0 0.0
  %1929 = vmatprep.subr.mxu0 0.0
  %1930 = vmatpush1.xpose.msra.mxu0 0.0
  %1931 = vmatprep.mubr.f32.mxu0 0.0
  %1932 = vmatmul.mubr.f32.gmra.mrb[0].mxu0 %v1862
  %v1933 = vpop.f32.mrb[0].mxu0
  %v1934 = vadd.f32 0.0, %v1933
  %v1935 = vpop.f32.mrb[0].mxu0
  %1936 = vdwg.mxu0
  %v1938 = vsel %vm951, %v1722, 0
  %v1941 = vsel %vm951, %v1790, 0
  %1943 = vmatprep.subr.mxu0 0.0
  %1944 = vmatpush1.xpose.msra.mxu0 %v1941
  %1945 = vmatprep.subr.mxu0 0.0
  %1946 = vmatpush1.xpose.msra.mxu0 0.0
  %1947 = vmatprep.subr.mxu0 0.0
  %1948 = vmatpush1.xpose.msra.mxu0 0.0
  %1949 = vmatprep.subr.mxu0 0.0
  %1950 = vmatpush1.xpose.msra.mxu0 0.0
  %1951 = vmatprep.subr.mxu0 0.0
  %1952 = vmatpush1.xpose.msra.mxu0 0.0
  %1953 = vmatprep.subr.mxu0 0.0
  %1954 = vmatpush1.xpose.msra.mxu0 0.0
  %1955 = vmatprep.subr.mxu0 0.0
  %1956 = vmatpush1.xpose.msra.mxu0 0.0
  %1957 = vmatprep.subr.mxu0 0.0
  %1958 = vmatpush1.xpose.msra.mxu0 0.0
  %1959 = vmatprep.subr.mxu0 0.0
  %1960 = vmatpush1.xpose.msra.mxu0 0.0
  %1961 = vmatprep.subr.mxu0 0.0
  %1962 = vmatpush1.xpose.msra.mxu0 0.0
  %1963 = vmatprep.subr.mxu0 0.0
  %1964 = vmatpush1.xpose.msra.mxu0 0.0
  %1965 = vmatprep.subr.mxu0 0.0
  %1966 = vmatpush1.xpose.msra.mxu0 0.0
  %1967 = vmatprep.subr.mxu0 0.0
  %1968 = vmatpush1.xpose.msra.mxu0 0.0
  %1969 = vmatprep.subr.mxu0 0.0
  %1970 = vmatpush1.xpose.msra.mxu0 0.0
  %1971 = vmatprep.subr.mxu0 0.0
  %1972 = vmatpush1.xpose.msra.mxu0 0.0
  %1973 = vmatprep.subr.mxu0 0.0
  %1974 = vmatpush1.xpose.msra.mxu0 0.0
  %1975 = vmatprep.subr.mxu0 0.0
  %1976 = vmatpush1.xpose.msra.mxu0 0.0
  %1977 = vmatprep.subr.mxu0 0.0
  %1978 = vmatpush1.xpose.msra.mxu0 0.0
  %1979 = vmatprep.subr.mxu0 0.0
  %1980 = vmatpush1.xpose.msra.mxu0 0.0
  %1981 = vmatprep.subr.mxu0 0.0
  %1982 = vmatpush1.xpose.msra.mxu0 0.0
  %1983 = vmatprep.subr.mxu0 0.0
  %1984 = vmatpush1.xpose.msra.mxu0 0.0
  %1985 = vmatprep.subr.mxu0 0.0
  %1986 = vmatpush1.xpose.msra.mxu0 0.0
  %1987 = vmatprep.subr.mxu0 0.0
  %1988 = vmatpush1.xpose.msra.mxu0 0.0
  %1989 = vmatprep.subr.mxu0 0.0
  %1990 = vmatpush1.xpose.msra.mxu0 0.0
  %1991 = vmatprep.subr.mxu0 0.0
  %1992 = vmatpush1.xpose.msra.mxu0 0.0
  %1993 = vmatprep.subr.mxu0 0.0
  %1994 = vmatpush1.xpose.msra.mxu0 0.0
  %1995 = vmatprep.subr.mxu0 0.0
  %1996 = vmatpush1.xpose.msra.mxu0 0.0
  %1997 = vmatprep.subr.mxu0 0.0
  %1998 = vmatpush1.xpose.msra.mxu0 0.0
  %1999 = vmatprep.subr.mxu0 0.0
  %2000 = vmatpush1.xpose.msra.mxu0 0.0
  %2001 = vmatprep.subr.mxu0 0.0
  %2002 = vmatpush1.xpose.msra.mxu0 0.0
  %2003 = vmatprep.subr.mxu0 0.0
  %2004 = vmatpush1.xpose.msra.mxu0 0.0
  %2005 = vmatprep.subr.mxu0 0.0
  %2006 = vmatpush1.xpose.msra.mxu0 0.0
  %2007 = vmatprep.mubr.f32.mxu0 0.0
  %2008 = vmatmul.mubr.f32.gmra.mrb[0].mxu0 %v1938
  %v2009 = vpop.f32.mrb[0].mxu0
  %v2010 = vadd.f32 0.0, %v2009
  %v2011 = vpop.f32.mrb[0].mxu0
  %2012 = vdwg.mxu0
  %v2014 = vsel %vm951, %v1723, 0
  %v2017 = vsel %vm951, %v1791, 0
  %2019 = vmatprep.subr.mxu0 0.0
  %2020 = vmatpush1.xpose.msra.mxu0 %v2017
  %2021 = vmatprep.subr.mxu0 0.0
  %2022 = vmatpush1.xpose.msra.mxu0 0.0
  %2023 = vmatprep.subr.mxu0 0.0
  %2024 = vmatpush1.xpose.msra.mxu0 0.0
  %2025 = vmatprep.subr.mxu0 0.0
  %2026 = vmatpush1.xpose.msra.mxu0 0.0
  %2027 = vmatprep.subr.mxu0 0.0
  %2028 = vmatpush1.xpose.msra.mxu0 0.0
  %2029 = vmatprep.subr.mxu0 0.0
  %2030 = vmatpush1.xpose.msra.mxu0 0.0
  %2031 = vmatprep.subr.mxu0 0.0
  %2032 = vmatpush1.xpose.msra.mxu0 0.0
  %2033 = vmatprep.subr.mxu0 0.0
  %2034 = vmatpush1.xpose.msra.mxu0 0.0
  %2035 = vmatprep.subr.mxu0 0.0
  %2036 = vmatpush1.xpose.msra.mxu0 0.0
  %2037 = vmatprep.subr.mxu0 0.0
  %2038 = vmatpush1.xpose.msra.mxu0 0.0
  %2039 = vmatprep.subr.mxu0 0.0
  %2040 = vmatpush1.xpose.msra.mxu0 0.0
  %2041 = vmatprep.subr.mxu0 0.0
  %2042 = vmatpush1.xpose.msra.mxu0 0.0
  %2043 = vmatprep.subr.mxu0 0.0
  %2044 = vmatpush1.xpose.msra.mxu0 0.0
  %2045 = vmatprep.subr.mxu0 0.0
  %2046 = vmatpush1.xpose.msra.mxu0 0.0
  %2047 = vmatprep.subr.mxu0 0.0
  %2048 = vmatpush1.xpose.msra.mxu0 0.0
  %2049 = vmatprep.subr.mxu0 0.0
  %2050 = vmatpush1.xpose.msra.mxu0 0.0
  %2051 = vmatprep.subr.mxu0 0.0
  %2052 = vmatpush1.xpose.msra.mxu0 0.0
  %2053 = vmatprep.subr.mxu0 0.0
  %2054 = vmatpush1.xpose.msra.mxu0 0.0
  %2055 = vmatprep.subr.mxu0 0.0
  %2056 = vmatpush1.xpose.msra.mxu0 0.0
  %2057 = vmatprep.subr.mxu0 0.0
  %2058 = vmatpush1.xpose.msra.mxu0 0.0
  %2059 = vmatprep.subr.mxu0 0.0
  %2060 = vmatpush1.xpose.msra.mxu0 0.0
  %2061 = vmatprep.subr.mxu0 0.0
  %2062 = vmatpush1.xpose.msra.mxu0 0.0
  %2063 = vmatprep.subr.mxu0 0.0
  %2064 = vmatpush1.xpose.msra.mxu0 0.0
  %2065 = vmatprep.subr.mxu0 0.0
  %2066 = vmatpush1.xpose.msra.mxu0 0.0
  %2067 = vmatprep.subr.mxu0 0.0
  %2068 = vmatpush1.xpose.msra.mxu0 0.0
  %2069 = vmatprep.subr.mxu0 0.0
  %2070 = vmatpush1.xpose.msra.mxu0 0.0
  %2071 = vmatprep.subr.mxu0 0.0
  %2072 = vmatpush1.xpose.msra.mxu0 0.0
  %2073 = vmatprep.subr.mxu0 0.0
  %2074 = vmatpush1.xpose.msra.mxu0 0.0
  %2075 = vmatprep.subr.mxu0 0.0
  %2076 = vmatpush1.xpose.msra.mxu0 0.0
  %2077 = vmatprep.subr.mxu0 0.0
  %2078 = vmatpush1.xpose.msra.mxu0 0.0
  %2079 = vmatprep.subr.mxu0 0.0
  %2080 = vmatpush1.xpose.msra.mxu0 0.0
  %2081 = vmatprep.subr.mxu0 0.0
  %2082 = vmatpush1.xpose.msra.mxu0 0.0
  %2083 = vmatprep.mubr.f32.mxu0 0.0
  %2084 = vmatmul.mubr.f32.gmra.mrb[0].mxu0 %v2014
  %v2085 = vpop.f32.mrb[0].mxu0
  %v2086 = vadd.f32 0.0, %v2085
  %v2087 = vpop.f32.mrb[0].mxu0
  %2088 = vdwg.mxu0
  %v2090 = vsel %vm951, %v1724, 0
  %v2093 = vsel %vm951, %v1792, 0
  %2095 = vmatprep.subr.mxu0 0.0
  %2096 = vmatpush1.xpose.msra.mxu0 %v2093
  %2097 = vmatprep.subr.mxu0 0.0
  %2098 = vmatpush1.xpose.msra.mxu0 0.0
  %2099 = vmatprep.subr.mxu0 0.0
  %2100 = vmatpush1.xpose.msra.mxu0 0.0
  %2101 = vmatprep.subr.mxu0 0.0
  %2102 = vmatpush1.xpose.msra.mxu0 0.0
  %2103 = vmatprep.subr.mxu0 0.0
  %2104 = vmatpush1.xpose.msra.mxu0 0.0
  %2105 = vmatprep.subr.mxu0 0.0
  %2106 = vmatpush1.xpose.msra.mxu0 0.0
  %2107 = vmatprep.subr.mxu0 0.0
  %2108 = vmatpush1.xpose.msra.mxu0 0.0
  %2109 = vmatprep.subr.mxu0 0.0
  %2110 = vmatpush1.xpose.msra.mxu0 0.0
  %2111 = vmatprep.subr.mxu0 0.0
  %2112 = vmatpush1.xpose.msra.mxu0 0.0
  %2113 = vmatprep.subr.mxu0 0.0
  %2114 = vmatpush1.xpose.msra.mxu0 0.0
  %2115 = vmatprep.subr.mxu0 0.0
  %2116 = vmatpush1.xpose.msra.mxu0 0.0
  %2117 = vmatprep.subr.mxu0 0.0
  %2118 = vmatpush1.xpose.msra.mxu0 0.0
  %2119 = vmatprep.subr.mxu0 0.0
  %2120 = vmatpush1.xpose.msra.mxu0 0.0
  %2121 = vmatprep.subr.mxu0 0.0
  %2122 = vmatpush1.xpose.msra.mxu0 0.0
  %2123 = vmatprep.subr.mxu0 0.0
  %2124 = vmatpush1.xpose.msra.mxu0 0.0
  %2125 = vmatprep.subr.mxu0 0.0
  %2126 = vmatpush1.xpose.msra.mxu0 0.0
  %2127 = vmatprep.subr.mxu0 0.0
  %2128 = vmatpush1.xpose.msra.mxu0 0.0
  %2129 = vmatprep.subr.mxu0 0.0
  %2130 = vmatpush1.xpose.msra.mxu0 0.0
  %2131 = vmatprep.subr.mxu0 0.0
  %2132 = vmatpush1.xpose.msra.mxu0 0.0
  %2133 = vmatprep.subr.mxu0 0.0
  %2134 = vmatpush1.xpose.msra.mxu0 0.0
  %2135 = vmatprep.subr.mxu0 0.0
  %2136 = vmatpush1.xpose.msra.mxu0 0.0
  %2137 = vmatprep.subr.mxu0 0.0
  %2138 = vmatpush1.xpose.msra.mxu0 0.0
  %2139 = vmatprep.subr.mxu0 0.0
  %2140 = vmatpush1.xpose.msra.mxu0 0.0
  %2141 = vmatprep.subr.mxu0 0.0
  %2142 = vmatpush1.xpose.msra.mxu0 0.0
  %2143 = vmatprep.subr.mxu0 0.0
  %2144 = vmatpush1.xpose.msra.mxu0 0.0
  %2145 = vmatprep.subr.mxu0 0.0
  %2146 = vmatpush1.xpose.msra.mxu0 0.0
  %2147 = vmatprep.subr.mxu0 0.0
  %2148 = vmatpush1.xpose.msra.mxu0 0.0
  %2149 = vmatprep.subr.mxu0 0.0
  %2150 = vmatpush1.xpose.msra.mxu0 0.0
  %2151 = vmatprep.subr.mxu0 0.0
  %2152 = vmatpush1.xpose.msra.mxu0 0.0
  %2153 = vmatprep.subr.mxu0 0.0
  %2154 = vmatpush1.xpose.msra.mxu0 0.0
  %2155 = vmatprep.subr.mxu0 0.0
  %2156 = vmatpush1.xpose.msra.mxu0 0.0
  %2157 = vmatprep.subr.mxu0 0.0
  %2158 = vmatpush1.xpose.msra.mxu0 0.0
  %2159 = vmatprep.mubr.f32.mxu0 0.0
  %2160 = vmatmul.mubr.f32.gmra.mrb[0].mxu0 %v2090
  %v2161 = vpop.f32.mrb[0].mxu0
  %v2162 = vadd.f32 0.0, %v2161
  %v2163 = vpop.f32.mrb[0].mxu0
  %2164 = vdwg.mxu0
  %v2165 = vsel %vm1256, %v1934, -inf
  %2166 = vmax.xlane.f32.xlu0 %v2165
  %v2167 = vpop.xlane.xlu0 %2166
  %v2168 = vsel %vm1256, %v2010, -inf
  %2169 = vmax.xlane.f32.xlu0 %v2168
  %v2170 = vpop.xlane.xlu0 %2169
  %v2171 = vsel %vm1256, %v2086, -inf
  %2172 = vmax.xlane.f32.xlu0 %v2171
  %v2173 = vpop.xlane.xlu0 %2172
  %v2174 = vsel %vm1256, %v2162, -inf
  %2175 = vmax.xlane.f32.xlu0 %v2174
  %v2176 = vpop.xlane.xlu0 %2175
  %v2177 = vsub.f32 %v1934, %v2167
  %v2178 = vsub.f32 %v2010, %v2170
  %v2179 = vsub.f32 %v2086, %v2173
  %v2180 = vsub.f32 %v2162, %v2176
  %v2181 = vmul.f32 %v2177, 1.442695
  %v2182 = vpow.pop %v2181
  %v2183 = vmul.f32 %v2178, 1.442695
  %v2184 = vpow.pop %v2183
  %v2185 = vmul.f32 %v2179, 1.442695
  %v2186 = vpow.pop %v2185
  %v2187 = vmul.f32 %v2180, 1.442695
  %v2188 = vpow.pop %v2187
  %v2189 = vsel %vm1256, %v2182, 0.0
  %2190 = vadd.xlane.f32.xlu0 %v2189
  %v2191 = vpop.xlane.xlu0 %2190
  %v2192 = vsel %vm1256, %v2184, 0.0
  %2193 = vadd.xlane.f32.xlu0 %v2192
  %v2194 = vpop.xlane.xlu0 %2193
  %v2195 = vsel %vm1256, %v2186, 0.0
  %2196 = vadd.xlane.f32.xlu0 %v2195
  %v2197 = vpop.xlane.xlu0 %2196
  %v2198 = vsel %vm1256, %v2188, 0.0
  %2199 = vadd.xlane.f32.xlu0 %v2198
  %v2200 = vpop.xlane.xlu0 %2199
  %v2201 = vrcp.pop %v2191
  %v2202 = vrcp.pop %v2194
  %v2203 = vrcp.pop %v2197
  %v2204 = vrcp.pop %v2200
  %v2205 = vmul.f32 %v2182, %v2201
  %v2206 = vmul.f32 %v2184, %v2202
  %v2207 = vmul.f32 %v2186, %v2203
  %v2208 = vmul.f32 %v2188, %v2204
  %v2210 = vsel %vm1256, %v2205, 0
  %2212 = vmatprep.subr.mxu0 0.0
  %2213 = vmatpush1.msra.mxu0 %v1857
  %2214 = vmatprep.subr.mxu0 0.0
  %2215 = vmatpush1.msra.mxu0 0.0
  %2216 = vmatprep.subr.mxu0 0.0
  %2217 = vmatpush1.msra.mxu0 0.0
  %2218 = vmatprep.subr.mxu0 0.0
  %2219 = vmatpush1.msra.mxu0 0.0
  %2220 = vmatprep.subr.mxu0 0.0
  %2221 = vmatpush1.msra.mxu0 0.0
  %2222 = vmatprep.subr.mxu0 0.0
  %2223 = vmatpush1.msra.mxu0 0.0
  %2224 = vmatprep.subr.mxu0 0.0
  %2225 = vmatpush1.msra.mxu0 0.0
  %2226 = vmatprep.subr.mxu0 0.0
  %2227 = vmatpush1.msra.mxu0 0.0
  %2228 = vmatprep.subr.mxu0 0.0
  %2229 = vmatpush1.msra.mxu0 0.0
  %2230 = vmatprep.subr.mxu0 0.0
  %2231 = vmatpush1.msra.mxu0 0.0
  %2232 = vmatprep.subr.mxu0 0.0
  %2233 = vmatpush1.msra.mxu0 0.0
  %2234 = vmatprep.subr.mxu0 0.0
  %2235 = vmatpush1.msra.mxu0 0.0
  %2236 = vmatprep.subr.mxu0 0.0
  %2237 = vmatpush1.msra.mxu0 0.0
  %2238 = vmatprep.subr.mxu0 0.0
  %2239 = vmatpush1.msra.mxu0 0.0
  %2240 = vmatprep.subr.mxu0 0.0
  %2241 = vmatpush1.msra.mxu0 0.0
  %2242 = vmatprep.subr.mxu0 0.0
  %2243 = vmatpush1.msra.mxu0 0.0
  %2244 = vmatprep.subr.mxu0 0.0
  %2245 = vmatpush1.msra.mxu0 0.0
  %2246 = vmatprep.subr.mxu0 0.0
  %2247 = vmatpush1.msra.mxu0 0.0
  %2248 = vmatprep.subr.mxu0 0.0
  %2249 = vmatpush1.msra.mxu0 0.0
  %2250 = vmatprep.subr.mxu0 0.0
  %2251 = vmatpush1.msra.mxu0 0.0
  %2252 = vmatprep.subr.mxu0 0.0
  %2253 = vmatpush1.msra.mxu0 0.0
  %2254 = vmatprep.subr.mxu0 0.0
  %2255 = vmatpush1.msra.mxu0 0.0
  %2256 = vmatprep.subr.mxu0 0.0
  %2257 = vmatpush1.msra.mxu0 0.0
  %2258 = vmatprep.subr.mxu0 0.0
  %2259 = vmatpush1.msra.mxu0 0.0
  %2260 = vmatprep.subr.mxu0 0.0
  %2261 = vmatpush1.msra.mxu0 0.0
  %2262 = vmatprep.subr.mxu0 0.0
  %2263 = vmatpush1.msra.mxu0 0.0
  %2264 = vmatprep.subr.mxu0 0.0
  %2265 = vmatpush1.msra.mxu0 0.0
  %2266 = vmatprep.subr.mxu0 0.0
  %2267 = vmatpush1.msra.mxu0 0.0
  %2268 = vmatprep.subr.mxu0 0.0
  %2269 = vmatpush1.msra.mxu0 0.0
  %2270 = vmatprep.subr.mxu0 0.0
  %2271 = vmatpush1.msra.mxu0 0.0
  %2272 = vmatprep.subr.mxu0 0.0
  %2273 = vmatpush1.msra.mxu0 0.0
  %2274 = vmatprep.subr.mxu0 0.0
  %2275 = vmatpush1.msra.mxu0 0.0
  %2276 = vmatprep.mubr.f32.mxu0 0.0
  %2277 = vmatmul.mubr.f32.gmra.mrb[0].mxu0 %v2210
  %v2278 = vpop.f32.mrb[0].mxu0
  %v2279 = vadd.f32 0.0, %v2278
  %v2280 = vpop.f32.mrb[0].mxu0
  %2281 = vdwg.mxu0
  %v2283 = vsel %vm1256, %v2206, 0
  %2285 = vmatprep.subr.mxu0 0.0
  %2286 = vmatpush1.msra.mxu0 %v1858
  %2287 = vmatprep.subr.mxu0 0.0
  %2288 = vmatpush1.msra.mxu0 0.0
  %2289 = vmatprep.subr.mxu0 0.0
  %2290 = vmatpush1.msra.mxu0 0.0
  %2291 = vmatprep.subr.mxu0 0.0
  %2292 = vmatpush1.msra.mxu0 0.0
  %2293 = vmatprep.subr.mxu0 0.0
  %2294 = vmatpush1.msra.mxu0 0.0
  %2295 = vmatprep.subr.mxu0 0.0
  %2296 = vmatpush1.msra.mxu0 0.0
  %2297 = vmatprep.subr.mxu0 0.0
  %2298 = vmatpush1.msra.mxu0 0.0
  %2299 = vmatprep.subr.mxu0 0.0
  %2300 = vmatpush1.msra.mxu0 0.0
  %2301 = vmatprep.subr.mxu0 0.0
  %2302 = vmatpush1.msra.mxu0 0.0
  %2303 = vmatprep.subr.mxu0 0.0
  %2304 = vmatpush1.msra.mxu0 0.0
  %2305 = vmatprep.subr.mxu0 0.0
  %2306 = vmatpush1.msra.mxu0 0.0
  %2307 = vmatprep.subr.mxu0 0.0
  %2308 = vmatpush1.msra.mxu0 0.0
  %2309 = vmatprep.subr.mxu0 0.0
  %2310 = vmatpush1.msra.mxu0 0.0
  %2311 = vmatprep.subr.mxu0 0.0
  %2312 = vmatpush1.msra.mxu0 0.0
  %2313 = vmatprep.subr.mxu0 0.0
  %2314 = vmatpush1.msra.mxu0 0.0
  %2315 = vmatprep.subr.mxu0 0.0
  %2316 = vmatpush1.msra.mxu0 0.0
  %2317 = vmatprep.subr.mxu0 0.0
  %2318 = vmatpush1.msra.mxu0 0.0
  %2319 = vmatprep.subr.mxu0 0.0
  %2320 = vmatpush1.msra.mxu0 0.0
  %2321 = vmatprep.subr.mxu0 0.0
  %2322 = vmatpush1.msra.mxu0 0.0
  %2323 = vmatprep.subr.mxu0 0.0
  %2324 = vmatpush1.msra.mxu0 0.0
  %2325 = vmatprep.subr.mxu0 0.0
  %2326 = vmatpush1.msra.mxu0 0.0
  %2327 = vmatprep.subr.mxu0 0.0
  %2328 = vmatpush1.msra.mxu0 0.0
  %2329 = vmatprep.subr.mxu0 0.0
  %2330 = vmatpush1.msra.mxu0 0.0
  %2331 = vmatprep.subr.mxu0 0.0
  %2332 = vmatpush1.msra.mxu0 0.0
  %2333 = vmatprep.subr.mxu0 0.0
  %2334 = vmatpush1.msra.mxu0 0.0
  %2335 = vmatprep.subr.mxu0 0.0
  %2336 = vmatpush1.msra.mxu0 0.0
  %2337 = vmatprep.subr.mxu0 0.0
  %2338 = vmatpush1.msra.mxu0 0.0
  %2339 = vmatprep.subr.mxu0 0.0
  %2340 = vmatpush1.msra.mxu0 0.0
  %2341 = vmatprep.subr.mxu0 0.0
  %2342 = vmatpush1.msra.mxu0 0.0
  %2343 = vmatprep.subr.mxu0 0.0
  %2344 = vmatpush1.msra.mxu0 0.0
  %2345 = vmatprep.subr.mxu0 0.0
  %2346 = vmatpush1.msra.mxu0 0.0
  %2347 = vmatprep.subr.mxu0 0.0
  %2348 = vmatpush1.msra.mxu0 0.0
  %2349 = vmatprep.mubr.f32.mxu0 0.0
  %2350 = vmatmul.mubr.f32.gmra.mrb[0].mxu0 %v2283
  %v2351 = vpop.f32.mrb[0].mxu0
  %v2352 = vadd.f32 0.0, %v2351
  %v2353 = vpop.f32.mrb[0].mxu0
  %2354 = vdwg.mxu0
  %v2356 = vsel %vm1256, %v2207, 0
  %2358 = vmatprep.subr.mxu0 0.0
  %2359 = vmatpush1.msra.mxu0 %v1859
  %2360 = vmatprep.subr.mxu0 0.0
  %2361 = vmatpush1.msra.mxu0 0.0
  %2362 = vmatprep.subr.mxu0 0.0
  %2363 = vmatpush1.msra.mxu0 0.0
  %2364 = vmatprep.subr.mxu0 0.0
  %2365 = vmatpush1.msra.mxu0 0.0
  %2366 = vmatprep.subr.mxu0 0.0
  %2367 = vmatpush1.msra.mxu0 0.0
  %2368 = vmatprep.subr.mxu0 0.0
  %2369 = vmatpush1.msra.mxu0 0.0
  %2370 = vmatprep.subr.mxu0 0.0
  %2371 = vmatpush1.msra.mxu0 0.0
  %2372 = vmatprep.subr.mxu0 0.0
  %2373 = vmatpush1.msra.mxu0 0.0
  %2374 = vmatprep.subr.mxu0 0.0
  %2375 = vmatpush1.msra.mxu0 0.0
  %2376 = vmatprep.subr.mxu0 0.0
  %2377 = vmatpush1.msra.mxu0 0.0
  %2378 = vmatprep.subr.mxu0 0.0
  %2379 = vmatpush1.msra.mxu0 0.0
  %2380 = vmatprep.subr.mxu0 0.0
  %2381 = vmatpush1.msra.mxu0 0.0
  %2382 = vmatprep.subr.mxu0 0.0
  %2383 = vmatpush1.msra.mxu0 0.0
  %2384 = vmatprep.subr.mxu0 0.0
  %2385 = vmatpush1.msra.mxu0 0.0
  %2386 = vmatprep.subr.mxu0 0.0
  %2387 = vmatpush1.msra.mxu0 0.0
  %2388 = vmatprep.subr.mxu0 0.0
  %2389 = vmatpush1.msra.mxu0 0.0
  %2390 = vmatprep.subr.mxu0 0.0
  %2391 = vmatpush1.msra.mxu0 0.0
  %2392 = vmatprep.subr.mxu0 0.0
  %2393 = vmatpush1.msra.mxu0 0.0
  %2394 = vmatprep.subr.mxu0 0.0
  %2395 = vmatpush1.msra.mxu0 0.0
  %2396 = vmatprep.subr.mxu0 0.0
  %2397 = vmatpush1.msra.mxu0 0.0
  %2398 = vmatprep.subr.mxu0 0.0
  %2399 = vmatpush1.msra.mxu0 0.0
  %2400 = vmatprep.subr.mxu0 0.0
  %2401 = vmatpush1.msra.mxu0 0.0
  %2402 = vmatprep.subr.mxu0 0.0
  %2403 = vmatpush1.msra.mxu0 0.0
  %2404 = vmatprep.subr.mxu0 0.0
  %2405 = vmatpush1.msra.mxu0 0.0
  %2406 = vmatprep.subr.mxu0 0.0
  %2407 = vmatpush1.msra.mxu0 0.0
  %2408 = vmatprep.subr.mxu0 0.0
  %2409 = vmatpush1.msra.mxu0 0.0
  %2410 = vmatprep.subr.mxu0 0.0
  %2411 = vmatpush1.msra.mxu0 0.0
  %2412 = vmatprep.subr.mxu0 0.0
  %2413 = vmatpush1.msra.mxu0 0.0
  %2414 = vmatprep.subr.mxu0 0.0
  %2415 = vmatpush1.msra.mxu0 0.0
  %2416 = vmatprep.subr.mxu0 0.0
  %2417 = vmatpush1.msra.mxu0 0.0
  %2418 = vmatprep.subr.mxu0 0.0
  %2419 = vmatpush1.msra.mxu0 0.0
  %2420 = vmatprep.subr.mxu0 0.0
  %2421 = vmatpush1.msra.mxu0 0.0
  %2422 = vmatprep.mubr.f32.mxu0 0.0
  %2423 = vmatmul.mubr.f32.gmra.mrb[0].mxu0 %v2356
  %v2424 = vpop.f32.mrb[0].mxu0
  %v2425 = vadd.f32 0.0, %v2424
  %v2426 = vpop.f32.mrb[0].mxu0
  %2427 = vdwg.mxu0
  %v2429 = vsel %vm1256, %v2208, 0
  %2431 = vmatprep.subr.mxu0 0.0
  %2432 = vmatpush1.msra.mxu0 %v1860
  %2433 = vmatprep.subr.mxu0 0.0
  %2434 = vmatpush1.msra.mxu0 0.0
  %2435 = vmatprep.subr.mxu0 0.0
  %2436 = vmatpush1.msra.mxu0 0.0
  %2437 = vmatprep.subr.mxu0 0.0
  %2438 = vmatpush1.msra.mxu0 0.0
  %2439 = vmatprep.subr.mxu0 0.0
  %2440 = vmatpush1.msra.mxu0 0.0
  %2441 = vmatprep.subr.mxu0 0.0
  %2442 = vmatpush1.msra.mxu0 0.0
  %2443 = vmatprep.subr.mxu0 0.0
  %2444 = vmatpush1.msra.mxu0 0.0
  %2445 = vmatprep.subr.mxu0 0.0
  %2446 = vmatpush1.msra.mxu0 0.0
  %2447 = vmatprep.subr.mxu0 0.0
  %2448 = vmatpush1.msra.mxu0 0.0
  %2449 = vmatprep.subr.mxu0 0.0
  %2450 = vmatpush1.msra.mxu0 0.0
  %2451 = vmatprep.subr.mxu0 0.0
  %2452 = vmatpush1.msra.mxu0 0.0
  %2453 = vmatprep.subr.mxu0 0.0
  %2454 = vmatpush1.msra.mxu0 0.0
  %2455 = vmatprep.subr.mxu0 0.0
  %2456 = vmatpush1.msra.mxu0 0.0
  %2457 = vmatprep.subr.mxu0 0.0
  %2458 = vmatpush1.msra.mxu0 0.0
  %2459 = vmatprep.subr.mxu0 0.0
  %2460 = vmatpush1.msra.mxu0 0.0
  %2461 = vmatprep.subr.mxu0 0.0
  %2462 = vmatpush1.msra.mxu0 0.0
  %2463 = vmatprep.subr.mxu0 0.0
  %2464 = vmatpush1.msra.mxu0 0.0
  %2465 = vmatprep.subr.mxu0 0.0
  %2466 = vmatpush1.msra.mxu0 0.0
  %2467 = vmatprep.subr.mxu0 0.0
  %2468 = vmatpush1.msra.mxu0 0.0
  %2469 = vmatprep.subr.mxu0 0.0
  %2470 = vmatpush1.msra.mxu0 0.0
  %2471 = vmatprep.subr.mxu0 0.0
  %2472 = vmatpush1.msra.mxu0 0.0
  %2473 = vmatprep.subr.mxu0 0.0
  %2474 = vmatpush1.msra.mxu0 0.0
  %2475 = vmatprep.subr.mxu0 0.0
  %2476 = vmatpush1.msra.mxu0 0.0
  %2477 = vmatprep.subr.mxu0 0.0
  %2478 = vmatpush1.msra.mxu0 0.0
  %2479 = vmatprep.subr.mxu0 0.0
  %2480 = vmatpush1.msra.mxu0 0.0
  %2481 = vmatprep.subr.mxu0 0.0
  %2482 = vmatpush1.msra.mxu0 0.0
  %2483 = vmatprep.subr.mxu0 0.0
  %2484 = vmatpush1.msra.mxu0 0.0
  %2485 = vmatprep.subr.mxu0 0.0
  %2486 = vmatpush1.msra.mxu0 0.0
  %2487 = vmatprep.subr.mxu0 0.0
  %2488 = vmatpush1.msra.mxu0 0.0
  %2489 = vmatprep.subr.mxu0 0.0
  %2490 = vmatpush1.msra.mxu0 0.0
  %2491 = vmatprep.subr.mxu0 0.0
  %2492 = vmatpush1.msra.mxu0 0.0
  %2493 = vmatprep.subr.mxu0 0.0
  %2494 = vmatpush1.msra.mxu0 0.0
  %2495 = vmatprep.mubr.f32.mxu0 0.0
  %2496 = vmatmul.mubr.f32.gmra.mrb[0].mxu0 %v2429
  %v2497 = vpop.f32.mrb[0].mxu0
  %v2498 = vadd.f32 0.0, %v2497
  %v2499 = vpop.f32.mrb[0].mxu0
  %2500 = vdwg.mxu0
  %v2501 = vcombine.low %v2279, %v2425
  %v2502 = vcombine.high %v2279, %v2425
  %v2504 = vunpack.c.l.s4 1983009808
  %v2505 = vunpack.c.0.s8 %v2504
  %v2506 = vlaneseq
  %v2507 = vshrl.u32 %v2506, 7
  %v2508 = vsub.s32 %v2505, %v2507
  %v2509 = vrot.slane %v2501, %v2508
  %v2511 = vunpack.c.l.s4 1983009808
  %v2512 = vunpack.c.0.s8 %v2511
  %v2513 = vlaneseq
  %v2514 = vshrl.u32 %v2513, 7
  %v2515 = vsub.s32 %v2512, %v2514
  %v2516 = vrot.slane %v2502, %v2515
  %v2517 = vcombine.low %v2352, %v2498
  %v2518 = vcombine.high %v2352, %v2498
  %v2520 = vunpack.c.l.s4 1983009808
  %v2521 = vunpack.c.0.s8 %v2520
  %v2522 = vlaneseq
  %v2523 = vshrl.u32 %v2522, 7
  %v2524 = vsub.s32 %v2521, %v2523
  %v2525 = vrot.slane %v2517, %v2524
  %v2527 = vunpack.c.l.s4 1983009808
  %v2528 = vunpack.c.0.s8 %v2527
  %v2529 = vlaneseq
  %v2530 = vshrl.u32 %v2529, 7
  %v2531 = vsub.s32 %v2528, %v2530
  %v2532 = vrot.slane %v2518, %v2531
  %v2533 = vcombine.low %v2509, %v2525
  %v2534 = vcombine.high %v2509, %v2525
  %v2536 = vunpack.c.l.s4 1934713408
  %v2537 = vunpack.c.0.s8 %v2536
  %v2538 = vlaneseq
  %v2539 = vshrl.u32 %v2538, 7
  %v2540 = vsub.s32 %v2537, %v2539
  %v2541 = vrot.slane %v2533, %v2540
  %v2543 = vunpack.c.l.s4 1934713408
  %v2544 = vunpack.c.0.s8 %v2543
  %v2545 = vlaneseq
  %v2546 = vshrl.u32 %v2545, 7
  %v2547 = vsub.s32 %v2544, %v2546
  %v2548 = vrot.slane %v2534, %v2547
  %v2549 = vcombine.low %v2516, %v2532
  %v2550 = vcombine.high %v2516, %v2532
  %v2552 = vunpack.c.l.s4 1934713408
  %v2553 = vunpack.c.0.s8 %v2552
  %v2554 = vlaneseq
  %v2555 = vshrl.u32 %v2554, 7
  %v2556 = vsub.s32 %v2553, %v2555
  %v2557 = vrot.slane %v2549, %v2556
  %v2559 = vunpack.c.l.s4 1934713408
  %v2560 = vunpack.c.0.s8 %v2559
  %v2561 = vlaneseq
  %v2562 = vshrl.u32 %v2561, 7
  %v2563 = vsub.s32 %v2560, %v2562
  %v2564 = vrot.slane %v2550, %v2563
  %v2566 = vunpack.c.l.s4 1983009808
  %v2567 = vunpack.c.0.s8 %v2566
  %v2568 = vlaneseq
  %v2569 = vshrl.u32 %v2568, 7
  %v2570 = vsub.s32 %v2567, %v2569
  %v2571 = vrot.slane %v1633, %v2570
  %v2572 = vcombine.high %v2571, 0.0
  %v2574 = vunpack.c.l.s4 1934713408
  %v2575 = vunpack.c.0.s8 %v2574
  %v2576 = vlaneseq
  %v2577 = vshrl.u32 %v2576, 7
  %v2578 = vsub.s32 %v2575, %v2577
  %v2579 = vrot.slane %v2571, %v2578
  %v2581 = vunpack.c.l.s4 1934713408
  %v2582 = vunpack.c.0.s8 %v2581
  %v2583 = vlaneseq
  %v2584 = vshrl.u32 %v2583, 7
  %v2585 = vsub.s32 %v2582, %v2584
  %v2586 = vrot.slane %v2572, %v2585
  %v2587 = vcombine.high %v2579, 0.0
  %v2588 = vcombine.high %v2586, 0.0
  %v2589 = vcombine.high %v1633, 0.0
  %v2591 = vunpack.c.l.s4 1983009808
  %v2592 = vunpack.c.0.s8 %v2591
  %v2593 = vlaneseq
  %v2594 = vshrl.u32 %v2593, 7
  %v2595 = vsub.s32 %v2592, %v2594
  %v2596 = vrot.slane %v2589, %v2595
  %v2597 = vcombine.high %v2596, 0.0
  %v2599 = vunpack.c.l.s4 1934713408
  %v2600 = vunpack.c.0.s8 %v2599
  %v2601 = vlaneseq
  %v2602 = vshrl.u32 %v2601, 7
  %v2603 = vsub.s32 %v2600, %v2602
  %v2604 = vrot.slane %v2596, %v2603
  %v2606 = vunpack.c.l.s4 1934713408
  %v2607 = vunpack.c.0.s8 %v2606
  %v2608 = vlaneseq
  %v2609 = vshrl.u32 %v2608, 7
  %v2610 = vsub.s32 %v2607, %v2609
  %v2611 = vrot.slane %v2597, %v2610
  %v2612 = vcombine.high %v2604, 0.0
  %v2613 = vcombine.high %v2611, 0.0
  %v2615 = vunpack.c.l.s4 1983009808
  %v2616 = vunpack.c.0.s8 %v2615
  %v2617 = vlaneseq
  %v2618 = vshrl.u32 %v2617, 7
  %v2619 = vsub.s32 %v2616, %v2618
  %v2620 = vrot.slane %v1640, %v2619
  %v2621 = vcombine.high %v2620, 0.0
  %v2623 = vunpack.c.l.s4 1934713408
  %v2624 = vunpack.c.0.s8 %v2623
  %v2625 = vlaneseq
  %v2626 = vshrl.u32 %v2625, 7
  %v2627 = vsub.s32 %v2624, %v2626
  %v2628 = vrot.slane %v2620, %v2627
  %v2630 = vunpack.c.l.s4 1934713408
  %v2631 = vunpack.c.0.s8 %v2630
  %v2632 = vlaneseq
  %v2633 = vshrl.u32 %v2632, 7
  %v2634 = vsub.s32 %v2631, %v2633
  %v2635 = vrot.slane %v2621, %v2634
  %v2636 = vcombine.high %v2628, 0.0
  %v2637 = vcombine.high %v2635, 0.0
  %v2638 = vcombine.high %v1640, 0.0
  %v2640 = vunpack.c.l.s4 1983009808
  %v2641 = vunpack.c.0.s8 %v2640
  %v2642 = vlaneseq
  %v2643 = vshrl.u32 %v2642, 7
  %v2644 = vsub.s32 %v2641, %v2643
  %v2645 = vrot.slane %v2638, %v2644
  %v2646 = vcombine.high %v2645, 0.0
  %v2648 = vunpack.c.l.s4 1934713408
  %v2649 = vunpack.c.0.s8 %v2648
  %v2650 = vlaneseq
  %v2651 = vshrl.u32 %v2650, 7
  %v2652 = vsub.s32 %v2649, %v2651
  %v2653 = vrot.slane %v2645, %v2652
  %v2655 = vunpack.c.l.s4 1934713408
  %v2656 = vunpack.c.0.s8 %v2655
  %v2657 = vlaneseq
  %v2658 = vshrl.u32 %v2657, 7
  %v2659 = vsub.s32 %v2656, %v2658
  %v2660 = vrot.slane %v2646, %v2659
  %v2661 = vcombine.high %v2653, 0.0
  %v2662 = vcombine.high %v2660, 0.0
  %v2664 = vunpack.c.l.s4 1983009808
  %v2665 = vunpack.c.0.s8 %v2664
  %v2666 = vlaneseq
  %v2667 = vshrl.u32 %v2666, 7
  %v2668 = vsub.s32 %v2665, %v2667
  %v2669 = vrot.slane %v1649, %v2668
  %v2670 = vcombine.high %v2669, 0.0
  %v2672 = vunpack.c.l.s4 1934713408
  %v2673 = vunpack.c.0.s8 %v2672
  %v2674 = vlaneseq
  %v2675 = vshrl.u32 %v2674, 7
  %v2676 = vsub.s32 %v2673, %v2675
  %v2677 = vrot.slane %v2669, %v2676
  %v2679 = vunpack.c.l.s4 1934713408
  %v2680 = vunpack.c.0.s8 %v2679
  %v2681 = vlaneseq
  %v2682 = vshrl.u32 %v2681, 7
  %v2683 = vsub.s32 %v2680, %v2682
  %v2684 = vrot.slane %v2670, %v2683
  %v2685 = vcombine.high %v2677, 0.0
  %v2686 = vcombine.high %v2684, 0.0
  %v2687 = vcombine.high %v1649, 0.0
  %v2689 = vunpack.c.l.s4 1983009808
  %v2690 = vunpack.c.0.s8 %v2689
  %v2691 = vlaneseq
  %v2692 = vshrl.u32 %v2691, 7
  %v2693 = vsub.s32 %v2690, %v2692
  %v2694 = vrot.slane %v2687, %v2693
  %v2695 = vcombine.high %v2694, 0.0
  %v2697 = vunpack.c.l.s4 1934713408
  %v2698 = vunpack.c.0.s8 %v2697
  %v2699 = vlaneseq
  %v2700 = vshrl.u32 %v2699, 7
  %v2701 = vsub.s32 %v2698, %v2700
  %v2702 = vrot.slane %v2694, %v2701
  %v2704 = vunpack.c.l.s4 1934713408
  %v2705 = vunpack.c.0.s8 %v2704
  %v2706 = vlaneseq
  %v2707 = vshrl.u32 %v2706, 7
  %v2708 = vsub.s32 %v2705, %v2707
  %v2709 = vrot.slane %v2695, %v2708
  %v2710 = vcombine.high %v2702, 0.0
  %v2711 = vcombine.high %v2709, 0.0
  %v2713 = vunpack.c.l.s4 1983009808
  %v2714 = vunpack.c.0.s8 %v2713
  %v2715 = vlaneseq
  %v2716 = vshrl.u32 %v2715, 7
  %v2717 = vsub.s32 %v2714, %v2716
  %v2718 = vrot.slane %v1656, %v2717
  %v2719 = vcombine.high %v2718, 0.0
  %v2721 = vunpack.c.l.s4 1934713408
  %v2722 = vunpack.c.0.s8 %v2721
  %v2723 = vlaneseq
  %v2724 = vshrl.u32 %v2723, 7
  %v2725 = vsub.s32 %v2722, %v2724
  %v2726 = vrot.slane %v2718, %v2725
  %v2728 = vunpack.c.l.s4 1934713408
  %v2729 = vunpack.c.0.s8 %v2728
  %v2730 = vlaneseq
  %v2731 = vshrl.u32 %v2730, 7
  %v2732 = vsub.s32 %v2729, %v2731
  %v2733 = vrot.slane %v2719, %v2732
  %v2734 = vcombine.high %v2726, 0.0
  %v2735 = vcombine.high %v2733, 0.0
  %v2736 = vcombine.high %v1656, 0.0
  %v2738 = vunpack.c.l.s4 1983009808
  %v2739 = vunpack.c.0.s8 %v2738
  %v2740 = vlaneseq
  %v2741 = vshrl.u32 %v2740, 7
  %v2742 = vsub.s32 %v2739, %v2741
  %v2743 = vrot.slane %v2736, %v2742
  %v2744 = vcombine.high %v2743, 0.0
  %v2746 = vunpack.c.l.s4 1934713408
  %v2747 = vunpack.c.0.s8 %v2746
  %v2748 = vlaneseq
  %v2749 = vshrl.u32 %v2748, 7
  %v2750 = vsub.s32 %v2747, %v2749
  %v2751 = vrot.slane %v2743, %v2750
  %v2753 = vunpack.c.l.s4 1934713408
  %v2754 = vunpack.c.0.s8 %v2753
  %v2755 = vlaneseq
  %v2756 = vshrl.u32 %v2755, 7
  %v2757 = vsub.s32 %v2754, %v2756
  %v2758 = vrot.slane %v2744, %v2757
  %v2759 = vcombine.high %v2751, 0.0
  %v2760 = vcombine.high %v2758, 0.0
  %2769 = vrot.lane.b32.xlu0 %v2587, 16
  %v2770 = vpop.permute.xlu0 %2769
  %2771 = vrot.lane.b32.xlu0 %v2612, 16
  %v2772 = vpop.permute.xlu0 %2771
  %2773 = vrot.lane.b32.xlu0 %v2636, 16
  %v2774 = vpop.permute.xlu0 %2773
  %2775 = vrot.lane.b32.xlu0 %v2661, 16
  %v2776 = vpop.permute.xlu0 %2775
  %2777 = vrot.lane.b32.xlu0 %v2685, 16
  %v2778 = vpop.permute.xlu0 %2777
  %2779 = vrot.lane.b32.xlu0 %v2710, 16
  %v2780 = vpop.permute.xlu0 %2779
  %2781 = vrot.lane.b32.xlu0 %v2734, 16
  %v2782 = vpop.permute.xlu0 %2781
  %2783 = vrot.lane.b32.xlu0 %v2759, 16
  %v2784 = vpop.permute.xlu0 %2783
  %2801 = vrot.lane.b32.xlu0 %v2586, 32
  %v2802 = vpop.permute.xlu0 %2801
  %2803 = vrot.lane.b32.xlu0 %v2611, 32
  %v2804 = vpop.permute.xlu0 %2803
  %2805 = vrot.lane.b32.xlu0 %v2635, 32
  %v2806 = vpop.permute.xlu0 %2805
  %2807 = vrot.lane.b32.xlu0 %v2660, 32
  %v2808 = vpop.permute.xlu0 %2807
  %2809 = vrot.lane.b32.xlu0 %v2684, 32
  %v2810 = vpop.permute.xlu0 %2809
  %2811 = vrot.lane.b32.xlu0 %v2709, 32
  %v2812 = vpop.permute.xlu0 %2811
  %2813 = vrot.lane.b32.xlu0 %v2733, 32
  %v2814 = vpop.permute.xlu0 %2813
  %2815 = vrot.lane.b32.xlu0 %v2758, 32
  %v2816 = vpop.permute.xlu0 %2815
  %2833 = vrot.lane.b32.xlu0 %v2588, 48
  %v2834 = vpop.permute.xlu0 %2833
  %2835 = vrot.lane.b32.xlu0 %v2613, 48
  %v2836 = vpop.permute.xlu0 %2835
  %2837 = vrot.lane.b32.xlu0 %v2637, 48
  %v2838 = vpop.permute.xlu0 %2837
  %2839 = vrot.lane.b32.xlu0 %v2662, 48
  %v2840 = vpop.permute.xlu0 %2839
  %2841 = vrot.lane.b32.xlu0 %v2686, 48
  %v2842 = vpop.permute.xlu0 %2841
  %2843 = vrot.lane.b32.xlu0 %v2711, 48
  %v2844 = vpop.permute.xlu0 %2843
  %2845 = vrot.lane.b32.xlu0 %v2735, 48
  %v2846 = vpop.permute.xlu0 %2845
  %2847 = vrot.lane.b32.xlu0 %v2760, 48
  %v2848 = vpop.permute.xlu0 %2847
  %v2857 = vsel %vm951, %v2579, %v2770
  %v2858 = vsel %vm951, %v2604, %v2772
  %v2859 = vsel %vm951, %v2628, %v2774
  %v2860 = vsel %vm951, %v2653, %v2776
  %v2861 = vsel %vm951, %v2677, %v2778
  %v2862 = vsel %vm951, %v2702, %v2780
  %v2863 = vsel %vm951, %v2726, %v2782
  %v2864 = vsel %vm951, %v2751, %v2784
  %vm2865 = vcmask 261120
  %v2866 = vsel %vm2865, %v2857, %v2802
  %v2867 = vsel %vm2865, %v2858, %v2804
  %v2868 = vsel %vm2865, %v2859, %v2806
  %v2869 = vsel %vm2865, %v2860, %v2808
  %v2870 = vsel %vm2865, %v2861, %v2810
  %v2871 = vsel %vm2865, %v2862, %v2812
  %v2872 = vsel %vm2865, %v2863, %v2814
  %v2873 = vsel %vm2865, %v2864, %v2816
  %vm2874 = vcmask 392192
  %v2875 = vsel %vm2874, %v2866, %v2834
  %v2876 = vsel %vm2874, %v2867, %v2836
  %v2877 = vsel %vm2874, %v2868, %v2838
  %v2878 = vsel %vm2874, %v2869, %v2840
  %v2879 = vsel %vm2874, %v2870, %v2842
  %v2880 = vsel %vm2874, %v2871, %v2844
  %v2881 = vsel %vm2874, %v2872, %v2846
  %v2882 = vsel %vm2874, %v2873, %v2848
  %v2884 = vunpack.c.l.s4 1983009808
  %v2885 = vunpack.c.0.s8 %v2884
  %v2886 = vlaneseq
  %v2887 = vshrl.u32 %v2886, 7
  %v2888 = vsub.s32 %v2885, %v2887
  %v2889 = vrot.slane %v2541, %v2888
  %v2890 = vcombine.high %v2889, 0.0
  %v2892 = vunpack.c.l.s4 1934713408
  %v2893 = vunpack.c.0.s8 %v2892
  %v2894 = vlaneseq
  %v2895 = vshrl.u32 %v2894, 7
  %v2896 = vsub.s32 %v2893, %v2895
  %v2897 = vrot.slane %v2889, %v2896
  %v2899 = vunpack.c.l.s4 1934713408
  %v2900 = vunpack.c.0.s8 %v2899
  %v2901 = vlaneseq
  %v2902 = vshrl.u32 %v2901, 7
  %v2903 = vsub.s32 %v2900, %v2902
  %v2904 = vrot.slane %v2890, %v2903
  %v2905 = vcombine.high %v2897, 0.0
  %v2906 = vcombine.high %v2904, 0.0
  %v2907 = vcombine.high %v2541, 0.0
  %v2909 = vunpack.c.l.s4 1983009808
  %v2910 = vunpack.c.0.s8 %v2909
  %v2911 = vlaneseq
  %v2912 = vshrl.u32 %v2911, 7
  %v2913 = vsub.s32 %v2910, %v2912
  %v2914 = vrot.slane %v2907, %v2913
  %v2915 = vcombine.high %v2914, 0.0
  %v2917 = vunpack.c.l.s4 1934713408
  %v2918 = vunpack.c.0.s8 %v2917
  %v2919 = vlaneseq
  %v2920 = vshrl.u32 %v2919, 7
  %v2921 = vsub.s32 %v2918, %v2920
  %v2922 = vrot.slane %v2914, %v2921
  %v2924 = vunpack.c.l.s4 1934713408
  %v2925 = vunpack.c.0.s8 %v2924
  %v2926 = vlaneseq
  %v2927 = vshrl.u32 %v2926, 7
  %v2928 = vsub.s32 %v2925, %v2927
  %v2929 = vrot.slane %v2915, %v2928
  %v2930 = vcombine.high %v2922, 0.0
  %v2931 = vcombine.high %v2929, 0.0
  %v2933 = vunpack.c.l.s4 1983009808
  %v2934 = vunpack.c.0.s8 %v2933
  %v2935 = vlaneseq
  %v2936 = vshrl.u32 %v2935, 7
  %v2937 = vsub.s32 %v2934, %v2936
  %v2938 = vrot.slane %v2548, %v2937
  %v2939 = vcombine.high %v2938, 0.0
  %v2941 = vunpack.c.l.s4 1934713408
  %v2942 = vunpack.c.0.s8 %v2941
  %v2943 = vlaneseq
  %v2944 = vshrl.u32 %v2943, 7
  %v2945 = vsub.s32 %v2942, %v2944
  %v2946 = vrot.slane %v2938, %v2945
  %v2948 = vunpack.c.l.s4 1934713408
  %v2949 = vunpack.c.0.s8 %v2948
  %v2950 = vlaneseq
  %v2951 = vshrl.u32 %v2950, 7
  %v2952 = vsub.s32 %v2949, %v2951
  %v2953 = vrot.slane %v2939, %v2952
  %v2954 = vcombine.high %v2946, 0.0
  %v2955 = vcombine.high %v2953, 0.0
  %v2956 = vcombine.high %v2548, 0.0
  %v2958 = vunpack.c.l.s4 1983009808
  %v2959 = vunpack.c.0.s8 %v2958
  %v2960 = vlaneseq
  %v2961 = vshrl.u32 %v2960, 7
  %v2962 = vsub.s32 %v2959, %v2961
  %v2963 = vrot.slane %v2956, %v2962
  %v2964 = vcombine.high %v2963, 0.0
  %v2966 = vunpack.c.l.s4 1934713408
  %v2967 = vunpack.c.0.s8 %v2966
  %v2968 = vlaneseq
  %v2969 = vshrl.u32 %v2968, 7
  %v2970 = vsub.s32 %v2967, %v2969
  %v2971 = vrot.slane %v2963, %v2970
  %v2973 = vunpack.c.l.s4 1934713408
  %v2974 = vunpack.c.0.s8 %v2973
  %v2975 = vlaneseq
  %v2976 = vshrl.u32 %v2975, 7
  %v2977 = vsub.s32 %v2974, %v2976
  %v2978 = vrot.slane %v2964, %v2977
  %v2979 = vcombine.high %v2971, 0.0
  %v2980 = vcombine.high %v2978, 0.0
  %v2982 = vunpack.c.l.s4 1983009808
  %v2983 = vunpack.c.0.s8 %v2982
  %v2984 = vlaneseq
  %v2985 = vshrl.u32 %v2984, 7
  %v2986 = vsub.s32 %v2983, %v2985
  %v2987 = vrot.slane %v2557, %v2986
  %v2988 = vcombine.high %v2987, 0.0
  %v2990 = vunpack.c.l.s4 1934713408
  %v2991 = vunpack.c.0.s8 %v2990
  %v2992 = vlaneseq
  %v2993 = vshrl.u32 %v2992, 7
  %v2994 = vsub.s32 %v2991, %v2993
  %v2995 = vrot.slane %v2987, %v2994
  %v2997 = vunpack.c.l.s4 1934713408
  %v2998 = vunpack.c.0.s8 %v2997
  %v2999 = vlaneseq
  %v3000 = vshrl.u32 %v2999, 7
  %v3001 = vsub.s32 %v2998, %v3000
  %v3002 = vrot.slane %v2988, %v3001
  %v3003 = vcombine.high %v2995, 0.0
  %v3004 = vcombine.high %v3002, 0.0
  %v3005 = vcombine.high %v2557, 0.0
  %v3007 = vunpack.c.l.s4 1983009808
  %v3008 = vunpack.c.0.s8 %v3007
  %v3009 = vlaneseq
  %v3010 = vshrl.u32 %v3009, 7
  %v3011 = vsub.s32 %v3008, %v3010
  %v3012 = vrot.slane %v3005, %v3011
  %v3013 = vcombine.high %v3012, 0.0
  %v3015 = vunpack.c.l.s4 1934713408
  %v3016 = vunpack.c.0.s8 %v3015
  %v3017 = vlaneseq
  %v3018 = vshrl.u32 %v3017, 7
  %v3019 = vsub.s32 %v3016, %v3018
  %v3020 = vrot.slane %v3012, %v3019
  %v3022 = vunpack.c.l.s4 1934713408
  %v3023 = vunpack.c.0.s8 %v3022
  %v3024 = vlaneseq
  %v3025 = vshrl.u32 %v3024, 7
  %v3026 = vsub.s32 %v3023, %v3025
  %v3027 = vrot.slane %v3013, %v3026
  %v3028 = vcombine.high %v3020, 0.0
  %v3029 = vcombine.high %v3027, 0.0
  %v3031 = vunpack.c.l.s4 1983009808
  %v3032 = vunpack.c.0.s8 %v3031
  %v3033 = vlaneseq
  %v3034 = vshrl.u32 %v3033, 7
  %v3035 = vsub.s32 %v3032, %v3034
  %v3036 = vrot.slane %v2564, %v3035
  %v3037 = vcombine.high %v3036, 0.0
  %v3039 = vunpack.c.l.s4 1934713408
  %v3040 = vunpack.c.0.s8 %v3039
  %v3041 = vlaneseq
  %v3042 = vshrl.u32 %v3041, 7
  %v3043 = vsub.s32 %v3040, %v3042
  %v3044 = vrot.slane %v3036, %v3043
  %v3046 = vunpack.c.l.s4 1934713408
  %v3047 = vunpack.c.0.s8 %v3046
  %v3048 = vlaneseq
  %v3049 = vshrl.u32 %v3048, 7
  %v3050 = vsub.s32 %v3047, %v3049
  %v3051 = vrot.slane %v3037, %v3050
  %v3052 = vcombine.high %v3044, 0.0
  %v3053 = vcombine.high %v3051, 0.0
  %v3054 = vcombine.high %v2564, 0.0
  %v3056 = vunpack.c.l.s4 1983009808
  %v3057 = vunpack.c.0.s8 %v3056
  %v3058 = vlaneseq
  %v3059 = vshrl.u32 %v3058, 7
  %v3060 = vsub.s32 %v3057, %v3059
  %v3061 = vrot.slane %v3054, %v3060
  %v3062 = vcombine.high %v3061, 0.0
  %v3064 = vunpack.c.l.s4 1934713408
  %v3065 = vunpack.c.0.s8 %v3064
  %v3066 = vlaneseq
  %v3067 = vshrl.u32 %v3066, 7
  %v3068 = vsub.s32 %v3065, %v3067
  %v3069 = vrot.slane %v3061, %v3068
  %v3071 = vunpack.c.l.s4 1934713408
  %v3072 = vunpack.c.0.s8 %v3071
  %v3073 = vlaneseq
  %v3074 = vshrl.u32 %v3073, 7
  %v3075 = vsub.s32 %v3072, %v3074
  %v3076 = vrot.slane %v3062, %v3075
  %v3077 = vcombine.high %v3069, 0.0
  %v3078 = vcombine.high %v3076, 0.0
  %3087 = vrot.lane.b32.xlu0 %v2905, 16
  %v3088 = vpop.permute.xlu0 %3087
  %3089 = vrot.lane.b32.xlu0 %v2930, 16
  %v3090 = vpop.permute.xlu0 %3089
  %3091 = vrot.lane.b32.xlu0 %v2954, 16
  %v3092 = vpop.permute.xlu0 %3091
  %3093 = vrot.lane.b32.xlu0 %v2979, 16
  %v3094 = vpop.permute.xlu0 %3093
  %3095 = vrot.lane.b32.xlu0 %v3003, 16
  %v3096 = vpop.permute.xlu0 %3095
  %3097 = vrot.lane.b32.xlu0 %v3028, 16
  %v3098 = vpop.permute.xlu0 %3097
  %3099 = vrot.lane.b32.xlu0 %v3052, 16
  %v3100 = vpop.permute.xlu0 %3099
  %3101 = vrot.lane.b32.xlu0 %v3077, 16
  %v3102 = vpop.permute.xlu0 %3101
  %3119 = vrot.lane.b32.xlu0 %v2904, 32
  %v3120 = vpop.permute.xlu0 %3119
  %3121 = vrot.lane.b32.xlu0 %v2929, 32
  %v3122 = vpop.permute.xlu0 %3121
  %3123 = vrot.lane.b32.xlu0 %v2953, 32
  %v3124 = vpop.permute.xlu0 %3123
  %3125 = vrot.lane.b32.xlu0 %v2978, 32
  %v3126 = vpop.permute.xlu0 %3125
  %3127 = vrot.lane.b32.xlu0 %v3002, 32
  %v3128 = vpop.permute.xlu0 %3127
  %3129 = vrot.lane.b32.xlu0 %v3027, 32
  %v3130 = vpop.permute.xlu0 %3129
  %3131 = vrot.lane.b32.xlu0 %v3051, 32
  %v3132 = vpop.permute.xlu0 %3131
  %3133 = vrot.lane.b32.xlu0 %v3076, 32
  %v3134 = vpop.permute.xlu0 %3133
  %3151 = vrot.lane.b32.xlu0 %v2906, 48
  %v3152 = vpop.permute.xlu0 %3151
  %3153 = vrot.lane.b32.xlu0 %v2931, 48
  %v3154 = vpop.permute.xlu0 %3153
  %3155 = vrot.lane.b32.xlu0 %v2955, 48
  %v3156 = vpop.permute.xlu0 %3155
  %3157 = vrot.lane.b32.xlu0 %v2980, 48
  %v3158 = vpop.permute.xlu0 %3157
  %3159 = vrot.lane.b32.xlu0 %v3004, 48
  %v3160 = vpop.permute.xlu0 %3159
  %3161 = vrot.lane.b32.xlu0 %v3029, 48
  %v3162 = vpop.permute.xlu0 %3161
  %3163 = vrot.lane.b32.xlu0 %v3053, 48
  %v3164 = vpop.permute.xlu0 %3163
  %3165 = vrot.lane.b32.xlu0 %v3078, 48
  %v3166 = vpop.permute.xlu0 %3165
  %v3175 = vsel %vm951, %v2897, %v3088
  %v3176 = vsel %vm951, %v2922, %v3090
  %v3177 = vsel %vm951, %v2946, %v3092
  %v3178 = vsel %vm951, %v2971, %v3094
  %v3179 = vsel %vm951, %v2995, %v3096
  %v3180 = vsel %vm951, %v3020, %v3098
  %v3181 = vsel %vm951, %v3044, %v3100
  %v3182 = vsel %vm951, %v3069, %v3102
  %v3183 = vsel %vm2865, %v3175, %v3120
  %v3184 = vsel %vm2865, %v3176, %v3122
  %v3185 = vsel %vm2865, %v3177, %v3124
  %v3186 = vsel %vm2865, %v3178, %v3126
  %v3187 = vsel %vm2865, %v3179, %v3128
  %v3188 = vsel %vm2865, %v3180, %v3130
  %v3189 = vsel %vm2865, %v3181, %v3132
  %v3190 = vsel %vm2865, %v3182, %v3134
  %v3191 = vsel %vm2874, %v3183, %v3152
  %v3192 = vsel %vm2874, %v3184, %v3154
  %v3193 = vsel %vm2874, %v3185, %v3156
  %v3194 = vsel %vm2874, %v3186, %v3158
  %v3195 = vsel %vm2874, %v3187, %v3160
  %v3196 = vsel %vm2874, %v3188, %v3162
  %v3197 = vsel %vm2874, %v3189, %v3164
  %v3198 = vsel %vm2874, %v3190, %v3166
  %v3207 = vrot.slane %v3191, 7
  %v3208 = vrot.slane %v3192, 7
  %v3209 = vrot.slane %v3193, 7
  %v3210 = vrot.slane %v3194, 7
  %v3211 = vrot.slane %v3195, 7
  %v3212 = vrot.slane %v3196, 7
  %v3213 = vrot.slane %v3197, 7
  %v3214 = vrot.slane %v3198, 7
  %vm3223 = vcmask 1040384
  %v3224 = vsel %vm3223, %v2875, %v3207
  %v3225 = vsel %vm3223, %v2876, %v3208
  %v3226 = vsel %vm3223, %v2877, %v3209
  %v3227 = vsel %vm3223, %v2878, %v3210
  %v3228 = vsel %vm3223, %v2879, %v3211
  %v3229 = vsel %vm3223, %v2880, %v3212
  %v3230 = vsel %vm3223, %v2881, %v3213
  %v3231 = vsel %vm3223, %v2882, %v3214
  %v3232 = vld [vmem:[%s4] sm:$0xff]
  %v3233 = vld [vmem:[%s4 + $0x8] sm:$0xff]
  %v3234 = vld [vmem:[%s4 + $0x10] sm:$0xff]
  %v3235 = vld [vmem:[%s4 + $0x18] sm:$0xff]
  %v3236 = vld [vmem:[%s4 + $0x20] sm:$0xff]
  %v3237 = vld [vmem:[%s4 + $0x28] sm:$0xff]
  %v3238 = vld [vmem:[%s4 + $0x30] sm:$0xff]
  %v3239 = vld [vmem:[%s4 + $0x38] sm:$0xff]
  %v3240 = vlaneseq
  %v3241 = vshrl.u32 %v3240, 7
  %v3242 = vsub.s32 0, %v3241
  %v3243 = vrot.slane %v106, %v3242
  %v3252 = vcombine.low %v3224, %v3225
  %v3253 = vcombine.low %v3226, %v3227
  %v3255 = vunpack.c.l.s4 1983009808
  %v3256 = vunpack.c.0.s8 %v3255
  %v3257 = vlaneseq
  %v3258 = vshrl.u32 %v3257, 7
  %v3259 = vsub.s32 %v3256, %v3258
  %v3260 = vrot.slane %v3252, %v3259
  %v3262 = vunpack.c.l.s4 1983009808
  %v3263 = vunpack.c.0.s8 %v3262
  %v3264 = vlaneseq
  %v3265 = vshrl.u32 %v3264, 7
  %v3266 = vsub.s32 %v3263, %v3265
  %v3267 = vrot.slane %v3253, %v3266
  %v3268 = vcombine.low %v3260, %v3267
  %v3269 = vcombine.low %v3228, %v3229
  %v3270 = vcombine.low %v3230, %v3231
  %v3272 = vunpack.c.l.s4 1983009808
  %v3273 = vunpack.c.0.s8 %v3272
  %v3274 = vlaneseq
  %v3275 = vshrl.u32 %v3274, 7
  %v3276 = vsub.s32 %v3273, %v3275
  %v3277 = vrot.slane %v3269, %v3276
  %v3279 = vunpack.c.l.s4 1983009808
  %v3280 = vunpack.c.0.s8 %v3279
  %v3281 = vlaneseq
  %v3282 = vshrl.u32 %v3281, 7
  %v3283 = vsub.s32 %v3280, %v3282
  %v3284 = vrot.slane %v3270, %v3283
  %v3285 = vcombine.low %v3277, %v3284
  %v3286 = vsel %vm177, %v3268, 0
  %v3288 = vsel %vm177, %v3285, 0
  %3290 = vmatprep.subr.mxu0 0.0
  %3291 = vmatpush1.msra.mxu0 %v3232
  %3292 = vmatprep.subr.mxu0 0.0
  %3293 = vmatpush1.msra.mxu0 %v3233
  %3294 = vmatprep.subr.mxu0 0.0
  %3295 = vmatpush1.msra.mxu0 %v3234
  %3296 = vmatprep.subr.mxu0 0.0
  %3297 = vmatpush1.msra.mxu0 %v3235
  %3298 = vmatprep.subr.mxu0 0.0
  %3299 = vmatpush1.msra.mxu0 %v3236
  %3300 = vmatprep.subr.mxu0 0.0
  %3301 = vmatpush1.msra.mxu0 %v3237
  %3302 = vmatprep.subr.mxu0 0.0
  %3303 = vmatpush1.msra.mxu0 %v3238
  %3304 = vmatprep.subr.mxu0 0.0
  %3305 = vmatpush1.msra.mxu0 %v3239
  %3306 = vmatprep.subr.mxu0 0.0
  %3307 = vmatpush1.msra.mxu0 0.0
  %3308 = vmatprep.subr.mxu0 0.0
  %3309 = vmatpush1.msra.mxu0 0.0
  %3310 = vmatprep.subr.mxu0 0.0
  %3311 = vmatpush1.msra.mxu0 0.0
  %3312 = vmatprep.subr.mxu0 0.0
  %3313 = vmatpush1.msra.mxu0 0.0
  %3314 = vmatprep.subr.mxu0 0.0
  %3315 = vmatpush1.msra.mxu0 0.0
  %3316 = vmatprep.subr.mxu0 0.0
  %3317 = vmatpush1.msra.mxu0 0.0
  %3318 = vmatprep.subr.mxu0 0.0
  %3319 = vmatpush1.msra.mxu0 0.0
  %3320 = vmatprep.subr.mxu0 0.0
  %3321 = vmatpush1.msra.mxu0 0.0
  %3322 = vmatprep.subr.mxu0 0.0
  %3323 = vmatpush1.msra.mxu0 0.0
  %3324 = vmatprep.subr.mxu0 0.0
  %3325 = vmatpush1.msra.mxu0 0.0
  %3326 = vmatprep.subr.mxu0 0.0
  %3327 = vmatpush1.msra.mxu0 0.0
  %3328 = vmatprep.subr.mxu0 0.0
  %3329 = vmatpush1.msra.mxu0 0.0
  %3330 = vmatprep.subr.mxu0 0.0
  %3331 = vmatpush1.msra.mxu0 0.0
  %3332 = vmatprep.subr.mxu0 0.0
  %3333 = vmatpush1.msra.mxu0 0.0
  %3334 = vmatprep.subr.mxu0 0.0
  %3335 = vmatpush1.msra.mxu0 0.0
  %3336 = vmatprep.subr.mxu0 0.0
  %3337 = vmatpush1.msra.mxu0 0.0
  %3338 = vmatprep.subr.mxu0 0.0
  %3339 = vmatpush1.msra.mxu0 0.0
  %3340 = vmatprep.subr.mxu0 0.0
  %3341 = vmatpush1.msra.mxu0 0.0
  %3342 = vmatprep.subr.mxu0 0.0
  %3343 = vmatpush1.msra.mxu0 0.0
  %3344 = vmatprep.subr.mxu0 0.0
  %3345 = vmatpush1.msra.mxu0 0.0
  %3346 = vmatprep.subr.mxu0 0.0
  %3347 = vmatpush1.msra.mxu0 0.0
  %3348 = vmatprep.subr.mxu0 0.0
  %3349 = vmatpush1.msra.mxu0 0.0
  %3350 = vmatprep.subr.mxu0 0.0
  %3351 = vmatpush1.msra.mxu0 0.0
  %3352 = vmatprep.subr.mxu0 0.0
  %3353 = vmatpush1.msra.mxu0 0.0
  %3354 = vmatprep.mubr.f32.mxu0 0.0
  %3355 = vmatmul.mubr.f32.gmra.mrb[0].mxu0 %v3286
  %v3356 = vpop.f32.mrb[0].mxu0
  %v3357 = vadd.f32 %v3243, %v3356
  %v3358 = vpop.f32.mrb[0].mxu0
  %3359 = vmatprep.mubr.f32.mxu0 0.0
  %3360 = vmatmul.mubr.f32.gmra.mrb[0].mxu0 %v3288
  %v3361 = vpop.f32.mrb[0].mxu0
  %v3362 = vadd.f32 %v3243, %v3361
  %v3363 = vpop.f32.mrb[0].mxu0
  %3364 = vdwg.mxu0
  %v3367 = vcombine.high %v3357, %v3357
  %v3369 = vunpack.c.l.s4 1983009808
  %v3370 = vunpack.c.0.s8 %v3369
  %v3371 = vlaneseq
  %v3372 = vshrl.u32 %v3371, 7
  %v3373 = vsub.s32 %v3370, %v3372
  %v3374 = vrot.slane %v3357, %v3373
  %v3376 = vunpack.c.l.s4 1983009808
  %v3377 = vunpack.c.0.s8 %v3376
  %v3378 = vlaneseq
  %v3379 = vshrl.u32 %v3378, 7
  %v3380 = vsub.s32 %v3377, %v3379
  %v3381 = vrot.slane %v3367, %v3380
  %v3382 = vcombine.high %v3374, %v3374
  %v3383 = vcombine.high %v3381, %v3381
  %v3384 = vcombine.high %v3362, %v3362
  %v3386 = vunpack.c.l.s4 1983009808
  %v3387 = vunpack.c.0.s8 %v3386
  %v3388 = vlaneseq
  %v3389 = vshrl.u32 %v3388, 7
  %v3390 = vsub.s32 %v3387, %v3389
  %v3391 = vrot.slane %v3362, %v3390
  %v3393 = vunpack.c.l.s4 1983009808
  %v3394 = vunpack.c.0.s8 %v3393
  %v3395 = vlaneseq
  %v3396 = vshrl.u32 %v3395, 7
  %v3397 = vsub.s32 %v3394, %v3396
  %v3398 = vrot.slane %v3384, %v3397
  %v3399 = vcombine.high %v3391, %v3391
  %v3400 = vcombine.high %v3398, %v3398
  %v3409 = vadd.f32 %v98, %v3374
  %v3410 = vadd.f32 %v99, %v3382
  %v3411 = vadd.f32 %v100, %v3381
  %v3412 = vadd.f32 %v101, %v3383
  %v3413 = vadd.f32 %v102, %v3391
  %v3414 = vadd.f32 %v103, %v3399
  %v3415 = vadd.f32 %v104, %v3398
  %v3416 = vadd.f32 %v105, %v3400
  %v3425 = vcombine.low %v3409, %v3410
  %v3426 = vcombine.low %v3411, %v3412
  %v3428 = vunpack.c.l.s4 1983009808
  %v3429 = vunpack.c.0.s8 %v3428
  %v3430 = vlaneseq
  %v3431 = vshrl.u32 %v3430, 7
  %v3432 = vsub.s32 %v3429, %v3431
  %v3433 = vrot.slane %v3425, %v3432
  %v3435 = vunpack.c.l.s4 1983009808
  %v3436 = vunpack.c.0.s8 %v3435
  %v3437 = vlaneseq
  %v3438 = vshrl.u32 %v3437, 7
  %v3439 = vsub.s32 %v3436, %v3438
  %v3440 = vrot.slane %v3426, %v3439
  %v3441 = vcombine.low %v3433, %v3440
  %v3442 = vcombine.low %v3413, %v3414
  %v3443 = vcombine.low %v3415, %v3416
  %v3445 = vunpack.c.l.s4 1983009808
  %v3446 = vunpack.c.0.s8 %v3445
  %v3447 = vlaneseq
  %v3448 = vshrl.u32 %v3447, 7
  %v3449 = vsub.s32 %v3446, %v3448
  %v3450 = vrot.slane %v3442, %v3449
  %v3452 = vunpack.c.l.s4 1983009808
  %v3453 = vunpack.c.0.s8 %v3452
  %v3454 = vlaneseq
  %v3455 = vshrl.u32 %v3454, 7
  %v3456 = vsub.s32 %v3453, %v3455
  %v3457 = vrot.slane %v3443, %v3456
  %v3458 = vcombine.low %v3450, %v3457
  %v3461 = vsel %vm177, %v3441, 0.0
  %3462 = vadd.xlane.f32.xlu0 %v3461
  %v3463 = vpop.xlane.xlu0 %3462
  %v3464 = vsel %vm177, %v3458, 0.0
  %3465 = vadd.xlane.f32.xlu0 %v3464
  %v3466 = vpop.xlane.xlu0 %3465
  %v3467 = vrcp.pop 64.0
  %v3468 = vmul.f32 %v3463, %v3467
  %v3469 = vmul.f32 %v3466, %v3467
  %v3473 = vunpack.c.l.s4 269488144
  %v3474 = vunpack.c.0.s8 %v3473
  %v3475 = vlaneseq
  %v3476 = vshrl.u32 %v3475, 7
  %v3477 = vsub.s32 %v3474, %v3476
  %v3478 = vrot.slane %v3468, %v3477
  %v3480 = vunpack.c.l.s4 842150450
  %v3481 = vunpack.c.0.s8 %v3480
  %v3482 = vlaneseq
  %v3483 = vshrl.u32 %v3482, 7
  %v3484 = vsub.s32 %v3481, %v3483
  %v3485 = vrot.slane %v3468, %v3484
  %v3487 = vunpack.c.l.s4 1414812756
  %v3488 = vunpack.c.0.s8 %v3487
  %v3489 = vlaneseq
  %v3490 = vshrl.u32 %v3489, 7
  %v3491 = vsub.s32 %v3488, %v3490
  %v3492 = vrot.slane %v3468, %v3491
  %v3494 = vunpack.c.l.s4 1987475062
  %v3495 = vunpack.c.0.s8 %v3494
  %v3496 = vlaneseq
  %v3497 = vshrl.u32 %v3496, 7
  %v3498 = vsub.s32 %v3495, %v3497
  %v3499 = vrot.slane %v3468, %v3498
  %v3501 = vunpack.c.l.s4 269488144
  %v3502 = vunpack.c.0.s8 %v3501
  %v3503 = vlaneseq
  %v3504 = vshrl.u32 %v3503, 7
  %v3505 = vsub.s32 %v3502, %v3504
  %v3506 = vrot.slane %v3469, %v3505
  %v3508 = vunpack.c.l.s4 842150450
  %v3509 = vunpack.c.0.s8 %v3508
  %v3510 = vlaneseq
  %v3511 = vshrl.u32 %v3510, 7
  %v3512 = vsub.s32 %v3509, %v3511
  %v3513 = vrot.slane %v3469, %v3512
  %v3515 = vunpack.c.l.s4 1414812756
  %v3516 = vunpack.c.0.s8 %v3515
  %v3517 = vlaneseq
  %v3518 = vshrl.u32 %v3517, 7
  %v3519 = vsub.s32 %v3516, %v3518
  %v3520 = vrot.slane %v3469, %v3519
  %v3522 = vunpack.c.l.s4 1987475062
  %v3523 = vunpack.c.0.s8 %v3522
  %v3524 = vlaneseq
  %v3525 = vshrl.u32 %v3524, 7
  %v3526 = vsub.s32 %v3523, %v3525
  %v3527 = vrot.slane %v3469, %v3526
  %v3536 = vsub.f32 %v3409, %v3478
  %v3537 = vsub.f32 %v3410, %v3485
  %v3538 = vsub.f32 %v3411, %v3492
  %v3539 = vsub.f32 %v3412, %v3499
  %v3540 = vsub.f32 %v3413, %v3506
  %v3541 = vsub.f32 %v3414, %v3513
  %v3542 = vsub.f32 %v3415, %v3520
  %v3543 = vsub.f32 %v3416, %v3527
  %v3544 = vmul.f32 %v3536, %v3536
  %v3545 = vmul.f32 %v3537, %v3537
  %v3546 = vmul.f32 %v3538, %v3538
  %v3547 = vmul.f32 %v3539, %v3539
  %v3548 = vmul.f32 %v3540, %v3540
  %v3549 = vmul.f32 %v3541, %v3541
  %v3550 = vmul.f32 %v3542, %v3542
  %v3551 = vmul.f32 %v3543, %v3543
  %v3560 = vcombine.low %v3544, %v3545
  %v3561 = vcombine.low %v3546, %v3547
  %v3563 = vunpack.c.l.s4 1983009808
  %v3564 = vunpack.c.0.s8 %v3563
  %v3565 = vlaneseq
  %v3566 = vshrl.u32 %v3565, 7
  %v3567 = vsub.s32 %v3564, %v3566
  %v3568 = vrot.slane %v3560, %v3567
  %v3570 = vunpack.c.l.s4 1983009808
  %v3571 = vunpack.c.0.s8 %v3570
  %v3572 = vlaneseq
  %v3573 = vshrl.u32 %v3572, 7
  %v3574 = vsub.s32 %v3571, %v3573
  %v3575 = vrot.slane %v3561, %v3574
  %v3576 = vcombine.low %v3568, %v3575
  %v3577 = vcombine.low %v3548, %v3549
  %v3578 = vcombine.low %v3550, %v3551
  %v3580 = vunpack.c.l.s4 1983009808
  %v3581 = vunpack.c.0.s8 %v3580
  %v3582 = vlaneseq
  %v3583 = vshrl.u32 %v3582, 7
  %v3584 = vsub.s32 %v3581, %v3583
  %v3585 = vrot.slane %v3577, %v3584
  %v3587 = vunpack.c.l.s4 1983009808
  %v3588 = vunpack.c.0.s8 %v3587
  %v3589 = vlaneseq
  %v3590 = vshrl.u32 %v3589, 7
  %v3591 = vsub.s32 %v3588, %v3590
  %v3592 = vrot.slane %v3578, %v3591
  %v3593 = vcombine.low %v3585, %v3592
  %v3596 = vsel %vm177, %v3576, 0.0
  %3597 = vadd.xlane.f32.xlu0 %v3596
  %v3598 = vpop.xlane.xlu0 %3597
  %v3599 = vsel %vm177, %v3593, 0.0
  %3600 = vadd.xlane.f32.xlu0 %v3599
  %v3601 = vpop.xlane.xlu0 %3600
  %v3602 = vmul.f32 %v3598, %v3467
  %v3603 = vmul.f32 %v3601, %v3467
  %v3604 = vadd.f32 %v3602, 1e-05
  %v3605 = vadd.f32 %v3603, 1e-05
  %v3606 = vrsqrt.pop %v3604
  %v3607 = vrsqrt.pop %v3605
  %v3611 = vunpack.c.l.s4 269488144
  %v3612 = vunpack.c.0.s8 %v3611
  %v3613 = vlaneseq
  %v3614 = vshrl.u32 %v3613, 7
  %v3615 = vsub.s32 %v3612, %v3614
  %v3616 = vrot.slane %v3606, %v3615
  %v3618 = vunpack.c.l.s4 842150450
  %v3619 = vunpack.c.0.s8 %v3618
  %v3620 = vlaneseq
  %v3621 = vshrl.u32 %v3620, 7
  %v3622 = vsub.s32 %v3619, %v3621
  %v3623 = vrot.slane %v3606, %v3622
  %v3625 = vunpack.c.l.s4 1414812756
  %v3626 = vunpack.c.0.s8 %v3625
  %v3627 = vlaneseq
  %v3628 = vshrl.u32 %v3627, 7
  %v3629 = vsub.s32 %v3626, %v3628
  %v3630 = vrot.slane %v3606, %v3629
  %v3632 = vunpack.c.l.s4 1987475062
  %v3633 = vunpack.c.0.s8 %v3632
  %v3634 = vlaneseq
  %v3635 = vshrl.u32 %v3634, 7
  %v3636 = vsub.s32 %v3633, %v3635
  %v3637 = vrot.slane %v3606, %v3636
  %v3639 = vunpack.c.l.s4 269488144
  %v3640 = vunpack.c.0.s8 %v3639
  %v3641 = vlaneseq
  %v3642 = vshrl.u32 %v3641, 7
  %v3643 = vsub.s32 %v3640, %v3642
  %v3644 = vrot.slane %v3607, %v3643
  %v3646 = vunpack.c.l.s4 842150450
  %v3647 = vunpack.c.0.s8 %v3646
  %v3648 = vlaneseq
  %v3649 = vshrl.u32 %v3648, 7
  %v3650 = vsub.s32 %v3647, %v3649
  %v3651 = vrot.slane %v3607, %v3650
  %v3653 = vunpack.c.l.s4 1414812756
  %v3654 = vunpack.c.0.s8 %v3653
  %v3655 = vlaneseq
  %v3656 = vshrl.u32 %v3655, 7
  %v3657 = vsub.s32 %v3654, %v3656
  %v3658 = vrot.slane %v3607, %v3657
  %v3660 = vunpack.c.l.s4 1987475062
  %v3661 = vunpack.c.0.s8 %v3660
  %v3662 = vlaneseq
  %v3663 = vshrl.u32 %v3662, 7
  %v3664 = vsub.s32 %v3661, %v3663
  %v3665 = vrot.slane %v3607, %v3664
  %v3674 = vmul.f32 %v3536, %v3616
  %v3675 = vmul.f32 %v3537, %v3623
  %v3676 = vmul.f32 %v3538, %v3630
  %v3677 = vmul.f32 %v3539, %v3637
  %v3678 = vmul.f32 %v3540, %v3644
  %v3679 = vmul.f32 %v3541, %v3651
  %v3680 = vmul.f32 %v3542, %v3658
  %v3681 = vmul.f32 %v3543, %v3665
  %v3682 = vlaneseq
  %v3683 = vshrl.u32 %v3682, 7
  %v3684 = vsub.s32 1, %v3683
  %v3685 = vrot.slane %v106, %v3684
  %v3687 = vcombine.high %v3685, %v3685
  %v3689 = vunpack.c.l.s4 1983009808
  %v3690 = vunpack.c.0.s8 %v3689
  %v3691 = vlaneseq
  %v3692 = vshrl.u32 %v3691, 7
  %v3693 = vsub.s32 %v3690, %v3692
  %v3694 = vrot.slane %v3685, %v3693
  %v3696 = vunpack.c.l.s4 1983009808
  %v3697 = vunpack.c.0.s8 %v3696
  %v3698 = vlaneseq
  %v3699 = vshrl.u32 %v3698, 7
  %v3700 = vsub.s32 %v3697, %v3699
  %v3701 = vrot.slane %v3687, %v3700
  %v3702 = vcombine.high %v3694, %v3694
  %v3703 = vcombine.high %v3701, %v3701
  %v3708 = vmul.f32 %v3674, %v3694
  %v3709 = vmul.f32 %v3675, %v3702
  %v3710 = vmul.f32 %v3676, %v3701
  %v3711 = vmul.f32 %v3677, %v3703
  %v3712 = vmul.f32 %v3678, %v3694
  %v3713 = vmul.f32 %v3679, %v3702
  %v3714 = vmul.f32 %v3680, %v3701
  %v3715 = vmul.f32 %v3681, %v3703
  %v3716 = vlaneseq
  %v3717 = vshrl.u32 %v3716, 7
  %v3718 = vsub.s32 2, %v3717
  %v3719 = vrot.slane %v106, %v3718
  %v3721 = vcombine.high %v3719, %v3719
  %v3723 = vunpack.c.l.s4 1983009808
  %v3724 = vunpack.c.0.s8 %v3723
  %v3725 = vlaneseq
  %v3726 = vshrl.u32 %v3725, 7
  %v3727 = vsub.s32 %v3724, %v3726
  %v3728 = vrot.slane %v3719, %v3727
  %v3730 = vunpack.c.l.s4 1983009808
  %v3731 = vunpack.c.0.s8 %v3730
  %v3732 = vlaneseq
  %v3733 = vshrl.u32 %v3732, 7
  %v3734 = vsub.s32 %v3731, %v3733
  %v3735 = vrot.slane %v3721, %v3734
  %v3736 = vcombine.high %v3728, %v3728
  %v3737 = vcombine.high %v3735, %v3735
  %v3742 = vadd.f32 %v3708, %v3728
  %v3743 = vadd.f32 %v3709, %v3736
  %v3744 = vadd.f32 %v3710, %v3735
  %v3745 = vadd.f32 %v3711, %v3737
  %v3746 = vadd.f32 %v3712, %v3728
  %v3747 = vadd.f32 %v3713, %v3736
  %v3748 = vadd.f32 %v3714, %v3735
  %v3749 = vadd.f32 %v3715, %v3737
  %v3758 = vcombine.low %v3742, %v3743
  %v3759 = vcombine.low %v3744, %v3745
  %v3761 = vunpack.c.l.s4 1983009808
  %v3762 = vunpack.c.0.s8 %v3761
  %v3763 = vlaneseq
  %v3764 = vshrl.u32 %v3763, 7
  %v3765 = vsub.s32 %v3762, %v3764
  %v3766 = vrot.slane %v3758, %v3765
  %v3768 = vunpack.c.l.s4 1983009808
  %v3769 = vunpack.c.0.s8 %v3768
  %v3770 = vlaneseq
  %v3771 = vshrl.u32 %v3770, 7
  %v3772 = vsub.s32 %v3769, %v3771
  %v3773 = vrot.slane %v3759, %v3772
  %v3774 = vcombine.low %v3766, %v3773
  %v3775 = vcombine.low %v3746, %v3747
  %v3776 = vcombine.low %v3748, %v3749
  %v3778 = vunpack.c.l.s4 1983009808
  %v3779 = vunpack.c.0.s8 %v3778
  %v3780 = vlaneseq
  %v3781 = vshrl.u32 %v3780, 7
  %v3782 = vsub.s32 %v3779, %v3781
  %v3783 = vrot.slane %v3775, %v3782
  %v3785 = vunpack.c.l.s4 1983009808
  %v3786 = vunpack.c.0.s8 %v3785
  %v3787 = vlaneseq
  %v3788 = vshrl.u32 %v3787, 7
  %v3789 = vsub.s32 %v3786, %v3788
  %v3790 = vrot.slane %v3776, %v3789
  %v3791 = vcombine.low %v3783, %v3790
  %v3794 = vpack.c.bf16 %v3791, %v3774
  %v3795 = vld [vmem:[%s6] sm:$0xff]
  %v3796 = vld [vmem:[%s6 + $0x8] sm:$0xff]
  %v3797 = vld [vmem:[%s6 + $0x10] sm:$0xff]
  %v3798 = vld [vmem:[%s6 + $0x18] sm:$0xff]
  %v3799 = vld [vmem:[%s6 + $0x20] sm:$0xff]
  %v3800 = vld [vmem:[%s6 + $0x28] sm:$0xff]
  %v3801 = vld [vmem:[%s6 + $0x30] sm:$0xff]
  %v3802 = vld [vmem:[%s6 + $0x38] sm:$0xff]
  %v3803 = vld [vmem:[%s6 + $0x40] sm:$0xff]
  %v3804 = vld [vmem:[%s6 + $0x48] sm:$0xff]
  %v3805 = vld [vmem:[%s6 + $0x50] sm:$0xff]
  %v3806 = vld [vmem:[%s6 + $0x58] sm:$0xff]
  %v3807 = vld [vmem:[%s6 + $0x60] sm:$0xff]
  %v3808 = vld [vmem:[%s6 + $0x68] sm:$0xff]
  %v3809 = vld [vmem:[%s6 + $0x70] sm:$0xff]
  %v3810 = vld [vmem:[%s6 + $0x78] sm:$0xff]
  %v3811 = vld [vmem:[%s6 + $0x80] sm:$0xff]
  %v3812 = vld [vmem:[%s6 + $0x88] sm:$0xff]
  %v3813 = vld [vmem:[%s6 + $0x90] sm:$0xff]
  %v3814 = vld [vmem:[%s6 + $0x98] sm:$0xff]
  %v3815 = vld [vmem:[%s6 + $0xa0] sm:$0xff]
  %v3816 = vld [vmem:[%s6 + $0xa8] sm:$0xff]
  %v3817 = vld [vmem:[%s6 + $0xb0] sm:$0xff]
  %v3818 = vld [vmem:[%s6 + $0xb8] sm:$0xff]
  %v3819 = vld [vmem:[%s6 + $0xc0] sm:$0xff]
  %v3820 = vld [vmem:[%s6 + $0xc8] sm:$0xff]
  %v3821 = vld [vmem:[%s6 + $0xd0] sm:$0xff]
  %v3822 = vld [vmem:[%s6 + $0xd8] sm:$0xff]
  %v3823 = vld [vmem:[%s6 + $0xe0] sm:$0xff]
  %v3824 = vld [vmem:[%s6 + $0xe8] sm:$0xff]
  %v3825 = vld [vmem:[%s6 + $0xf0] sm:$0xff]
  %v3826 = vld [vmem:[%s6 + $0xf8] sm:$0xff]
  %v3827 = vld [vmem:[%s6 + $0x100] sm:$0xff]
  %v3828 = vld [vmem:[%s6 + $0x108] sm:$0xff]
  %v3829 = vld [vmem:[%s6 + $0x110] sm:$0xff]
  %v3830 = vld [vmem:[%s6 + $0x118] sm:$0xff]
  %v3831 = vld [vmem:[%s6 + $0x120] sm:$0xff]
  %v3832 = vld [vmem:[%s6 + $0x128] sm:$0xff]
  %v3833 = vld [vmem:[%s6 + $0x130] sm:$0xff]
  %v3834 = vld [vmem:[%s6 + $0x138] sm:$0xff]
  %v3835 = vld [vmem:[%s6 + $0x140] sm:$0xff]
  %v3836 = vld [vmem:[%s6 + $0x148] sm:$0xff]
  %v3837 = vld [vmem:[%s6 + $0x150] sm:$0xff]
  %v3838 = vld [vmem:[%s6 + $0x158] sm:$0xff]
  %v3839 = vld [vmem:[%s6 + $0x160] sm:$0xff]
  %v3840 = vld [vmem:[%s6 + $0x168] sm:$0xff]
  %v3841 = vld [vmem:[%s6 + $0x170] sm:$0xff]
  %v3842 = vld [vmem:[%s6 + $0x178] sm:$0xff]
  %v3843 = vld [vmem:[%s6 + $0x180] sm:$0xff]
  %v3844 = vld [vmem:[%s6 + $0x188] sm:$0xff]
  %v3845 = vld [vmem:[%s6 + $0x190] sm:$0xff]
  %v3846 = vld [vmem:[%s6 + $0x198] sm:$0xff]
  %v3847 = vld [vmem:[%s6 + $0x1a0] sm:$0xff]
  %v3848 = vld [vmem:[%s6 + $0x1a8] sm:$0xff]
  %v3849 = vld [vmem:[%s6 + $0x1b0] sm:$0xff]
  %v3850 = vld [vmem:[%s6 + $0x1b8] sm:$0xff]
  %v3851 = vld [vmem:[%s6 + $0x1c0] sm:$0xff]
  %v3852 = vld [vmem:[%s6 + $0x1c8] sm:$0xff]
  %v3853 = vld [vmem:[%s6 + $0x1d0] sm:$0xff]
  %v3854 = vld [vmem:[%s6 + $0x1d8] sm:$0xff]
  %v3855 = vld [vmem:[%s6 + $0x1e0] sm:$0xff]
  %v3856 = vld [vmem:[%s6 + $0x1e8] sm:$0xff]
  %v3857 = vld [vmem:[%s6 + $0x1f0] sm:$0xff]
  %v3858 = vld [vmem:[%s6 + $0x1f8] sm:$0xff]
  %v3859 = vld [vmem:[%s7] sm:$0xff]
  %v3860 = vld [vmem:[%s7 + $0x8] sm:$0xff]
  %v3863 = vlaneseq
  %v3864 = vshrl.u32 %v3863, 7
  %v3865 = vsub.s32 0, %v3864
  %v3866 = vrot.slane %v3859, %v3865
  %v3867 = vlaneseq
  %v3868 = vshrl.u32 %v3867, 7
  %v3869 = vsub.s32 1, %v3868
  %v3870 = vrot.slane %v3859, %v3869
  %v3871 = vlaneseq
  %v3872 = vshrl.u32 %v3871, 7
  %v3873 = vsub.s32 2, %v3872
  %v3874 = vrot.slane %v3859, %v3873
  %v3875 = vlaneseq
  %v3876 = vshrl.u32 %v3875, 7
  %v3877 = vsub.s32 3, %v3876
  %v3878 = vrot.slane %v3859, %v3877
  %v3879 = vlaneseq
  %v3880 = vshrl.u32 %v3879, 7
  %v3881 = vsub.s32 4, %v3880
  %v3882 = vrot.slane %v3859, %v3881
  %v3883 = vlaneseq
  %v3884 = vshrl.u32 %v3883, 7
  %v3885 = vsub.s32 5, %v3884
  %v3886 = vrot.slane %v3859, %v3885
  %v3887 = vlaneseq
  %v3888 = vshrl.u32 %v3887, 7
  %v3889 = vsub.s32 6, %v3888
  %v3890 = vrot.slane %v3859, %v3889
  %v3891 = vlaneseq
  %v3892 = vshrl.u32 %v3891, 7
  %v3893 = vsub.s32 7, %v3892
  %v3894 = vrot.slane %v3859, %v3893
  %v3895 = vlaneseq
  %v3896 = vshrl.u32 %v3895, 7
  %v3897 = vsub.s32 0, %v3896
  %v3898 = vrot.slane %v3860, %v3897
  %v3899 = vlaneseq
  %v3900 = vshrl.u32 %v3899, 7
  %v3901 = vsub.s32 1, %v3900
  %v3902 = vrot.slane %v3860, %v3901
  %v3903 = vlaneseq
  %v3904 = vshrl.u32 %v3903, 7
  %v3905 = vsub.s32 2, %v3904
  %v3906 = vrot.slane %v3860, %v3905
  %v3907 = vlaneseq
  %v3908 = vshrl.u32 %v3907, 7
  %v3909 = vsub.s32 3, %v3908
  %v3910 = vrot.slane %v3860, %v3909
  %v3911 = vlaneseq
  %v3912 = vshrl.u32 %v3911, 7
  %v3913 = vsub.s32 4, %v3912
  %v3914 = vrot.slane %v3860, %v3913
  %v3915 = vlaneseq
  %v3916 = vshrl.u32 %v3915, 7
  %v3917 = vsub.s32 5, %v3916
  %v3918 = vrot.slane %v3860, %v3917
  %v3919 = vlaneseq
  %v3920 = vshrl.u32 %v3919, 7
  %v3921 = vsub.s32 6, %v3920
  %v3922 = vrot.slane %v3860, %v3921
  %v3923 = vlaneseq
  %v3924 = vshrl.u32 %v3923, 7
  %v3925 = vsub.s32 7, %v3924
  %v3926 = vrot.slane %v3860, %v3925
  %v4007 = vunpack.c.l.b16 %v3795
  %v4008 = vunpack.c.h.b16 %v3795
  %v4009 = vunpack.c.l.b16 %v3796
  %v4010 = vunpack.c.h.b16 %v3796
  %v4011 = vunpack.c.l.b16 %v3797
  %v4012 = vunpack.c.h.b16 %v3797
  %v4013 = vunpack.c.l.b16 %v3798
  %v4014 = vunpack.c.h.b16 %v3798
  %v4015 = vunpack.c.l.b16 %v3799
  %v4016 = vunpack.c.h.b16 %v3799
  %v4017 = vunpack.c.l.b16 %v3800
  %v4018 = vunpack.c.h.b16 %v3800
  %v4019 = vunpack.c.l.b16 %v3801
  %v4020 = vunpack.c.h.b16 %v3801
  %v4021 = vunpack.c.l.b16 %v3802
  %v4022 = vunpack.c.h.b16 %v3802
  %v4023 = vunpack.c.l.b16 %v3803
  %v4024 = vunpack.c.h.b16 %v3803
  %v4025 = vunpack.c.l.b16 %v3804
  %v4026 = vunpack.c.h.b16 %v3804
  %v4027 = vunpack.c.l.b16 %v3805
  %v4028 = vunpack.c.h.b16 %v3805
  %v4029 = vunpack.c.l.b16 %v3806
  %v4030 = vunpack.c.h.b16 %v3806
  %v4031 = vunpack.c.l.b16 %v3807
  %v4032 = vunpack.c.h.b16 %v3807
  %v4033 = vunpack.c.l.b16 %v3808
  %v4034 = vunpack.c.h.b16 %v3808
  %v4035 = vunpack.c.l.b16 %v3809
  %v4036 = vunpack.c.h.b16 %v3809
  %v4037 = vunpack.c.l.b16 %v3810
  %v4038 = vunpack.c.h.b16 %v3810
  %v4039 = vunpack.c.l.b16 %v3811
  %v4040 = vunpack.c.h.b16 %v3811
  %v4041 = vunpack.c.l.b16 %v3812
  %v4042 = vunpack.c.h.b16 %v3812
  %v4043 = vunpack.c.l.b16 %v3813
  %v4044 = vunpack.c.h.b16 %v3813
  %v4045 = vunpack.c.l.b16 %v3814
  %v4046 = vunpack.c.h.b16 %v3814
  %v4047 = vunpack.c.l.b16 %v3815
  %v4048 = vunpack.c.h.b16 %v3815
  %v4049 = vunpack.c.l.b16 %v3816
  %v4050 = vunpack.c.h.b16 %v3816
  %v4051 = vunpack.c.l.b16 %v3817
  %v4052 = vunpack.c.h.b16 %v3817
  %v4053 = vunpack.c.l.b16 %v3818
  %v4054 = vunpack.c.h.b16 %v3818
  %v4055 = vunpack.c.l.b16 %v3819
  %v4056 = vunpack.c.h.b16 %v3819
  %v4057 = vunpack.c.l.b16 %v3820
  %v4058 = vunpack.c.h.b16 %v3820
  %v4059 = vunpack.c.l.b16 %v3821
  %v4060 = vunpack.c.h.b16 %v3821
  %v4061 = vunpack.c.l.b16 %v3822
  %v4062 = vunpack.c.h.b16 %v3822
  %v4063 = vunpack.c.l.b16 %v3823
  %v4064 = vunpack.c.h.b16 %v3823
  %v4065 = vunpack.c.l.b16 %v3824
  %v4066 = vunpack.c.h.b16 %v3824
  %v4067 = vunpack.c.l.b16 %v3825
  %v4068 = vunpack.c.h.b16 %v3825
  %v4069 = vunpack.c.l.b16 %v3826
  %v4070 = vunpack.c.h.b16 %v3826
  %v4071 = vunpack.c.l.b16 %v3827
  %v4072 = vunpack.c.h.b16 %v3827
  %v4073 = vunpack.c.l.b16 %v3828
  %v4074 = vunpack.c.h.b16 %v3828
  %v4075 = vunpack.c.l.b16 %v3829
  %v4076 = vunpack.c.h.b16 %v3829
  %v4077 = vunpack.c.l.b16 %v3830
  %v4078 = vunpack.c.h.b16 %v3830
  %v4079 = vunpack.c.l.b16 %v3831
  %v4080 = vunpack.c.h.b16 %v3831
  %v4081 = vunpack.c.l.b16 %v3832
  %v4082 = vunpack.c.h.b16 %v3832
  %v4083 = vunpack.c.l.b16 %v3833
  %v4084 = vunpack.c.h.b16 %v3833
  %v4085 = vunpack.c.l.b16 %v3834
  %v4086 = vunpack.c.h.b16 %v3834
  %v4087 = vunpack.c.l.b16 %v3835
  %v4088 = vunpack.c.h.b16 %v3835
  %v4089 = vunpack.c.l.b16 %v3836
  %v4090 = vunpack.c.h.b16 %v3836
  %v4091 = vunpack.c.l.b16 %v3837
  %v4092 = vunpack.c.h.b16 %v3837
  %v4093 = vunpack.c.l.b16 %v3838
  %v4094 = vunpack.c.h.b16 %v3838
  %v4095 = vunpack.c.l.b16 %v3839
  %v4096 = vunpack.c.h.b16 %v3839
  %v4097 = vunpack.c.l.b16 %v3840
  %v4098 = vunpack.c.h.b16 %v3840
  %v4099 = vunpack.c.l.b16 %v3841
  %v4100 = vunpack.c.h.b16 %v3841
  %v4101 = vunpack.c.l.b16 %v3842
  %v4102 = vunpack.c.h.b16 %v3842
  %v4103 = vunpack.c.l.b16 %v3843
  %v4104 = vunpack.c.h.b16 %v3843
  %v4105 = vunpack.c.l.b16 %v3844
  %v4106 = vunpack.c.h.b16 %v3844
  %v4107 = vunpack.c.l.b16 %v3845
  %v4108 = vunpack.c.h.b16 %v3845
  %v4109 = vunpack.c.l.b16 %v3846
  %v4110 = vunpack.c.h.b16 %v3846
  %v4111 = vunpack.c.l.b16 %v3847
  %v4112 = vunpack.c.h.b16 %v3847
  %v4113 = vunpack.c.l.b16 %v3848
  %v4114 = vunpack.c.h.b16 %v3848
  %v4115 = vunpack.c.l.b16 %v3849
  %v4116 = vunpack.c.h.b16 %v3849
  %v4117 = vunpack.c.l.b16 %v3850
  %v4118 = vunpack.c.h.b16 %v3850
  %v4119 = vunpack.c.l.b16 %v3851
  %v4120 = vunpack.c.h.b16 %v3851
  %v4121 = vunpack.c.l.b16 %v3852
  %v4122 = vunpack.c.h.b16 %v3852
  %v4123 = vunpack.c.l.b16 %v3853
  %v4124 = vunpack.c.h.b16 %v3853
  %v4125 = vunpack.c.l.b16 %v3854
  %v4126 = vunpack.c.h.b16 %v3854
  %v4127 = vunpack.c.l.b16 %v3855
  %v4128 = vunpack.c.h.b16 %v3855
  %v4129 = vunpack.c.l.b16 %v3856
  %v4130 = vunpack.c.h.b16 %v3856
  %v4131 = vunpack.c.l.b16 %v3857
  %v4132 = vunpack.c.h.b16 %v3857
  %v4133 = vunpack.c.l.b16 %v3858
  %v4134 = vunpack.c.h.b16 %v3858
  %v4135 = vpack.c.b16 %v4023, %v4007
  %v4136 = vpack.c.b16 %v4024, %v4008
  %v4137 = vpack.c.b16 %v4025, %v4009
  %v4138 = vpack.c.b16 %v4026, %v4010
  %v4139 = vpack.c.b16 %v4027, %v4011
  %v4140 = vpack.c.b16 %v4028, %v4012
  %v4141 = vpack.c.b16 %v4029, %v4013
  %v4142 = vpack.c.b16 %v4030, %v4014
  %v4143 = vpack.c.b16 %v4031, %v4015
  %v4144 = vpack.c.b16 %v4032, %v4016
  %v4145 = vpack.c.b16 %v4033, %v4017
  %v4146 = vpack.c.b16 %v4034, %v4018
  %v4147 = vpack.c.b16 %v4035, %v4019
  %v4148 = vpack.c.b16 %v4036, %v4020
  %v4149 = vpack.c.b16 %v4037, %v4021
  %v4150 = vpack.c.b16 %v4038, %v4022
  %v4151 = vpack.c.b16 %v4055, %v4039
  %v4152 = vpack.c.b16 %v4056, %v4040
  %v4153 = vpack.c.b16 %v4057, %v4041
  %v4154 = vpack.c.b16 %v4058, %v4042
  %v4155 = vpack.c.b16 %v4059, %v4043
  %v4156 = vpack.c.b16 %v4060, %v4044
  %v4157 = vpack.c.b16 %v4061, %v4045
  %v4158 = vpack.c.b16 %v4062, %v4046
  %v4159 = vpack.c.b16 %v4063, %v4047
  %v4160 = vpack.c.b16 %v4064, %v4048
  %v4161 = vpack.c.b16 %v4065, %v4049
  %v4162 = vpack.c.b16 %v4066, %v4050
  %v4163 = vpack.c.b16 %v4067, %v4051
  %v4164 = vpack.c.b16 %v4068, %v4052
  %v4165 = vpack.c.b16 %v4069, %v4053
  %v4166 = vpack.c.b16 %v4070, %v4054
  %v4167 = vpack.c.b16 %v4087, %v4071
  %v4168 = vpack.c.b16 %v4088, %v4072
  %v4169 = vpack.c.b16 %v4089, %v4073
  %v4170 = vpack.c.b16 %v4090, %v4074
  %v4171 = vpack.c.b16 %v4091, %v4075
  %v4172 = vpack.c.b16 %v4092, %v4076
  %v4173 = vpack.c.b16 %v4093, %v4077
  %v4174 = vpack.c.b16 %v4094, %v4078
  %v4175 = vpack.c.b16 %v4095, %v4079
  %v4176 = vpack.c.b16 %v4096, %v4080
  %v4177 = vpack.c.b16 %v4097, %v4081
  %v4178 = vpack.c.b16 %v4098, %v4082
  %v4179 = vpack.c.b16 %v4099, %v4083
  %v4180 = vpack.c.b16 %v4100, %v4084
  %v4181 = vpack.c.b16 %v4101, %v4085
  %v4182 = vpack.c.b16 %v4102, %v4086
  %v4183 = vpack.c.b16 %v4119, %v4103
  %v4184 = vpack.c.b16 %v4120, %v4104
  %v4185 = vpack.c.b16 %v4121, %v4105
  %v4186 = vpack.c.b16 %v4122, %v4106
  %v4187 = vpack.c.b16 %v4123, %v4107
  %v4188 = vpack.c.b16 %v4124, %v4108
  %v4189 = vpack.c.b16 %v4125, %v4109
  %v4190 = vpack.c.b16 %v4126, %v4110
  %v4191 = vpack.c.b16 %v4127, %v4111
  %v4192 = vpack.c.b16 %v4128, %v4112
  %v4193 = vpack.c.b16 %v4129, %v4113
  %v4194 = vpack.c.b16 %v4130, %v4114
  %v4195 = vpack.c.b16 %v4131, %v4115
  %v4196 = vpack.c.b16 %v4132, %v4116
  %v4197 = vpack.c.b16 %v4133, %v4117
  %v4198 = vpack.c.b16 %v4134, %v4118
  %v4264 = vsel %vm177, %v3794, 0
  %4266 = vmatprep.subr.bf16.mxu0 %v4136
  %4267 = vmatpush1.bf16.msra.mxu0 %v4135
  %4268 = vmatprep.subr.bf16.mxu0 %v4152
  %4269 = vmatpush1.bf16.msra.mxu0 %v4151
  %4270 = vmatprep.subr.bf16.mxu0 %v4168
  %4271 = vmatpush1.bf16.msra.mxu0 %v4167
  %4272 = vmatprep.subr.bf16.mxu0 %v4184
  %4273 = vmatpush1.bf16.msra.mxu0 %v4183
  %4274 = vmatprep.subr.bf16.mxu0 0
  %4275 = vmatpush1.bf16.msra.mxu0 0
  %4276 = vmatprep.subr.bf16.mxu0 0
  %4277 = vmatpush1.bf16.msra.mxu0 0
  %4278 = vmatprep.subr.bf16.mxu0 0
  %4279 = vmatpush1.bf16.msra.mxu0 0
  %4280 = vmatprep.subr.bf16.mxu0 0
  %4281 = vmatpush1.bf16.msra.mxu0 0
  %4282 = vmatprep.subr.bf16.mxu0 0
  %4283 = vmatpush1.bf16.msra.mxu0 0
  %4284 = vmatprep.subr.bf16.mxu0 0
  %4285 = vmatpush1.bf16.msra.mxu0 0
  %4286 = vmatprep.subr.bf16.mxu0 0
  %4287 = vmatpush1.bf16.msra.mxu0 0
  %4288 = vmatprep.subr.bf16.mxu0 0
  %4289 = vmatpush1.bf16.msra.mxu0 0
  %4290 = vmatprep.subr.bf16.mxu0 0
  %4291 = vmatpush1.bf16.msra.mxu0 0
  %4292 = vmatprep.subr.bf16.mxu0 0
  %4293 = vmatpush1.bf16.msra.mxu0 0
  %4294 = vmatprep.subr.bf16.mxu0 0
  %4295 = vmatpush1.bf16.msra.mxu0 0
  %4296 = vmatprep.subr.bf16.mxu0 0
  %4297 = vmatpush1.bf16.msra.mxu0 0
  %4298 = vmatprep.mubr.bf16.mxu0 0
  %4299 = vmatmul.mubr.bf16.gmra.mrb[0].mxu0 %v4264
  %v4300 = vpop.f32.mrb[0].mxu0
  %v4301 = vadd.f32 %v3866, %v4300
  %v4302 = vpop.f32.mrb[0].mxu0
  %v4303 = vadd.f32 %v3870, %v4302
  %v4304 = vpop.f32.mrb[0].mxu0
  %v4305 = vadd.f32 %v3866, %v4304
  %v4306 = vpop.f32.mrb[0].mxu0
  %v4307 = vadd.f32 %v3870, %v4306
  %4308 = vdwg.mxu0
  %4309 = vmatprep.subr.bf16.mxu0 %v4138
  %4310 = vmatpush1.bf16.msra.mxu0 %v4137
  %4311 = vmatprep.subr.bf16.mxu0 %v4154
  %4312 = vmatpush1.bf16.msra.mxu0 %v4153
  %4313 = vmatprep.subr.bf16.mxu0 %v4170
  %4314 = vmatpush1.bf16.msra.mxu0 %v4169
  %4315 = vmatprep.subr.bf16.mxu0 %v4186
  %4316 = vmatpush1.bf16.msra.mxu0 %v4185
  %4317 = vmatprep.subr.bf16.mxu0 0
  %4318 = vmatpush1.bf16.msra.mxu0 0
  %4319 = vmatprep.subr.bf16.mxu0 0
  %4320 = vmatpush1.bf16.msra.mxu0 0
  %4321 = vmatprep.subr.bf16.mxu0 0
  %4322 = vmatpush1.bf16.msra.mxu0 0
  %4323 = vmatprep.subr.bf16.mxu0 0
  %4324 = vmatpush1.bf16.msra.mxu0 0
  %4325 = vmatprep.subr.bf16.mxu0 0
  %4326 = vmatpush1.bf16.msra.mxu0 0
  %4327 = vmatprep.subr.bf16.mxu0 0
  %4328 = vmatpush1.bf16.msra.mxu0 0
  %4329 = vmatprep.subr.bf16.mxu0 0
  %4330 = vmatpush1.bf16.msra.mxu0 0
  %4331 = vmatprep.subr.bf16.mxu0 0
  %4332 = vmatpush1.bf16.msra.mxu0 0
  %4333 = vmatprep.subr.bf16.mxu0 0
  %4334 = vmatpush1.bf16.msra.mxu0 0
  %4335 = vmatprep.subr.bf16.mxu0 0
  %4336 = vmatpush1.bf16.msra.mxu0 0
  %4337 = vmatprep.subr.bf16.mxu0 0
  %4338 = vmatpush1.bf16.msra.mxu0 0
  %4339 = vmatprep.subr.bf16.mxu0 0
  %4340 = vmatpush1.bf16.msra.mxu0 0
  %4341 = vmatprep.mubr.bf16.mxu0 0
  %4342 = vmatmul.mubr.bf16.gmra.mrb[0].mxu0 %v4264
  %v4343 = vpop.f32.mrb[0].mxu0
  %v4344 = vadd.f32 %v3874, %v4343
  %v4345 = vpop.f32.mrb[0].mxu0
  %v4346 = vadd.f32 %v3878, %v4345
  %v4347 = vpop.f32.mrb[0].mxu0
  %v4348 = vadd.f32 %v3874, %v4347
  %v4349 = vpop.f32.mrb[0].mxu0
  %v4350 = vadd.f32 %v3878, %v4349
  %4351 = vdwg.mxu0
  %4352 = vmatprep.subr.bf16.mxu0 %v4140
  %4353 = vmatpush1.bf16.msra.mxu0 %v4139
  %4354 = vmatprep.subr.bf16.mxu0 %v4156
  %4355 = vmatpush1.bf16.msra.mxu0 %v4155
  %4356 = vmatprep.subr.bf16.mxu0 %v4172
  %4357 = vmatpush1.bf16.msra.mxu0 %v4171
  %4358 = vmatprep.subr.bf16.mxu0 %v4188
  %4359 = vmatpush1.bf16.msra.mxu0 %v4187
  %4360 = vmatprep.subr.bf16.mxu0 0
  %4361 = vmatpush1.bf16.msra.mxu0 0
  %4362 = vmatprep.subr.bf16.mxu0 0
  %4363 = vmatpush1.bf16.msra.mxu0 0
  %4364 = vmatprep.subr.bf16.mxu0 0
  %4365 = vmatpush1.bf16.msra.mxu0 0
  %4366 = vmatprep.subr.bf16.mxu0 0
  %4367 = vmatpush1.bf16.msra.mxu0 0
  %4368 = vmatprep.subr.bf16.mxu0 0
  %4369 = vmatpush1.bf16.msra.mxu0 0
  %4370 = vmatprep.subr.bf16.mxu0 0
  %4371 = vmatpush1.bf16.msra.mxu0 0
  %4372 = vmatprep.subr.bf16.mxu0 0
  %4373 = vmatpush1.bf16.msra.mxu0 0
  %4374 = vmatprep.subr.bf16.mxu0 0
  %4375 = vmatpush1.bf16.msra.mxu0 0
  %4376 = vmatprep.subr.bf16.mxu0 0
  %4377 = vmatpush1.bf16.msra.mxu0 0
  %4378 = vmatprep.subr.bf16.mxu0 0
  %4379 = vmatpush1.bf16.msra.mxu0 0
  %4380 = vmatprep.subr.bf16.mxu0 0
  %4381 = vmatpush1.bf16.msra.mxu0 0
  %4382 = vmatprep.subr.bf16.mxu0 0
  %4383 = vmatpush1.bf16.msra.mxu0 0
  %4384 = vmatprep.mubr.bf16.mxu0 0
  %4385 = vmatmul.mubr.bf16.gmra.mrb[0].mxu0 %v4264
  %v4386 = vpop.f32.mrb[0].mxu0
  %v4387 = vadd.f32 %v3882, %v4386
  %v4388 = vpop.f32.mrb[0].mxu0
  %v4389 = vadd.f32 %v3886, %v4388
  %v4390 = vpop.f32.mrb[0].mxu0
  %v4391 = vadd.f32 %v3882, %v4390
  %v4392 = vpop.f32.mrb[0].mxu0
  %v4393 = vadd.f32 %v3886, %v4392
  %4394 = vdwg.mxu0
  %4395 = vmatprep.subr.bf16.mxu0 %v4142
  %4396 = vmatpush1.bf16.msra.mxu0 %v4141
  %4397 = vmatprep.subr.bf16.mxu0 %v4158
  %4398 = vmatpush1.bf16.msra.mxu0 %v4157
  %4399 = vmatprep.subr.bf16.mxu0 %v4174
  %4400 = vmatpush1.bf16.msra.mxu0 %v4173
  %4401 = vmatprep.subr.bf16.mxu0 %v4190
  %4402 = vmatpush1.bf16.msra.mxu0 %v4189
  %4403 = vmatprep.subr.bf16.mxu0 0
  %4404 = vmatpush1.bf16.msra.mxu0 0
  %4405 = vmatprep.subr.bf16.mxu0 0
  %4406 = vmatpush1.bf16.msra.mxu0 0
  %4407 = vmatprep.subr.bf16.mxu0 0
  %4408 = vmatpush1.bf16.msra.mxu0 0
  %4409 = vmatprep.subr.bf16.mxu0 0
  %4410 = vmatpush1.bf16.msra.mxu0 0
  %4411 = vmatprep.subr.bf16.mxu0 0
  %4412 = vmatpush1.bf16.msra.mxu0 0
  %4413 = vmatprep.subr.bf16.mxu0 0
  %4414 = vmatpush1.bf16.msra.mxu0 0
  %4415 = vmatprep.subr.bf16.mxu0 0
  %4416 = vmatpush1.bf16.msra.mxu0 0
  %4417 = vmatprep.subr.bf16.mxu0 0
  %4418 = vmatpush1.bf16.msra.mxu0 0
  %4419 = vmatprep.subr.bf16.mxu0 0
  %4420 = vmatpush1.bf16.msra.mxu0 0
  %4421 = vmatprep.subr.bf16.mxu0 0
  %4422 = vmatpush1.bf16.msra.mxu0 0
  %4423 = vmatprep.subr.bf16.mxu0 0
  %4424 = vmatpush1.bf16.msra.mxu0 0
  %4425 = vmatprep.subr.bf16.mxu0 0
  %4426 = vmatpush1.bf16.msra.mxu0 0
  %4427 = vmatprep.mubr.bf16.mxu0 0
  %4428 = vmatmul.mubr.bf16.gmra.mrb[0].mxu0 %v4264
  %v4429 = vpop.f32.mrb[0].mxu0
  %v4430 = vadd.f32 %v3890, %v4429
  %v4431 = vpop.f32.mrb[0].mxu0
  %v4432 = vadd.f32 %v3894, %v4431
  %v4433 = vpop.f32.mrb[0].mxu0
  %v4434 = vadd.f32 %v3890, %v4433
  %v4435 = vpop.f32.mrb[0].mxu0
  %v4436 = vadd.f32 %v3894, %v4435
  %4437 = vdwg.mxu0
  %4438 = vmatprep.subr.bf16.mxu0 %v4144
  %4439 = vmatpush1.bf16.msra.mxu0 %v4143
  %4440 = vmatprep.subr.bf16.mxu0 %v4160
  %4441 = vmatpush1.bf16.msra.mxu0 %v4159
  %4442 = vmatprep.subr.bf16.mxu0 %v4176
  %4443 = vmatpush1.bf16.msra.mxu0 %v4175
  %4444 = vmatprep.subr.bf16.mxu0 %v4192
  %4445 = vmatpush1.bf16.msra.mxu0 %v4191
  %4446 = vmatprep.subr.bf16.mxu0 0
  %4447 = vmatpush1.bf16.msra.mxu0 0
  %4448 = vmatprep.subr.bf16.mxu0 0
  %4449 = vmatpush1.bf16.msra.mxu0 0
  %4450 = vmatprep.subr.bf16.mxu0 0
  %4451 = vmatpush1.bf16.msra.mxu0 0
  %4452 = vmatprep.subr.bf16.mxu0 0
  %4453 = vmatpush1.bf16.msra.mxu0 0
  %4454 = vmatprep.subr.bf16.mxu0 0
  %4455 = vmatpush1.bf16.msra.mxu0 0
  %4456 = vmatprep.subr.bf16.mxu0 0
  %4457 = vmatpush1.bf16.msra.mxu0 0
  %4458 = vmatprep.subr.bf16.mxu0 0
  %4459 = vmatpush1.bf16.msra.mxu0 0
  %4460 = vmatprep.subr.bf16.mxu0 0
  %4461 = vmatpush1.bf16.msra.mxu0 0
  %4462 = vmatprep.subr.bf16.mxu0 0
  %4463 = vmatpush1.bf16.msra.mxu0 0
  %4464 = vmatprep.subr.bf16.mxu0 0
  %4465 = vmatpush1.bf16.msra.mxu0 0
  %4466 = vmatprep.subr.bf16.mxu0 0
  %4467 = vmatpush1.bf16.msra.mxu0 0
  %4468 = vmatprep.subr.bf16.mxu0 0
  %4469 = vmatpush1.bf16.msra.mxu0 0
  %4470 = vmatprep.mubr.bf16.mxu0 0
  %4471 = vmatmul.mubr.bf16.gmra.mrb[0].mxu0 %v4264
  %v4472 = vpop.f32.mrb[0].mxu0
  %v4473 = vadd.f32 %v3898, %v4472
  %v4474 = vpop.f32.mrb[0].mxu0
  %v4475 = vadd.f32 %v3902, %v4474
  %v4476 = vpop.f32.mrb[0].mxu0
  %v4477 = vadd.f32 %v3898, %v4476
  %v4478 = vpop.f32.mrb[0].mxu0
  %v4479 = vadd.f32 %v3902, %v4478
  %4480 = vdwg.mxu0
  %4481 = vmatprep.subr.bf16.mxu0 %v4146
  %4482 = vmatpush1.bf16.msra.mxu0 %v4145
  %4483 = vmatprep.subr.bf16.mxu0 %v4162
  %4484 = vmatpush1.bf16.msra.mxu0 %v4161
  %4485 = vmatprep.subr.bf16.mxu0 %v4178
  %4486 = vmatpush1.bf16.msra.mxu0 %v4177
  %4487 = vmatprep.subr.bf16.mxu0 %v4194
  %4488 = vmatpush1.bf16.msra.mxu0 %v4193
  %4489 = vmatprep.subr.bf16.mxu0 0
  %4490 = vmatpush1.bf16.msra.mxu0 0
  %4491 = vmatprep.subr.bf16.mxu0 0
  %4492 = vmatpush1.bf16.msra.mxu0 0
  %4493 = vmatprep.subr.bf16.mxu0 0
  %4494 = vmatpush1.bf16.msra.mxu0 0
  %4495 = vmatprep.subr.bf16.mxu0 0
  %4496 = vmatpush1.bf16.msra.mxu0 0
  %4497 = vmatprep.subr.bf16.mxu0 0
  %4498 = vmatpush1.bf16.msra.mxu0 0
  %4499 = vmatprep.subr.bf16.mxu0 0
  %4500 = vmatpush1.bf16.msra.mxu0 0
  %4501 = vmatprep.subr.bf16.mxu0 0
  %4502 = vmatpush1.bf16.msra.mxu0 0
  %4503 = vmatprep.subr.bf16.mxu0 0
  %4504 = vmatpush1.bf16.msra.mxu0 0
  %4505 = vmatprep.subr.bf16.mxu0 0
  %4506 = vmatpush1.bf16.msra.mxu0 0
  %4507 = vmatprep.subr.bf16.mxu0 0
  %4508 = vmatpush1.bf16.msra.mxu0 0
  %4509 = vmatprep.subr.bf16.mxu0 0
  %4510 = vmatpush1.bf16.msra.mxu0 0
  %4511 = vmatprep.subr.bf16.mxu0 0
  %4512 = vmatpush1.bf16.msra.mxu0 0
  %4513 = vmatprep.mubr.bf16.mxu0 0
  %4514 = vmatmul.mubr.bf16.gmra.mrb[0].mxu0 %v4264
  %v4515 = vpop.f32.mrb[0].mxu0
  %v4516 = vadd.f32 %v3906, %v4515
  %v4517 = vpop.f32.mrb[0].mxu0
  %v4518 = vadd.f32 %v3910, %v4517
  %v4519 = vpop.f32.mrb[0].mxu0
  %v4520 = vadd.f32 %v3906, %v4519
  %v4521 = vpop.f32.mrb[0].mxu0
  %v4522 = vadd.f32 %v3910, %v4521
  %4523 = vdwg.mxu0
  %4524 = vmatprep.subr.bf16.mxu0 %v4148
  %4525 = vmatpush1.bf16.msra.mxu0 %v4147
  %4526 = vmatprep.subr.bf16.mxu0 %v4164
  %4527 = vmatpush1.bf16.msra.mxu0 %v4163
  %4528 = vmatprep.subr.bf16.mxu0 %v4180
  %4529 = vmatpush1.bf16.msra.mxu0 %v4179
  %4530 = vmatprep.subr.bf16.mxu0 %v4196
  %4531 = vmatpush1.bf16.msra.mxu0 %v4195
  %4532 = vmatprep.subr.bf16.mxu0 0
  %4533 = vmatpush1.bf16.msra.mxu0 0
  %4534 = vmatprep.subr.bf16.mxu0 0
  %4535 = vmatpush1.bf16.msra.mxu0 0
  %4536 = vmatprep.subr.bf16.mxu0 0
  %4537 = vmatpush1.bf16.msra.mxu0 0
  %4538 = vmatprep.subr.bf16.mxu0 0
  %4539 = vmatpush1.bf16.msra.mxu0 0
  %4540 = vmatprep.subr.bf16.mxu0 0
  %4541 = vmatpush1.bf16.msra.mxu0 0
  %4542 = vmatprep.subr.bf16.mxu0 0
  %4543 = vmatpush1.bf16.msra.mxu0 0
  %4544 = vmatprep.subr.bf16.mxu0 0
  %4545 = vmatpush1.bf16.msra.mxu0 0
  %4546 = vmatprep.subr.bf16.mxu0 0
  %4547 = vmatpush1.bf16.msra.mxu0 0
  %4548 = vmatprep.subr.bf16.mxu0 0
  %4549 = vmatpush1.bf16.msra.mxu0 0
  %4550 = vmatprep.subr.bf16.mxu0 0
  %4551 = vmatpush1.bf16.msra.mxu0 0
  %4552 = vmatprep.subr.bf16.mxu0 0
  %4553 = vmatpush1.bf16.msra.mxu0 0
  %4554 = vmatprep.subr.bf16.mxu0 0
  %4555 = vmatpush1.bf16.msra.mxu0 0
  %4556 = vmatprep.mubr.bf16.mxu0 0
  %4557 = vmatmul.mubr.bf16.gmra.mrb[0].mxu0 %v4264
  %v4558 = vpop.f32.mrb[0].mxu0
  %v4559 = vadd.f32 %v3914, %v4558
  %v4560 = vpop.f32.mrb[0].mxu0
  %v4561 = vadd.f32 %v3918, %v4560
  %v4562 = vpop.f32.mrb[0].mxu0
  %v4563 = vadd.f32 %v3914, %v4562
  %v4564 = vpop.f32.mrb[0].mxu0
  %v4565 = vadd.f32 %v3918, %v4564
  %4566 = vdwg.mxu0
  %4567 = vmatprep.subr.bf16.mxu0 %v4150
  %4568 = vmatpush1.bf16.msra.mxu0 %v4149
  %4569 = vmatprep.subr.bf16.mxu0 %v4166
  %4570 = vmatpush1.bf16.msra.mxu0 %v4165
  %4571 = vmatprep.subr.bf16.mxu0 %v4182
  %4572 = vmatpush1.bf16.msra.mxu0 %v4181
  %4573 = vmatprep.subr.bf16.mxu0 %v4198
  %4574 = vmatpush1.bf16.msra.mxu0 %v4197
  %4575 = vmatprep.subr.bf16.mxu0 0
  %4576 = vmatpush1.bf16.msra.mxu0 0
  %4577 = vmatprep.subr.bf16.mxu0 0
  %4578 = vmatpush1.bf16.msra.mxu0 0
  %4579 = vmatprep.subr.bf16.mxu0 0
  %4580 = vmatpush1.bf16.msra.mxu0 0
  %4581 = vmatprep.subr.bf16.mxu0 0
  %4582 = vmatpush1.bf16.msra.mxu0 0
  %4583 = vmatprep.subr.bf16.mxu0 0
  %4584 = vmatpush1.bf16.msra.mxu0 0
  %4585 = vmatprep.subr.bf16.mxu0 0
  %4586 = vmatpush1.bf16.msra.mxu0 0
  %4587 = vmatprep.subr.bf16.mxu0 0
  %4588 = vmatpush1.bf16.msra.mxu0 0
  %4589 = vmatprep.subr.bf16.mxu0 0
  %4590 = vmatpush1.bf16.msra.mxu0 0
  %4591 = vmatprep.subr.bf16.mxu0 0
  %4592 = vmatpush1.bf16.msra.mxu0 0
  %4593 = vmatprep.subr.bf16.mxu0 0
  %4594 = vmatpush1.bf16.msra.mxu0 0
  %4595 = vmatprep.subr.bf16.mxu0 0
  %4596 = vmatpush1.bf16.msra.mxu0 0
  %4597 = vmatprep.subr.bf16.mxu0 0
  %4598 = vmatpush1.bf16.msra.mxu0 0
  %4599 = vmatprep.mubr.bf16.mxu0 0
  %4600 = vmatmul.mubr.bf16.gmra.mrb[0].mxu0 %v4264
  %v4601 = vpop.f32.mrb[0].mxu0
  %v4602 = vadd.f32 %v3922, %v4601
  %v4603 = vpop.f32.mrb[0].mxu0
  %v4604 = vadd.f32 %v3926, %v4603
  %v4605 = vpop.f32.mrb[0].mxu0
  %v4606 = vadd.f32 %v3922, %v4605
  %v4607 = vpop.f32.mrb[0].mxu0
  %v4608 = vadd.f32 %v3926, %v4607
  %4609 = vdwg.mxu0
  %v4610 = vmax.f32 %v4301, 0.0
  %v4611 = vmax.f32 %v4303, 0.0
  %v4612 = vmax.f32 %v4344, 0.0
  %v4613 = vmax.f32 %v4346, 0.0
  %v4614 = vmax.f32 %v4387, 0.0
  %v4615 = vmax.f32 %v4389, 0.0
  %v4616 = vmax.f32 %v4430, 0.0
  %v4617 = vmax.f32 %v4432, 0.0
  %v4618 = vmax.f32 %v4473, 0.0
  %v4619 = vmax.f32 %v4475, 0.0
  %v4620 = vmax.f32 %v4516, 0.0
  %v4621 = vmax.f32 %v4518, 0.0
  %v4622 = vmax.f32 %v4559, 0.0
  %v4623 = vmax.f32 %v4561, 0.0
  %v4624 = vmax.f32 %v4602, 0.0
  %v4625 = vmax.f32 %v4604, 0.0
  %v4626 = vmax.f32 %v4305, 0.0
  %v4627 = vmax.f32 %v4307, 0.0
  %v4628 = vmax.f32 %v4348, 0.0
  %v4629 = vmax.f32 %v4350, 0.0
  %v4630 = vmax.f32 %v4391, 0.0
  %v4631 = vmax.f32 %v4393, 0.0
  %v4632 = vmax.f32 %v4434, 0.0
  %v4633 = vmax.f32 %v4436, 0.0
  %v4634 = vmax.f32 %v4477, 0.0
  %v4635 = vmax.f32 %v4479, 0.0
  %v4636 = vmax.f32 %v4520, 0.0
  %v4637 = vmax.f32 %v4522, 0.0
  %v4638 = vmax.f32 %v4563, 0.0
  %v4639 = vmax.f32 %v4565, 0.0
  %v4640 = vmax.f32 %v4606, 0.0
  %v4641 = vmax.f32 %v4608, 0.0
  %v4642 = vpack.c.bf16 %v4626, %v4610
  %v4643 = vpack.c.bf16 %v4627, %v4611
  %v4644 = vpack.c.bf16 %v4628, %v4612
  %v4645 = vpack.c.bf16 %v4629, %v4613
  %v4646 = vpack.c.bf16 %v4630, %v4614
  %v4647 = vpack.c.bf16 %v4631, %v4615
  %v4648 = vpack.c.bf16 %v4632, %v4616
  %v4649 = vpack.c.bf16 %v4633, %v4617
  %v4650 = vpack.c.bf16 %v4634, %v4618
  %v4651 = vpack.c.bf16 %v4635, %v4619
  %v4652 = vpack.c.bf16 %v4636, %v4620
  %v4653 = vpack.c.bf16 %v4637, %v4621
  %v4654 = vpack.c.bf16 %v4638, %v4622
  %v4655 = vpack.c.bf16 %v4639, %v4623
  %v4656 = vpack.c.bf16 %v4640, %v4624
  %v4657 = vpack.c.bf16 %v4641, %v4625
  %v4658 = vld [vmem:[%s8] sm:$0xf]
  %v4659 = vld [vmem:[%s8 + $0x4] sm:$0xf]
  %v4660 = vld [vmem:[%s8 + $0x8] sm:$0xf]
  %v4661 = vld [vmem:[%s8 + $0xc] sm:$0xf]
  %v4662 = vld [vmem:[%s8 + $0x10] sm:$0xf]
  %v4663 = vld [vmem:[%s8 + $0x14] sm:$0xf]
  %v4664 = vld [vmem:[%s8 + $0x18] sm:$0xf]
  %v4665 = vld [vmem:[%s8 + $0x1c] sm:$0xf]
  %v4666 = vld [vmem:[%s8 + $0x20] sm:$0xf]
  %v4667 = vld [vmem:[%s8 + $0x24] sm:$0xf]
  %v4668 = vld [vmem:[%s8 + $0x28] sm:$0xf]
  %v4669 = vld [vmem:[%s8 + $0x2c] sm:$0xf]
  %v4670 = vld [vmem:[%s8 + $0x30] sm:$0xf]
  %v4671 = vld [vmem:[%s8 + $0x34] sm:$0xf]
  %v4672 = vld [vmem:[%s8 + $0x38] sm:$0xf]
  %v4673 = vld [vmem:[%s8 + $0x3c] sm:$0xf]
  %v4674 = vld [vmem:[%s8 + $0x40] sm:$0xf]
  %v4675 = vld [vmem:[%s8 + $0x44] sm:$0xf]
  %v4676 = vld [vmem:[%s8 + $0x48] sm:$0xf]
  %v4677 = vld [vmem:[%s8 + $0x4c] sm:$0xf]
  %v4678 = vld [vmem:[%s8 + $0x50] sm:$0xf]
  %v4679 = vld [vmem:[%s8 + $0x54] sm:$0xf]
  %v4680 = vld [vmem:[%s8 + $0x58] sm:$0xf]
  %v4681 = vld [vmem:[%s8 + $0x5c] sm:$0xf]
  %v4682 = vld [vmem:[%s8 + $0x60] sm:$0xf]
  %v4683 = vld [vmem:[%s8 + $0x64] sm:$0xf]
  %v4684 = vld [vmem:[%s8 + $0x68] sm:$0xf]
  %v4685 = vld [vmem:[%s8 + $0x6c] sm:$0xf]
  %v4686 = vld [vmem:[%s8 + $0x70] sm:$0xf]
  %v4687 = vld [vmem:[%s8 + $0x74] sm:$0xf]
  %v4688 = vld [vmem:[%s8 + $0x78] sm:$0xf]
  %v4689 = vld [vmem:[%s8 + $0x7c] sm:$0xf]
  %v4690 = vld [vmem:[%s8 + $0x80] sm:$0xf]
  %v4691 = vld [vmem:[%s8 + $0x84] sm:$0xf]
  %v4692 = vld [vmem:[%s8 + $0x88] sm:$0xf]
  %v4693 = vld [vmem:[%s8 + $0x8c] sm:$0xf]
  %v4694 = vld [vmem:[%s8 + $0x90] sm:$0xf]
  %v4695 = vld [vmem:[%s8 + $0x94] sm:$0xf]
  %v4696 = vld [vmem:[%s8 + $0x98] sm:$0xf]
  %v4697 = vld [vmem:[%s8 + $0x9c] sm:$0xf]
  %v4698 = vld [vmem:[%s8 + $0xa0] sm:$0xf]
  %v4699 = vld [vmem:[%s8 + $0xa4] sm:$0xf]
  %v4700 = vld [vmem:[%s8 + $0xa8] sm:$0xf]
  %v4701 = vld [vmem:[%s8 + $0xac] sm:$0xf]
  %v4702 = vld [vmem:[%s8 + $0xb0] sm:$0xf]
  %v4703 = vld [vmem:[%s8 + $0xb4] sm:$0xf]
  %v4704 = vld [vmem:[%s8 + $0xb8] sm:$0xf]
  %v4705 = vld [vmem:[%s8 + $0xbc] sm:$0xf]
  %v4706 = vld [vmem:[%s8 + $0xc0] sm:$0xf]
  %v4707 = vld [vmem:[%s8 + $0xc4] sm:$0xf]
  %v4708 = vld [vmem:[%s8 + $0xc8] sm:$0xf]
  %v4709 = vld [vmem:[%s8 + $0xcc] sm:$0xf]
  %v4710 = vld [vmem:[%s8 + $0xd0] sm:$0xf]
  %v4711 = vld [vmem:[%s8 + $0xd4] sm:$0xf]
  %v4712 = vld [vmem:[%s8 + $0xd8] sm:$0xf]
  %v4713 = vld [vmem:[%s8 + $0xdc] sm:$0xf]
  %v4714 = vld [vmem:[%s8 + $0xe0] sm:$0xf]
  %v4715 = vld [vmem:[%s8 + $0xe4] sm:$0xf]
  %v4716 = vld [vmem:[%s8 + $0xe8] sm:$0xf]
  %v4717 = vld [vmem:[%s8 + $0xec] sm:$0xf]
  %v4718 = vld [vmem:[%s8 + $0xf0] sm:$0xf]
  %v4719 = vld [vmem:[%s8 + $0xf4] sm:$0xf]
  %v4720 = vld [vmem:[%s8 + $0xf8] sm:$0xf]
  %v4721 = vld [vmem:[%s8 + $0xfc] sm:$0xf]
  %v4722 = vld [vmem:[%s8 + $0x100] sm:$0xf]
  %v4723 = vld [vmem:[%s8 + $0x104] sm:$0xf]
  %v4724 = vld [vmem:[%s8 + $0x108] sm:$0xf]
  %v4725 = vld [vmem:[%s8 + $0x10c] sm:$0xf]
  %v4726 = vld [vmem:[%s8 + $0x110] sm:$0xf]
  %v4727 = vld [vmem:[%s8 + $0x114] sm:$0xf]
  %v4728 = vld [vmem:[%s8 + $0x118] sm:$0xf]
  %v4729 = vld [vmem:[%s8 + $0x11c] sm:$0xf]
  %v4730 = vld [vmem:[%s8 + $0x120] sm:$0xf]
  %v4731 = vld [vmem:[%s8 + $0x124] sm:$0xf]
  %v4732 = vld [vmem:[%s8 + $0x128] sm:$0xf]
  %v4733 = vld [vmem:[%s8 + $0x12c] sm:$0xf]
  %v4734 = vld [vmem:[%s8 + $0x130] sm:$0xf]
  %v4735 = vld [vmem:[%s8 + $0x134] sm:$0xf]
  %v4736 = vld [vmem:[%s8 + $0x138] sm:$0xf]
  %v4737 = vld [vmem:[%s8 + $0x13c] sm:$0xf]
  %v4738 = vld [vmem:[%s8 + $0x140] sm:$0xf]
  %v4739 = vld [vmem:[%s8 + $0x144] sm:$0xf]
  %v4740 = vld [vmem:[%s8 + $0x148] sm:$0xf]
  %v4741 = vld [vmem:[%s8 + $0x14c] sm:$0xf]
  %v4742 = vld [vmem:[%s8 + $0x150] sm:$0xf]
  %v4743 = vld [vmem:[%s8 + $0x154] sm:$0xf]
  %v4744 = vld [vmem:[%s8 + $0x158] sm:$0xf]
  %v4745 = vld [vmem:[%s8 + $0x15c] sm:$0xf]
  %v4746 = vld [vmem:[%s8 + $0x160] sm:$0xf]
  %v4747 = vld [vmem:[%s8 + $0x164] sm:$0xf]
  %v4748 = vld [vmem:[%s8 + $0x168] sm:$0xf]
  %v4749 = vld [vmem:[%s8 + $0x16c] sm:$0xf]
  %v4750 = vld [vmem:[%s8 + $0x170] sm:$0xf]
  %v4751 = vld [vmem:[%s8 + $0x174] sm:$0xf]
  %v4752 = vld [vmem:[%s8 + $0x178] sm:$0xf]
  %v4753 = vld [vmem:[%s8 + $0x17c] sm:$0xf]
  %v4754 = vld [vmem:[%s8 + $0x180] sm:$0xf]
  %v4755 = vld [vmem:[%s8 + $0x184] sm:$0xf]
  %v4756 = vld [vmem:[%s8 + $0x188] sm:$0xf]
  %v4757 = vld [vmem:[%s8 + $0x18c] sm:$0xf]
  %v4758 = vld [vmem:[%s8 + $0x190] sm:$0xf]
  %v4759 = vld [vmem:[%s8 + $0x194] sm:$0xf]
  %v4760 = vld [vmem:[%s8 + $0x198] sm:$0xf]
  %v4761 = vld [vmem:[%s8 + $0x19c] sm:$0xf]
  %v4762 = vld [vmem:[%s8 + $0x1a0] sm:$0xf]
  %v4763 = vld [vmem:[%s8 + $0x1a4] sm:$0xf]
  %v4764 = vld [vmem:[%s8 + $0x1a8] sm:$0xf]
  %v4765 = vld [vmem:[%s8 + $0x1ac] sm:$0xf]
  %v4766 = vld [vmem:[%s8 + $0x1b0] sm:$0xf]
  %v4767 = vld [vmem:[%s8 + $0x1b4] sm:$0xf]
  %v4768 = vld [vmem:[%s8 + $0x1b8] sm:$0xf]
  %v4769 = vld [vmem:[%s8 + $0x1bc] sm:$0xf]
  %v4770 = vld [vmem:[%s8 + $0x1c0] sm:$0xf]
  %v4771 = vld [vmem:[%s8 + $0x1c4] sm:$0xf]
  %v4772 = vld [vmem:[%s8 + $0x1c8] sm:$0xf]
  %v4773 = vld [vmem:[%s8 + $0x1cc] sm:$0xf]
  %v4774 = vld [vmem:[%s8 + $0x1d0] sm:$0xf]
  %v4775 = vld [vmem:[%s8 + $0x1d4] sm:$0xf]
  %v4776 = vld [vmem:[%s8 + $0x1d8] sm:$0xf]
  %v4777 = vld [vmem:[%s8 + $0x1dc] sm:$0xf]
  %v4778 = vld [vmem:[%s8 + $0x1e0] sm:$0xf]
  %v4779 = vld [vmem:[%s8 + $0x1e4] sm:$0xf]
  %v4780 = vld [vmem:[%s8 + $0x1e8] sm:$0xf]
  %v4781 = vld [vmem:[%s8 + $0x1ec] sm:$0xf]
  %v4782 = vld [vmem:[%s8 + $0x1f0] sm:$0xf]
  %v4783 = vld [vmem:[%s8 + $0x1f4] sm:$0xf]
  %v4784 = vld [vmem:[%s8 + $0x1f8] sm:$0xf]
  %v4785 = vld [vmem:[%s8 + $0x1fc] sm:$0xf]
  %v4786 = vld [vmem:[%s8 + $0x200] sm:$0xf]
  %v4787 = vld [vmem:[%s8 + $0x204] sm:$0xf]
  %v4788 = vld [vmem:[%s8 + $0x208] sm:$0xf]
  %v4789 = vld [vmem:[%s8 + $0x20c] sm:$0xf]
  %v4790 = vld [vmem:[%s8 + $0x210] sm:$0xf]
  %v4791 = vld [vmem:[%s8 + $0x214] sm:$0xf]
  %v4792 = vld [vmem:[%s8 + $0x218] sm:$0xf]
  %v4793 = vld [vmem:[%s8 + $0x21c] sm:$0xf]
  %v4794 = vld [vmem:[%s8 + $0x220] sm:$0xf]
  %v4795 = vld [vmem:[%s8 + $0x224] sm:$0xf]
  %v4796 = vld [vmem:[%s8 + $0x228] sm:$0xf]
  %v4797 = vld [vmem:[%s8 + $0x22c] sm:$0xf]
  %v4798 = vld [vmem:[%s8 + $0x230] sm:$0xf]
  %v4799 = vld [vmem:[%s8 + $0x234] sm:$0xf]
  %v4800 = vld [vmem:[%s8 + $0x238] sm:$0xf]
  %v4801 = vld [vmem:[%s8 + $0x23c] sm:$0xf]
  %v4802 = vld [vmem:[%s8 + $0x240] sm:$0xf]
  %v4803 = vld [vmem:[%s8 + $0x244] sm:$0xf]
  %v4804 = vld [vmem:[%s8 + $0x248] sm:$0xf]
  %v4805 = vld [vmem:[%s8 + $0x24c] sm:$0xf]
  %v4806 = vld [vmem:[%s8 + $0x250] sm:$0xf]
  %v4807 = vld [vmem:[%s8 + $0x254] sm:$0xf]
  %v4808 = vld [vmem:[%s8 + $0x258] sm:$0xf]
  %v4809 = vld [vmem:[%s8 + $0x25c] sm:$0xf]
  %v4810 = vld [vmem:[%s8 + $0x260] sm:$0xf]
  %v4811 = vld [vmem:[%s8 + $0x264] sm:$0xf]
  %v4812 = vld [vmem:[%s8 + $0x268] sm:$0xf]
  %v4813 = vld [vmem:[%s8 + $0x26c] sm:$0xf]
  %v4814 = vld [vmem:[%s8 + $0x270] sm:$0xf]
  %v4815 = vld [vmem:[%s8 + $0x274] sm:$0xf]
  %v4816 = vld [vmem:[%s8 + $0x278] sm:$0xf]
  %v4817 = vld [vmem:[%s8 + $0x27c] sm:$0xf]
  %v4818 = vld [vmem:[%s8 + $0x280] sm:$0xf]
  %v4819 = vld [vmem:[%s8 + $0x284] sm:$0xf]
  %v4820 = vld [vmem:[%s8 + $0x288] sm:$0xf]
  %v4821 = vld [vmem:[%s8 + $0x28c] sm:$0xf]
  %v4822 = vld [vmem:[%s8 + $0x290] sm:$0xf]
  %v4823 = vld [vmem:[%s8 + $0x294] sm:$0xf]
  %v4824 = vld [vmem:[%s8 + $0x298] sm:$0xf]
  %v4825 = vld [vmem:[%s8 + $0x29c] sm:$0xf]
  %v4826 = vld [vmem:[%s8 + $0x2a0] sm:$0xf]
  %v4827 = vld [vmem:[%s8 + $0x2a4] sm:$0xf]
  %v4828 = vld [vmem:[%s8 + $0x2a8] sm:$0xf]
  %v4829 = vld [vmem:[%s8 + $0x2ac] sm:$0xf]
  %v4830 = vld [vmem:[%s8 + $0x2b0] sm:$0xf]
  %v4831 = vld [vmem:[%s8 + $0x2b4] sm:$0xf]
  %v4832 = vld [vmem:[%s8 + $0x2b8] sm:$0xf]
  %v4833 = vld [vmem:[%s8 + $0x2bc] sm:$0xf]
  %v4834 = vld [vmem:[%s8 + $0x2c0] sm:$0xf]
  %v4835 = vld [vmem:[%s8 + $0x2c4] sm:$0xf]
  %v4836 = vld [vmem:[%s8 + $0x2c8] sm:$0xf]
  %v4837 = vld [vmem:[%s8 + $0x2cc] sm:$0xf]
  %v4838 = vld [vmem:[%s8 + $0x2d0] sm:$0xf]
  %v4839 = vld [vmem:[%s8 + $0x2d4] sm:$0xf]
  %v4840 = vld [vmem:[%s8 + $0x2d8] sm:$0xf]
  %v4841 = vld [vmem:[%s8 + $0x2dc] sm:$0xf]
  %v4842 = vld [vmem:[%s8 + $0x2e0] sm:$0xf]
  %v4843 = vld [vmem:[%s8 + $0x2e4] sm:$0xf]
  %v4844 = vld [vmem:[%s8 + $0x2e8] sm:$0xf]
  %v4845 = vld [vmem:[%s8 + $0x2ec] sm:$0xf]
  %v4846 = vld [vmem:[%s8 + $0x2f0] sm:$0xf]
  %v4847 = vld [vmem:[%s8 + $0x2f4] sm:$0xf]
  %v4848 = vld [vmem:[%s8 + $0x2f8] sm:$0xf]
  %v4849 = vld [vmem:[%s8 + $0x2fc] sm:$0xf]
  %v4850 = vld [vmem:[%s8 + $0x300] sm:$0xf]
  %v4851 = vld [vmem:[%s8 + $0x304] sm:$0xf]
  %v4852 = vld [vmem:[%s8 + $0x308] sm:$0xf]
  %v4853 = vld [vmem:[%s8 + $0x30c] sm:$0xf]
  %v4854 = vld [vmem:[%s8 + $0x310] sm:$0xf]
  %v4855 = vld [vmem:[%s8 + $0x314] sm:$0xf]
  %v4856 = vld [vmem:[%s8 + $0x318] sm:$0xf]
  %v4857 = vld [vmem:[%s8 + $0x31c] sm:$0xf]
  %v4858 = vld [vmem:[%s8 + $0x320] sm:$0xf]
  %v4859 = vld [vmem:[%s8 + $0x324] sm:$0xf]
  %v4860 = vld [vmem:[%s8 + $0x328] sm:$0xf]
  %v4861 = vld [vmem:[%s8 + $0x32c] sm:$0xf]
  %v4862 = vld [vmem:[%s8 + $0x330] sm:$0xf]
  %v4863 = vld [vmem:[%s8 + $0x334] sm:$0xf]
  %v4864 = vld [vmem:[%s8 + $0x338] sm:$0xf]
  %v4865 = vld [vmem:[%s8 + $0x33c] sm:$0xf]
  %v4866 = vld [vmem:[%s8 + $0x340] sm:$0xf]
  %v4867 = vld [vmem:[%s8 + $0x344] sm:$0xf]
  %v4868 = vld [vmem:[%s8 + $0x348] sm:$0xf]
  %v4869 = vld [vmem:[%s8 + $0x34c] sm:$0xf]
  %v4870 = vld [vmem:[%s8 + $0x350] sm:$0xf]
  %v4871 = vld [vmem:[%s8 + $0x354] sm:$0xf]
  %v4872 = vld [vmem:[%s8 + $0x358] sm:$0xf]
  %v4873 = vld [vmem:[%s8 + $0x35c] sm:$0xf]
  %v4874 = vld [vmem:[%s8 + $0x360] sm:$0xf]
  %v4875 = vld [vmem:[%s8 + $0x364] sm:$0xf]
  %v4876 = vld [vmem:[%s8 + $0x368] sm:$0xf]
  %v4877 = vld [vmem:[%s8 + $0x36c] sm:$0xf]
  %v4878 = vld [vmem:[%s8 + $0x370] sm:$0xf]
  %v4879 = vld [vmem:[%s8 + $0x374] sm:$0xf]
  %v4880 = vld [vmem:[%s8 + $0x378] sm:$0xf]
  %v4881 = vld [vmem:[%s8 + $0x37c] sm:$0xf]
  %v4882 = vld [vmem:[%s8 + $0x380] sm:$0xf]
  %v4883 = vld [vmem:[%s8 + $0x384] sm:$0xf]
  %v4884 = vld [vmem:[%s8 + $0x388] sm:$0xf]
  %v4885 = vld [vmem:[%s8 + $0x38c] sm:$0xf]
  %v4886 = vld [vmem:[%s8 + $0x390] sm:$0xf]
  %v4887 = vld [vmem:[%s8 + $0x394] sm:$0xf]
  %v4888 = vld [vmem:[%s8 + $0x398] sm:$0xf]
  %v4889 = vld [vmem:[%s8 + $0x39c] sm:$0xf]
  %v4890 = vld [vmem:[%s8 + $0x3a0] sm:$0xf]
  %v4891 = vld [vmem:[%s8 + $0x3a4] sm:$0xf]
  %v4892 = vld [vmem:[%s8 + $0x3a8] sm:$0xf]
  %v4893 = vld [vmem:[%s8 + $0x3ac] sm:$0xf]
  %v4894 = vld [vmem:[%s8 + $0x3b0] sm:$0xf]
  %v4895 = vld [vmem:[%s8 + $0x3b4] sm:$0xf]
  %v4896 = vld [vmem:[%s8 + $0x3b8] sm:$0xf]
  %v4897 = vld [vmem:[%s8 + $0x3bc] sm:$0xf]
  %v4898 = vld [vmem:[%s8 + $0x3c0] sm:$0xf]
  %v4899 = vld [vmem:[%s8 + $0x3c4] sm:$0xf]
  %v4900 = vld [vmem:[%s8 + $0x3c8] sm:$0xf]
  %v4901 = vld [vmem:[%s8 + $0x3cc] sm:$0xf]
  %v4902 = vld [vmem:[%s8 + $0x3d0] sm:$0xf]
  %v4903 = vld [vmem:[%s8 + $0x3d4] sm:$0xf]
  %v4904 = vld [vmem:[%s8 + $0x3d8] sm:$0xf]
  %v4905 = vld [vmem:[%s8 + $0x3dc] sm:$0xf]
  %v4906 = vld [vmem:[%s8 + $0x3e0] sm:$0xf]
  %v4907 = vld [vmem:[%s8 + $0x3e4] sm:$0xf]
  %v4908 = vld [vmem:[%s8 + $0x3e8] sm:$0xf]
  %v4909 = vld [vmem:[%s8 + $0x3ec] sm:$0xf]
  %v4910 = vld [vmem:[%s8 + $0x3f0] sm:$0xf]
  %v4911 = vld [vmem:[%s8 + $0x3f4] sm:$0xf]
  %v4912 = vld [vmem:[%s8 + $0x3f8] sm:$0xf]
  %v4913 = vld [vmem:[%s8 + $0x3fc] sm:$0xf]
  %v4914 = vlaneseq
  %v4915 = vshrl.u32 %v4914, 7
  %v4916 = vsub.s32 3, %v4915
  %v4917 = vrot.slane %v106, %v4916
  %v5174 = vunpack.c.l.b16 %v4658
  %v5175 = vunpack.c.l.b16 %v4659
  %v5176 = vunpack.c.l.b16 %v4660
  %v5177 = vunpack.c.l.b16 %v4661
  %v5178 = vunpack.c.l.b16 %v4662
  %v5179 = vunpack.c.l.b16 %v4663
  %v5180 = vunpack.c.l.b16 %v4664
  %v5181 = vunpack.c.l.b16 %v4665
  %v5182 = vunpack.c.l.b16 %v4666
  %v5183 = vunpack.c.l.b16 %v4667
  %v5184 = vunpack.c.l.b16 %v4668
  %v5185 = vunpack.c.l.b16 %v4669
  %v5186 = vunpack.c.l.b16 %v4670
  %v5187 = vunpack.c.l.b16 %v4671
  %v5188 = vunpack.c.l.b16 %v4672
  %v5189 = vunpack.c.l.b16 %v4673
  %v5190 = vunpack.c.l.b16 %v4674
  %v5191 = vunpack.c.l.b16 %v4675
  %v5192 = vunpack.c.l.b16 %v4676
  %v5193 = vunpack.c.l.b16 %v4677
  %v5194 = vunpack.c.l.b16 %v4678
  %v5195 = vunpack.c.l.b16 %v4679
  %v5196 = vunpack.c.l.b16 %v4680
  %v5197 = vunpack.c.l.b16 %v4681
  %v5198 = vunpack.c.l.b16 %v4682
  %v5199 = vunpack.c.l.b16 %v4683
  %v5200 = vunpack.c.l.b16 %v4684
  %v5201 = vunpack.c.l.b16 %v4685
  %v5202 = vunpack.c.l.b16 %v4686
  %v5203 = vunpack.c.l.b16 %v4687
  %v5204 = vunpack.c.l.b16 %v4688
  %v5205 = vunpack.c.l.b16 %v4689
  %v5206 = vunpack.c.l.b16 %v4690
  %v5207 = vunpack.c.l.b16 %v4691
  %v5208 = vunpack.c.l.b16 %v4692
  %v5209 = vunpack.c.l.b16 %v4693
  %v5210 = vunpack.c.l.b16 %v4694
  %v5211 = vunpack.c.l.b16 %v4695
  %v5212 = vunpack.c.l.b16 %v4696
  %v5213 = vunpack.c.l.b16 %v4697
  %v5214 = vunpack.c.l.b16 %v4698
  %v5215 = vunpack.c.l.b16 %v4699
  %v5216 = vunpack.c.l.b16 %v4700
  %v5217 = vunpack.c.l.b16 %v4701
  %v5218 = vunpack.c.l.b16 %v4702
  %v5219 = vunpack.c.l.b16 %v4703
  %v5220 = vunpack.c.l.b16 %v4704
  %v5221 = vunpack.c.l.b16 %v4705
  %v5222 = vunpack.c.l.b16 %v4706
  %v5223 = vunpack.c.l.b16 %v4707
  %v5224 = vunpack.c.l.b16 %v4708
  %v5225 = vunpack.c.l.b16 %v4709
  %v5226 = vunpack.c.l.b16 %v4710
  %v5227 = vunpack.c.l.b16 %v4711
  %v5228 = vunpack.c.l.b16 %v4712
  %v5229 = vunpack.c.l.b16 %v4713
  %v5230 = vunpack.c.l.b16 %v4714
  %v5231 = vunpack.c.l.b16 %v4715
  %v5232 = vunpack.c.l.b16 %v4716
  %v5233 = vunpack.c.l.b16 %v4717
  %v5234 = vunpack.c.l.b16 %v4718
  %v5235 = vunpack.c.l.b16 %v4719
  %v5236 = vunpack.c.l.b16 %v4720
  %v5237 = vunpack.c.l.b16 %v4721
  %v5238 = vunpack.c.l.b16 %v4722
  %v5239 = vunpack.c.l.b16 %v4723
  %v5240 = vunpack.c.l.b16 %v4724
  %v5241 = vunpack.c.l.b16 %v4725
  %v5242 = vunpack.c.l.b16 %v4726
  %v5243 = vunpack.c.l.b16 %v4727
  %v5244 = vunpack.c.l.b16 %v4728
  %v5245 = vunpack.c.l.b16 %v4729
  %v5246 = vunpack.c.l.b16 %v4730
  %v5247 = vunpack.c.l.b16 %v4731
  %v5248 = vunpack.c.l.b16 %v4732
  %v5249 = vunpack.c.l.b16 %v4733
  %v5250 = vunpack.c.l.b16 %v4734
  %v5251 = vunpack.c.l.b16 %v4735
  %v5252 = vunpack.c.l.b16 %v4736
  %v5253 = vunpack.c.l.b16 %v4737
  %v5254 = vunpack.c.l.b16 %v4738
  %v5255 = vunpack.c.l.b16 %v4739
  %v5256 = vunpack.c.l.b16 %v4740
  %v5257 = vunpack.c.l.b16 %v4741
  %v5258 = vunpack.c.l.b16 %v4742
  %v5259 = vunpack.c.l.b16 %v4743
  %v5260 = vunpack.c.l.b16 %v4744
  %v5261 = vunpack.c.l.b16 %v4745
  %v5262 = vunpack.c.l.b16 %v4746
  %v5263 = vunpack.c.l.b16 %v4747
  %v5264 = vunpack.c.l.b16 %v4748
  %v5265 = vunpack.c.l.b16 %v4749
  %v5266 = vunpack.c.l.b16 %v4750
  %v5267 = vunpack.c.l.b16 %v4751
  %v5268 = vunpack.c.l.b16 %v4752
  %v5269 = vunpack.c.l.b16 %v4753
  %v5270 = vunpack.c.l.b16 %v4754
  %v5271 = vunpack.c.l.b16 %v4755
  %v5272 = vunpack.c.l.b16 %v4756
  %v5273 = vunpack.c.l.b16 %v4757
  %v5274 = vunpack.c.l.b16 %v4758
  %v5275 = vunpack.c.l.b16 %v4759
  %v5276 = vunpack.c.l.b16 %v4760
  %v5277 = vunpack.c.l.b16 %v4761
  %v5278 = vunpack.c.l.b16 %v4762
  %v5279 = vunpack.c.l.b16 %v4763
  %v5280 = vunpack.c.l.b16 %v4764
  %v5281 = vunpack.c.l.b16 %v4765
  %v5282 = vunpack.c.l.b16 %v4766
  %v5283 = vunpack.c.l.b16 %v4767
  %v5284 = vunpack.c.l.b16 %v4768
  %v5285 = vunpack.c.l.b16 %v4769
  %v5286 = vunpack.c.l.b16 %v4770
  %v5287 = vunpack.c.l.b16 %v4771
  %v5288 = vunpack.c.l.b16 %v4772
  %v5289 = vunpack.c.l.b16 %v4773
  %v5290 = vunpack.c.l.b16 %v4774
  %v5291 = vunpack.c.l.b16 %v4775
  %v5292 = vunpack.c.l.b16 %v4776
  %v5293 = vunpack.c.l.b16 %v4777
  %v5294 = vunpack.c.l.b16 %v4778
  %v5295 = vunpack.c.l.b16 %v4779
  %v5296 = vunpack.c.l.b16 %v4780
  %v5297 = vunpack.c.l.b16 %v4781
  %v5298 = vunpack.c.l.b16 %v4782
  %v5299 = vunpack.c.l.b16 %v4783
  %v5300 = vunpack.c.l.b16 %v4784
  %v5301 = vunpack.c.l.b16 %v4785
  %v5302 = vunpack.c.l.b16 %v4786
  %v5303 = vunpack.c.l.b16 %v4787
  %v5304 = vunpack.c.l.b16 %v4788
  %v5305 = vunpack.c.l.b16 %v4789
  %v5306 = vunpack.c.l.b16 %v4790
  %v5307 = vunpack.c.l.b16 %v4791
  %v5308 = vunpack.c.l.b16 %v4792
  %v5309 = vunpack.c.l.b16 %v4793
  %v5310 = vunpack.c.l.b16 %v4794
  %v5311 = vunpack.c.l.b16 %v4795
  %v5312 = vunpack.c.l.b16 %v4796
  %v5313 = vunpack.c.l.b16 %v4797
  %v5314 = vunpack.c.l.b16 %v4798
  %v5315 = vunpack.c.l.b16 %v4799
  %v5316 = vunpack.c.l.b16 %v4800
  %v5317 = vunpack.c.l.b16 %v4801
  %v5318 = vunpack.c.l.b16 %v4802
  %v5319 = vunpack.c.l.b16 %v4803
  %v5320 = vunpack.c.l.b16 %v4804
  %v5321 = vunpack.c.l.b16 %v4805
  %v5322 = vunpack.c.l.b16 %v4806
  %v5323 = vunpack.c.l.b16 %v4807
  %v5324 = vunpack.c.l.b16 %v4808
  %v5325 = vunpack.c.l.b16 %v4809
  %v5326 = vunpack.c.l.b16 %v4810
  %v5327 = vunpack.c.l.b16 %v4811
  %v5328 = vunpack.c.l.b16 %v4812
  %v5329 = vunpack.c.l.b16 %v4813
  %v5330 = vunpack.c.l.b16 %v4814
  %v5331 = vunpack.c.l.b16 %v4815
  %v5332 = vunpack.c.l.b16 %v4816
  %v5333 = vunpack.c.l.b16 %v4817
  %v5334 = vunpack.c.l.b16 %v4818
  %v5335 = vunpack.c.l.b16 %v4819
  %v5336 = vunpack.c.l.b16 %v4820
  %v5337 = vunpack.c.l.b16 %v4821
  %v5338 = vunpack.c.l.b16 %v4822
  %v5339 = vunpack.c.l.b16 %v4823
  %v5340 = vunpack.c.l.b16 %v4824
  %v5341 = vunpack.c.l.b16 %v4825
  %v5342 = vunpack.c.l.b16 %v4826
  %v5343 = vunpack.c.l.b16 %v4827
  %v5344 = vunpack.c.l.b16 %v4828
  %v5345 = vunpack.c.l.b16 %v4829
  %v5346 = vunpack.c.l.b16 %v4830
  %v5347 = vunpack.c.l.b16 %v4831
  %v5348 = vunpack.c.l.b16 %v4832
  %v5349 = vunpack.c.l.b16 %v4833
  %v5350 = vunpack.c.l.b16 %v4834
  %v5351 = vunpack.c.l.b16 %v4835
  %v5352 = vunpack.c.l.b16 %v4836
  %v5353 = vunpack.c.l.b16 %v4837
  %v5354 = vunpack.c.l.b16 %v4838
  %v5355 = vunpack.c.l.b16 %v4839
  %v5356 = vunpack.c.l.b16 %v4840
  %v5357 = vunpack.c.l.b16 %v4841
  %v5358 = vunpack.c.l.b16 %v4842
  %v5359 = vunpack.c.l.b16 %v4843
  %v5360 = vunpack.c.l.b16 %v4844
  %v5361 = vunpack.c.l.b16 %v4845
  %v5362 = vunpack.c.l.b16 %v4846
  %v5363 = vunpack.c.l.b16 %v4847
  %v5364 = vunpack.c.l.b16 %v4848
  %v5365 = vunpack.c.l.b16 %v4849
  %v5366 = vunpack.c.l.b16 %v4850
  %v5367 = vunpack.c.l.b16 %v4851
  %v5368 = vunpack.c.l.b16 %v4852
  %v5369 = vunpack.c.l.b16 %v4853
  %v5370 = vunpack.c.l.b16 %v4854
  %v5371 = vunpack.c.l.b16 %v4855
  %v5372 = vunpack.c.l.b16 %v4856
  %v5373 = vunpack.c.l.b16 %v4857
  %v5374 = vunpack.c.l.b16 %v4858
  %v5375 = vunpack.c.l.b16 %v4859
  %v5376 = vunpack.c.l.b16 %v4860
  %v5377 = vunpack.c.l.b16 %v4861
  %v5378 = vunpack.c.l.b16 %v4862
  %v5379 = vunpack.c.l.b16 %v4863
  %v5380 = vunpack.c.l.b16 %v4864
  %v5381 = vunpack.c.l.b16 %v4865
  %v5382 = vunpack.c.l.b16 %v4866
  %v5383 = vunpack.c.l.b16 %v4867
  %v5384 = vunpack.c.l.b16 %v4868
  %v5385 = vunpack.c.l.b16 %v4869
  %v5386 = vunpack.c.l.b16 %v4870
  %v5387 = vunpack.c.l.b16 %v4871
  %v5388 = vunpack.c.l.b16 %v4872
  %v5389 = vunpack.c.l.b16 %v4873
  %v5390 = vunpack.c.l.b16 %v4874
  %v5391 = vunpack.c.l.b16 %v4875
  %v5392 = vunpack.c.l.b16 %v4876
  %v5393 = vunpack.c.l.b16 %v4877
  %v5394 = vunpack.c.l.b16 %v4878
  %v5395 = vunpack.c.l.b16 %v4879
  %v5396 = vunpack.c.l.b16 %v4880
  %v5397 = vunpack.c.l.b16 %v4881
  %v5398 = vunpack.c.l.b16 %v4882
  %v5399 = vunpack.c.l.b16 %v4883
  %v5400 = vunpack.c.l.b16 %v4884
  %v5401 = vunpack.c.l.b16 %v4885
  %v5402 = vunpack.c.l.b16 %v4886
  %v5403 = vunpack.c.l.b16 %v4887
  %v5404 = vunpack.c.l.b16 %v4888
  %v5405 = vunpack.c.l.b16 %v4889
  %v5406 = vunpack.c.l.b16 %v4890
  %v5407 = vunpack.c.l.b16 %v4891
  %v5408 = vunpack.c.l.b16 %v4892
  %v5409 = vunpack.c.l.b16 %v4893
  %v5410 = vunpack.c.l.b16 %v4894
  %v5411 = vunpack.c.l.b16 %v4895
  %v5412 = vunpack.c.l.b16 %v4896
  %v5413 = vunpack.c.l.b16 %v4897
  %v5414 = vunpack.c.l.b16 %v4898
  %v5415 = vunpack.c.l.b16 %v4899
  %v5416 = vunpack.c.l.b16 %v4900
  %v5417 = vunpack.c.l.b16 %v4901
  %v5418 = vunpack.c.l.b16 %v4902
  %v5419 = vunpack.c.l.b16 %v4903
  %v5420 = vunpack.c.l.b16 %v4904
  %v5421 = vunpack.c.l.b16 %v4905
  %v5422 = vunpack.c.l.b16 %v4906
  %v5423 = vunpack.c.l.b16 %v4907
  %v5424 = vunpack.c.l.b16 %v4908
  %v5425 = vunpack.c.l.b16 %v4909
  %v5426 = vunpack.c.l.b16 %v4910
  %v5427 = vunpack.c.l.b16 %v4911
  %v5428 = vunpack.c.l.b16 %v4912
  %v5429 = vunpack.c.l.b16 %v4913
  %v5430 = vpack.c.b16 %v5175, %v5174
  %v5431 = vpack.c.b16 %v5177, %v5176
  %v5432 = vpack.c.b16 %v5179, %v5178
  %v5433 = vpack.c.b16 %v5181, %v5180
  %v5434 = vpack.c.b16 %v5183, %v5182
  %v5435 = vpack.c.b16 %v5185, %v5184
  %v5436 = vpack.c.b16 %v5187, %v5186
  %v5437 = vpack.c.b16 %v5189, %v5188
  %v5438 = vpack.c.b16 %v5191, %v5190
  %v5439 = vpack.c.b16 %v5193, %v5192
  %v5440 = vpack.c.b16 %v5195, %v5194
  %v5441 = vpack.c.b16 %v5197, %v5196
  %v5442 = vpack.c.b16 %v5199, %v5198
  %v5443 = vpack.c.b16 %v5201, %v5200
  %v5444 = vpack.c.b16 %v5203, %v5202
  %v5445 = vpack.c.b16 %v5205, %v5204
  %v5446 = vpack.c.b16 %v5207, %v5206
  %v5447 = vpack.c.b16 %v5209, %v5208
  %v5448 = vpack.c.b16 %v5211, %v5210
  %v5449 = vpack.c.b16 %v5213, %v5212
  %v5450 = vpack.c.b16 %v5215, %v5214
  %v5451 = vpack.c.b16 %v5217, %v5216
  %v5452 = vpack.c.b16 %v5219, %v5218
  %v5453 = vpack.c.b16 %v5221, %v5220
  %v5454 = vpack.c.b16 %v5223, %v5222
  %v5455 = vpack.c.b16 %v5225, %v5224
  %v5456 = vpack.c.b16 %v5227, %v5226
  %v5457 = vpack.c.b16 %v5229, %v5228
  %v5458 = vpack.c.b16 %v5231, %v5230
  %v5459 = vpack.c.b16 %v5233, %v5232
  %v5460 = vpack.c.b16 %v5235, %v5234
  %v5461 = vpack.c.b16 %v5237, %v5236
  %v5462 = vpack.c.b16 %v5239, %v5238
  %v5463 = vpack.c.b16 %v5241, %v5240
  %v5464 = vpack.c.b16 %v5243, %v5242
  %v5465 = vpack.c.b16 %v5245, %v5244
  %v5466 = vpack.c.b16 %v5247, %v5246
  %v5467 = vpack.c.b16 %v5249, %v5248
  %v5468 = vpack.c.b16 %v5251, %v5250
  %v5469 = vpack.c.b16 %v5253, %v5252
  %v5470 = vpack.c.b16 %v5255, %v5254
  %v5471 = vpack.c.b16 %v5257, %v5256
  %v5472 = vpack.c.b16 %v5259, %v5258
  %v5473 = vpack.c.b16 %v5261, %v5260
  %v5474 = vpack.c.b16 %v5263, %v5262
  %v5475 = vpack.c.b16 %v5265, %v5264
  %v5476 = vpack.c.b16 %v5267, %v5266
  %v5477 = vpack.c.b16 %v5269, %v5268
  %v5478 = vpack.c.b16 %v5271, %v5270
  %v5479 = vpack.c.b16 %v5273, %v5272
  %v5480 = vpack.c.b16 %v5275, %v5274
  %v5481 = vpack.c.b16 %v5277, %v5276
  %v5482 = vpack.c.b16 %v5279, %v5278
  %v5483 = vpack.c.b16 %v5281, %v5280
  %v5484 = vpack.c.b16 %v5283, %v5282
  %v5485 = vpack.c.b16 %v5285, %v5284
  %v5486 = vpack.c.b16 %v5287, %v5286
  %v5487 = vpack.c.b16 %v5289, %v5288
  %v5488 = vpack.c.b16 %v5291, %v5290
  %v5489 = vpack.c.b16 %v5293, %v5292
  %v5490 = vpack.c.b16 %v5295, %v5294
  %v5491 = vpack.c.b16 %v5297, %v5296
  %v5492 = vpack.c.b16 %v5299, %v5298
  %v5493 = vpack.c.b16 %v5301, %v5300
  %v5494 = vpack.c.b16 %v5303, %v5302
  %v5495 = vpack.c.b16 %v5305, %v5304
  %v5496 = vpack.c.b16 %v5307, %v5306
  %v5497 = vpack.c.b16 %v5309, %v5308
  %v5498 = vpack.c.b16 %v5311, %v5310
  %v5499 = vpack.c.b16 %v5313, %v5312
  %v5500 = vpack.c.b16 %v5315, %v5314
  %v5501 = vpack.c.b16 %v5317, %v5316
  %v5502 = vpack.c.b16 %v5319, %v5318
  %v5503 = vpack.c.b16 %v5321, %v5320
  %v5504 = vpack.c.b16 %v5323, %v5322
  %v5505 = vpack.c.b16 %v5325, %v5324
  %v5506 = vpack.c.b16 %v5327, %v5326
  %v5507 = vpack.c.b16 %v5329, %v5328
  %v5508 = vpack.c.b16 %v5331, %v5330
  %v5509 = vpack.c.b16 %v5333, %v5332
  %v5510 = vpack.c.b16 %v5335, %v5334
  %v5511 = vpack.c.b16 %v5337, %v5336
  %v5512 = vpack.c.b16 %v5339, %v5338
  %v5513 = vpack.c.b16 %v5341, %v5340
  %v5514 = vpack.c.b16 %v5343, %v5342
  %v5515 = vpack.c.b16 %v5345, %v5344
  %v5516 = vpack.c.b16 %v5347, %v5346
  %v5517 = vpack.c.b16 %v5349, %v5348
  %v5518 = vpack.c.b16 %v5351, %v5350
  %v5519 = vpack.c.b16 %v5353, %v5352
  %v5520 = vpack.c.b16 %v5355, %v5354
  %v5521 = vpack.c.b16 %v5357, %v5356
  %v5522 = vpack.c.b16 %v5359, %v5358
  %v5523 = vpack.c.b16 %v5361, %v5360
  %v5524 = vpack.c.b16 %v5363, %v5362
  %v5525 = vpack.c.b16 %v5365, %v5364
  %v5526 = vpack.c.b16 %v5367, %v5366
  %v5527 = vpack.c.b16 %v5369, %v5368
  %v5528 = vpack.c.b16 %v5371, %v5370
  %v5529 = vpack.c.b16 %v5373, %v5372
  %v5530 = vpack.c.b16 %v5375, %v5374
  %v5531 = vpack.c.b16 %v5377, %v5376
  %v5532 = vpack.c.b16 %v5379, %v5378
  %v5533 = vpack.c.b16 %v5381, %v5380
  %v5534 = vpack.c.b16 %v5383, %v5382
  %v5535 = vpack.c.b16 %v5385, %v5384
  %v5536 = vpack.c.b16 %v5387, %v5386
  %v5537 = vpack.c.b16 %v5389, %v5388
  %v5538 = vpack.c.b16 %v5391, %v5390
  %v5539 = vpack.c.b16 %v5393, %v5392
  %v5540 = vpack.c.b16 %v5395, %v5394
  %v5541 = vpack.c.b16 %v5397, %v5396
  %v5542 = vpack.c.b16 %v5399, %v5398
  %v5543 = vpack.c.b16 %v5401, %v5400
  %v5544 = vpack.c.b16 %v5403, %v5402
  %v5545 = vpack.c.b16 %v5405, %v5404
  %v5546 = vpack.c.b16 %v5407, %v5406
  %v5547 = vpack.c.b16 %v5409, %v5408
  %v5548 = vpack.c.b16 %v5411, %v5410
  %v5549 = vpack.c.b16 %v5413, %v5412
  %v5550 = vpack.c.b16 %v5415, %v5414
  %v5551 = vpack.c.b16 %v5417, %v5416
  %v5552 = vpack.c.b16 %v5419, %v5418
  %v5553 = vpack.c.b16 %v5421, %v5420
  %v5554 = vpack.c.b16 %v5423, %v5422
  %v5555 = vpack.c.b16 %v5425, %v5424
  %v5556 = vpack.c.b16 %v5427, %v5426
  %v5557 = vpack.c.b16 %v5429, %v5428
  %5686 = vmatprep.subr.bf16.mxu0 0
  %5687 = vmatpush1.bf16.msra.mxu0 %v5430
  %5688 = vmatprep.subr.bf16.mxu0 0
  %5689 = vmatpush1.bf16.msra.mxu0 %v5431
  %5690 = vmatprep.subr.bf16.mxu0 0
  %5691 = vmatpush1.bf16.msra.mxu0 %v5432
  %5692 = vmatprep.subr.bf16.mxu0 0
  %5693 = vmatpush1.bf16.msra.mxu0 %v5433
  %5694 = vmatprep.subr.bf16.mxu0 0
  %5695 = vmatpush1.bf16.msra.mxu0 %v5434
  %5696 = vmatprep.subr.bf16.mxu0 0
  %5697 = vmatpush1.bf16.msra.mxu0 %v5435
  %5698 = vmatprep.subr.bf16.mxu0 0
  %5699 = vmatpush1.bf16.msra.mxu0 %v5436
  %5700 = vmatprep.subr.bf16.mxu0 0
  %5701 = vmatpush1.bf16.msra.mxu0 %v5437
  %5702 = vmatprep.subr.bf16.mxu0 0
  %5703 = vmatpush1.bf16.msra.mxu0 %v5438
  %5704 = vmatprep.subr.bf16.mxu0 0
  %5705 = vmatpush1.bf16.msra.mxu0 %v5439
  %5706 = vmatprep.subr.bf16.mxu0 0
  %5707 = vmatpush1.bf16.msra.mxu0 %v5440
  %5708 = vmatprep.subr.bf16.mxu0 0
  %5709 = vmatpush1.bf16.msra.mxu0 %v5441
  %5710 = vmatprep.subr.bf16.mxu0 0
  %5711 = vmatpush1.bf16.msra.mxu0 %v5442
  %5712 = vmatprep.subr.bf16.mxu0 0
  %5713 = vmatpush1.bf16.msra.mxu0 %v5443
  %5714 = vmatprep.subr.bf16.mxu0 0
  %5715 = vmatpush1.bf16.msra.mxu0 %v5444
  %5716 = vmatprep.subr.bf16.mxu0 0
  %5717 = vmatpush1.bf16.msra.mxu0 %v5445
  %5718 = vmatprep.mubr.bf16.mxu0 %v4643
  %5719 = vmatmul.mubr.bf16.gmra.mrb[0].mxu0 %v4642
  %v5720 = vpop.f32.mrb[0].mxu0
  %v5721 = vadd.f32 %v4917, %v5720
  %v5722 = vpop.f32.mrb[0].mxu0
  %v5723 = vpop.f32.mrb[0].mxu0
  %v5724 = vadd.f32 %v4917, %v5723
  %v5725 = vpop.f32.mrb[0].mxu0
  %5726 = vdwg.mxu0
  %5727 = vmatprep.subr.bf16.mxu0 0
  %5728 = vmatpush1.bf16.msra.mxu0 %v5446
  %5729 = vmatprep.subr.bf16.mxu0 0
  %5730 = vmatpush1.bf16.msra.mxu0 %v5447
  %5731 = vmatprep.subr.bf16.mxu0 0
  %5732 = vmatpush1.bf16.msra.mxu0 %v5448
  %5733 = vmatprep.subr.bf16.mxu0 0
  %5734 = vmatpush1.bf16.msra.mxu0 %v5449
  %5735 = vmatprep.subr.bf16.mxu0 0
  %5736 = vmatpush1.bf16.msra.mxu0 %v5450
  %5737 = vmatprep.subr.bf16.mxu0 0
  %5738 = vmatpush1.bf16.msra.mxu0 %v5451
  %5739 = vmatprep.subr.bf16.mxu0 0
  %5740 = vmatpush1.bf16.msra.mxu0 %v5452
  %5741 = vmatprep.subr.bf16.mxu0 0
  %5742 = vmatpush1.bf16.msra.mxu0 %v5453
  %5743 = vmatprep.subr.bf16.mxu0 0
  %5744 = vmatpush1.bf16.msra.mxu0 %v5454
  %5745 = vmatprep.subr.bf16.mxu0 0
  %5746 = vmatpush1.bf16.msra.mxu0 %v5455
  %5747 = vmatprep.subr.bf16.mxu0 0
  %5748 = vmatpush1.bf16.msra.mxu0 %v5456
  %5749 = vmatprep.subr.bf16.mxu0 0
  %5750 = vmatpush1.bf16.msra.mxu0 %v5457
  %5751 = vmatprep.subr.bf16.mxu0 0
  %5752 = vmatpush1.bf16.msra.mxu0 %v5458
  %5753 = vmatprep.subr.bf16.mxu0 0
  %5754 = vmatpush1.bf16.msra.mxu0 %v5459
  %5755 = vmatprep.subr.bf16.mxu0 0
  %5756 = vmatpush1.bf16.msra.mxu0 %v5460
  %5757 = vmatprep.subr.bf16.mxu0 0
  %5758 = vmatpush1.bf16.msra.mxu0 %v5461
  %5759 = vmatprep.mubr.bf16.mxu0 %v4645
  %5760 = vmatmul.mubr.bf16.gmra.mrb[0].mxu0 %v4644
  %v5761 = vpop.f32.mrb[0].mxu0
  %v5762 = vadd.f32 %v5721, %v5761
  %v5763 = vpop.f32.mrb[0].mxu0
  %v5764 = vpop.f32.mrb[0].mxu0
  %v5765 = vadd.f32 %v5724, %v5764
  %v5766 = vpop.f32.mrb[0].mxu0
  %5767 = vdwg.mxu0
  %5768 = vmatprep.subr.bf16.mxu0 0
  %5769 = vmatpush1.bf16.msra.mxu0 %v5462
  %5770 = vmatprep.subr.bf16.mxu0 0
  %5771 = vmatpush1.bf16.msra.mxu0 %v5463
  %5772 = vmatprep.subr.bf16.mxu0 0
  %5773 = vmatpush1.bf16.msra.mxu0 %v5464
  %5774 = vmatprep.subr.bf16.mxu0 0
  %5775 = vmatpush1.bf16.msra.mxu0 %v5465
  %5776 = vmatprep.subr.bf16.mxu0 0
  %5777 = vmatpush1.bf16.msra.mxu0 %v5466
  %5778 = vmatprep.subr.bf16.mxu0 0
  %5779 = vmatpush1.bf16.msra.mxu0 %v5467
  %5780 = vmatprep.subr.bf16.mxu0 0
  %5781 = vmatpush1.bf16.msra.mxu0 %v5468
  %5782 = vmatprep.subr.bf16.mxu0 0
  %5783 = vmatpush1.bf16.msra.mxu0 %v5469
  %5784 = vmatprep.subr.bf16.mxu0 0
  %5785 = vmatpush1.bf16.msra.mxu0 %v5470
  %5786 = vmatprep.subr.bf16.mxu0 0
  %5787 = vmatpush1.bf16.msra.mxu0 %v5471
  %5788 = vmatprep.subr.bf16.mxu0 0
  %5789 = vmatpush1.bf16.msra.mxu0 %v5472
  %5790 = vmatprep.subr.bf16.mxu0 0
  %5791 = vmatpush1.bf16.msra.mxu0 %v5473
  %5792 = vmatprep.subr.bf16.mxu0 0
  %5793 = vmatpush1.bf16.msra.mxu0 %v5474
  %5794 = vmatprep.subr.bf16.mxu0 0
  %5795 = vmatpush1.bf16.msra.mxu0 %v5475
  %5796 = vmatprep.subr.bf16.mxu0 0
  %5797 = vmatpush1.bf16.msra.mxu0 %v5476
  %5798 = vmatprep.subr.bf16.mxu0 0
  %5799 = vmatpush1.bf16.msra.mxu0 %v5477
  %5800 = vmatprep.mubr.bf16.mxu0 %v4647
  %5801 = vmatmul.mubr.bf16.gmra.mrb[0].mxu0 %v4646
  %v5802 = vpop.f32.mrb[0].mxu0
  %v5803 = vadd.f32 %v5762, %v5802
  %v5804 = vpop.f32.mrb[0].mxu0
  %v5805 = vpop.f32.mrb[0].mxu0
  %v5806 = vadd.f32 %v5765, %v5805
  %v5807 = vpop.f32.mrb[0].mxu0
  %5808 = vdwg.mxu0
  %5809 = vmatprep.subr.bf16.mxu0 0
  %5810 = vmatpush1.bf16.msra.mxu0 %v5478
  %5811 = vmatprep.subr.bf16.mxu0 0
  %5812 = vmatpush1.bf16.msra.mxu0 %v5479
  %5813 = vmatprep.subr.bf16.mxu0 0
  %5814 = vmatpush1.bf16.msra.mxu0 %v5480
  %5815 = vmatprep.subr.bf16.mxu0 0
  %5816 = vmatpush1.bf16.msra.mxu0 %v5481
  %5817 = vmatprep.subr.bf16.mxu0 0
  %5818 = vmatpush1.bf16.msra.mxu0 %v5482
  %5819 = vmatprep.subr.bf16.mxu0 0
  %5820 = vmatpush1.bf16.msra.mxu0 %v5483
  %5821 = vmatprep.subr.bf16.mxu0 0
  %5822 = vmatpush1.bf16.msra.mxu0 %v5484
  %5823 = vmatprep.subr.bf16.mxu0 0
  %5824 = vmatpush1.bf16.msra.mxu0 %v5485
  %5825 = vmatprep.subr.bf16.mxu0 0
  %5826 = vmatpush1.bf16.msra.mxu0 %v5486
  %5827 = vmatprep.subr.bf16.mxu0 0
  %5828 = vmatpush1.bf16.msra.mxu0 %v5487
  %5829 = vmatprep.subr.bf16.mxu0 0
  %5830 = vmatpush1.bf16.msra.mxu0 %v5488
  %5831 = vmatprep.subr.bf16.mxu0 0
  %5832 = vmatpush1.bf16.msra.mxu0 %v5489
  %5833 = vmatprep.subr.bf16.mxu0 0
  %5834 = vmatpush1.bf16.msra.mxu0 %v5490
  %5835 = vmatprep.subr.bf16.mxu0 0
  %5836 = vmatpush1.bf16.msra.mxu0 %v5491
  %5837 = vmatprep.subr.bf16.mxu0 0
  %5838 = vmatpush1.bf16.msra.mxu0 %v5492
  %5839 = vmatprep.subr.bf16.mxu0 0
  %5840 = vmatpush1.bf16.msra.mxu0 %v5493
  %5841 = vmatprep.mubr.bf16.mxu0 %v4649
  %5842 = vmatmul.mubr.bf16.gmra.mrb[0].mxu0 %v4648
  %v5843 = vpop.f32.mrb[0].mxu0
  %v5844 = vadd.f32 %v5803, %v5843
  %v5845 = vpop.f32.mrb[0].mxu0
  %v5846 = vpop.f32.mrb[0].mxu0
  %v5847 = vadd.f32 %v5806, %v5846
  %v5848 = vpop.f32.mrb[0].mxu0
  %5849 = vdwg.mxu0
  %5850 = vmatprep.subr.bf16.mxu0 0
  %5851 = vmatpush1.bf16.msra.mxu0 %v5494
  %5852 = vmatprep.subr.bf16.mxu0 0
  %5853 = vmatpush1.bf16.msra.mxu0 %v5495
  %5854 = vmatprep.subr.bf16.mxu0 0
  %5855 = vmatpush1.bf16.msra.mxu0 %v5496
  %5856 = vmatprep.subr.bf16.mxu0 0
  %5857 = vmatpush1.bf16.msra.mxu0 %v5497
  %5858 = vmatprep.subr.bf16.mxu0 0
  %5859 = vmatpush1.bf16.msra.mxu0 %v5498
  %5860 = vmatprep.subr.bf16.mxu0 0
  %5861 = vmatpush1.bf16.msra.mxu0 %v5499
  %5862 = vmatprep.subr.bf16.mxu0 0
  %5863 = vmatpush1.bf16.msra.mxu0 %v5500
  %5864 = vmatprep.subr.bf16.mxu0 0
  %5865 = vmatpush1.bf16.msra.mxu0 %v5501
  %5866 = vmatprep.subr.bf16.mxu0 0
  %5867 = vmatpush1.bf16.msra.mxu0 %v5502
  %5868 = vmatprep.subr.bf16.mxu0 0
  %5869 = vmatpush1.bf16.msra.mxu0 %v5503
  %5870 = vmatprep.subr.bf16.mxu0 0
  %5871 = vmatpush1.bf16.msra.mxu0 %v5504
  %5872 = vmatprep.subr.bf16.mxu0 0
  %5873 = vmatpush1.bf16.msra.mxu0 %v5505
  %5874 = vmatprep.subr.bf16.mxu0 0
  %5875 = vmatpush1.bf16.msra.mxu0 %v5506
  %5876 = vmatprep.subr.bf16.mxu0 0
  %5877 = vmatpush1.bf16.msra.mxu0 %v5507
  %5878 = vmatprep.subr.bf16.mxu0 0
  %5879 = vmatpush1.bf16.msra.mxu0 %v5508
  %5880 = vmatprep.subr.bf16.mxu0 0
  %5881 = vmatpush1.bf16.msra.mxu0 %v5509
  %5882 = vmatprep.mubr.bf16.mxu0 %v4651
  %5883 = vmatmul.mubr.bf16.gmra.mrb[0].mxu0 %v4650
  %v5884 = vpop.f32.mrb[0].mxu0
  %v5885 = vadd.f32 %v5844, %v5884
  %v5886 = vpop.f32.mrb[0].mxu0
  %v5887 = vpop.f32.mrb[0].mxu0
  %v5888 = vadd.f32 %v5847, %v5887
  %v5889 = vpop.f32.mrb[0].mxu0
  %5890 = vdwg.mxu0
  %5891 = vmatprep.subr.bf16.mxu0 0
  %5892 = vmatpush1.bf16.msra.mxu0 %v5510
  %5893 = vmatprep.subr.bf16.mxu0 0
  %5894 = vmatpush1.bf16.msra.mxu0 %v5511
  %5895 = vmatprep.subr.bf16.mxu0 0
  %5896 = vmatpush1.bf16.msra.mxu0 %v5512
  %5897 = vmatprep.subr.bf16.mxu0 0
  %5898 = vmatpush1.bf16.msra.mxu0 %v5513
  %5899 = vmatprep.subr.bf16.mxu0 0
  %5900 = vmatpush1.bf16.msra.mxu0 %v5514
  %5901 = vmatprep.subr.bf16.mxu0 0
  %5902 = vmatpush1.bf16.msra.mxu0 %v5515
  %5903 = vmatprep.subr.bf16.mxu0 0
  %5904 = vmatpush1.bf16.msra.mxu0 %v5516
  %5905 = vmatprep.subr.bf16.mxu0 0
  %5906 = vmatpush1.bf16.msra.mxu0 %v5517
  %5907 = vmatprep.subr.bf16.mxu0 0
  %5908 = vmatpush1.bf16.msra.mxu0 %v5518
  %5909 = vmatprep.subr.bf16.mxu0 0
  %5910 = vmatpush1.bf16.msra.mxu0 %v5519
  %5911 = vmatprep.subr.bf16.mxu0 0
  %5912 = vmatpush1.bf16.msra.mxu0 %v5520
  %5913 = vmatprep.subr.bf16.mxu0 0
  %5914 = vmatpush1.bf16.msra.mxu0 %v5521
  %5915 = vmatprep.subr.bf16.mxu0 0
  %5916 = vmatpush1.bf16.msra.mxu0 %v5522
  %5917 = vmatprep.subr.bf16.mxu0 0
  %5918 = vmatpush1.bf16.msra.mxu0 %v5523
  %5919 = vmatprep.subr.bf16.mxu0 0
  %5920 = vmatpush1.bf16.msra.mxu0 %v5524
  %5921 = vmatprep.subr.bf16.mxu0 0
  %5922 = vmatpush1.bf16.msra.mxu0 %v5525
  %5923 = vmatprep.mubr.bf16.mxu0 %v4653
  %5924 = vmatmul.mubr.bf16.gmra.mrb[0].mxu0 %v4652
  %v5925 = vpop.f32.mrb[0].mxu0
  %v5926 = vadd.f32 %v5885, %v5925
  %v5927 = vpop.f32.mrb[0].mxu0
  %v5928 = vpop.f32.mrb[0].mxu0
  %v5929 = vadd.f32 %v5888, %v5928
  %v5930 = vpop.f32.mrb[0].mxu0
  %5931 = vdwg.mxu0
  %5932 = vmatprep.subr.bf16.mxu0 0
  %5933 = vmatpush1.bf16.msra.mxu0 %v5526
  %5934 = vmatprep.subr.bf16.mxu0 0
  %5935 = vmatpush1.bf16.msra.mxu0 %v5527
  %5936 = vmatprep.subr.bf16.mxu0 0
  %5937 = vmatpush1.bf16.msra.mxu0 %v5528
  %5938 = vmatprep.subr.bf16.mxu0 0
  %5939 = vmatpush1.bf16.msra.mxu0 %v5529
  %5940 = vmatprep.subr.bf16.mxu0 0
  %5941 = vmatpush1.bf16.msra.mxu0 %v5530
  %5942 = vmatprep.subr.bf16.mxu0 0
  %5943 = vmatpush1.bf16.msra.mxu0 %v5531
  %5944 = vmatprep.subr.bf16.mxu0 0
  %5945 = vmatpush1.bf16.msra.mxu0 %v5532
  %5946 = vmatprep.subr.bf16.mxu0 0
  %5947 = vmatpush1.bf16.msra.mxu0 %v5533
  %5948 = vmatprep.subr.bf16.mxu0 0
  %5949 = vmatpush1.bf16.msra.mxu0 %v5534
  %5950 = vmatprep.subr.bf16.mxu0 0
  %5951 = vmatpush1.bf16.msra.mxu0 %v5535
  %5952 = vmatprep.subr.bf16.mxu0 0
  %5953 = vmatpush1.bf16.msra.mxu0 %v5536
  %5954 = vmatprep.subr.bf16.mxu0 0
  %5955 = vmatpush1.bf16.msra.mxu0 %v5537
  %5956 = vmatprep.subr.bf16.mxu0 0
  %5957 = vmatpush1.bf16.msra.mxu0 %v5538
  %5958 = vmatprep.subr.bf16.mxu0 0
  %5959 = vmatpush1.bf16.msra.mxu0 %v5539
  %5960 = vmatprep.subr.bf16.mxu0 0
  %5961 = vmatpush1.bf16.msra.mxu0 %v5540
  %5962 = vmatprep.subr.bf16.mxu0 0
  %5963 = vmatpush1.bf16.msra.mxu0 %v5541
  %5964 = vmatprep.mubr.bf16.mxu0 %v4655
  %5965 = vmatmul.mubr.bf16.gmra.mrb[0].mxu0 %v4654
  %v5966 = vpop.f32.mrb[0].mxu0
  %v5967 = vadd.f32 %v5926, %v5966
  %v5968 = vpop.f32.mrb[0].mxu0
  %v5969 = vpop.f32.mrb[0].mxu0
  %v5970 = vadd.f32 %v5929, %v5969
  %v5971 = vpop.f32.mrb[0].mxu0
  %5972 = vdwg.mxu0
  %5973 = vmatprep.subr.bf16.mxu0 0
  %5974 = vmatpush1.bf16.msra.mxu0 %v5542
  %5975 = vmatprep.subr.bf16.mxu0 0
  %5976 = vmatpush1.bf16.msra.mxu0 %v5543
  %5977 = vmatprep.subr.bf16.mxu0 0
  %5978 = vmatpush1.bf16.msra.mxu0 %v5544
  %5979 = vmatprep.subr.bf16.mxu0 0
  %5980 = vmatpush1.bf16.msra.mxu0 %v5545
  %5981 = vmatprep.subr.bf16.mxu0 0
  %5982 = vmatpush1.bf16.msra.mxu0 %v5546
  %5983 = vmatprep.subr.bf16.mxu0 0
  %5984 = vmatpush1.bf16.msra.mxu0 %v5547
  %5985 = vmatprep.subr.bf16.mxu0 0
  %5986 = vmatpush1.bf16.msra.mxu0 %v5548
  %5987 = vmatprep.subr.bf16.mxu0 0
  %5988 = vmatpush1.bf16.msra.mxu0 %v5549
  %5989 = vmatprep.subr.bf16.mxu0 0
  %5990 = vmatpush1.bf16.msra.mxu0 %v5550
  %5991 = vmatprep.subr.bf16.mxu0 0
  %5992 = vmatpush1.bf16.msra.mxu0 %v5551
  %5993 = vmatprep.subr.bf16.mxu0 0
  %5994 = vmatpush1.bf16.msra.mxu0 %v5552
  %5995 = vmatprep.subr.bf16.mxu0 0
  %5996 = vmatpush1.bf16.msra.mxu0 %v5553
  %5997 = vmatprep.subr.bf16.mxu0 0
  %5998 = vmatpush1.bf16.msra.mxu0 %v5554
  %5999 = vmatprep.subr.bf16.mxu0 0
  %6000 = vmatpush1.bf16.msra.mxu0 %v5555
  %6001 = vmatprep.subr.bf16.mxu0 0
  %6002 = vmatpush1.bf16.msra.mxu0 %v5556
  %6003 = vmatprep.subr.bf16.mxu0 0
  %6004 = vmatpush1.bf16.msra.mxu0 %v5557
  %6005 = vmatprep.mubr.bf16.mxu0 %v4657
  %6006 = vmatmul.mubr.bf16.gmra.mrb[0].mxu0 %v4656
  %v6007 = vpop.f32.mrb[0].mxu0
  %v6008 = vadd.f32 %v5967, %v6007
  %v6009 = vpop.f32.mrb[0].mxu0
  %v6010 = vpop.f32.mrb[0].mxu0
  %v6011 = vadd.f32 %v5970, %v6010
  %v6012 = vpop.f32.mrb[0].mxu0
  %6013 = vdwg.mxu0
  %v6016 = vcombine.high %v6008, %v6008
  %v6018 = vunpack.c.l.s4 1983009808
  %v6019 = vunpack.c.0.s8 %v6018
  %v6020 = vlaneseq
  %v6021 = vshrl.u32 %v6020, 7
  %v6022 = vsub.s32 %v6019, %v6021
  %v6023 = vrot.slane %v6008, %v6022
  %v6025 = vunpack.c.l.s4 1983009808
  %v6026 = vunpack.c.0.s8 %v6025
  %v6027 = vlaneseq
  %v6028 = vshrl.u32 %v6027, 7
  %v6029 = vsub.s32 %v6026, %v6028
  %v6030 = vrot.slane %v6016, %v6029
  %v6031 = vcombine.high %v6023, %v6023
  %v6032 = vcombine.high %v6030, %v6030
  %v6033 = vcombine.high %v6011, %v6011
  %v6035 = vunpack.c.l.s4 1983009808
  %v6036 = vunpack.c.0.s8 %v6035
  %v6037 = vlaneseq
  %v6038 = vshrl.u32 %v6037, 7
  %v6039 = vsub.s32 %v6036, %v6038
  %v6040 = vrot.slane %v6011, %v6039
  %v6042 = vunpack.c.l.s4 1983009808
  %v6043 = vunpack.c.0.s8 %v6042
  %v6044 = vlaneseq
  %v6045 = vshrl.u32 %v6044, 7
  %v6046 = vsub.s32 %v6043, %v6045
  %v6047 = vrot.slane %v6033, %v6046
  %v6048 = vcombine.high %v6040, %v6040
  %v6049 = vcombine.high %v6047, %v6047
  %v6058 = vadd.f32 %v3742, %v6023
  %v6059 = vadd.f32 %v3743, %v6031
  %v6060 = vadd.f32 %v3744, %v6030
  %v6061 = vadd.f32 %v3745, %v6032
  %v6062 = vadd.f32 %v3746, %v6040
  %v6063 = vadd.f32 %v3747, %v6048
  %v6064 = vadd.f32 %v3748, %v6047
  %v6065 = vadd.f32 %v3749, %v6049
  %v6074 = vcombine.low %v6058, %v6059
  %v6075 = vcombine.low %v6060, %v6061
  %v6077 = vunpack.c.l.s4 1983009808
  %v6078 = vunpack.c.0.s8 %v6077
  %v6079 = vlaneseq
  %v6080 = vshrl.u32 %v6079, 7
  %v6081 = vsub.s32 %v6078, %v6080
  %v6082 = vrot.slane %v6074, %v6081
  %v6084 = vunpack.c.l.s4 1983009808
  %v6085 = vunpack.c.0.s8 %v6084
  %v6086 = vlaneseq
  %v6087 = vshrl.u32 %v6086, 7
  %v6088 = vsub.s32 %v6085, %v6087
  %v6089 = vrot.slane %v6075, %v6088
  %v6090 = vcombine.low %v6082, %v6089
  %v6091 = vcombine.low %v6062, %v6063
  %v6092 = vcombine.low %v6064, %v6065
  %v6094 = vunpack.c.l.s4 1983009808
  %v6095 = vunpack.c.0.s8 %v6094
  %v6096 = vlaneseq
  %v6097 = vshrl.u32 %v6096, 7
  %v6098 = vsub.s32 %v6095, %v6097
  %v6099 = vrot.slane %v6091, %v6098
  %v6101 = vunpack.c.l.s4 1983009808
  %v6102 = vunpack.c.0.s8 %v6101
  %v6103 = vlaneseq
  %v6104 = vshrl.u32 %v6103, 7
  %v6105 = vsub.s32 %v6102, %v6104
  %v6106 = vrot.slane %v6092, %v6105
  %v6107 = vcombine.low %v6099, %v6106
  %v6110 = vsel %vm177, %v6090, 0.0
  %6111 = vadd.xlane.f32.xlu0 %v6110
  %v6112 = vpop.xlane.xlu0 %6111
  %v6113 = vsel %vm177, %v6107, 0.0
  %6114 = vadd.xlane.f32.xlu0 %v6113
  %v6115 = vpop.xlane.xlu0 %6114
  %v6116 = vmul.f32 %v6112, %v3467
  %v6117 = vmul.f32 %v6115, %v3467
  %v6121 = vunpack.c.l.s4 269488144
  %v6122 = vunpack.c.0.s8 %v6121
  %v6123 = vlaneseq
  %v6124 = vshrl.u32 %v6123, 7
  %v6125 = vsub.s32 %v6122, %v6124
  %v6126 = vrot.slane %v6116, %v6125
  %v6128 = vunpack.c.l.s4 842150450
  %v6129 = vunpack.c.0.s8 %v6128
  %v6130 = vlaneseq
  %v6131 = vshrl.u32 %v6130, 7
  %v6132 = vsub.s32 %v6129, %v6131
  %v6133 = vrot.slane %v6116, %v6132
  %v6135 = vunpack.c.l.s4 1414812756
  %v6136 = vunpack.c.0.s8 %v6135
  %v6137 = vlaneseq
  %v6138 = vshrl.u32 %v6137, 7
  %v6139 = vsub.s32 %v6136, %v6138
  %v6140 = vrot.slane %v6116, %v6139
  %v6142 = vunpack.c.l.s4 1987475062
  %v6143 = vunpack.c.0.s8 %v6142
  %v6144 = vlaneseq
  %v6145 = vshrl.u32 %v6144, 7
  %v6146 = vsub.s32 %v6143, %v6145
  %v6147 = vrot.slane %v6116, %v6146
  %v6149 = vunpack.c.l.s4 269488144
  %v6150 = vunpack.c.0.s8 %v6149
  %v6151 = vlaneseq
  %v6152 = vshrl.u32 %v6151, 7
  %v6153 = vsub.s32 %v6150, %v6152
  %v6154 = vrot.slane %v6117, %v6153
  %v6156 = vunpack.c.l.s4 842150450
  %v6157 = vunpack.c.0.s8 %v6156
  %v6158 = vlaneseq
  %v6159 = vshrl.u32 %v6158, 7
  %v6160 = vsub.s32 %v6157, %v6159
  %v6161 = vrot.slane %v6117, %v6160
  %v6163 = vunpack.c.l.s4 1414812756
  %v6164 = vunpack.c.0.s8 %v6163
  %v6165 = vlaneseq
  %v6166 = vshrl.u32 %v6165, 7
  %v6167 = vsub.s32 %v6164, %v6166
  %v6168 = vrot.slane %v6117, %v6167
  %v6170 = vunpack.c.l.s4 1987475062
  %v6171 = vunpack.c.0.s8 %v6170
  %v6172 = vlaneseq
  %v6173 = vshrl.u32 %v6172, 7
  %v6174 = vsub.s32 %v6171, %v6173
  %v6175 = vrot.slane %v6117, %v6174
  %v6184 = vsub.f32 %v6058, %v6126
  %v6185 = vsub.f32 %v6059, %v6133
  %v6186 = vsub.f32 %v6060, %v6140
  %v6187 = vsub.f32 %v6061, %v6147
  %v6188 = vsub.f32 %v6062, %v6154
  %v6189 = vsub.f32 %v6063, %v6161
  %v6190 = vsub.f32 %v6064, %v6168
  %v6191 = vsub.f32 %v6065, %v6175
  %v6192 = vmul.f32 %v6184, %v6184
  %v6193 = vmul.f32 %v6185, %v6185
  %v6194 = vmul.f32 %v6186, %v6186
  %v6195 = vmul.f32 %v6187, %v6187
  %v6196 = vmul.f32 %v6188, %v6188
  %v6197 = vmul.f32 %v6189, %v6189
  %v6198 = vmul.f32 %v6190, %v6190
  %v6199 = vmul.f32 %v6191, %v6191
  %v6208 = vcombine.low %v6192, %v6193
  %v6209 = vcombine.low %v6194, %v6195
  %v6211 = vunpack.c.l.s4 1983009808
  %v6212 = vunpack.c.0.s8 %v6211
  %v6213 = vlaneseq
  %v6214 = vshrl.u32 %v6213, 7
  %v6215 = vsub.s32 %v6212, %v6214
  %v6216 = vrot.slane %v6208, %v6215
  %v6218 = vunpack.c.l.s4 1983009808
  %v6219 = vunpack.c.0.s8 %v6218
  %v6220 = vlaneseq
  %v6221 = vshrl.u32 %v6220, 7
  %v6222 = vsub.s32 %v6219, %v6221
  %v6223 = vrot.slane %v6209, %v6222
  %v6224 = vcombine.low %v6216, %v6223
  %v6225 = vcombine.low %v6196, %v6197
  %v6226 = vcombine.low %v6198, %v6199
  %v6228 = vunpack.c.l.s4 1983009808
  %v6229 = vunpack.c.0.s8 %v6228
  %v6230 = vlaneseq
  %v6231 = vshrl.u32 %v6230, 7
  %v6232 = vsub.s32 %v6229, %v6231
  %v6233 = vrot.slane %v6225, %v6232
  %v6235 = vunpack.c.l.s4 1983009808
  %v6236 = vunpack.c.0.s8 %v6235
  %v6237 = vlaneseq
  %v6238 = vshrl.u32 %v6237, 7
  %v6239 = vsub.s32 %v6236, %v6238
  %v6240 = vrot.slane %v6226, %v6239
  %v6241 = vcombine.low %v6233, %v6240
  %v6244 = vsel %vm177, %v6224, 0.0
  %6245 = vadd.xlane.f32.xlu0 %v6244
  %v6246 = vpop.xlane.xlu0 %6245
  %v6247 = vsel %vm177, %v6241, 0.0
  %6248 = vadd.xlane.f32.xlu0 %v6247
  %v6249 = vpop.xlane.xlu0 %6248
  %v6250 = vmul.f32 %v6246, %v3467
  %v6251 = vmul.f32 %v6249, %v3467
  %v6252 = vadd.f32 %v6250, 1e-05
  %v6253 = vadd.f32 %v6251, 1e-05
  %v6254 = vrsqrt.pop %v6252
  %v6255 = vrsqrt.pop %v6253
  %v6259 = vunpack.c.l.s4 269488144
  %v6260 = vunpack.c.0.s8 %v6259
  %v6261 = vlaneseq
  %v6262 = vshrl.u32 %v6261, 7
  %v6263 = vsub.s32 %v6260, %v6262
  %v6264 = vrot.slane %v6254, %v6263
  %v6266 = vunpack.c.l.s4 842150450
  %v6267 = vunpack.c.0.s8 %v6266
  %v6268 = vlaneseq
  %v6269 = vshrl.u32 %v6268, 7
  %v6270 = vsub.s32 %v6267, %v6269
  %v6271 = vrot.slane %v6254, %v6270
  %v6273 = vunpack.c.l.s4 1414812756
  %v6274 = vunpack.c.0.s8 %v6273
  %v6275 = vlaneseq
  %v6276 = vshrl.u32 %v6275, 7
  %v6277 = vsub.s32 %v6274, %v6276
  %v6278 = vrot.slane %v6254, %v6277
  %v6280 = vunpack.c.l.s4 1987475062
  %v6281 = vunpack.c.0.s8 %v6280
  %v6282 = vlaneseq
  %v6283 = vshrl.u32 %v6282, 7
  %v6284 = vsub.s32 %v6281, %v6283
  %v6285 = vrot.slane %v6254, %v6284
  %v6287 = vunpack.c.l.s4 269488144
  %v6288 = vunpack.c.0.s8 %v6287
  %v6289 = vlaneseq
  %v6290 = vshrl.u32 %v6289, 7
  %v6291 = vsub.s32 %v6288, %v6290
  %v6292 = vrot.slane %v6255, %v6291
  %v6294 = vunpack.c.l.s4 842150450
  %v6295 = vunpack.c.0.s8 %v6294
  %v6296 = vlaneseq
  %v6297 = vshrl.u32 %v6296, 7
  %v6298 = vsub.s32 %v6295, %v6297
  %v6299 = vrot.slane %v6255, %v6298
  %v6301 = vunpack.c.l.s4 1414812756
  %v6302 = vunpack.c.0.s8 %v6301
  %v6303 = vlaneseq
  %v6304 = vshrl.u32 %v6303, 7
  %v6305 = vsub.s32 %v6302, %v6304
  %v6306 = vrot.slane %v6255, %v6305
  %v6308 = vunpack.c.l.s4 1987475062
  %v6309 = vunpack.c.0.s8 %v6308
  %v6310 = vlaneseq
  %v6311 = vshrl.u32 %v6310, 7
  %v6312 = vsub.s32 %v6309, %v6311
  %v6313 = vrot.slane %v6255, %v6312
  %v6322 = vmul.f32 %v6184, %v6264
  %v6323 = vmul.f32 %v6185, %v6271
  %v6324 = vmul.f32 %v6186, %v6278
  %v6325 = vmul.f32 %v6187, %v6285
  %v6326 = vmul.f32 %v6188, %v6292
  %v6327 = vmul.f32 %v6189, %v6299
  %v6328 = vmul.f32 %v6190, %v6306
  %v6329 = vmul.f32 %v6191, %v6313
  %v6330 = vlaneseq
  %v6331 = vshrl.u32 %v6330, 7
  %v6332 = vsub.s32 4, %v6331
  %v6333 = vrot.slane %v106, %v6332
  %v6335 = vcombine.high %v6333, %v6333
  %v6337 = vunpack.c.l.s4 1983009808
  %v6338 = vunpack.c.0.s8 %v6337
  %v6339 = vlaneseq
  %v6340 = vshrl.u32 %v6339, 7
  %v6341 = vsub.s32 %v6338, %v6340
  %v6342 = vrot.slane %v6333, %v6341
  %v6344 = vunpack.c.l.s4 1983009808
  %v6345 = vunpack.c.0.s8 %v6344
  %v6346 = vlaneseq
  %v6347 = vshrl.u32 %v6346, 7
  %v6348 = vsub.s32 %v6345, %v6347
  %v6349 = vrot.slane %v6335, %v6348
  %v6350 = vcombine.high %v6342, %v6342
  %v6351 = vcombine.high %v6349, %v6349
  %v6356 = vmul.f32 %v6322, %v6342
  %v6357 = vmul.f32 %v6323, %v6350
  %v6358 = vmul.f32 %v6324, %v6349
  %v6359 = vmul.f32 %v6325, %v6351
  %v6360 = vmul.f32 %v6326, %v6342
  %v6361 = vmul.f32 %v6327, %v6350
  %v6362 = vmul.f32 %v6328, %v6349
  %v6363 = vmul.f32 %v6329, %v6351
  %v6364 = vlaneseq
  %v6365 = vshrl.u32 %v6364, 7
  %v6366 = vsub.s32 5, %v6365
  %v6367 = vrot.slane %v106, %v6366
  %v6369 = vcombine.high %v6367, %v6367
  %v6371 = vunpack.c.l.s4 1983009808
  %v6372 = vunpack.c.0.s8 %v6371
  %v6373 = vlaneseq
  %v6374 = vshrl.u32 %v6373, 7
  %v6375 = vsub.s32 %v6372, %v6374
  %v6376 = vrot.slane %v6367, %v6375
  %v6378 = vunpack.c.l.s4 1983009808
  %v6379 = vunpack.c.0.s8 %v6378
  %v6380 = vlaneseq
  %v6381 = vshrl.u32 %v6380, 7
  %v6382 = vsub.s32 %v6379, %v6381
  %v6383 = vrot.slane %v6369, %v6382
  %v6384 = vcombine.high %v6376, %v6376
  %v6385 = vcombine.high %v6383, %v6383
  %v6390 = vadd.f32 %v6356, %v6376
  %v6391 = vadd.f32 %v6357, %v6384
  %v6392 = vadd.f32 %v6358, %v6383
  %v6393 = vadd.f32 %v6359, %v6385
  %v6394 = vadd.f32 %v6360, %v6376
  %v6395 = vadd.f32 %v6361, %v6384
  %v6396 = vadd.f32 %v6362, %v6383
  %v6397 = vadd.f32 %v6363, %v6385
  %s6398 = scalar_lea.vmem %s5, 8
  %v6399 = vld [vmem:[%s6398] sm:$0xff]
  %s6400 = scalar_lea.vmem %s2, 128
  %v6401 = vld [vmem:[%s6400] sm:$0xff]
  %v6402 = vld [vmem:[%s6400 + $0x8] sm:$0xff]
  %v6403 = vld [vmem:[%s6400 + $0x10] sm:$0xff]
  %v6404 = vld [vmem:[%s6400 + $0x18] sm:$0xff]
  %v6405 = vld [vmem:[%s6400 + $0x20] sm:$0xff]
  %v6406 = vld [vmem:[%s6400 + $0x28] sm:$0xff]
  %v6407 = vld [vmem:[%s6400 + $0x30] sm:$0xff]
  %v6408 = vld [vmem:[%s6400 + $0x38] sm:$0xff]
  %v6409 = vld [vmem:[%s6400 + $0x40] sm:$0xff]
  %v6410 = vld [vmem:[%s6400 + $0x48] sm:$0xff]
  %v6411 = vld [vmem:[%s6400 + $0x50] sm:$0xff]
  %v6412 = vld [vmem:[%s6400 + $0x58] sm:$0xff]
  %v6413 = vld [vmem:[%s6400 + $0x60] sm:$0xff]
  %v6414 = vld [vmem:[%s6400 + $0x68] sm:$0xff]
  %v6415 = vld [vmem:[%s6400 + $0x70] sm:$0xff]
  %v6416 = vld [vmem:[%s6400 + $0x78] sm:$0xff]
  %s6417 = scalar_lea.vmem %s3, 2
  %v6418 = vld [vmem:[%s6417] sm:$0x3]
  %v6420 = vlaneseq
  %v6421 = vshrl.u32 %v6420, 7
  %v6422 = vsub.s32 0, %v6421
  %v6423 = vrot.slane %v6418, %v6422
  %v6424 = vlaneseq
  %v6425 = vshrl.u32 %v6424, 7
  %v6426 = vsub.s32 1, %v6425
  %v6427 = vrot.slane %v6418, %v6426
  %v6438 = vcombine.low %v6390, %v6391
  %v6439 = vcombine.low %v6392, %v6393
  %v6441 = vunpack.c.l.s4 1983009808
  %v6442 = vunpack.c.0.s8 %v6441
  %v6443 = vlaneseq
  %v6444 = vshrl.u32 %v6443, 7
  %v6445 = vsub.s32 %v6442, %v6444
  %v6446 = vrot.slane %v6438, %v6445
  %v6448 = vunpack.c.l.s4 1983009808
  %v6449 = vunpack.c.0.s8 %v6448
  %v6450 = vlaneseq
  %v6451 = vshrl.u32 %v6450, 7
  %v6452 = vsub.s32 %v6449, %v6451
  %v6453 = vrot.slane %v6439, %v6452
  %v6454 = vcombine.low %v6446, %v6453
  %v6455 = vcombine.low %v6394, %v6395
  %v6456 = vcombine.low %v6396, %v6397
  %v6458 = vunpack.c.l.s4 1983009808
  %v6459 = vunpack.c.0.s8 %v6458
  %v6460 = vlaneseq
  %v6461 = vshrl.u32 %v6460, 7
  %v6462 = vsub.s32 %v6459, %v6461
  %v6463 = vrot.slane %v6455, %v6462
  %v6465 = vunpack.c.l.s4 1983009808
  %v6466 = vunpack.c.0.s8 %v6465
  %v6467 = vlaneseq
  %v6468 = vshrl.u32 %v6467, 7
  %v6469 = vsub.s32 %v6466, %v6468
  %v6470 = vrot.slane %v6456, %v6469
  %v6471 = vcombine.low %v6463, %v6470
  %v6472 = vsel %vm177, %v6454, 0
  %v6474 = vsel %vm177, %v6471, 0
  %6476 = vmatprep.subr.mxu0 %v6402
  %6477 = vmatpush1.msra.mxu0 %v6401
  %6478 = vmatprep.subr.mxu0 %v6404
  %6479 = vmatpush1.msra.mxu0 %v6403
  %6480 = vmatprep.subr.mxu0 %v6406
  %6481 = vmatpush1.msra.mxu0 %v6405
  %6482 = vmatprep.subr.mxu0 %v6408
  %6483 = vmatpush1.msra.mxu0 %v6407
  %6484 = vmatprep.subr.mxu0 %v6410
  %6485 = vmatpush1.msra.mxu0 %v6409
  %6486 = vmatprep.subr.mxu0 %v6412
  %6487 = vmatpush1.msra.mxu0 %v6411
  %6488 = vmatprep.subr.mxu0 %v6414
  %6489 = vmatpush1.msra.mxu0 %v6413
  %6490 = vmatprep.subr.mxu0 %v6416
  %6491 = vmatpush1.msra.mxu0 %v6415
  %6492 = vmatprep.subr.mxu0 0.0
  %6493 = vmatpush1.msra.mxu0 0.0
  %6494 = vmatprep.subr.mxu0 0.0
  %6495 = vmatpush1.msra.mxu0 0.0
  %6496 = vmatprep.subr.mxu0 0.0
  %6497 = vmatpush1.msra.mxu0 0.0
  %6498 = vmatprep.subr.mxu0 0.0
  %6499 = vmatpush1.msra.mxu0 0.0
  %6500 = vmatprep.subr.mxu0 0.0
  %6501 = vmatpush1.msra.mxu0 0.0
  %6502 = vmatprep.subr.mxu0 0.0
  %6503 = vmatpush1.msra.mxu0 0.0
  %6504 = vmatprep.subr.mxu0 0.0
  %6505 = vmatpush1.msra.mxu0 0.0
  %6506 = vmatprep.subr.mxu0 0.0
  %6507 = vmatpush1.msra.mxu0 0.0
  %6508 = vmatprep.subr.mxu0 0.0
  %6509 = vmatpush1.msra.mxu0 0.0
  %6510 = vmatprep.subr.mxu0 0.0
  %6511 = vmatpush1.msra.mxu0 0.0
  %6512 = vmatprep.subr.mxu0 0.0
  %6513 = vmatpush1.msra.mxu0 0.0
  %6514 = vmatprep.subr.mxu0 0.0
  %6515 = vmatpush1.msra.mxu0 0.0
  %6516 = vmatprep.subr.mxu0 0.0
  %6517 = vmatpush1.msra.mxu0 0.0
  %6518 = vmatprep.subr.mxu0 0.0
  %6519 = vmatpush1.msra.mxu0 0.0
  %6520 = vmatprep.subr.mxu0 0.0
  %6521 = vmatpush1.msra.mxu0 0.0
  %6522 = vmatprep.subr.mxu0 0.0
  %6523 = vmatpush1.msra.mxu0 0.0
  %6524 = vmatprep.subr.mxu0 0.0
  %6525 = vmatpush1.msra.mxu0 0.0
  %6526 = vmatprep.subr.mxu0 0.0
  %6527 = vmatpush1.msra.mxu0 0.0
  %6528 = vmatprep.subr.mxu0 0.0
  %6529 = vmatpush1.msra.mxu0 0.0
  %6530 = vmatprep.subr.mxu0 0.0
  %6531 = vmatpush1.msra.mxu0 0.0
  %6532 = vmatprep.subr.mxu0 0.0
  %6533 = vmatpush1.msra.mxu0 0.0
  %6534 = vmatprep.subr.mxu0 0.0
  %6535 = vmatpush1.msra.mxu0 0.0
  %6536 = vmatprep.subr.mxu0 0.0
  %6537 = vmatpush1.msra.mxu0 0.0
  %6538 = vmatprep.subr.mxu0 0.0
  %6539 = vmatpush1.msra.mxu0 0.0
  %6540 = vmatprep.mubr.f32.mxu0 0.0
  %6541 = vmatmul.mubr.f32.gmra.mrb[0].mxu0 %v6472
  %v6542 = vpop.f32.mrb[0].mxu0
  %v6543 = vadd.f32 %v6423, %v6542
  %v6544 = vpop.f32.mrb[0].mxu0
  %v6545 = vadd.f32 %v6427, %v6544
  %6546 = vmatprep.mubr.f32.mxu0 0.0
  %6547 = vmatmul.mubr.f32.gmra.mrb[0].mxu0 %v6474
  %v6548 = vpop.f32.mrb[0].mxu0
  %v6549 = vadd.f32 %v6423, %v6548
  %v6550 = vpop.f32.mrb[0].mxu0
  %v6551 = vadd.f32 %v6427, %v6550
  %6552 = vdwg.mxu0
  %v6553 = vmul.f32 %v6543, 0.25
  %v6554 = vmul.f32 %v6549, 0.25
  %6557 = vrot.lane.b32.xlu0 %v6553, 112
  %v6558 = vpop.permute.xlu0 %6557
  %6559 = vrot.lane.b32.xlu0 %v6554, 112
  %v6560 = vpop.permute.xlu0 %6559
  %6563 = vrot.lane.b32.xlu0 %v6553, 96
  %v6564 = vpop.permute.xlu0 %6563
  %6565 = vrot.lane.b32.xlu0 %v6554, 96
  %v6566 = vpop.permute.xlu0 %6565
  %6569 = vrot.lane.b32.xlu0 %v6553, 80
  %v6570 = vpop.permute.xlu0 %6569
  %6571 = vrot.lane.b32.xlu0 %v6554, 80
  %v6572 = vpop.permute.xlu0 %6571
  %v6575 = vcombine.low %v6553, %v6564
  %v6576 = vcombine.high %v6553, %v6564
  %v6578 = vunpack.c.l.s4 1983009808
  %v6579 = vunpack.c.0.s8 %v6578
  %v6580 = vlaneseq
  %v6581 = vshrl.u32 %v6580, 7
  %v6582 = vsub.s32 %v6579, %v6581
  %v6583 = vrot.slane %v6575, %v6582
  %v6585 = vunpack.c.l.s4 1983009808
  %v6586 = vunpack.c.0.s8 %v6585
  %v6587 = vlaneseq
  %v6588 = vshrl.u32 %v6587, 7
  %v6589 = vsub.s32 %v6586, %v6588
  %v6590 = vrot.slane %v6576, %v6589
  %v6591 = vcombine.low %v6558, %v6570
  %v6592 = vcombine.high %v6558, %v6570
  %v6594 = vunpack.c.l.s4 1983009808
  %v6595 = vunpack.c.0.s8 %v6594
  %v6596 = vlaneseq
  %v6597 = vshrl.u32 %v6596, 7
  %v6598 = vsub.s32 %v6595, %v6597
  %v6599 = vrot.slane %v6591, %v6598
  %v6601 = vunpack.c.l.s4 1983009808
  %v6602 = vunpack.c.0.s8 %v6601
  %v6603 = vlaneseq
  %v6604 = vshrl.u32 %v6603, 7
  %v6605 = vsub.s32 %v6602, %v6604
  %v6606 = vrot.slane %v6592, %v6605
  %v6607 = vcombine.low %v6583, %v6599
  %v6608 = vcombine.high %v6583, %v6599
  %v6610 = vunpack.c.l.s4 1934713408
  %v6611 = vunpack.c.0.s8 %v6610
  %v6612 = vlaneseq
  %v6613 = vshrl.u32 %v6612, 7
  %v6614 = vsub.s32 %v6611, %v6613
  %v6615 = vrot.slane %v6607, %v6614
  %v6617 = vunpack.c.l.s4 1934713408
  %v6618 = vunpack.c.0.s8 %v6617
  %v6619 = vlaneseq
  %v6620 = vshrl.u32 %v6619, 7
  %v6621 = vsub.s32 %v6618, %v6620
  %v6622 = vrot.slane %v6608, %v6621
  %v6623 = vcombine.low %v6590, %v6606
  %v6624 = vcombine.high %v6590, %v6606
  %v6626 = vunpack.c.l.s4 1934713408
  %v6627 = vunpack.c.0.s8 %v6626
  %v6628 = vlaneseq
  %v6629 = vshrl.u32 %v6628, 7
  %v6630 = vsub.s32 %v6627, %v6629
  %v6631 = vrot.slane %v6623, %v6630
  %v6633 = vunpack.c.l.s4 1934713408
  %v6634 = vunpack.c.0.s8 %v6633
  %v6635 = vlaneseq
  %v6636 = vshrl.u32 %v6635, 7
  %v6637 = vsub.s32 %v6634, %v6636
  %v6638 = vrot.slane %v6624, %v6637
  %v6639 = vcombine.high %v6615, 0.0
  %v6640 = vcombine.high %v6622, 0.0
  %v6641 = vcombine.high %v6631, 0.0
  %v6642 = vcombine.high %v6638, 0.0
  %v6643 = vcombine.low %v6554, %v6566
  %v6644 = vcombine.high %v6554, %v6566
  %v6646 = vunpack.c.l.s4 1983009808
  %v6647 = vunpack.c.0.s8 %v6646
  %v6648 = vlaneseq
  %v6649 = vshrl.u32 %v6648, 7
  %v6650 = vsub.s32 %v6647, %v6649
  %v6651 = vrot.slane %v6643, %v6650
  %v6653 = vunpack.c.l.s4 1983009808
  %v6654 = vunpack.c.0.s8 %v6653
  %v6655 = vlaneseq
  %v6656 = vshrl.u32 %v6655, 7
  %v6657 = vsub.s32 %v6654, %v6656
  %v6658 = vrot.slane %v6644, %v6657
  %v6659 = vcombine.low %v6560, %v6572
  %v6660 = vcombine.high %v6560, %v6572
  %v6662 = vunpack.c.l.s4 1983009808
  %v6663 = vunpack.c.0.s8 %v6662
  %v6664 = vlaneseq
  %v6665 = vshrl.u32 %v6664, 7
  %v6666 = vsub.s32 %v6663, %v6665
  %v6667 = vrot.slane %v6659, %v6666
  %v6669 = vunpack.c.l.s4 1983009808
  %v6670 = vunpack.c.0.s8 %v6669
  %v6671 = vlaneseq
  %v6672 = vshrl.u32 %v6671, 7
  %v6673 = vsub.s32 %v6670, %v6672
  %v6674 = vrot.slane %v6660, %v6673
  %v6675 = vcombine.low %v6651, %v6667
  %v6676 = vcombine.high %v6651, %v6667
  %v6678 = vunpack.c.l.s4 1934713408
  %v6679 = vunpack.c.0.s8 %v6678
  %v6680 = vlaneseq
  %v6681 = vshrl.u32 %v6680, 7
  %v6682 = vsub.s32 %v6679, %v6681
  %v6683 = vrot.slane %v6675, %v6682
  %v6685 = vunpack.c.l.s4 1934713408
  %v6686 = vunpack.c.0.s8 %v6685
  %v6687 = vlaneseq
  %v6688 = vshrl.u32 %v6687, 7
  %v6689 = vsub.s32 %v6686, %v6688
  %v6690 = vrot.slane %v6676, %v6689
  %v6691 = vcombine.low %v6658, %v6674
  %v6692 = vcombine.high %v6658, %v6674
  %v6694 = vunpack.c.l.s4 1934713408
  %v6695 = vunpack.c.0.s8 %v6694
  %v6696 = vlaneseq
  %v6697 = vshrl.u32 %v6696, 7
  %v6698 = vsub.s32 %v6695, %v6697
  %v6699 = vrot.slane %v6691, %v6698
  %v6701 = vunpack.c.l.s4 1934713408
  %v6702 = vunpack.c.0.s8 %v6701
  %v6703 = vlaneseq
  %v6704 = vshrl.u32 %v6703, 7
  %v6705 = vsub.s32 %v6702, %v6704
  %v6706 = vrot.slane %v6692, %v6705
  %v6707 = vcombine.high %v6683, 0.0
  %v6708 = vcombine.high %v6690, 0.0
  %v6709 = vcombine.high %v6699, 0.0
  %v6710 = vcombine.high %v6706, 0.0
  %6713 = vrot.lane.b32.xlu0 %v6543, 112
  %v6714 = vpop.permute.xlu0 %6713
  %6715 = vrot.lane.b32.xlu0 %v6549, 112
  %v6716 = vpop.permute.xlu0 %6715
  %6717 = vrot.lane.b32.xlu0 %v6543, 96
  %v6718 = vpop.permute.xlu0 %6717
  %6719 = vrot.lane.b32.xlu0 %v6549, 96
  %v6720 = vpop.permute.xlu0 %6719
  %6721 = vrot.lane.b32.xlu0 %v6543, 80
  %v6722 = vpop.permute.xlu0 %6721
  %6723 = vrot.lane.b32.xlu0 %v6549, 80
  %v6724 = vpop.permute.xlu0 %6723
  %6725 = vrot.lane.b32.xlu0 %v6543, 64
  %v6726 = vpop.permute.xlu0 %6725
  %6727 = vrot.lane.b32.xlu0 %v6549, 64
  %v6728 = vpop.permute.xlu0 %6727
  %6729 = vrot.lane.b32.xlu0 %v6714, 64
  %v6730 = vpop.permute.xlu0 %6729
  %6731 = vrot.lane.b32.xlu0 %v6716, 64
  %v6732 = vpop.permute.xlu0 %6731
  %6733 = vrot.lane.b32.xlu0 %v6718, 64
  %v6734 = vpop.permute.xlu0 %6733
  %6735 = vrot.lane.b32.xlu0 %v6720, 64
  %v6736 = vpop.permute.xlu0 %6735
  %6737 = vrot.lane.b32.xlu0 %v6722, 64
  %v6738 = vpop.permute.xlu0 %6737
  %6739 = vrot.lane.b32.xlu0 %v6724, 64
  %v6740 = vpop.permute.xlu0 %6739
  %v6749 = vcombine.low %v6726, %v6734
  %v6750 = vcombine.high %v6726, %v6734
  %v6752 = vunpack.c.l.s4 1983009808
  %v6753 = vunpack.c.0.s8 %v6752
  %v6754 = vlaneseq
  %v6755 = vshrl.u32 %v6754, 7
  %v6756 = vsub.s32 %v6753, %v6755
  %v6757 = vrot.slane %v6749, %v6756
  %v6759 = vunpack.c.l.s4 1983009808
  %v6760 = vunpack.c.0.s8 %v6759
  %v6761 = vlaneseq
  %v6762 = vshrl.u32 %v6761, 7
  %v6763 = vsub.s32 %v6760, %v6762
  %v6764 = vrot.slane %v6750, %v6763
  %v6765 = vcombine.low %v6730, %v6738
  %v6766 = vcombine.high %v6730, %v6738
  %v6768 = vunpack.c.l.s4 1983009808
  %v6769 = vunpack.c.0.s8 %v6768
  %v6770 = vlaneseq
  %v6771 = vshrl.u32 %v6770, 7
  %v6772 = vsub.s32 %v6769, %v6771
  %v6773 = vrot.slane %v6765, %v6772
  %v6775 = vunpack.c.l.s4 1983009808
  %v6776 = vunpack.c.0.s8 %v6775
  %v6777 = vlaneseq
  %v6778 = vshrl.u32 %v6777, 7
  %v6779 = vsub.s32 %v6776, %v6778
  %v6780 = vrot.slane %v6766, %v6779
  %v6781 = vcombine.low %v6757, %v6773
  %v6782 = vcombine.high %v6757, %v6773
  %v6784 = vunpack.c.l.s4 1934713408
  %v6785 = vunpack.c.0.s8 %v6784
  %v6786 = vlaneseq
  %v6787 = vshrl.u32 %v6786, 7
  %v6788 = vsub.s32 %v6785, %v6787
  %v6789 = vrot.slane %v6781, %v6788
  %v6791 = vunpack.c.l.s4 1934713408
  %v6792 = vunpack.c.0.s8 %v6791
  %v6793 = vlaneseq
  %v6794 = vshrl.u32 %v6793, 7
  %v6795 = vsub.s32 %v6792, %v6794
  %v6796 = vrot.slane %v6782, %v6795
  %v6797 = vcombine.low %v6764, %v6780
  %v6798 = vcombine.high %v6764, %v6780
  %v6800 = vunpack.c.l.s4 1934713408
  %v6801 = vunpack.c.0.s8 %v6800
  %v6802 = vlaneseq
  %v6803 = vshrl.u32 %v6802, 7
  %v6804 = vsub.s32 %v6801, %v6803
  %v6805 = vrot.slane %v6797, %v6804
  %v6807 = vunpack.c.l.s4 1934713408
  %v6808 = vunpack.c.0.s8 %v6807
  %v6809 = vlaneseq
  %v6810 = vshrl.u32 %v6809, 7
  %v6811 = vsub.s32 %v6808, %v6810
  %v6812 = vrot.slane %v6798, %v6811
  %v6813 = vcombine.high %v6789, 0.0
  %v6814 = vcombine.high %v6796, 0.0
  %v6815 = vcombine.high %v6805, 0.0
  %v6816 = vcombine.high %v6812, 0.0
  %v6817 = vcombine.low %v6728, %v6736
  %v6818 = vcombine.high %v6728, %v6736
  %v6820 = vunpack.c.l.s4 1983009808
  %v6821 = vunpack.c.0.s8 %v6820
  %v6822 = vlaneseq
  %v6823 = vshrl.u32 %v6822, 7
  %v6824 = vsub.s32 %v6821, %v6823
  %v6825 = vrot.slane %v6817, %v6824
  %v6827 = vunpack.c.l.s4 1983009808
  %v6828 = vunpack.c.0.s8 %v6827
  %v6829 = vlaneseq
  %v6830 = vshrl.u32 %v6829, 7
  %v6831 = vsub.s32 %v6828, %v6830
  %v6832 = vrot.slane %v6818, %v6831
  %v6833 = vcombine.low %v6732, %v6740
  %v6834 = vcombine.high %v6732, %v6740
  %v6836 = vunpack.c.l.s4 1983009808
  %v6837 = vunpack.c.0.s8 %v6836
  %v6838 = vlaneseq
  %v6839 = vshrl.u32 %v6838, 7
  %v6840 = vsub.s32 %v6837, %v6839
  %v6841 = vrot.slane %v6833, %v6840
  %v6843 = vunpack.c.l.s4 1983009808
  %v6844 = vunpack.c.0.s8 %v6843
  %v6845 = vlaneseq
  %v6846 = vshrl.u32 %v6845, 7
  %v6847 = vsub.s32 %v6844, %v6846
  %v6848 = vrot.slane %v6834, %v6847
  %v6849 = vcombine.low %v6825, %v6841
  %v6850 = vcombine.high %v6825, %v6841
  %v6852 = vunpack.c.l.s4 1934713408
  %v6853 = vunpack.c.0.s8 %v6852
  %v6854 = vlaneseq
  %v6855 = vshrl.u32 %v6854, 7
  %v6856 = vsub.s32 %v6853, %v6855
  %v6857 = vrot.slane %v6849, %v6856
  %v6859 = vunpack.c.l.s4 1934713408
  %v6860 = vunpack.c.0.s8 %v6859
  %v6861 = vlaneseq
  %v6862 = vshrl.u32 %v6861, 7
  %v6863 = vsub.s32 %v6860, %v6862
  %v6864 = vrot.slane %v6850, %v6863
  %v6865 = vcombine.low %v6832, %v6848
  %v6866 = vcombine.high %v6832, %v6848
  %v6868 = vunpack.c.l.s4 1934713408
  %v6869 = vunpack.c.0.s8 %v6868
  %v6870 = vlaneseq
  %v6871 = vshrl.u32 %v6870, 7
  %v6872 = vsub.s32 %v6869, %v6871
  %v6873 = vrot.slane %v6865, %v6872
  %v6875 = vunpack.c.l.s4 1934713408
  %v6876 = vunpack.c.0.s8 %v6875
  %v6877 = vlaneseq
  %v6878 = vshrl.u32 %v6877, 7
  %v6879 = vsub.s32 %v6876, %v6878
  %v6880 = vrot.slane %v6866, %v6879
  %v6881 = vcombine.high %v6857, 0.0
  %v6882 = vcombine.high %v6864, 0.0
  %v6883 = vcombine.high %v6873, 0.0
  %v6884 = vcombine.high %v6880, 0.0
  %6887 = vrot.lane.b32.xlu0 %v6545, 112
  %v6888 = vpop.permute.xlu0 %6887
  %6889 = vrot.lane.b32.xlu0 %v6551, 112
  %v6890 = vpop.permute.xlu0 %6889
  %6893 = vrot.lane.b32.xlu0 %v6545, 96
  %v6894 = vpop.permute.xlu0 %6893
  %6895 = vrot.lane.b32.xlu0 %v6551, 96
  %v6896 = vpop.permute.xlu0 %6895
  %6899 = vrot.lane.b32.xlu0 %v6545, 80
  %v6900 = vpop.permute.xlu0 %6899
  %6901 = vrot.lane.b32.xlu0 %v6551, 80
  %v6902 = vpop.permute.xlu0 %6901
  %v6905 = vcombine.low %v6545, %v6894
  %v6906 = vcombine.high %v6545, %v6894
  %v6908 = vunpack.c.l.s4 1983009808
  %v6909 = vunpack.c.0.s8 %v6908
  %v6910 = vlaneseq
  %v6911 = vshrl.u32 %v6910, 7
  %v6912 = vsub.s32 %v6909, %v6911
  %v6913 = vrot.slane %v6905, %v6912
  %v6915 = vunpack.c.l.s4 1983009808
  %v6916 = vunpack.c.0.s8 %v6915
  %v6917 = vlaneseq
  %v6918 = vshrl.u32 %v6917, 7
  %v6919 = vsub.s32 %v6916, %v6918
  %v6920 = vrot.slane %v6906, %v6919
  %v6921 = vcombine.low %v6888, %v6900
  %v6922 = vcombine.high %v6888, %v6900
  %v6924 = vunpack.c.l.s4 1983009808
  %v6925 = vunpack.c.0.s8 %v6924
  %v6926 = vlaneseq
  %v6927 = vshrl.u32 %v6926, 7
  %v6928 = vsub.s32 %v6925, %v6927
  %v6929 = vrot.slane %v6921, %v6928
  %v6931 = vunpack.c.l.s4 1983009808
  %v6932 = vunpack.c.0.s8 %v6931
  %v6933 = vlaneseq
  %v6934 = vshrl.u32 %v6933, 7
  %v6935 = vsub.s32 %v6932, %v6934
  %v6936 = vrot.slane %v6922, %v6935
  %v6937 = vcombine.low %v6913, %v6929
  %v6938 = vcombine.high %v6913, %v6929
  %v6940 = vunpack.c.l.s4 1934713408
  %v6941 = vunpack.c.0.s8 %v6940
  %v6942 = vlaneseq
  %v6943 = vshrl.u32 %v6942, 7
  %v6944 = vsub.s32 %v6941, %v6943
  %v6945 = vrot.slane %v6937, %v6944
  %v6947 = vunpack.c.l.s4 1934713408
  %v6948 = vunpack.c.0.s8 %v6947
  %v6949 = vlaneseq
  %v6950 = vshrl.u32 %v6949, 7
  %v6951 = vsub.s32 %v6948, %v6950
  %v6952 = vrot.slane %v6938, %v6951
  %v6953 = vcombine.low %v6920, %v6936
  %v6954 = vcombine.high %v6920, %v6936
  %v6956 = vunpack.c.l.s4 1934713408
  %v6957 = vunpack.c.0.s8 %v6956
  %v6958 = vlaneseq
  %v6959 = vshrl.u32 %v6958, 7
  %v6960 = vsub.s32 %v6957, %v6959
  %v6961 = vrot.slane %v6953, %v6960
  %v6963 = vunpack.c.l.s4 1934713408
  %v6964 = vunpack.c.0.s8 %v6963
  %v6965 = vlaneseq
  %v6966 = vshrl.u32 %v6965, 7
  %v6967 = vsub.s32 %v6964, %v6966
  %v6968 = vrot.slane %v6954, %v6967
  %v6969 = vcombine.high %v6945, 0.0
  %v6970 = vcombine.high %v6952, 0.0
  %v6971 = vcombine.high %v6961, 0.0
  %v6972 = vcombine.high %v6968, 0.0
  %v6973 = vcombine.low %v6551, %v6896
  %v6974 = vcombine.high %v6551, %v6896
  %v6976 = vunpack.c.l.s4 1983009808
  %v6977 = vunpack.c.0.s8 %v6976
  %v6978 = vlaneseq
  %v6979 = vshrl.u32 %v6978, 7
  %v6980 = vsub.s32 %v6977, %v6979
  %v6981 = vrot.slane %v6973, %v6980
  %v6983 = vunpack.c.l.s4 1983009808
  %v6984 = vunpack.c.0.s8 %v6983
  %v6985 = vlaneseq
  %v6986 = vshrl.u32 %v6985, 7
  %v6987 = vsub.s32 %v6984, %v6986
  %v6988 = vrot.slane %v6974, %v6987
  %v6989 = vcombine.low %v6890, %v6902
  %v6990 = vcombine.high %v6890, %v6902
  %v6992 = vunpack.c.l.s4 1983009808
  %v6993 = vunpack.c.0.s8 %v6992
  %v6994 = vlaneseq
  %v6995 = vshrl.u32 %v6994, 7
  %v6996 = vsub.s32 %v6993, %v6995
  %v6997 = vrot.slane %v6989, %v6996
  %v6999 = vunpack.c.l.s4 1983009808
  %v7000 = vunpack.c.0.s8 %v6999
  %v7001 = vlaneseq
  %v7002 = vshrl.u32 %v7001, 7
  %v7003 = vsub.s32 %v7000, %v7002
  %v7004 = vrot.slane %v6990, %v7003
  %v7005 = vcombine.low %v6981, %v6997
  %v7006 = vcombine.high %v6981, %v6997
  %v7008 = vunpack.c.l.s4 1934713408
  %v7009 = vunpack.c.0.s8 %v7008
  %v7010 = vlaneseq
  %v7011 = vshrl.u32 %v7010, 7
  %v7012 = vsub.s32 %v7009, %v7011
  %v7013 = vrot.slane %v7005, %v7012
  %v7015 = vunpack.c.l.s4 1934713408
  %v7016 = vunpack.c.0.s8 %v7015
  %v7017 = vlaneseq
  %v7018 = vshrl.u32 %v7017, 7
  %v7019 = vsub.s32 %v7016, %v7018
  %v7020 = vrot.slane %v7006, %v7019
  %v7021 = vcombine.low %v6988, %v7004
  %v7022 = vcombine.high %v6988, %v7004
  %v7024 = vunpack.c.l.s4 1934713408
  %v7025 = vunpack.c.0.s8 %v7024
  %v7026 = vlaneseq
  %v7027 = vshrl.u32 %v7026, 7
  %v7028 = vsub.s32 %v7025, %v7027
  %v7029 = vrot.slane %v7021, %v7028
  %v7031 = vunpack.c.l.s4 1934713408
  %v7032 = vunpack.c.0.s8 %v7031
  %v7033 = vlaneseq
  %v7034 = vshrl.u32 %v7033, 7
  %v7035 = vsub.s32 %v7032, %v7034
  %v7036 = vrot.slane %v7022, %v7035
  %v7037 = vcombine.high %v7013, 0.0
  %v7038 = vcombine.high %v7020, 0.0
  %v7039 = vcombine.high %v7029, 0.0
  %v7040 = vcombine.high %v7036, 0.0
  %v7041 = vcombine.low %v6615, %v6631
  %v7043 = vunpack.c.l.s4 1983009808
  %v7044 = vunpack.c.0.s8 %v7043
  %v7045 = vlaneseq
  %v7046 = vshrl.u32 %v7045, 7
  %v7047 = vsub.s32 %v7044, %v7046
  %v7048 = vrot.slane %v7041, %v7047
  %v7049 = vcombine.low %v6622, %v6638
  %v7051 = vunpack.c.l.s4 1983009808
  %v7052 = vunpack.c.0.s8 %v7051
  %v7053 = vlaneseq
  %v7054 = vshrl.u32 %v7053, 7
  %v7055 = vsub.s32 %v7052, %v7054
  %v7056 = vrot.slane %v7049, %v7055
  %v7057 = vcombine.low %v6683, %v6699
  %v7059 = vunpack.c.l.s4 1983009808
  %v7060 = vunpack.c.0.s8 %v7059
  %v7061 = vlaneseq
  %v7062 = vshrl.u32 %v7061, 7
  %v7063 = vsub.s32 %v7060, %v7062
  %v7064 = vrot.slane %v7057, %v7063
  %v7065 = vcombine.low %v6690, %v6706
  %v7067 = vunpack.c.l.s4 1983009808
  %v7068 = vunpack.c.0.s8 %v7067
  %v7069 = vlaneseq
  %v7070 = vshrl.u32 %v7069, 7
  %v7071 = vsub.s32 %v7068, %v7070
  %v7072 = vrot.slane %v7065, %v7071
  %v7073 = vcombine.low %v7048, %v7056
  %v7074 = vcombine.high %v7048, %v7056
  %v7076 = vunpack.c.l.s4 1934713408
  %v7077 = vunpack.c.0.s8 %v7076
  %v7078 = vlaneseq
  %v7079 = vshrl.u32 %v7078, 7
  %v7080 = vsub.s32 %v7077, %v7079
  %v7081 = vrot.slane %v7073, %v7080
  %v7083 = vunpack.c.l.s4 1934713408
  %v7084 = vunpack.c.0.s8 %v7083
  %v7085 = vlaneseq
  %v7086 = vshrl.u32 %v7085, 7
  %v7087 = vsub.s32 %v7084, %v7086
  %v7088 = vrot.slane %v7074, %v7087
  %v7089 = vcombine.low %v7064, %v7072
  %v7090 = vcombine.high %v7064, %v7072
  %v7092 = vunpack.c.l.s4 1934713408
  %v7093 = vunpack.c.0.s8 %v7092
  %v7094 = vlaneseq
  %v7095 = vshrl.u32 %v7094, 7
  %v7096 = vsub.s32 %v7093, %v7095
  %v7097 = vrot.slane %v7089, %v7096
  %v7099 = vunpack.c.l.s4 1934713408
  %v7100 = vunpack.c.0.s8 %v7099
  %v7101 = vlaneseq
  %v7102 = vshrl.u32 %v7101, 7
  %v7103 = vsub.s32 %v7100, %v7102
  %v7104 = vrot.slane %v7090, %v7103
  %v7105 = vcombine.low %v7081, %v7097
  %v7106 = vcombine.high %v7081, %v7097
  %v7107 = vcombine.low %v7088, %v7104
  %v7108 = vcombine.high %v7088, %v7104
  %v7109 = vcombine.low %v6789, %v6805
  %v7111 = vunpack.c.l.s4 1983009808
  %v7112 = vunpack.c.0.s8 %v7111
  %v7113 = vlaneseq
  %v7114 = vshrl.u32 %v7113, 7
  %v7115 = vsub.s32 %v7112, %v7114
  %v7116 = vrot.slane %v7109, %v7115
  %v7117 = vcombine.low %v6796, %v6812
  %v7119 = vunpack.c.l.s4 1983009808
  %v7120 = vunpack.c.0.s8 %v7119
  %v7121 = vlaneseq
  %v7122 = vshrl.u32 %v7121, 7
  %v7123 = vsub.s32 %v7120, %v7122
  %v7124 = vrot.slane %v7117, %v7123
  %v7125 = vcombine.low %v6857, %v6873
  %v7127 = vunpack.c.l.s4 1983009808
  %v7128 = vunpack.c.0.s8 %v7127
  %v7129 = vlaneseq
  %v7130 = vshrl.u32 %v7129, 7
  %v7131 = vsub.s32 %v7128, %v7130
  %v7132 = vrot.slane %v7125, %v7131
  %v7133 = vcombine.low %v6864, %v6880
  %v7135 = vunpack.c.l.s4 1983009808
  %v7136 = vunpack.c.0.s8 %v7135
  %v7137 = vlaneseq
  %v7138 = vshrl.u32 %v7137, 7
  %v7139 = vsub.s32 %v7136, %v7138
  %v7140 = vrot.slane %v7133, %v7139
  %v7141 = vcombine.low %v7116, %v7124
  %v7142 = vcombine.high %v7116, %v7124
  %v7144 = vunpack.c.l.s4 1934713408
  %v7145 = vunpack.c.0.s8 %v7144
  %v7146 = vlaneseq
  %v7147 = vshrl.u32 %v7146, 7
  %v7148 = vsub.s32 %v7145, %v7147
  %v7149 = vrot.slane %v7141, %v7148
  %v7151 = vunpack.c.l.s4 1934713408
  %v7152 = vunpack.c.0.s8 %v7151
  %v7153 = vlaneseq
  %v7154 = vshrl.u32 %v7153, 7
  %v7155 = vsub.s32 %v7152, %v7154
  %v7156 = vrot.slane %v7142, %v7155
  %v7157 = vcombine.low %v7132, %v7140
  %v7158 = vcombine.high %v7132, %v7140
  %v7160 = vunpack.c.l.s4 1934713408
  %v7161 = vunpack.c.0.s8 %v7160
  %v7162 = vlaneseq
  %v7163 = vshrl.u32 %v7162, 7
  %v7164 = vsub.s32 %v7161, %v7163
  %v7165 = vrot.slane %v7157, %v7164
  %v7167 = vunpack.c.l.s4 1934713408
  %v7168 = vunpack.c.0.s8 %v7167
  %v7169 = vlaneseq
  %v7170 = vshrl.u32 %v7169, 7
  %v7171 = vsub.s32 %v7168, %v7170
  %v7172 = vrot.slane %v7158, %v7171
  %v7173 = vcombine.low %v7149, %v7165
  %v7174 = vcombine.high %v7149, %v7165
  %v7175 = vcombine.low %v7156, %v7172
  %v7176 = vcombine.high %v7156, %v7172
  %v7177 = vcombine.low %v6945, %v6961
  %v7179 = vunpack.c.l.s4 1983009808
  %v7180 = vunpack.c.0.s8 %v7179
  %v7181 = vlaneseq
  %v7182 = vshrl.u32 %v7181, 7
  %v7183 = vsub.s32 %v7180, %v7182
  %v7184 = vrot.slane %v7177, %v7183
  %v7185 = vcombine.low %v6952, %v6968
  %v7187 = vunpack.c.l.s4 1983009808
  %v7188 = vunpack.c.0.s8 %v7187
  %v7189 = vlaneseq
  %v7190 = vshrl.u32 %v7189, 7
  %v7191 = vsub.s32 %v7188, %v7190
  %v7192 = vrot.slane %v7185, %v7191
  %v7193 = vcombine.low %v7013, %v7029
  %v7195 = vunpack.c.l.s4 1983009808
  %v7196 = vunpack.c.0.s8 %v7195
  %v7197 = vlaneseq
  %v7198 = vshrl.u32 %v7197, 7
  %v7199 = vsub.s32 %v7196, %v7198
  %v7200 = vrot.slane %v7193, %v7199
  %v7201 = vcombine.low %v7020, %v7036
  %v7203 = vunpack.c.l.s4 1983009808
  %v7204 = vunpack.c.0.s8 %v7203
  %v7205 = vlaneseq
  %v7206 = vshrl.u32 %v7205, 7
  %v7207 = vsub.s32 %v7204, %v7206
  %v7208 = vrot.slane %v7201, %v7207
  %v7209 = vcombine.low %v7184, %v7192
  %v7210 = vcombine.high %v7184, %v7192
  %v7212 = vunpack.c.l.s4 1934713408
  %v7213 = vunpack.c.0.s8 %v7212
  %v7214 = vlaneseq
  %v7215 = vshrl.u32 %v7214, 7
  %v7216 = vsub.s32 %v7213, %v7215
  %v7217 = vrot.slane %v7209, %v7216
  %v7219 = vunpack.c.l.s4 1934713408
  %v7220 = vunpack.c.0.s8 %v7219
  %v7221 = vlaneseq
  %v7222 = vshrl.u32 %v7221, 7
  %v7223 = vsub.s32 %v7220, %v7222
  %v7224 = vrot.slane %v7210, %v7223
  %v7225 = vcombine.low %v7200, %v7208
  %v7226 = vcombine.high %v7200, %v7208
  %v7228 = vunpack.c.l.s4 1934713408
  %v7229 = vunpack.c.0.s8 %v7228
  %v7230 = vlaneseq
  %v7231 = vshrl.u32 %v7230, 7
  %v7232 = vsub.s32 %v7229, %v7231
  %v7233 = vrot.slane %v7225, %v7232
  %v7235 = vunpack.c.l.s4 1934713408
  %v7236 = vunpack.c.0.s8 %v7235
  %v7237 = vlaneseq
  %v7238 = vshrl.u32 %v7237, 7
  %v7239 = vsub.s32 %v7236, %v7238
  %v7240 = vrot.slane %v7226, %v7239
  %v7241 = vcombine.low %v7217, %v7233
  %v7242 = vcombine.high %v7217, %v7233
  %v7243 = vcombine.low %v7224, %v7240
  %v7244 = vcombine.high %v7224, %v7240
  %v7246 = vsel %vm951, %v7105, 0
  %v7249 = vsel %vm951, %v7173, 0
  %7251 = vmatprep.subr.mxu0 0.0
  %7252 = vmatpush1.xpose.msra.mxu0 %v7249
  %7253 = vmatprep.subr.mxu0 0.0
  %7254 = vmatpush1.xpose.msra.mxu0 0.0
  %7255 = vmatprep.subr.mxu0 0.0
  %7256 = vmatpush1.xpose.msra.mxu0 0.0
  %7257 = vmatprep.subr.mxu0 0.0
  %7258 = vmatpush1.xpose.msra.mxu0 0.0
  %7259 = vmatprep.subr.mxu0 0.0
  %7260 = vmatpush1.xpose.msra.mxu0 0.0
  %7261 = vmatprep.subr.mxu0 0.0
  %7262 = vmatpush1.xpose.msra.mxu0 0.0
  %7263 = vmatprep.subr.mxu0 0.0
  %7264 = vmatpush1.xpose.msra.mxu0 0.0
  %7265 = vmatprep.subr.mxu0 0.0
  %7266 = vmatpush1.xpose.msra.mxu0 0.0
  %7267 = vmatprep.subr.mxu0 0.0
  %7268 = vmatpush1.xpose.msra.mxu0 0.0
  %7269 = vmatprep.subr.mxu0 0.0
  %7270 = vmatpush1.xpose.msra.mxu0 0.0
  %7271 = vmatprep.subr.mxu0 0.0
  %7272 = vmatpush1.xpose.msra.mxu0 0.0
  %7273 = vmatprep.subr.mxu0 0.0
  %7274 = vmatpush1.xpose.msra.mxu0 0.0
  %7275 = vmatprep.subr.mxu0 0.0
  %7276 = vmatpush1.xpose.msra.mxu0 0.0
  %7277 = vmatprep.subr.mxu0 0.0
  %7278 = vmatpush1.xpose.msra.mxu0 0.0
  %7279 = vmatprep.subr.mxu0 0.0
  %7280 = vmatpush1.xpose.msra.mxu0 0.0
  %7281 = vmatprep.subr.mxu0 0.0
  %7282 = vmatpush1.xpose.msra.mxu0 0.0
  %7283 = vmatprep.subr.mxu0 0.0
  %7284 = vmatpush1.xpose.msra.mxu0 0.0
  %7285 = vmatprep.subr.mxu0 0.0
  %7286 = vmatpush1.xpose.msra.mxu0 0.0
  %7287 = vmatprep.subr.mxu0 0.0
  %7288 = vmatpush1.xpose.msra.mxu0 0.0
  %7289 = vmatprep.subr.mxu0 0.0
  %7290 = vmatpush1.xpose.msra.mxu0 0.0
  %7291 = vmatprep.subr.mxu0 0.0
  %7292 = vmatpush1.xpose.msra.mxu0 0.0
  %7293 = vmatprep.subr.mxu0 0.0
  %7294 = vmatpush1.xpose.msra.mxu0 0.0
  %7295 = vmatprep.subr.mxu0 0.0
  %7296 = vmatpush1.xpose.msra.mxu0 0.0
  %7297 = vmatprep.subr.mxu0 0.0
  %7298 = vmatpush1.xpose.msra.mxu0 0.0
  %7299 = vmatprep.subr.mxu0 0.0
  %7300 = vmatpush1.xpose.msra.mxu0 0.0
  %7301 = vmatprep.subr.mxu0 0.0
  %7302 = vmatpush1.xpose.msra.mxu0 0.0
  %7303 = vmatprep.subr.mxu0 0.0
  %7304 = vmatpush1.xpose.msra.mxu0 0.0
  %7305 = vmatprep.subr.mxu0 0.0
  %7306 = vmatpush1.xpose.msra.mxu0 0.0
  %7307 = vmatprep.subr.mxu0 0.0
  %7308 = vmatpush1.xpose.msra.mxu0 0.0
  %7309 = vmatprep.subr.mxu0 0.0
  %7310 = vmatpush1.xpose.msra.mxu0 0.0
  %7311 = vmatprep.subr.mxu0 0.0
  %7312 = vmatpush1.xpose.msra.mxu0 0.0
  %7313 = vmatprep.subr.mxu0 0.0
  %7314 = vmatpush1.xpose.msra.mxu0 0.0
  %7315 = vmatprep.mubr.f32.mxu0 0.0
  %7316 = vmatmul.mubr.f32.gmra.mrb[0].mxu0 %v7246
  %v7317 = vpop.f32.mrb[0].mxu0
  %v7318 = vadd.f32 0.0, %v7317
  %v7319 = vpop.f32.mrb[0].mxu0
  %7320 = vdwg.mxu0
  %v7322 = vsel %vm951, %v7106, 0
  %v7325 = vsel %vm951, %v7174, 0
  %7327 = vmatprep.subr.mxu0 0.0
  %7328 = vmatpush1.xpose.msra.mxu0 %v7325
  %7329 = vmatprep.subr.mxu0 0.0
  %7330 = vmatpush1.xpose.msra.mxu0 0.0
  %7331 = vmatprep.subr.mxu0 0.0
  %7332 = vmatpush1.xpose.msra.mxu0 0.0
  %7333 = vmatprep.subr.mxu0 0.0
  %7334 = vmatpush1.xpose.msra.mxu0 0.0
  %7335 = vmatprep.subr.mxu0 0.0
  %7336 = vmatpush1.xpose.msra.mxu0 0.0
  %7337 = vmatprep.subr.mxu0 0.0
  %7338 = vmatpush1.xpose.msra.mxu0 0.0
  %7339 = vmatprep.subr.mxu0 0.0
  %7340 = vmatpush1.xpose.msra.mxu0 0.0
  %7341 = vmatprep.subr.mxu0 0.0
  %7342 = vmatpush1.xpose.msra.mxu0 0.0
  %7343 = vmatprep.subr.mxu0 0.0
  %7344 = vmatpush1.xpose.msra.mxu0 0.0
  %7345 = vmatprep.subr.mxu0 0.0
  %7346 = vmatpush1.xpose.msra.mxu0 0.0
  %7347 = vmatprep.subr.mxu0 0.0
  %7348 = vmatpush1.xpose.msra.mxu0 0.0
  %7349 = vmatprep.subr.mxu0 0.0
  %7350 = vmatpush1.xpose.msra.mxu0 0.0
  %7351 = vmatprep.subr.mxu0 0.0
  %7352 = vmatpush1.xpose.msra.mxu0 0.0
  %7353 = vmatprep.subr.mxu0 0.0
  %7354 = vmatpush1.xpose.msra.mxu0 0.0
  %7355 = vmatprep.subr.mxu0 0.0
  %7356 = vmatpush1.xpose.msra.mxu0 0.0
  %7357 = vmatprep.subr.mxu0 0.0
  %7358 = vmatpush1.xpose.msra.mxu0 0.0
  %7359 = vmatprep.subr.mxu0 0.0
  %7360 = vmatpush1.xpose.msra.mxu0 0.0
  %7361 = vmatprep.subr.mxu0 0.0
  %7362 = vmatpush1.xpose.msra.mxu0 0.0
  %7363 = vmatprep.subr.mxu0 0.0
  %7364 = vmatpush1.xpose.msra.mxu0 0.0
  %7365 = vmatprep.subr.mxu0 0.0
  %7366 = vmatpush1.xpose.msra.mxu0 0.0
  %7367 = vmatprep.subr.mxu0 0.0
  %7368 = vmatpush1.xpose.msra.mxu0 0.0
  %7369 = vmatprep.subr.mxu0 0.0
  %7370 = vmatpush1.xpose.msra.mxu0 0.0
  %7371 = vmatprep.subr.mxu0 0.0
  %7372 = vmatpush1.xpose.msra.mxu0 0.0
  %7373 = vmatprep.subr.mxu0 0.0
  %7374 = vmatpush1.xpose.msra.mxu0 0.0
  %7375 = vmatprep.subr.mxu0 0.0
  %7376 = vmatpush1.xpose.msra.mxu0 0.0
  %7377 = vmatprep.subr.mxu0 0.0
  %7378 = vmatpush1.xpose.msra.mxu0 0.0
  %7379 = vmatprep.subr.mxu0 0.0
  %7380 = vmatpush1.xpose.msra.mxu0 0.0
  %7381 = vmatprep.subr.mxu0 0.0
  %7382 = vmatpush1.xpose.msra.mxu0 0.0
  %7383 = vmatprep.subr.mxu0 0.0
  %7384 = vmatpush1.xpose.msra.mxu0 0.0
  %7385 = vmatprep.subr.mxu0 0.0
  %7386 = vmatpush1.xpose.msra.mxu0 0.0
  %7387 = vmatprep.subr.mxu0 0.0
  %7388 = vmatpush1.xpose.msra.mxu0 0.0
  %7389 = vmatprep.subr.mxu0 0.0
  %7390 = vmatpush1.xpose.msra.mxu0 0.0
  %7391 = vmatprep.mubr.f32.mxu0 0.0
  %7392 = vmatmul.mubr.f32.gmra.mrb[0].mxu0 %v7322
  %v7393 = vpop.f32.mrb[0].mxu0
  %v7394 = vadd.f32 0.0, %v7393
  %v7395 = vpop.f32.mrb[0].mxu0
  %7396 = vdwg.mxu0
  %v7398 = vsel %vm951, %v7107, 0
  %v7401 = vsel %vm951, %v7175, 0
  %7403 = vmatprep.subr.mxu0 0.0
  %7404 = vmatpush1.xpose.msra.mxu0 %v7401
  %7405 = vmatprep.subr.mxu0 0.0
  %7406 = vmatpush1.xpose.msra.mxu0 0.0
  %7407 = vmatprep.subr.mxu0 0.0
  %7408 = vmatpush1.xpose.msra.mxu0 0.0
  %7409 = vmatprep.subr.mxu0 0.0
  %7410 = vmatpush1.xpose.msra.mxu0 0.0
  %7411 = vmatprep.subr.mxu0 0.0
  %7412 = vmatpush1.xpose.msra.mxu0 0.0
  %7413 = vmatprep.subr.mxu0 0.0
  %7414 = vmatpush1.xpose.msra.mxu0 0.0
  %7415 = vmatprep.subr.mxu0 0.0
  %7416 = vmatpush1.xpose.msra.mxu0 0.0
  %7417 = vmatprep.subr.mxu0 0.0
  %7418 = vmatpush1.xpose.msra.mxu0 0.0
  %7419 = vmatprep.subr.mxu0 0.0
  %7420 = vmatpush1.xpose.msra.mxu0 0.0
  %7421 = vmatprep.subr.mxu0 0.0
  %7422 = vmatpush1.xpose.msra.mxu0 0.0
  %7423 = vmatprep.subr.mxu0 0.0
  %7424 = vmatpush1.xpose.msra.mxu0 0.0
  %7425 = vmatprep.subr.mxu0 0.0
  %7426 = vmatpush1.xpose.msra.mxu0 0.0
  %7427 = vmatprep.subr.mxu0 0.0
  %7428 = vmatpush1.xpose.msra.mxu0 0.0
  %7429 = vmatprep.subr.mxu0 0.0
  %7430 = vmatpush1.xpose.msra.mxu0 0.0
  %7431 = vmatprep.subr.mxu0 0.0
  %7432 = vmatpush1.xpose.msra.mxu0 0.0
  %7433 = vmatprep.subr.mxu0 0.0
  %7434 = vmatpush1.xpose.msra.mxu0 0.0
  %7435 = vmatprep.subr.mxu0 0.0
  %7436 = vmatpush1.xpose.msra.mxu0 0.0
  %7437 = vmatprep.subr.mxu0 0.0
  %7438 = vmatpush1.xpose.msra.mxu0 0.0
  %7439 = vmatprep.subr.mxu0 0.0
  %7440 = vmatpush1.xpose.msra.mxu0 0.0
  %7441 = vmatprep.subr.mxu0 0.0
  %7442 = vmatpush1.xpose.msra.mxu0 0.0
  %7443 = vmatprep.subr.mxu0 0.0
  %7444 = vmatpush1.xpose.msra.mxu0 0.0
  %7445 = vmatprep.subr.mxu0 0.0
  %7446 = vmatpush1.xpose.msra.mxu0 0.0
  %7447 = vmatprep.subr.mxu0 0.0
  %7448 = vmatpush1.xpose.msra.mxu0 0.0
  %7449 = vmatprep.subr.mxu0 0.0
  %7450 = vmatpush1.xpose.msra.mxu0 0.0
  %7451 = vmatprep.subr.mxu0 0.0
  %7452 = vmatpush1.xpose.msra.mxu0 0.0
  %7453 = vmatprep.subr.mxu0 0.0
  %7454 = vmatpush1.xpose.msra.mxu0 0.0
  %7455 = vmatprep.subr.mxu0 0.0
  %7456 = vmatpush1.xpose.msra.mxu0 0.0
  %7457 = vmatprep.subr.mxu0 0.0
  %7458 = vmatpush1.xpose.msra.mxu0 0.0
  %7459 = vmatprep.subr.mxu0 0.0
  %7460 = vmatpush1.xpose.msra.mxu0 0.0
  %7461 = vmatprep.subr.mxu0 0.0
  %7462 = vmatpush1.xpose.msra.mxu0 0.0
  %7463 = vmatprep.subr.mxu0 0.0
  %7464 = vmatpush1.xpose.msra.mxu0 0.0
  %7465 = vmatprep.subr.mxu0 0.0
  %7466 = vmatpush1.xpose.msra.mxu0 0.0
  %7467 = vmatprep.mubr.f32.mxu0 0.0
  %7468 = vmatmul.mubr.f32.gmra.mrb[0].mxu0 %v7398
  %v7469 = vpop.f32.mrb[0].mxu0
  %v7470 = vadd.f32 0.0, %v7469
  %v7471 = vpop.f32.mrb[0].mxu0
  %7472 = vdwg.mxu0
  %v7474 = vsel %vm951, %v7108, 0
  %v7477 = vsel %vm951, %v7176, 0
  %7479 = vmatprep.subr.mxu0 0.0
  %7480 = vmatpush1.xpose.msra.mxu0 %v7477
  %7481 = vmatprep.subr.mxu0 0.0
  %7482 = vmatpush1.xpose.msra.mxu0 0.0
  %7483 = vmatprep.subr.mxu0 0.0
  %7484 = vmatpush1.xpose.msra.mxu0 0.0
  %7485 = vmatprep.subr.mxu0 0.0
  %7486 = vmatpush1.xpose.msra.mxu0 0.0
  %7487 = vmatprep.subr.mxu0 0.0
  %7488 = vmatpush1.xpose.msra.mxu0 0.0
  %7489 = vmatprep.subr.mxu0 0.0
  %7490 = vmatpush1.xpose.msra.mxu0 0.0
  %7491 = vmatprep.subr.mxu0 0.0
  %7492 = vmatpush1.xpose.msra.mxu0 0.0
  %7493 = vmatprep.subr.mxu0 0.0
  %7494 = vmatpush1.xpose.msra.mxu0 0.0
  %7495 = vmatprep.subr.mxu0 0.0
  %7496 = vmatpush1.xpose.msra.mxu0 0.0
  %7497 = vmatprep.subr.mxu0 0.0
  %7498 = vmatpush1.xpose.msra.mxu0 0.0
  %7499 = vmatprep.subr.mxu0 0.0
  %7500 = vmatpush1.xpose.msra.mxu0 0.0
  %7501 = vmatprep.subr.mxu0 0.0
  %7502 = vmatpush1.xpose.msra.mxu0 0.0
  %7503 = vmatprep.subr.mxu0 0.0
  %7504 = vmatpush1.xpose.msra.mxu0 0.0
  %7505 = vmatprep.subr.mxu0 0.0
  %7506 = vmatpush1.xpose.msra.mxu0 0.0
  %7507 = vmatprep.subr.mxu0 0.0
  %7508 = vmatpush1.xpose.msra.mxu0 0.0
  %7509 = vmatprep.subr.mxu0 0.0
  %7510 = vmatpush1.xpose.msra.mxu0 0.0
  %7511 = vmatprep.subr.mxu0 0.0
  %7512 = vmatpush1.xpose.msra.mxu0 0.0
  %7513 = vmatprep.subr.mxu0 0.0
  %7514 = vmatpush1.xpose.msra.mxu0 0.0
  %7515 = vmatprep.subr.mxu0 0.0
  %7516 = vmatpush1.xpose.msra.mxu0 0.0
  %7517 = vmatprep.subr.mxu0 0.0
  %7518 = vmatpush1.xpose.msra.mxu0 0.0
  %7519 = vmatprep.subr.mxu0 0.0
  %7520 = vmatpush1.xpose.msra.mxu0 0.0
  %7521 = vmatprep.subr.mxu0 0.0
  %7522 = vmatpush1.xpose.msra.mxu0 0.0
  %7523 = vmatprep.subr.mxu0 0.0
  %7524 = vmatpush1.xpose.msra.mxu0 0.0
  %7525 = vmatprep.subr.mxu0 0.0
  %7526 = vmatpush1.xpose.msra.mxu0 0.0
  %7527 = vmatprep.subr.mxu0 0.0
  %7528 = vmatpush1.xpose.msra.mxu0 0.0
  %7529 = vmatprep.subr.mxu0 0.0
  %7530 = vmatpush1.xpose.msra.mxu0 0.0
  %7531 = vmatprep.subr.mxu0 0.0
  %7532 = vmatpush1.xpose.msra.mxu0 0.0
  %7533 = vmatprep.subr.mxu0 0.0
  %7534 = vmatpush1.xpose.msra.mxu0 0.0
  %7535 = vmatprep.subr.mxu0 0.0
  %7536 = vmatpush1.xpose.msra.mxu0 0.0
  %7537 = vmatprep.subr.mxu0 0.0
  %7538 = vmatpush1.xpose.msra.mxu0 0.0
  %7539 = vmatprep.subr.mxu0 0.0
  %7540 = vmatpush1.xpose.msra.mxu0 0.0
  %7541 = vmatprep.subr.mxu0 0.0
  %7542 = vmatpush1.xpose.msra.mxu0 0.0
  %7543 = vmatprep.mubr.f32.mxu0 0.0
  %7544 = vmatmul.mubr.f32.gmra.mrb[0].mxu0 %v7474
  %v7545 = vpop.f32.mrb[0].mxu0
  %v7546 = vadd.f32 0.0, %v7545
  %v7547 = vpop.f32.mrb[0].mxu0
  %7548 = vdwg.mxu0
  %v7549 = vsel %vm1256, %v7318, -inf
  %7550 = vmax.xlane.f32.xlu0 %v7549
  %v7551 = vpop.xlane.xlu0 %7550
  %v7552 = vsel %vm1256, %v7394, -inf
  %7553 = vmax.xlane.f32.xlu0 %v7552
  %v7554 = vpop.xlane.xlu0 %7553
  %v7555 = vsel %vm1256, %v7470, -inf
  %7556 = vmax.xlane.f32.xlu0 %v7555
  %v7557 = vpop.xlane.xlu0 %7556
  %v7558 = vsel %vm1256, %v7546, -inf
  %7559 = vmax.xlane.f32.xlu0 %v7558
  %v7560 = vpop.xlane.xlu0 %7559
  %v7561 = vsub.f32 %v7318, %v7551
  %v7562 = vsub.f32 %v7394, %v7554
  %v7563 = vsub.f32 %v7470, %v7557
  %v7564 = vsub.f32 %v7546, %v7560
  %v7565 = vmul.f32 %v7561, 1.442695
  %v7566 = vpow.pop %v7565
  %v7567 = vmul.f32 %v7562, 1.442695
  %v7568 = vpow.pop %v7567
  %v7569 = vmul.f32 %v7563, 1.442695
  %v7570 = vpow.pop %v7569
  %v7571 = vmul.f32 %v7564, 1.442695
  %v7572 = vpow.pop %v7571
  %v7573 = vsel %vm1256, %v7566, 0.0
  %7574 = vadd.xlane.f32.xlu0 %v7573
  %v7575 = vpop.xlane.xlu0 %7574
  %v7576 = vsel %vm1256, %v7568, 0.0
  %7577 = vadd.xlane.f32.xlu0 %v7576
  %v7578 = vpop.xlane.xlu0 %7577
  %v7579 = vsel %vm1256, %v7570, 0.0
  %7580 = vadd.xlane.f32.xlu0 %v7579
  %v7581 = vpop.xlane.xlu0 %7580
  %v7582 = vsel %vm1256, %v7572, 0.0
  %7583 = vadd.xlane.f32.xlu0 %v7582
  %v7584 = vpop.xlane.xlu0 %7583
  %v7585 = vrcp.pop %v7575
  %v7586 = vrcp.pop %v7578
  %v7587 = vrcp.pop %v7581
  %v7588 = vrcp.pop %v7584
  %v7589 = vmul.f32 %v7566, %v7585
  %v7590 = vmul.f32 %v7568, %v7586
  %v7591 = vmul.f32 %v7570, %v7587
  %v7592 = vmul.f32 %v7572, %v7588
  %v7594 = vsel %vm1256, %v7589, 0
  %7596 = vmatprep.subr.mxu0 0.0
  %7597 = vmatpush1.msra.mxu0 %v7241
  %7598 = vmatprep.subr.mxu0 0.0
  %7599 = vmatpush1.msra.mxu0 0.0
  %7600 = vmatprep.subr.mxu0 0.0
  %7601 = vmatpush1.msra.mxu0 0.0
  %7602 = vmatprep.subr.mxu0 0.0
  %7603 = vmatpush1.msra.mxu0 0.0
  %7604 = vmatprep.subr.mxu0 0.0
  %7605 = vmatpush1.msra.mxu0 0.0
  %7606 = vmatprep.subr.mxu0 0.0
  %7607 = vmatpush1.msra.mxu0 0.0
  %7608 = vmatprep.subr.mxu0 0.0
  %7609 = vmatpush1.msra.mxu0 0.0
  %7610 = vmatprep.subr.mxu0 0.0
  %7611 = vmatpush1.msra.mxu0 0.0
  %7612 = vmatprep.subr.mxu0 0.0
  %7613 = vmatpush1.msra.mxu0 0.0
  %7614 = vmatprep.subr.mxu0 0.0
  %7615 = vmatpush1.msra.mxu0 0.0
  %7616 = vmatprep.subr.mxu0 0.0
  %7617 = vmatpush1.msra.mxu0 0.0
  %7618 = vmatprep.subr.mxu0 0.0
  %7619 = vmatpush1.msra.mxu0 0.0
  %7620 = vmatprep.subr.mxu0 0.0
  %7621 = vmatpush1.msra.mxu0 0.0
  %7622 = vmatprep.subr.mxu0 0.0
  %7623 = vmatpush1.msra.mxu0 0.0
  %7624 = vmatprep.subr.mxu0 0.0
  %7625 = vmatpush1.msra.mxu0 0.0
  %7626 = vmatprep.subr.mxu0 0.0
  %7627 = vmatpush1.msra.mxu0 0.0
  %7628 = vmatprep.subr.mxu0 0.0
  %7629 = vmatpush1.msra.mxu0 0.0
  %7630 = vmatprep.subr.mxu0 0.0
  %7631 = vmatpush1.msra.mxu0 0.0
  %7632 = vmatprep.subr.mxu0 0.0
  %7633 = vmatpush1.msra.mxu0 0.0
  %7634 = vmatprep.subr.mxu0 0.0
  %7635 = vmatpush1.msra.mxu0 0.0
  %7636 = vmatprep.subr.mxu0 0.0
  %7637 = vmatpush1.msra.mxu0 0.0
  %7638 = vmatprep.subr.mxu0 0.0
  %7639 = vmatpush1.msra.mxu0 0.0
  %7640 = vmatprep.subr.mxu0 0.0
  %7641 = vmatpush1.msra.mxu0 0.0
  %7642 = vmatprep.subr.mxu0 0.0
  %7643 = vmatpush1.msra.mxu0 0.0
  %7644 = vmatprep.subr.mxu0 0.0
  %7645 = vmatpush1.msra.mxu0 0.0
  %7646 = vmatprep.subr.mxu0 0.0
  %7647 = vmatpush1.msra.mxu0 0.0
  %7648 = vmatprep.subr.mxu0 0.0
  %7649 = vmatpush1.msra.mxu0 0.0
  %7650 = vmatprep.subr.mxu0 0.0
  %7651 = vmatpush1.msra.mxu0 0.0
  %7652 = vmatprep.subr.mxu0 0.0
  %7653 = vmatpush1.msra.mxu0 0.0
  %7654 = vmatprep.subr.mxu0 0.0
  %7655 = vmatpush1.msra.mxu0 0.0
  %7656 = vmatprep.subr.mxu0 0.0
  %7657 = vmatpush1.msra.mxu0 0.0
  %7658 = vmatprep.subr.mxu0 0.0
  %7659 = vmatpush1.msra.mxu0 0.0
  %7660 = vmatprep.mubr.f32.mxu0 0.0
  %7661 = vmatmul.mubr.f32.gmra.mrb[0].mxu0 %v7594
  %v7662 = vpop.f32.mrb[0].mxu0
  %v7663 = vadd.f32 0.0, %v7662
  %v7664 = vpop.f32.mrb[0].mxu0
  %7665 = vdwg.mxu0
  %v7667 = vsel %vm1256, %v7590, 0
  %7669 = vmatprep.subr.mxu0 0.0
  %7670 = vmatpush1.msra.mxu0 %v7242
  %7671 = vmatprep.subr.mxu0 0.0
  %7672 = vmatpush1.msra.mxu0 0.0
  %7673 = vmatprep.subr.mxu0 0.0
  %7674 = vmatpush1.msra.mxu0 0.0
  %7675 = vmatprep.subr.mxu0 0.0
  %7676 = vmatpush1.msra.mxu0 0.0
  %7677 = vmatprep.subr.mxu0 0.0
  %7678 = vmatpush1.msra.mxu0 0.0
  %7679 = vmatprep.subr.mxu0 0.0
  %7680 = vmatpush1.msra.mxu0 0.0
  %7681 = vmatprep.subr.mxu0 0.0
  %7682 = vmatpush1.msra.mxu0 0.0
  %7683 = vmatprep.subr.mxu0 0.0
  %7684 = vmatpush1.msra.mxu0 0.0
  %7685 = vmatprep.subr.mxu0 0.0
  %7686 = vmatpush1.msra.mxu0 0.0
  %7687 = vmatprep.subr.mxu0 0.0
  %7688 = vmatpush1.msra.mxu0 0.0
  %7689 = vmatprep.subr.mxu0 0.0
  %7690 = vmatpush1.msra.mxu0 0.0
  %7691 = vmatprep.subr.mxu0 0.0
  %7692 = vmatpush1.msra.mxu0 0.0
  %7693 = vmatprep.subr.mxu0 0.0
  %7694 = vmatpush1.msra.mxu0 0.0
  %7695 = vmatprep.subr.mxu0 0.0
  %7696 = vmatpush1.msra.mxu0 0.0
  %7697 = vmatprep.subr.mxu0 0.0
  %7698 = vmatpush1.msra.mxu0 0.0
  %7699 = vmatprep.subr.mxu0 0.0
  %7700 = vmatpush1.msra.mxu0 0.0
  %7701 = vmatprep.subr.mxu0 0.0
  %7702 = vmatpush1.msra.mxu0 0.0
  %7703 = vmatprep.subr.mxu0 0.0
  %7704 = vmatpush1.msra.mxu0 0.0
  %7705 = vmatprep.subr.mxu0 0.0
  %7706 = vmatpush1.msra.mxu0 0.0
  %7707 = vmatprep.subr.mxu0 0.0
  %7708 = vmatpush1.msra.mxu0 0.0
  %7709 = vmatprep.subr.mxu0 0.0
  %7710 = vmatpush1.msra.mxu0 0.0
  %7711 = vmatprep.subr.mxu0 0.0
  %7712 = vmatpush1.msra.mxu0 0.0
  %7713 = vmatprep.subr.mxu0 0.0
  %7714 = vmatpush1.msra.mxu0 0.0
  %7715 = vmatprep.subr.mxu0 0.0
  %7716 = vmatpush1.msra.mxu0 0.0
  %7717 = vmatprep.subr.mxu0 0.0
  %7718 = vmatpush1.msra.mxu0 0.0
  %7719 = vmatprep.subr.mxu0 0.0
  %7720 = vmatpush1.msra.mxu0 0.0
  %7721 = vmatprep.subr.mxu0 0.0
  %7722 = vmatpush1.msra.mxu0 0.0
  %7723 = vmatprep.subr.mxu0 0.0
  %7724 = vmatpush1.msra.mxu0 0.0
  %7725 = vmatprep.subr.mxu0 0.0
  %7726 = vmatpush1.msra.mxu0 0.0
  %7727 = vmatprep.subr.mxu0 0.0
  %7728 = vmatpush1.msra.mxu0 0.0
  %7729 = vmatprep.subr.mxu0 0.0
  %7730 = vmatpush1.msra.mxu0 0.0
  %7731 = vmatprep.subr.mxu0 0.0
  %7732 = vmatpush1.msra.mxu0 0.0
  %7733 = vmatprep.mubr.f32.mxu0 0.0
  %7734 = vmatmul.mubr.f32.gmra.mrb[0].mxu0 %v7667
  %v7735 = vpop.f32.mrb[0].mxu0
  %v7736 = vadd.f32 0.0, %v7735
  %v7737 = vpop.f32.mrb[0].mxu0
  %7738 = vdwg.mxu0
  %v7740 = vsel %vm1256, %v7591, 0
  %7742 = vmatprep.subr.mxu0 0.0
  %7743 = vmatpush1.msra.mxu0 %v7243
  %7744 = vmatprep.subr.mxu0 0.0
  %7745 = vmatpush1.msra.mxu0 0.0
  %7746 = vmatprep.subr.mxu0 0.0
  %7747 = vmatpush1.msra.mxu0 0.0
  %7748 = vmatprep.subr.mxu0 0.0
  %7749 = vmatpush1.msra.mxu0 0.0
  %7750 = vmatprep.subr.mxu0 0.0
  %7751 = vmatpush1.msra.mxu0 0.0
  %7752 = vmatprep.subr.mxu0 0.0
  %7753 = vmatpush1.msra.mxu0 0.0
  %7754 = vmatprep.subr.mxu0 0.0
  %7755 = vmatpush1.msra.mxu0 0.0
  %7756 = vmatprep.subr.mxu0 0.0
  %7757 = vmatpush1.msra.mxu0 0.0
  %7758 = vmatprep.subr.mxu0 0.0
  %7759 = vmatpush1.msra.mxu0 0.0
  %7760 = vmatprep.subr.mxu0 0.0
  %7761 = vmatpush1.msra.mxu0 0.0
  %7762 = vmatprep.subr.mxu0 0.0
  %7763 = vmatpush1.msra.mxu0 0.0
  %7764 = vmatprep.subr.mxu0 0.0
  %7765 = vmatpush1.msra.mxu0 0.0
  %7766 = vmatprep.subr.mxu0 0.0
  %7767 = vmatpush1.msra.mxu0 0.0
  %7768 = vmatprep.subr.mxu0 0.0
  %7769 = vmatpush1.msra.mxu0 0.0
  %7770 = vmatprep.subr.mxu0 0.0
  %7771 = vmatpush1.msra.mxu0 0.0
  %7772 = vmatprep.subr.mxu0 0.0
  %7773 = vmatpush1.msra.mxu0 0.0
  %7774 = vmatprep.subr.mxu0 0.0
  %7775 = vmatpush1.msra.mxu0 0.0
  %7776 = vmatprep.subr.mxu0 0.0
  %7777 = vmatpush1.msra.mxu0 0.0
  %7778 = vmatprep.subr.mxu0 0.0
  %7779 = vmatpush1.msra.mxu0 0.0
  %7780 = vmatprep.subr.mxu0 0.0
  %7781 = vmatpush1.msra.mxu0 0.0
  %7782 = vmatprep.subr.mxu0 0.0
  %7783 = vmatpush1.msra.mxu0 0.0
  %7784 = vmatprep.subr.mxu0 0.0
  %7785 = vmatpush1.msra.mxu0 0.0
  %7786 = vmatprep.subr.mxu0 0.0
  %7787 = vmatpush1.msra.mxu0 0.0
  %7788 = vmatprep.subr.mxu0 0.0
  %7789 = vmatpush1.msra.mxu0 0.0
  %7790 = vmatprep.subr.mxu0 0.0
  %7791 = vmatpush1.msra.mxu0 0.0
  %7792 = vmatprep.subr.mxu0 0.0
  %7793 = vmatpush1.msra.mxu0 0.0
  %7794 = vmatprep.subr.mxu0 0.0
  %7795 = vmatpush1.msra.mxu0 0.0
  %7796 = vmatprep.subr.mxu0 0.0
  %7797 = vmatpush1.msra.mxu0 0.0
  %7798 = vmatprep.subr.mxu0 0.0
  %7799 = vmatpush1.msra.mxu0 0.0
  %7800 = vmatprep.subr.mxu0 0.0
  %7801 = vmatpush1.msra.mxu0 0.0
  %7802 = vmatprep.subr.mxu0 0.0
  %7803 = vmatpush1.msra.mxu0 0.0
  %7804 = vmatprep.subr.mxu0 0.0
  %7805 = vmatpush1.msra.mxu0 0.0
  %7806 = vmatprep.mubr.f32.mxu0 0.0
  %7807 = vmatmul.mubr.f32.gmra.mrb[0].mxu0 %v7740
  %v7808 = vpop.f32.mrb[0].mxu0
  %v7809 = vadd.f32 0.0, %v7808
  %v7810 = vpop.f32.mrb[0].mxu0
  %7811 = vdwg.mxu0
  %v7813 = vsel %vm1256, %v7592, 0
  %7815 = vmatprep.subr.mxu0 0.0
  %7816 = vmatpush1.msra.mxu0 %v7244
  %7817 = vmatprep.subr.mxu0 0.0
  %7818 = vmatpush1.msra.mxu0 0.0
  %7819 = vmatprep.subr.mxu0 0.0
  %7820 = vmatpush1.msra.mxu0 0.0
  %7821 = vmatprep.subr.mxu0 0.0
  %7822 = vmatpush1.msra.mxu0 0.0
  %7823 = vmatprep.subr.mxu0 0.0
  %7824 = vmatpush1.msra.mxu0 0.0
  %7825 = vmatprep.subr.mxu0 0.0
  %7826 = vmatpush1.msra.mxu0 0.0
  %7827 = vmatprep.subr.mxu0 0.0
  %7828 = vmatpush1.msra.mxu0 0.0
  %7829 = vmatprep.subr.mxu0 0.0
  %7830 = vmatpush1.msra.mxu0 0.0
  %7831 = vmatprep.subr.mxu0 0.0
  %7832 = vmatpush1.msra.mxu0 0.0
  %7833 = vmatprep.subr.mxu0 0.0
  %7834 = vmatpush1.msra.mxu0 0.0
  %7835 = vmatprep.subr.mxu0 0.0
  %7836 = vmatpush1.msra.mxu0 0.0
  %7837 = vmatprep.subr.mxu0 0.0
  %7838 = vmatpush1.msra.mxu0 0.0
  %7839 = vmatprep.subr.mxu0 0.0
  %7840 = vmatpush1.msra.mxu0 0.0
  %7841 = vmatprep.subr.mxu0 0.0
  %7842 = vmatpush1.msra.mxu0 0.0
  %7843 = vmatprep.subr.mxu0 0.0
  %7844 = vmatpush1.msra.mxu0 0.0
  %7845 = vmatprep.subr.mxu0 0.0
  %7846 = vmatpush1.msra.mxu0 0.0
  %7847 = vmatprep.subr.mxu0 0.0
  %7848 = vmatpush1.msra.mxu0 0.0
  %7849 = vmatprep.subr.mxu0 0.0
  %7850 = vmatpush1.msra.mxu0 0.0
  %7851 = vmatprep.subr.mxu0 0.0
  %7852 = vmatpush1.msra.mxu0 0.0
  %7853 = vmatprep.subr.mxu0 0.0
  %7854 = vmatpush1.msra.mxu0 0.0
  %7855 = vmatprep.subr.mxu0 0.0
  %7856 = vmatpush1.msra.mxu0 0.0
  %7857 = vmatprep.subr.mxu0 0.0
  %7858 = vmatpush1.msra.mxu0 0.0
  %7859 = vmatprep.subr.mxu0 0.0
  %7860 = vmatpush1.msra.mxu0 0.0
  %7861 = vmatprep.subr.mxu0 0.0
  %7862 = vmatpush1.msra.mxu0 0.0
  %7863 = vmatprep.subr.mxu0 0.0
  %7864 = vmatpush1.msra.mxu0 0.0
  %7865 = vmatprep.subr.mxu0 0.0
  %7866 = vmatpush1.msra.mxu0 0.0
  %7867 = vmatprep.subr.mxu0 0.0
  %7868 = vmatpush1.msra.mxu0 0.0
  %7869 = vmatprep.subr.mxu0 0.0
  %7870 = vmatpush1.msra.mxu0 0.0
  %7871 = vmatprep.subr.mxu0 0.0
  %7872 = vmatpush1.msra.mxu0 0.0
  %7873 = vmatprep.subr.mxu0 0.0
  %7874 = vmatpush1.msra.mxu0 0.0
  %7875 = vmatprep.subr.mxu0 0.0
  %7876 = vmatpush1.msra.mxu0 0.0
  %7877 = vmatprep.subr.mxu0 0.0
  %7878 = vmatpush1.msra.mxu0 0.0
  %7879 = vmatprep.mubr.f32.mxu0 0.0
  %7880 = vmatmul.mubr.f32.gmra.mrb[0].mxu0 %v7813
  %v7881 = vpop.f32.mrb[0].mxu0
  %v7882 = vadd.f32 0.0, %v7881
  %v7883 = vpop.f32.mrb[0].mxu0
  %7884 = vdwg.mxu0
  %v7885 = vcombine.low %v7663, %v7809
  %v7886 = vcombine.high %v7663, %v7809
  %v7888 = vunpack.c.l.s4 1983009808
  %v7889 = vunpack.c.0.s8 %v7888
  %v7890 = vlaneseq
  %v7891 = vshrl.u32 %v7890, 7
  %v7892 = vsub.s32 %v7889, %v7891
  %v7893 = vrot.slane %v7885, %v7892
  %v7895 = vunpack.c.l.s4 1983009808
  %v7896 = vunpack.c.0.s8 %v7895
  %v7897 = vlaneseq
  %v7898 = vshrl.u32 %v7897, 7
  %v7899 = vsub.s32 %v7896, %v7898
  %v7900 = vrot.slane %v7886, %v7899
  %v7901 = vcombine.low %v7736, %v7882
  %v7902 = vcombine.high %v7736, %v7882
  %v7904 = vunpack.c.l.s4 1983009808
  %v7905 = vunpack.c.0.s8 %v7904
  %v7906 = vlaneseq
  %v7907 = vshrl.u32 %v7906, 7
  %v7908 = vsub.s32 %v7905, %v7907
  %v7909 = vrot.slane %v7901, %v7908
  %v7911 = vunpack.c.l.s4 1983009808
  %v7912 = vunpack.c.0.s8 %v7911
  %v7913 = vlaneseq
  %v7914 = vshrl.u32 %v7913, 7
  %v7915 = vsub.s32 %v7912, %v7914
  %v7916 = vrot.slane %v7902, %v7915
  %v7917 = vcombine.low %v7893, %v7909
  %v7918 = vcombine.high %v7893, %v7909
  %v7920 = vunpack.c.l.s4 1934713408
  %v7921 = vunpack.c.0.s8 %v7920
  %v7922 = vlaneseq
  %v7923 = vshrl.u32 %v7922, 7
  %v7924 = vsub.s32 %v7921, %v7923
  %v7925 = vrot.slane %v7917, %v7924
  %v7927 = vunpack.c.l.s4 1934713408
  %v7928 = vunpack.c.0.s8 %v7927
  %v7929 = vlaneseq
  %v7930 = vshrl.u32 %v7929, 7
  %v7931 = vsub.s32 %v7928, %v7930
  %v7932 = vrot.slane %v7918, %v7931
  %v7933 = vcombine.low %v7900, %v7916
  %v7934 = vcombine.high %v7900, %v7916
  %v7936 = vunpack.c.l.s4 1934713408
  %v7937 = vunpack.c.0.s8 %v7936
  %v7938 = vlaneseq
  %v7939 = vshrl.u32 %v7938, 7
  %v7940 = vsub.s32 %v7937, %v7939
  %v7941 = vrot.slane %v7933, %v7940
  %v7943 = vunpack.c.l.s4 1934713408
  %v7944 = vunpack.c.0.s8 %v7943
  %v7945 = vlaneseq
  %v7946 = vshrl.u32 %v7945, 7
  %v7947 = vsub.s32 %v7944, %v7946
  %v7948 = vrot.slane %v7934, %v7947
  %v7949 = vcombine.low %v6639, %v6641
  %v7951 = vunpack.c.l.s4 1983009808
  %v7952 = vunpack.c.0.s8 %v7951
  %v7953 = vlaneseq
  %v7954 = vshrl.u32 %v7953, 7
  %v7955 = vsub.s32 %v7952, %v7954
  %v7956 = vrot.slane %v7949, %v7955
  %v7957 = vcombine.low %v6640, %v6642
  %v7959 = vunpack.c.l.s4 1983009808
  %v7960 = vunpack.c.0.s8 %v7959
  %v7961 = vlaneseq
  %v7962 = vshrl.u32 %v7961, 7
  %v7963 = vsub.s32 %v7960, %v7962
  %v7964 = vrot.slane %v7957, %v7963
  %v7965 = vcombine.low %v6707, %v6709
  %v7967 = vunpack.c.l.s4 1983009808
  %v7968 = vunpack.c.0.s8 %v7967
  %v7969 = vlaneseq
  %v7970 = vshrl.u32 %v7969, 7
  %v7971 = vsub.s32 %v7968, %v7970
  %v7972 = vrot.slane %v7965, %v7971
  %v7973 = vcombine.low %v6708, %v6710
  %v7975 = vunpack.c.l.s4 1983009808
  %v7976 = vunpack.c.0.s8 %v7975
  %v7977 = vlaneseq
  %v7978 = vshrl.u32 %v7977, 7
  %v7979 = vsub.s32 %v7976, %v7978
  %v7980 = vrot.slane %v7973, %v7979
  %v7981 = vcombine.low %v7956, %v7964
  %v7982 = vcombine.high %v7956, %v7964
  %v7984 = vunpack.c.l.s4 1934713408
  %v7985 = vunpack.c.0.s8 %v7984
  %v7986 = vlaneseq
  %v7987 = vshrl.u32 %v7986, 7
  %v7988 = vsub.s32 %v7985, %v7987
  %v7989 = vrot.slane %v7981, %v7988
  %v7991 = vunpack.c.l.s4 1934713408
  %v7992 = vunpack.c.0.s8 %v7991
  %v7993 = vlaneseq
  %v7994 = vshrl.u32 %v7993, 7
  %v7995 = vsub.s32 %v7992, %v7994
  %v7996 = vrot.slane %v7982, %v7995
  %v7997 = vcombine.low %v7972, %v7980
  %v7998 = vcombine.high %v7972, %v7980
  %v8000 = vunpack.c.l.s4 1934713408
  %v8001 = vunpack.c.0.s8 %v8000
  %v8002 = vlaneseq
  %v8003 = vshrl.u32 %v8002, 7
  %v8004 = vsub.s32 %v8001, %v8003
  %v8005 = vrot.slane %v7997, %v8004
  %v8007 = vunpack.c.l.s4 1934713408
  %v8008 = vunpack.c.0.s8 %v8007
  %v8009 = vlaneseq
  %v8010 = vshrl.u32 %v8009, 7
  %v8011 = vsub.s32 %v8008, %v8010
  %v8012 = vrot.slane %v7998, %v8011
  %v8013 = vcombine.low %v7989, %v8005
  %v8014 = vcombine.high %v7989, %v8005
  %v8015 = vcombine.low %v7996, %v8012
  %v8016 = vcombine.high %v7996, %v8012
  %v8017 = vcombine.low %v6813, %v6815
  %v8019 = vunpack.c.l.s4 1983009808
  %v8020 = vunpack.c.0.s8 %v8019
  %v8021 = vlaneseq
  %v8022 = vshrl.u32 %v8021, 7
  %v8023 = vsub.s32 %v8020, %v8022
  %v8024 = vrot.slane %v8017, %v8023
  %v8025 = vcombine.low %v6814, %v6816
  %v8027 = vunpack.c.l.s4 1983009808
  %v8028 = vunpack.c.0.s8 %v8027
  %v8029 = vlaneseq
  %v8030 = vshrl.u32 %v8029, 7
  %v8031 = vsub.s32 %v8028, %v8030
  %v8032 = vrot.slane %v8025, %v8031
  %v8033 = vcombine.low %v6881, %v6883
  %v8035 = vunpack.c.l.s4 1983009808
  %v8036 = vunpack.c.0.s8 %v8035
  %v8037 = vlaneseq
  %v8038 = vshrl.u32 %v8037, 7
  %v8039 = vsub.s32 %v8036, %v8038
  %v8040 = vrot.slane %v8033, %v8039
  %v8041 = vcombine.low %v6882, %v6884
  %v8043 = vunpack.c.l.s4 1983009808
  %v8044 = vunpack.c.0.s8 %v8043
  %v8045 = vlaneseq
  %v8046 = vshrl.u32 %v8045, 7
  %v8047 = vsub.s32 %v8044, %v8046
  %v8048 = vrot.slane %v8041, %v8047
  %v8049 = vcombine.low %v8024, %v8032
  %v8050 = vcombine.high %v8024, %v8032
  %v8052 = vunpack.c.l.s4 1934713408
  %v8053 = vunpack.c.0.s8 %v8052
  %v8054 = vlaneseq
  %v8055 = vshrl.u32 %v8054, 7
  %v8056 = vsub.s32 %v8053, %v8055
  %v8057 = vrot.slane %v8049, %v8056
  %v8059 = vunpack.c.l.s4 1934713408
  %v8060 = vunpack.c.0.s8 %v8059
  %v8061 = vlaneseq
  %v8062 = vshrl.u32 %v8061, 7
  %v8063 = vsub.s32 %v8060, %v8062
  %v8064 = vrot.slane %v8050, %v8063
  %v8065 = vcombine.low %v8040, %v8048
  %v8066 = vcombine.high %v8040, %v8048
  %v8068 = vunpack.c.l.s4 1934713408
  %v8069 = vunpack.c.0.s8 %v8068
  %v8070 = vlaneseq
  %v8071 = vshrl.u32 %v8070, 7
  %v8072 = vsub.s32 %v8069, %v8071
  %v8073 = vrot.slane %v8065, %v8072
  %v8075 = vunpack.c.l.s4 1934713408
  %v8076 = vunpack.c.0.s8 %v8075
  %v8077 = vlaneseq
  %v8078 = vshrl.u32 %v8077, 7
  %v8079 = vsub.s32 %v8076, %v8078
  %v8080 = vrot.slane %v8066, %v8079
  %v8081 = vcombine.low %v8057, %v8073
  %v8082 = vcombine.high %v8057, %v8073
  %v8083 = vcombine.low %v8064, %v8080
  %v8084 = vcombine.high %v8064, %v8080
  %v8085 = vcombine.low %v6969, %v6971
  %v8087 = vunpack.c.l.s4 1983009808
  %v8088 = vunpack.c.0.s8 %v8087
  %v8089 = vlaneseq
  %v8090 = vshrl.u32 %v8089, 7
  %v8091 = vsub.s32 %v8088, %v8090
  %v8092 = vrot.slane %v8085, %v8091
  %v8093 = vcombine.low %v6970, %v6972
  %v8095 = vunpack.c.l.s4 1983009808
  %v8096 = vunpack.c.0.s8 %v8095
  %v8097 = vlaneseq
  %v8098 = vshrl.u32 %v8097, 7
  %v8099 = vsub.s32 %v8096, %v8098
  %v8100 = vrot.slane %v8093, %v8099
  %v8101 = vcombine.low %v7037, %v7039
  %v8103 = vunpack.c.l.s4 1983009808
  %v8104 = vunpack.c.0.s8 %v8103
  %v8105 = vlaneseq
  %v8106 = vshrl.u32 %v8105, 7
  %v8107 = vsub.s32 %v8104, %v8106
  %v8108 = vrot.slane %v8101, %v8107
  %v8109 = vcombine.low %v7038, %v7040
  %v8111 = vunpack.c.l.s4 1983009808
  %v8112 = vunpack.c.0.s8 %v8111
  %v8113 = vlaneseq
  %v8114 = vshrl.u32 %v8113, 7
  %v8115 = vsub.s32 %v8112, %v8114
  %v8116 = vrot.slane %v8109, %v8115
  %v8117 = vcombine.low %v8092, %v8100
  %v8118 = vcombine.high %v8092, %v8100
  %v8120 = vunpack.c.l.s4 1934713408
  %v8121 = vunpack.c.0.s8 %v8120
  %v8122 = vlaneseq
  %v8123 = vshrl.u32 %v8122, 7
  %v8124 = vsub.s32 %v8121, %v8123
  %v8125 = vrot.slane %v8117, %v8124
  %v8127 = vunpack.c.l.s4 1934713408
  %v8128 = vunpack.c.0.s8 %v8127
  %v8129 = vlaneseq
  %v8130 = vshrl.u32 %v8129, 7
  %v8131 = vsub.s32 %v8128, %v8130
  %v8132 = vrot.slane %v8118, %v8131
  %v8133 = vcombine.low %v8108, %v8116
  %v8134 = vcombine.high %v8108, %v8116
  %v8136 = vunpack.c.l.s4 1934713408
  %v8137 = vunpack.c.0.s8 %v8136
  %v8138 = vlaneseq
  %v8139 = vshrl.u32 %v8138, 7
  %v8140 = vsub.s32 %v8137, %v8139
  %v8141 = vrot.slane %v8133, %v8140
  %v8143 = vunpack.c.l.s4 1934713408
  %v8144 = vunpack.c.0.s8 %v8143
  %v8145 = vlaneseq
  %v8146 = vshrl.u32 %v8145, 7
  %v8147 = vsub.s32 %v8144, %v8146
  %v8148 = vrot.slane %v8134, %v8147
  %v8149 = vcombine.low %v8125, %v8141
  %v8150 = vcombine.high %v8125, %v8141
  %v8151 = vcombine.low %v8132, %v8148
  %v8152 = vcombine.high %v8132, %v8148
  %v8154 = vsel %vm951, %v8013, 0
  %v8157 = vsel %vm951, %v8081, 0
  %8159 = vmatprep.subr.mxu0 0.0
  %8160 = vmatpush1.xpose.msra.mxu0 %v8157
  %8161 = vmatprep.subr.mxu0 0.0
  %8162 = vmatpush1.xpose.msra.mxu0 0.0
  %8163 = vmatprep.subr.mxu0 0.0
  %8164 = vmatpush1.xpose.msra.mxu0 0.0
  %8165 = vmatprep.subr.mxu0 0.0
  %8166 = vmatpush1.xpose.msra.mxu0 0.0
  %8167 = vmatprep.subr.mxu0 0.0
  %8168 = vmatpush1.xpose.msra.mxu0 0.0
  %8169 = vmatprep.subr.mxu0 0.0
  %8170 = vmatpush1.xpose.msra.mxu0 0.0
  %8171 = vmatprep.subr.mxu0 0.0
  %8172 = vmatpush1.xpose.msra.mxu0 0.0
  %8173 = vmatprep.subr.mxu0 0.0
  %8174 = vmatpush1.xpose.msra.mxu0 0.0
  %8175 = vmatprep.subr.mxu0 0.0
  %8176 = vmatpush1.xpose.msra.mxu0 0.0
  %8177 = vmatprep.subr.mxu0 0.0
  %8178 = vmatpush1.xpose.msra.mxu0 0.0
  %8179 = vmatprep.subr.mxu0 0.0
  %8180 = vmatpush1.xpose.msra.mxu0 0.0
  %8181 = vmatprep.subr.mxu0 0.0
  %8182 = vmatpush1.xpose.msra.mxu0 0.0
  %8183 = vmatprep.subr.mxu0 0.0
  %8184 = vmatpush1.xpose.msra.mxu0 0.0
  %8185 = vmatprep.subr.mxu0 0.0
  %8186 = vmatpush1.xpose.msra.mxu0 0.0
  %8187 = vmatprep.subr.mxu0 0.0
  %8188 = vmatpush1.xpose.msra.mxu0 0.0
  %8189 = vmatprep.subr.mxu0 0.0
  %8190 = vmatpush1.xpose.msra.mxu0 0.0
  %8191 = vmatprep.subr.mxu0 0.0
  %8192 = vmatpush1.xpose.msra.mxu0 0.0
  %8193 = vmatprep.subr.mxu0 0.0
  %8194 = vmatpush1.xpose.msra.mxu0 0.0
  %8195 = vmatprep.subr.mxu0 0.0
  %8196 = vmatpush1.xpose.msra.mxu0 0.0
  %8197 = vmatprep.subr.mxu0 0.0
  %8198 = vmatpush1.xpose.msra.mxu0 0.0
  %8199 = vmatprep.subr.mxu0 0.0
  %8200 = vmatpush1.xpose.msra.mxu0 0.0
  %8201 = vmatprep.subr.mxu0 0.0
  %8202 = vmatpush1.xpose.msra.mxu0 0.0
  %8203 = vmatprep.subr.mxu0 0.0
  %8204 = vmatpush1.xpose.msra.mxu0 0.0
  %8205 = vmatprep.subr.mxu0 0.0
  %8206 = vmatpush1.xpose.msra.mxu0 0.0
  %8207 = vmatprep.subr.mxu0 0.0
  %8208 = vmatpush1.xpose.msra.mxu0 0.0
  %8209 = vmatprep.subr.mxu0 0.0
  %8210 = vmatpush1.xpose.msra.mxu0 0.0
  %8211 = vmatprep.subr.mxu0 0.0
  %8212 = vmatpush1.xpose.msra.mxu0 0.0
  %8213 = vmatprep.subr.mxu0 0.0
  %8214 = vmatpush1.xpose.msra.mxu0 0.0
  %8215 = vmatprep.subr.mxu0 0.0
  %8216 = vmatpush1.xpose.msra.mxu0 0.0
  %8217 = vmatprep.subr.mxu0 0.0
  %8218 = vmatpush1.xpose.msra.mxu0 0.0
  %8219 = vmatprep.subr.mxu0 0.0
  %8220 = vmatpush1.xpose.msra.mxu0 0.0
  %8221 = vmatprep.subr.mxu0 0.0
  %8222 = vmatpush1.xpose.msra.mxu0 0.0
  %8223 = vmatprep.mubr.f32.mxu0 0.0
  %8224 = vmatmul.mubr.f32.gmra.mrb[0].mxu0 %v8154
  %v8225 = vpop.f32.mrb[0].mxu0
  %v8226 = vadd.f32 0.0, %v8225
  %v8227 = vpop.f32.mrb[0].mxu0
  %8228 = vdwg.mxu0
  %v8230 = vsel %vm951, %v8014, 0
  %v8233 = vsel %vm951, %v8082, 0
  %8235 = vmatprep.subr.mxu0 0.0
  %8236 = vmatpush1.xpose.msra.mxu0 %v8233
  %8237 = vmatprep.subr.mxu0 0.0
  %8238 = vmatpush1.xpose.msra.mxu0 0.0
  %8239 = vmatprep.subr.mxu0 0.0
  %8240 = vmatpush1.xpose.msra.mxu0 0.0
  %8241 = vmatprep.subr.mxu0 0.0
  %8242 = vmatpush1.xpose.msra.mxu0 0.0
  %8243 = vmatprep.subr.mxu0 0.0
  %8244 = vmatpush1.xpose.msra.mxu0 0.0
  %8245 = vmatprep.subr.mxu0 0.0
  %8246 = vmatpush1.xpose.msra.mxu0 0.0
  %8247 = vmatprep.subr.mxu0 0.0
  %8248 = vmatpush1.xpose.msra.mxu0 0.0
  %8249 = vmatprep.subr.mxu0 0.0
  %8250 = vmatpush1.xpose.msra.mxu0 0.0
  %8251 = vmatprep.subr.mxu0 0.0
  %8252 = vmatpush1.xpose.msra.mxu0 0.0
  %8253 = vmatprep.subr.mxu0 0.0
  %8254 = vmatpush1.xpose.msra.mxu0 0.0
  %8255 = vmatprep.subr.mxu0 0.0
  %8256 = vmatpush1.xpose.msra.mxu0 0.0
  %8257 = vmatprep.subr.mxu0 0.0
  %8258 = vmatpush1.xpose.msra.mxu0 0.0
  %8259 = vmatprep.subr.mxu0 0.0
  %8260 = vmatpush1.xpose.msra.mxu0 0.0
  %8261 = vmatprep.subr.mxu0 0.0
  %8262 = vmatpush1.xpose.msra.mxu0 0.0
  %8263 = vmatprep.subr.mxu0 0.0
  %8264 = vmatpush1.xpose.msra.mxu0 0.0
  %8265 = vmatprep.subr.mxu0 0.0
  %8266 = vmatpush1.xpose.msra.mxu0 0.0
  %8267 = vmatprep.subr.mxu0 0.0
  %8268 = vmatpush1.xpose.msra.mxu0 0.0
  %8269 = vmatprep.subr.mxu0 0.0
  %8270 = vmatpush1.xpose.msra.mxu0 0.0
  %8271 = vmatprep.subr.mxu0 0.0
  %8272 = vmatpush1.xpose.msra.mxu0 0.0
  %8273 = vmatprep.subr.mxu0 0.0
  %8274 = vmatpush1.xpose.msra.mxu0 0.0
  %8275 = vmatprep.subr.mxu0 0.0
  %8276 = vmatpush1.xpose.msra.mxu0 0.0
  %8277 = vmatprep.subr.mxu0 0.0
  %8278 = vmatpush1.xpose.msra.mxu0 0.0
  %8279 = vmatprep.subr.mxu0 0.0
  %8280 = vmatpush1.xpose.msra.mxu0 0.0
  %8281 = vmatprep.subr.mxu0 0.0
  %8282 = vmatpush1.xpose.msra.mxu0 0.0
  %8283 = vmatprep.subr.mxu0 0.0
  %8284 = vmatpush1.xpose.msra.mxu0 0.0
  %8285 = vmatprep.subr.mxu0 0.0
  %8286 = vmatpush1.xpose.msra.mxu0 0.0
  %8287 = vmatprep.subr.mxu0 0.0
  %8288 = vmatpush1.xpose.msra.mxu0 0.0
  %8289 = vmatprep.subr.mxu0 0.0
  %8290 = vmatpush1.xpose.msra.mxu0 0.0
  %8291 = vmatprep.subr.mxu0 0.0
  %8292 = vmatpush1.xpose.msra.mxu0 0.0
  %8293 = vmatprep.subr.mxu0 0.0
  %8294 = vmatpush1.xpose.msra.mxu0 0.0
  %8295 = vmatprep.subr.mxu0 0.0
  %8296 = vmatpush1.xpose.msra.mxu0 0.0
  %8297 = vmatprep.subr.mxu0 0.0
  %8298 = vmatpush1.xpose.msra.mxu0 0.0
  %8299 = vmatprep.mubr.f32.mxu0 0.0
  %8300 = vmatmul.mubr.f32.gmra.mrb[0].mxu0 %v8230
  %v8301 = vpop.f32.mrb[0].mxu0
  %v8302 = vadd.f32 0.0, %v8301
  %v8303 = vpop.f32.mrb[0].mxu0
  %8304 = vdwg.mxu0
  %v8306 = vsel %vm951, %v8015, 0
  %v8309 = vsel %vm951, %v8083, 0
  %8311 = vmatprep.subr.mxu0 0.0
  %8312 = vmatpush1.xpose.msra.mxu0 %v8309
  %8313 = vmatprep.subr.mxu0 0.0
  %8314 = vmatpush1.xpose.msra.mxu0 0.0
  %8315 = vmatprep.subr.mxu0 0.0
  %8316 = vmatpush1.xpose.msra.mxu0 0.0
  %8317 = vmatprep.subr.mxu0 0.0
  %8318 = vmatpush1.xpose.msra.mxu0 0.0
  %8319 = vmatprep.subr.mxu0 0.0
  %8320 = vmatpush1.xpose.msra.mxu0 0.0
  %8321 = vmatprep.subr.mxu0 0.0
  %8322 = vmatpush1.xpose.msra.mxu0 0.0
  %8323 = vmatprep.subr.mxu0 0.0
  %8324 = vmatpush1.xpose.msra.mxu0 0.0
  %8325 = vmatprep.subr.mxu0 0.0
  %8326 = vmatpush1.xpose.msra.mxu0 0.0
  %8327 = vmatprep.subr.mxu0 0.0
  %8328 = vmatpush1.xpose.msra.mxu0 0.0
  %8329 = vmatprep.subr.mxu0 0.0
  %8330 = vmatpush1.xpose.msra.mxu0 0.0
  %8331 = vmatprep.subr.mxu0 0.0
  %8332 = vmatpush1.xpose.msra.mxu0 0.0
  %8333 = vmatprep.subr.mxu0 0.0
  %8334 = vmatpush1.xpose.msra.mxu0 0.0
  %8335 = vmatprep.subr.mxu0 0.0
  %8336 = vmatpush1.xpose.msra.mxu0 0.0
  %8337 = vmatprep.subr.mxu0 0.0
  %8338 = vmatpush1.xpose.msra.mxu0 0.0
  %8339 = vmatprep.subr.mxu0 0.0
  %8340 = vmatpush1.xpose.msra.mxu0 0.0
  %8341 = vmatprep.subr.mxu0 0.0
  %8342 = vmatpush1.xpose.msra.mxu0 0.0
  %8343 = vmatprep.subr.mxu0 0.0
  %8344 = vmatpush1.xpose.msra.mxu0 0.0
  %8345 = vmatprep.subr.mxu0 0.0
  %8346 = vmatpush1.xpose.msra.mxu0 0.0
  %8347 = vmatprep.subr.mxu0 0.0
  %8348 = vmatpush1.xpose.msra.mxu0 0.0
  %8349 = vmatprep.subr.mxu0 0.0
  %8350 = vmatpush1.xpose.msra.mxu0 0.0
  %8351 = vmatprep.subr.mxu0 0.0
  %8352 = vmatpush1.xpose.msra.mxu0 0.0
  %8353 = vmatprep.subr.mxu0 0.0
  %8354 = vmatpush1.xpose.msra.mxu0 0.0
  %8355 = vmatprep.subr.mxu0 0.0
  %8356 = vmatpush1.xpose.msra.mxu0 0.0
  %8357 = vmatprep.subr.mxu0 0.0
  %8358 = vmatpush1.xpose.msra.mxu0 0.0
  %8359 = vmatprep.subr.mxu0 0.0
  %8360 = vmatpush1.xpose.msra.mxu0 0.0
  %8361 = vmatprep.subr.mxu0 0.0
  %8362 = vmatpush1.xpose.msra.mxu0 0.0
  %8363 = vmatprep.subr.mxu0 0.0
  %8364 = vmatpush1.xpose.msra.mxu0 0.0
  %8365 = vmatprep.subr.mxu0 0.0
  %8366 = vmatpush1.xpose.msra.mxu0 0.0
  %8367 = vmatprep.subr.mxu0 0.0
  %8368 = vmatpush1.xpose.msra.mxu0 0.0
  %8369 = vmatprep.subr.mxu0 0.0
  %8370 = vmatpush1.xpose.msra.mxu0 0.0
  %8371 = vmatprep.subr.mxu0 0.0
  %8372 = vmatpush1.xpose.msra.mxu0 0.0
  %8373 = vmatprep.subr.mxu0 0.0
  %8374 = vmatpush1.xpose.msra.mxu0 0.0
  %8375 = vmatprep.mubr.f32.mxu0 0.0
  %8376 = vmatmul.mubr.f32.gmra.mrb[0].mxu0 %v8306
  %v8377 = vpop.f32.mrb[0].mxu0
  %v8378 = vadd.f32 0.0, %v8377
  %v8379 = vpop.f32.mrb[0].mxu0
  %8380 = vdwg.mxu0
  %v8382 = vsel %vm951, %v8016, 0
  %v8385 = vsel %vm951, %v8084, 0
  %8387 = vmatprep.subr.mxu0 0.0
  %8388 = vmatpush1.xpose.msra.mxu0 %v8385
  %8389 = vmatprep.subr.mxu0 0.0
  %8390 = vmatpush1.xpose.msra.mxu0 0.0
  %8391 = vmatprep.subr.mxu0 0.0
  %8392 = vmatpush1.xpose.msra.mxu0 0.0
  %8393 = vmatprep.subr.mxu0 0.0
  %8394 = vmatpush1.xpose.msra.mxu0 0.0
  %8395 = vmatprep.subr.mxu0 0.0
  %8396 = vmatpush1.xpose.msra.mxu0 0.0
  %8397 = vmatprep.subr.mxu0 0.0
  %8398 = vmatpush1.xpose.msra.mxu0 0.0
  %8399 = vmatprep.subr.mxu0 0.0
  %8400 = vmatpush1.xpose.msra.mxu0 0.0
  %8401 = vmatprep.subr.mxu0 0.0
  %8402 = vmatpush1.xpose.msra.mxu0 0.0
  %8403 = vmatprep.subr.mxu0 0.0
  %8404 = vmatpush1.xpose.msra.mxu0 0.0
  %8405 = vmatprep.subr.mxu0 0.0
  %8406 = vmatpush1.xpose.msra.mxu0 0.0
  %8407 = vmatprep.subr.mxu0 0.0
  %8408 = vmatpush1.xpose.msra.mxu0 0.0
  %8409 = vmatprep.subr.mxu0 0.0
  %8410 = vmatpush1.xpose.msra.mxu0 0.0
  %8411 = vmatprep.subr.mxu0 0.0
  %8412 = vmatpush1.xpose.msra.mxu0 0.0
  %8413 = vmatprep.subr.mxu0 0.0
  %8414 = vmatpush1.xpose.msra.mxu0 0.0
  %8415 = vmatprep.subr.mxu0 0.0
  %8416 = vmatpush1.xpose.msra.mxu0 0.0
  %8417 = vmatprep.subr.mxu0 0.0
  %8418 = vmatpush1.xpose.msra.mxu0 0.0
  %8419 = vmatprep.subr.mxu0 0.0
  %8420 = vmatpush1.xpose.msra.mxu0 0.0
  %8421 = vmatprep.subr.mxu0 0.0
  %8422 = vmatpush1.xpose.msra.mxu0 0.0
  %8423 = vmatprep.subr.mxu0 0.0
  %8424 = vmatpush1.xpose.msra.mxu0 0.0
  %8425 = vmatprep.subr.mxu0 0.0
  %8426 = vmatpush1.xpose.msra.mxu0 0.0
  %8427 = vmatprep.subr.mxu0 0.0
  %8428 = vmatpush1.xpose.msra.mxu0 0.0
  %8429 = vmatprep.subr.mxu0 0.0
  %8430 = vmatpush1.xpose.msra.mxu0 0.0
  %8431 = vmatprep.subr.mxu0 0.0
  %8432 = vmatpush1.xpose.msra.mxu0 0.0
  %8433 = vmatprep.subr.mxu0 0.0
  %8434 = vmatpush1.xpose.msra.mxu0 0.0
  %8435 = vmatprep.subr.mxu0 0.0
  %8436 = vmatpush1.xpose.msra.mxu0 0.0
  %8437 = vmatprep.subr.mxu0 0.0
  %8438 = vmatpush1.xpose.msra.mxu0 0.0
  %8439 = vmatprep.subr.mxu0 0.0
  %8440 = vmatpush1.xpose.msra.mxu0 0.0
  %8441 = vmatprep.subr.mxu0 0.0
  %8442 = vmatpush1.xpose.msra.mxu0 0.0
  %8443 = vmatprep.subr.mxu0 0.0
  %8444 = vmatpush1.xpose.msra.mxu0 0.0
  %8445 = vmatprep.subr.mxu0 0.0
  %8446 = vmatpush1.xpose.msra.mxu0 0.0
  %8447 = vmatprep.subr.mxu0 0.0
  %8448 = vmatpush1.xpose.msra.mxu0 0.0
  %8449 = vmatprep.subr.mxu0 0.0
  %8450 = vmatpush1.xpose.msra.mxu0 0.0
  %8451 = vmatprep.mubr.f32.mxu0 0.0
  %8452 = vmatmul.mubr.f32.gmra.mrb[0].mxu0 %v8382
  %v8453 = vpop.f32.mrb[0].mxu0
  %v8454 = vadd.f32 0.0, %v8453
  %v8455 = vpop.f32.mrb[0].mxu0
  %8456 = vdwg.mxu0
  %v8457 = vsel %vm1256, %v8226, -inf
  %8458 = vmax.xlane.f32.xlu0 %v8457
  %v8459 = vpop.xlane.xlu0 %8458
  %v8460 = vsel %vm1256, %v8302, -inf
  %8461 = vmax.xlane.f32.xlu0 %v8460
  %v8462 = vpop.xlane.xlu0 %8461
  %v8463 = vsel %vm1256, %v8378, -inf
  %8464 = vmax.xlane.f32.xlu0 %v8463
  %v8465 = vpop.xlane.xlu0 %8464
  %v8466 = vsel %vm1256, %v8454, -inf
  %8467 = vmax.xlane.f32.xlu0 %v8466
  %v8468 = vpop.xlane.xlu0 %8467
  %v8469 = vsub.f32 %v8226, %v8459
  %v8470 = vsub.f32 %v8302, %v8462
  %v8471 = vsub.f32 %v8378, %v8465
  %v8472 = vsub.f32 %v8454, %v8468
  %v8473 = vmul.f32 %v8469, 1.442695
  %v8474 = vpow.pop %v8473
  %v8475 = vmul.f32 %v8470, 1.442695
  %v8476 = vpow.pop %v8475
  %v8477 = vmul.f32 %v8471, 1.442695
  %v8478 = vpow.pop %v8477
  %v8479 = vmul.f32 %v8472, 1.442695
  %v8480 = vpow.pop %v8479
  %v8481 = vsel %vm1256, %v8474, 0.0
  %8482 = vadd.xlane.f32.xlu0 %v8481
  %v8483 = vpop.xlane.xlu0 %8482
  %v8484 = vsel %vm1256, %v8476, 0.0
  %8485 = vadd.xlane.f32.xlu0 %v8484
  %v8486 = vpop.xlane.xlu0 %8485
  %v8487 = vsel %vm1256, %v8478, 0.0
  %8488 = vadd.xlane.f32.xlu0 %v8487
  %v8489 = vpop.xlane.xlu0 %8488
  %v8490 = vsel %vm1256, %v8480, 0.0
  %8491 = vadd.xlane.f32.xlu0 %v8490
  %v8492 = vpop.xlane.xlu0 %8491
  %v8493 = vrcp.pop %v8483
  %v8494 = vrcp.pop %v8486
  %v8495 = vrcp.pop %v8489
  %v8496 = vrcp.pop %v8492
  %v8497 = vmul.f32 %v8474, %v8493
  %v8498 = vmul.f32 %v8476, %v8494
  %v8499 = vmul.f32 %v8478, %v8495
  %v8500 = vmul.f32 %v8480, %v8496
  %v8502 = vsel %vm1256, %v8497, 0
  %8504 = vmatprep.subr.mxu0 0.0
  %8505 = vmatpush1.msra.mxu0 %v8149
  %8506 = vmatprep.subr.mxu0 0.0
  %8507 = vmatpush1.msra.mxu0 0.0
  %8508 = vmatprep.subr.mxu0 0.0
  %8509 = vmatpush1.msra.mxu0 0.0
  %8510 = vmatprep.subr.mxu0 0.0
  %8511 = vmatpush1.msra.mxu0 0.0
  %8512 = vmatprep.subr.mxu0 0.0
  %8513 = vmatpush1.msra.mxu0 0.0
  %8514 = vmatprep.subr.mxu0 0.0
  %8515 = vmatpush1.msra.mxu0 0.0
  %8516 = vmatprep.subr.mxu0 0.0
  %8517 = vmatpush1.msra.mxu0 0.0
  %8518 = vmatprep.subr.mxu0 0.0
  %8519 = vmatpush1.msra.mxu0 0.0
  %8520 = vmatprep.subr.mxu0 0.0
  %8521 = vmatpush1.msra.mxu0 0.0
  %8522 = vmatprep.subr.mxu0 0.0
  %8523 = vmatpush1.msra.mxu0 0.0
  %8524 = vmatprep.subr.mxu0 0.0
  %8525 = vmatpush1.msra.mxu0 0.0
  %8526 = vmatprep.subr.mxu0 0.0
  %8527 = vmatpush1.msra.mxu0 0.0
  %8528 = vmatprep.subr.mxu0 0.0
  %8529 = vmatpush1.msra.mxu0 0.0
  %8530 = vmatprep.subr.mxu0 0.0
  %8531 = vmatpush1.msra.mxu0 0.0
  %8532 = vmatprep.subr.mxu0 0.0
  %8533 = vmatpush1.msra.mxu0 0.0
  %8534 = vmatprep.subr.mxu0 0.0
  %8535 = vmatpush1.msra.mxu0 0.0
  %8536 = vmatprep.subr.mxu0 0.0
  %8537 = vmatpush1.msra.mxu0 0.0
  %8538 = vmatprep.subr.mxu0 0.0
  %8539 = vmatpush1.msra.mxu0 0.0
  %8540 = vmatprep.subr.mxu0 0.0
  %8541 = vmatpush1.msra.mxu0 0.0
  %8542 = vmatprep.subr.mxu0 0.0
  %8543 = vmatpush1.msra.mxu0 0.0
  %8544 = vmatprep.subr.mxu0 0.0
  %8545 = vmatpush1.msra.mxu0 0.0
  %8546 = vmatprep.subr.mxu0 0.0
  %8547 = vmatpush1.msra.mxu0 0.0
  %8548 = vmatprep.subr.mxu0 0.0
  %8549 = vmatpush1.msra.mxu0 0.0
  %8550 = vmatprep.subr.mxu0 0.0
  %8551 = vmatpush1.msra.mxu0 0.0
  %8552 = vmatprep.subr.mxu0 0.0
  %8553 = vmatpush1.msra.mxu0 0.0
  %8554 = vmatprep.subr.mxu0 0.0
  %8555 = vmatpush1.msra.mxu0 0.0
  %8556 = vmatprep.subr.mxu0 0.0
  %8557 = vmatpush1.msra.mxu0 0.0
  %8558 = vmatprep.subr.mxu0 0.0
  %8559 = vmatpush1.msra.mxu0 0.0
  %8560 = vmatprep.subr.mxu0 0.0
  %8561 = vmatpush1.msra.mxu0 0.0
  %8562 = vmatprep.subr.mxu0 0.0
  %8563 = vmatpush1.msra.mxu0 0.0
  %8564 = vmatprep.subr.mxu0 0.0
  %8565 = vmatpush1.msra.mxu0 0.0
  %8566 = vmatprep.subr.mxu0 0.0
  %8567 = vmatpush1.msra.mxu0 0.0
  %8568 = vmatprep.mubr.f32.mxu0 0.0
  %8569 = vmatmul.mubr.f32.gmra.mrb[0].mxu0 %v8502
  %v8570 = vpop.f32.mrb[0].mxu0
  %v8571 = vadd.f32 0.0, %v8570
  %v8572 = vpop.f32.mrb[0].mxu0
  %8573 = vdwg.mxu0
  %v8575 = vsel %vm1256, %v8498, 0
  %8577 = vmatprep.subr.mxu0 0.0
  %8578 = vmatpush1.msra.mxu0 %v8150
  %8579 = vmatprep.subr.mxu0 0.0
  %8580 = vmatpush1.msra.mxu0 0.0
  %8581 = vmatprep.subr.mxu0 0.0
  %8582 = vmatpush1.msra.mxu0 0.0
  %8583 = vmatprep.subr.mxu0 0.0
  %8584 = vmatpush1.msra.mxu0 0.0
  %8585 = vmatprep.subr.mxu0 0.0
  %8586 = vmatpush1.msra.mxu0 0.0
  %8587 = vmatprep.subr.mxu0 0.0
  %8588 = vmatpush1.msra.mxu0 0.0
  %8589 = vmatprep.subr.mxu0 0.0
  %8590 = vmatpush1.msra.mxu0 0.0
  %8591 = vmatprep.subr.mxu0 0.0
  %8592 = vmatpush1.msra.mxu0 0.0
  %8593 = vmatprep.subr.mxu0 0.0
  %8594 = vmatpush1.msra.mxu0 0.0
  %8595 = vmatprep.subr.mxu0 0.0
  %8596 = vmatpush1.msra.mxu0 0.0
  %8597 = vmatprep.subr.mxu0 0.0
  %8598 = vmatpush1.msra.mxu0 0.0
  %8599 = vmatprep.subr.mxu0 0.0
  %8600 = vmatpush1.msra.mxu0 0.0
  %8601 = vmatprep.subr.mxu0 0.0
  %8602 = vmatpush1.msra.mxu0 0.0
  %8603 = vmatprep.subr.mxu0 0.0
  %8604 = vmatpush1.msra.mxu0 0.0
  %8605 = vmatprep.subr.mxu0 0.0
  %8606 = vmatpush1.msra.mxu0 0.0
  %8607 = vmatprep.subr.mxu0 0.0
  %8608 = vmatpush1.msra.mxu0 0.0
  %8609 = vmatprep.subr.mxu0 0.0
  %8610 = vmatpush1.msra.mxu0 0.0
  %8611 = vmatprep.subr.mxu0 0.0
  %8612 = vmatpush1.msra.mxu0 0.0
  %8613 = vmatprep.subr.mxu0 0.0
  %8614 = vmatpush1.msra.mxu0 0.0
  %8615 = vmatprep.subr.mxu0 0.0
  %8616 = vmatpush1.msra.mxu0 0.0
  %8617 = vmatprep.subr.mxu0 0.0
  %8618 = vmatpush1.msra.mxu0 0.0
  %8619 = vmatprep.subr.mxu0 0.0
  %8620 = vmatpush1.msra.mxu0 0.0
  %8621 = vmatprep.subr.mxu0 0.0
  %8622 = vmatpush1.msra.mxu0 0.0
  %8623 = vmatprep.subr.mxu0 0.0
  %8624 = vmatpush1.msra.mxu0 0.0
  %8625 = vmatprep.subr.mxu0 0.0
  %8626 = vmatpush1.msra.mxu0 0.0
  %8627 = vmatprep.subr.mxu0 0.0
  %8628 = vmatpush1.msra.mxu0 0.0
  %8629 = vmatprep.subr.mxu0 0.0
  %8630 = vmatpush1.msra.mxu0 0.0
  %8631 = vmatprep.subr.mxu0 0.0
  %8632 = vmatpush1.msra.mxu0 0.0
  %8633 = vmatprep.subr.mxu0 0.0
  %8634 = vmatpush1.msra.mxu0 0.0
  %8635 = vmatprep.subr.mxu0 0.0
  %8636 = vmatpush1.msra.mxu0 0.0
  %8637 = vmatprep.subr.mxu0 0.0
  %8638 = vmatpush1.msra.mxu0 0.0
  %8639 = vmatprep.subr.mxu0 0.0
  %8640 = vmatpush1.msra.mxu0 0.0
  %8641 = vmatprep.mubr.f32.mxu0 0.0
  %8642 = vmatmul.mubr.f32.gmra.mrb[0].mxu0 %v8575
  %v8643 = vpop.f32.mrb[0].mxu0
  %v8644 = vadd.f32 0.0, %v8643
  %v8645 = vpop.f32.mrb[0].mxu0
  %8646 = vdwg.mxu0
  %v8648 = vsel %vm1256, %v8499, 0
  %8650 = vmatprep.subr.mxu0 0.0
  %8651 = vmatpush1.msra.mxu0 %v8151
  %8652 = vmatprep.subr.mxu0 0.0
  %8653 = vmatpush1.msra.mxu0 0.0
  %8654 = vmatprep.subr.mxu0 0.0
  %8655 = vmatpush1.msra.mxu0 0.0
  %8656 = vmatprep.subr.mxu0 0.0
  %8657 = vmatpush1.msra.mxu0 0.0
  %8658 = vmatprep.subr.mxu0 0.0
  %8659 = vmatpush1.msra.mxu0 0.0
  %8660 = vmatprep.subr.mxu0 0.0
  %8661 = vmatpush1.msra.mxu0 0.0
  %8662 = vmatprep.subr.mxu0 0.0
  %8663 = vmatpush1.msra.mxu0 0.0
  %8664 = vmatprep.subr.mxu0 0.0
  %8665 = vmatpush1.msra.mxu0 0.0
  %8666 = vmatprep.subr.mxu0 0.0
  %8667 = vmatpush1.msra.mxu0 0.0
  %8668 = vmatprep.subr.mxu0 0.0
  %8669 = vmatpush1.msra.mxu0 0.0
  %8670 = vmatprep.subr.mxu0 0.0
  %8671 = vmatpush1.msra.mxu0 0.0
  %8672 = vmatprep.subr.mxu0 0.0
  %8673 = vmatpush1.msra.mxu0 0.0
  %8674 = vmatprep.subr.mxu0 0.0
  %8675 = vmatpush1.msra.mxu0 0.0
  %8676 = vmatprep.subr.mxu0 0.0
  %8677 = vmatpush1.msra.mxu0 0.0
  %8678 = vmatprep.subr.mxu0 0.0
  %8679 = vmatpush1.msra.mxu0 0.0
  %8680 = vmatprep.subr.mxu0 0.0
  %8681 = vmatpush1.msra.mxu0 0.0
  %8682 = vmatprep.subr.mxu0 0.0
  %8683 = vmatpush1.msra.mxu0 0.0
  %8684 = vmatprep.subr.mxu0 0.0
  %8685 = vmatpush1.msra.mxu0 0.0
  %8686 = vmatprep.subr.mxu0 0.0
  %8687 = vmatpush1.msra.mxu0 0.0
  %8688 = vmatprep.subr.mxu0 0.0
  %8689 = vmatpush1.msra.mxu0 0.0
  %8690 = vmatprep.subr.mxu0 0.0
  %8691 = vmatpush1.msra.mxu0 0.0
  %8692 = vmatprep.subr.mxu0 0.0
  %8693 = vmatpush1.msra.mxu0 0.0
  %8694 = vmatprep.subr.mxu0 0.0
  %8695 = vmatpush1.msra.mxu0 0.0
  %8696 = vmatprep.subr.mxu0 0.0
  %8697 = vmatpush1.msra.mxu0 0.0
  %8698 = vmatprep.subr.mxu0 0.0
  %8699 = vmatpush1.msra.mxu0 0.0
  %8700 = vmatprep.subr.mxu0 0.0
  %8701 = vmatpush1.msra.mxu0 0.0
  %8702 = vmatprep.subr.mxu0 0.0
  %8703 = vmatpush1.msra.mxu0 0.0
  %8704 = vmatprep.subr.mxu0 0.0
  %8705 = vmatpush1.msra.mxu0 0.0
  %8706 = vmatprep.subr.mxu0 0.0
  %8707 = vmatpush1.msra.mxu0 0.0
  %8708 = vmatprep.subr.mxu0 0.0
  %8709 = vmatpush1.msra.mxu0 0.0
  %8710 = vmatprep.subr.mxu0 0.0
  %8711 = vmatpush1.msra.mxu0 0.0
  %8712 = vmatprep.subr.mxu0 0.0
  %8713 = vmatpush1.msra.mxu0 0.0
  %8714 = vmatprep.mubr.f32.mxu0 0.0
  %8715 = vmatmul.mubr.f32.gmra.mrb[0].mxu0 %v8648
  %v8716 = vpop.f32.mrb[0].mxu0
  %v8717 = vadd.f32 0.0, %v8716
  %v8718 = vpop.f32.mrb[0].mxu0
  %8719 = vdwg.mxu0
  %v8721 = vsel %vm1256, %v8500, 0
  %8723 = vmatprep.subr.mxu0 0.0
  %8724 = vmatpush1.msra.mxu0 %v8152
  %8725 = vmatprep.subr.mxu0 0.0
  %8726 = vmatpush1.msra.mxu0 0.0
  %8727 = vmatprep.subr.mxu0 0.0
  %8728 = vmatpush1.msra.mxu0 0.0
  %8729 = vmatprep.subr.mxu0 0.0
  %8730 = vmatpush1.msra.mxu0 0.0
  %8731 = vmatprep.subr.mxu0 0.0
  %8732 = vmatpush1.msra.mxu0 0.0
  %8733 = vmatprep.subr.mxu0 0.0
  %8734 = vmatpush1.msra.mxu0 0.0
  %8735 = vmatprep.subr.mxu0 0.0
  %8736 = vmatpush1.msra.mxu0 0.0
  %8737 = vmatprep.subr.mxu0 0.0
  %8738 = vmatpush1.msra.mxu0 0.0
  %8739 = vmatprep.subr.mxu0 0.0
  %8740 = vmatpush1.msra.mxu0 0.0
  %8741 = vmatprep.subr.mxu0 0.0
  %8742 = vmatpush1.msra.mxu0 0.0
  %8743 = vmatprep.subr.mxu0 0.0
  %8744 = vmatpush1.msra.mxu0 0.0
  %8745 = vmatprep.subr.mxu0 0.0
  %8746 = vmatpush1.msra.mxu0 0.0
  %8747 = vmatprep.subr.mxu0 0.0
  %8748 = vmatpush1.msra.mxu0 0.0
  %8749 = vmatprep.subr.mxu0 0.0
  %8750 = vmatpush1.msra.mxu0 0.0
  %8751 = vmatprep.subr.mxu0 0.0
  %8752 = vmatpush1.msra.mxu0 0.0
  %8753 = vmatprep.subr.mxu0 0.0
  %8754 = vmatpush1.msra.mxu0 0.0
  %8755 = vmatprep.subr.mxu0 0.0
  %8756 = vmatpush1.msra.mxu0 0.0
  %8757 = vmatprep.subr.mxu0 0.0
  %8758 = vmatpush1.msra.mxu0 0.0
  %8759 = vmatprep.subr.mxu0 0.0
  %8760 = vmatpush1.msra.mxu0 0.0
  %8761 = vmatprep.subr.mxu0 0.0
  %8762 = vmatpush1.msra.mxu0 0.0
  %8763 = vmatprep.subr.mxu0 0.0
  %8764 = vmatpush1.msra.mxu0 0.0
  %8765 = vmatprep.subr.mxu0 0.0
  %8766 = vmatpush1.msra.mxu0 0.0
  %8767 = vmatprep.subr.mxu0 0.0
  %8768 = vmatpush1.msra.mxu0 0.0
  %8769 = vmatprep.subr.mxu0 0.0
  %8770 = vmatpush1.msra.mxu0 0.0
  %8771 = vmatprep.subr.mxu0 0.0
  %8772 = vmatpush1.msra.mxu0 0.0
  %8773 = vmatprep.subr.mxu0 0.0
  %8774 = vmatpush1.msra.mxu0 0.0
  %8775 = vmatprep.subr.mxu0 0.0
  %8776 = vmatpush1.msra.mxu0 0.0
  %8777 = vmatprep.subr.mxu0 0.0
  %8778 = vmatpush1.msra.mxu0 0.0
  %8779 = vmatprep.subr.mxu0 0.0
  %8780 = vmatpush1.msra.mxu0 0.0
  %8781 = vmatprep.subr.mxu0 0.0
  %8782 = vmatpush1.msra.mxu0 0.0
  %8783 = vmatprep.subr.mxu0 0.0
  %8784 = vmatpush1.msra.mxu0 0.0
  %8785 = vmatprep.subr.mxu0 0.0
  %8786 = vmatpush1.msra.mxu0 0.0
  %8787 = vmatprep.mubr.f32.mxu0 0.0
  %8788 = vmatmul.mubr.f32.gmra.mrb[0].mxu0 %v8721
  %v8789 = vpop.f32.mrb[0].mxu0
  %v8790 = vadd.f32 0.0, %v8789
  %v8791 = vpop.f32.mrb[0].mxu0
  %8792 = vdwg.mxu0
  %v8793 = vcombine.low %v8571, %v8717
  %v8794 = vcombine.high %v8571, %v8717
  %v8796 = vunpack.c.l.s4 1983009808
  %v8797 = vunpack.c.0.s8 %v8796
  %v8798 = vlaneseq
  %v8799 = vshrl.u32 %v8798, 7
  %v8800 = vsub.s32 %v8797, %v8799
  %v8801 = vrot.slane %v8793, %v8800
  %v8803 = vunpack.c.l.s4 1983009808
  %v8804 = vunpack.c.0.s8 %v8803
  %v8805 = vlaneseq
  %v8806 = vshrl.u32 %v8805, 7
  %v8807 = vsub.s32 %v8804, %v8806
  %v8808 = vrot.slane %v8794, %v8807
  %v8809 = vcombine.low %v8644, %v8790
  %v8810 = vcombine.high %v8644, %v8790
  %v8812 = vunpack.c.l.s4 1983009808
  %v8813 = vunpack.c.0.s8 %v8812
  %v8814 = vlaneseq
  %v8815 = vshrl.u32 %v8814, 7
  %v8816 = vsub.s32 %v8813, %v8815
  %v8817 = vrot.slane %v8809, %v8816
  %v8819 = vunpack.c.l.s4 1983009808
  %v8820 = vunpack.c.0.s8 %v8819
  %v8821 = vlaneseq
  %v8822 = vshrl.u32 %v8821, 7
  %v8823 = vsub.s32 %v8820, %v8822
  %v8824 = vrot.slane %v8810, %v8823
  %v8825 = vcombine.low %v8801, %v8817
  %v8826 = vcombine.high %v8801, %v8817
  %v8828 = vunpack.c.l.s4 1934713408
  %v8829 = vunpack.c.0.s8 %v8828
  %v8830 = vlaneseq
  %v8831 = vshrl.u32 %v8830, 7
  %v8832 = vsub.s32 %v8829, %v8831
  %v8833 = vrot.slane %v8825, %v8832
  %v8835 = vunpack.c.l.s4 1934713408
  %v8836 = vunpack.c.0.s8 %v8835
  %v8837 = vlaneseq
  %v8838 = vshrl.u32 %v8837, 7
  %v8839 = vsub.s32 %v8836, %v8838
  %v8840 = vrot.slane %v8826, %v8839
  %v8841 = vcombine.low %v8808, %v8824
  %v8842 = vcombine.high %v8808, %v8824
  %v8844 = vunpack.c.l.s4 1934713408
  %v8845 = vunpack.c.0.s8 %v8844
  %v8846 = vlaneseq
  %v8847 = vshrl.u32 %v8846, 7
  %v8848 = vsub.s32 %v8845, %v8847
  %v8849 = vrot.slane %v8841, %v8848
  %v8851 = vunpack.c.l.s4 1934713408
  %v8852 = vunpack.c.0.s8 %v8851
  %v8853 = vlaneseq
  %v8854 = vshrl.u32 %v8853, 7
  %v8855 = vsub.s32 %v8852, %v8854
  %v8856 = vrot.slane %v8842, %v8855
  %v8858 = vunpack.c.l.s4 1983009808
  %v8859 = vunpack.c.0.s8 %v8858
  %v8860 = vlaneseq
  %v8861 = vshrl.u32 %v8860, 7
  %v8862 = vsub.s32 %v8859, %v8861
  %v8863 = vrot.slane %v7925, %v8862
  %v8864 = vcombine.high %v8863, 0.0
  %v8866 = vunpack.c.l.s4 1934713408
  %v8867 = vunpack.c.0.s8 %v8866
  %v8868 = vlaneseq
  %v8869 = vshrl.u32 %v8868, 7
  %v8870 = vsub.s32 %v8867, %v8869
  %v8871 = vrot.slane %v8863, %v8870
  %v8873 = vunpack.c.l.s4 1934713408
  %v8874 = vunpack.c.0.s8 %v8873
  %v8875 = vlaneseq
  %v8876 = vshrl.u32 %v8875, 7
  %v8877 = vsub.s32 %v8874, %v8876
  %v8878 = vrot.slane %v8864, %v8877
  %v8879 = vcombine.high %v8871, 0.0
  %v8880 = vcombine.high %v8878, 0.0
  %v8881 = vcombine.high %v7925, 0.0
  %v8883 = vunpack.c.l.s4 1983009808
  %v8884 = vunpack.c.0.s8 %v8883
  %v8885 = vlaneseq
  %v8886 = vshrl.u32 %v8885, 7
  %v8887 = vsub.s32 %v8884, %v8886
  %v8888 = vrot.slane %v8881, %v8887
  %v8889 = vcombine.high %v8888, 0.0
  %v8891 = vunpack.c.l.s4 1934713408
  %v8892 = vunpack.c.0.s8 %v8891
  %v8893 = vlaneseq
  %v8894 = vshrl.u32 %v8893, 7
  %v8895 = vsub.s32 %v8892, %v8894
  %v8896 = vrot.slane %v8888, %v8895
  %v8898 = vunpack.c.l.s4 1934713408
  %v8899 = vunpack.c.0.s8 %v8898
  %v8900 = vlaneseq
  %v8901 = vshrl.u32 %v8900, 7
  %v8902 = vsub.s32 %v8899, %v8901
  %v8903 = vrot.slane %v8889, %v8902
  %v8904 = vcombine.high %v8896, 0.0
  %v8905 = vcombine.high %v8903, 0.0
  %v8907 = vunpack.c.l.s4 1983009808
  %v8908 = vunpack.c.0.s8 %v8907
  %v8909 = vlaneseq
  %v8910 = vshrl.u32 %v8909, 7
  %v8911 = vsub.s32 %v8908, %v8910
  %v8912 = vrot.slane %v7932, %v8911
  %v8913 = vcombine.high %v8912, 0.0
  %v8915 = vunpack.c.l.s4 1934713408
  %v8916 = vunpack.c.0.s8 %v8915
  %v8917 = vlaneseq
  %v8918 = vshrl.u32 %v8917, 7
  %v8919 = vsub.s32 %v8916, %v8918
  %v8920 = vrot.slane %v8912, %v8919
  %v8922 = vunpack.c.l.s4 1934713408
  %v8923 = vunpack.c.0.s8 %v8922
  %v8924 = vlaneseq
  %v8925 = vshrl.u32 %v8924, 7
  %v8926 = vsub.s32 %v8923, %v8925
  %v8927 = vrot.slane %v8913, %v8926
  %v8928 = vcombine.high %v8920, 0.0
  %v8929 = vcombine.high %v8927, 0.0
  %v8930 = vcombine.high %v7932, 0.0
  %v8932 = vunpack.c.l.s4 1983009808
  %v8933 = vunpack.c.0.s8 %v8932
  %v8934 = vlaneseq
  %v8935 = vshrl.u32 %v8934, 7
  %v8936 = vsub.s32 %v8933, %v8935
  %v8937 = vrot.slane %v8930, %v8936
  %v8938 = vcombine.high %v8937, 0.0
  %v8940 = vunpack.c.l.s4 1934713408
  %v8941 = vunpack.c.0.s8 %v8940
  %v8942 = vlaneseq
  %v8943 = vshrl.u32 %v8942, 7
  %v8944 = vsub.s32 %v8941, %v8943
  %v8945 = vrot.slane %v8937, %v8944
  %v8947 = vunpack.c.l.s4 1934713408
  %v8948 = vunpack.c.0.s8 %v8947
  %v8949 = vlaneseq
  %v8950 = vshrl.u32 %v8949, 7
  %v8951 = vsub.s32 %v8948, %v8950
  %v8952 = vrot.slane %v8938, %v8951
  %v8953 = vcombine.high %v8945, 0.0
  %v8954 = vcombine.high %v8952, 0.0
  %v8956 = vunpack.c.l.s4 1983009808
  %v8957 = vunpack.c.0.s8 %v8956
  %v8958 = vlaneseq
  %v8959 = vshrl.u32 %v8958, 7
  %v8960 = vsub.s32 %v8957, %v8959
  %v8961 = vrot.slane %v7941, %v8960
  %v8962 = vcombine.high %v8961, 0.0
  %v8964 = vunpack.c.l.s4 1934713408
  %v8965 = vunpack.c.0.s8 %v8964
  %v8966 = vlaneseq
  %v8967 = vshrl.u32 %v8966, 7
  %v8968 = vsub.s32 %v8965, %v8967
  %v8969 = vrot.slane %v8961, %v8968
  %v8971 = vunpack.c.l.s4 1934713408
  %v8972 = vunpack.c.0.s8 %v8971
  %v8973 = vlaneseq
  %v8974 = vshrl.u32 %v8973, 7
  %v8975 = vsub.s32 %v8972, %v8974
  %v8976 = vrot.slane %v8962, %v8975
  %v8977 = vcombine.high %v8969, 0.0
  %v8978 = vcombine.high %v8976, 0.0
  %v8979 = vcombine.high %v7941, 0.0
  %v8981 = vunpack.c.l.s4 1983009808
  %v8982 = vunpack.c.0.s8 %v8981
  %v8983 = vlaneseq
  %v8984 = vshrl.u32 %v8983, 7
  %v8985 = vsub.s32 %v8982, %v8984
  %v8986 = vrot.slane %v8979, %v8985
  %v8987 = vcombine.high %v8986, 0.0
  %v8989 = vunpack.c.l.s4 1934713408
  %v8990 = vunpack.c.0.s8 %v8989
  %v8991 = vlaneseq
  %v8992 = vshrl.u32 %v8991, 7
  %v8993 = vsub.s32 %v8990, %v8992
  %v8994 = vrot.slane %v8986, %v8993
  %v8996 = vunpack.c.l.s4 1934713408
  %v8997 = vunpack.c.0.s8 %v8996
  %v8998 = vlaneseq
  %v8999 = vshrl.u32 %v8998, 7
  %v9000 = vsub.s32 %v8997, %v8999
  %v9001 = vrot.slane %v8987, %v9000
  %v9002 = vcombine.high %v8994, 0.0
  %v9003 = vcombine.high %v9001, 0.0
  %v9005 = vunpack.c.l.s4 1983009808
  %v9006 = vunpack.c.0.s8 %v9005
  %v9007 = vlaneseq
  %v9008 = vshrl.u32 %v9007, 7
  %v9009 = vsub.s32 %v9006, %v9008
  %v9010 = vrot.slane %v7948, %v9009
  %v9011 = vcombine.high %v9010, 0.0
  %v9013 = vunpack.c.l.s4 1934713408
  %v9014 = vunpack.c.0.s8 %v9013
  %v9015 = vlaneseq
  %v9016 = vshrl.u32 %v9015, 7
  %v9017 = vsub.s32 %v9014, %v9016
  %v9018 = vrot.slane %v9010, %v9017
  %v9020 = vunpack.c.l.s4 1934713408
  %v9021 = vunpack.c.0.s8 %v9020
  %v9022 = vlaneseq
  %v9023 = vshrl.u32 %v9022, 7
  %v9024 = vsub.s32 %v9021, %v9023
  %v9025 = vrot.slane %v9011, %v9024
  %v9026 = vcombine.high %v9018, 0.0
  %v9027 = vcombine.high %v9025, 0.0
  %v9028 = vcombine.high %v7948, 0.0
  %v9030 = vunpack.c.l.s4 1983009808
  %v9031 = vunpack.c.0.s8 %v9030
  %v9032 = vlaneseq
  %v9033 = vshrl.u32 %v9032, 7
  %v9034 = vsub.s32 %v9031, %v9033
  %v9035 = vrot.slane %v9028, %v9034
  %v9036 = vcombine.high %v9035, 0.0
  %v9038 = vunpack.c.l.s4 1934713408
  %v9039 = vunpack.c.0.s8 %v9038
  %v9040 = vlaneseq
  %v9041 = vshrl.u32 %v9040, 7
  %v9042 = vsub.s32 %v9039, %v9041
  %v9043 = vrot.slane %v9035, %v9042
  %v9045 = vunpack.c.l.s4 1934713408
  %v9046 = vunpack.c.0.s8 %v9045
  %v9047 = vlaneseq
  %v9048 = vshrl.u32 %v9047, 7
  %v9049 = vsub.s32 %v9046, %v9048
  %v9050 = vrot.slane %v9036, %v9049
  %v9051 = vcombine.high %v9043, 0.0
  %v9052 = vcombine.high %v9050, 0.0
  %9061 = vrot.lane.b32.xlu0 %v8879, 16
  %v9062 = vpop.permute.xlu0 %9061
  %9063 = vrot.lane.b32.xlu0 %v8904, 16
  %v9064 = vpop.permute.xlu0 %9063
  %9065 = vrot.lane.b32.xlu0 %v8928, 16
  %v9066 = vpop.permute.xlu0 %9065
  %9067 = vrot.lane.b32.xlu0 %v8953, 16
  %v9068 = vpop.permute.xlu0 %9067
  %9069 = vrot.lane.b32.xlu0 %v8977, 16
  %v9070 = vpop.permute.xlu0 %9069
  %9071 = vrot.lane.b32.xlu0 %v9002, 16
  %v9072 = vpop.permute.xlu0 %9071
  %9073 = vrot.lane.b32.xlu0 %v9026, 16
  %v9074 = vpop.permute.xlu0 %9073
  %9075 = vrot.lane.b32.xlu0 %v9051, 16
  %v9076 = vpop.permute.xlu0 %9075
  %9093 = vrot.lane.b32.xlu0 %v8878, 32
  %v9094 = vpop.permute.xlu0 %9093
  %9095 = vrot.lane.b32.xlu0 %v8903, 32
  %v9096 = vpop.permute.xlu0 %9095
  %9097 = vrot.lane.b32.xlu0 %v8927, 32
  %v9098 = vpop.permute.xlu0 %9097
  %9099 = vrot.lane.b32.xlu0 %v8952, 32
  %v9100 = vpop.permute.xlu0 %9099
  %9101 = vrot.lane.b32.xlu0 %v8976, 32
  %v9102 = vpop.permute.xlu0 %9101
  %9103 = vrot.lane.b32.xlu0 %v9001, 32
  %v9104 = vpop.permute.xlu0 %9103
  %9105 = vrot.lane.b32.xlu0 %v9025, 32
  %v9106 = vpop.permute.xlu0 %9105
  %9107 = vrot.lane.b32.xlu0 %v9050, 32
  %v9108 = vpop.permute.xlu0 %9107
  %9125 = vrot.lane.b32.xlu0 %v8880, 48
  %v9126 = vpop.permute.xlu0 %9125
  %9127 = vrot.lane.b32.xlu0 %v8905, 48
  %v9128 = vpop.permute.xlu0 %9127
  %9129 = vrot.lane.b32.xlu0 %v8929, 48
  %v9130 = vpop.permute.xlu0 %9129
  %9131 = vrot.lane.b32.xlu0 %v8954, 48
  %v9132 = vpop.permute.xlu0 %9131
  %9133 = vrot.lane.b32.xlu0 %v8978, 48
  %v9134 = vpop.permute.xlu0 %9133
  %9135 = vrot.lane.b32.xlu0 %v9003, 48
  %v9136 = vpop.permute.xlu0 %9135
  %9137 = vrot.lane.b32.xlu0 %v9027, 48
  %v9138 = vpop.permute.xlu0 %9137
  %9139 = vrot.lane.b32.xlu0 %v9052, 48
  %v9140 = vpop.permute.xlu0 %9139
  %v9149 = vsel %vm951, %v8871, %v9062
  %v9150 = vsel %vm951, %v8896, %v9064
  %v9151 = vsel %vm951, %v8920, %v9066
  %v9152 = vsel %vm951, %v8945, %v9068
  %v9153 = vsel %vm951, %v8969, %v9070
  %v9154 = vsel %vm951, %v8994, %v9072
  %v9155 = vsel %vm951, %v9018, %v9074
  %v9156 = vsel %vm951, %v9043, %v9076
  %v9157 = vsel %vm2865, %v9149, %v9094
  %v9158 = vsel %vm2865, %v9150, %v9096
  %v9159 = vsel %vm2865, %v9151, %v9098
  %v9160 = vsel %vm2865, %v9152, %v9100
  %v9161 = vsel %vm2865, %v9153, %v9102
  %v9162 = vsel %vm2865, %v9154, %v9104
  %v9163 = vsel %vm2865, %v9155, %v9106
  %v9164 = vsel %vm2865, %v9156, %v9108
  %v9165 = vsel %vm2874, %v9157, %v9126
  %v9166 = vsel %vm2874, %v9158, %v9128
  %v9167 = vsel %vm2874, %v9159, %v9130
  %v9168 = vsel %vm2874, %v9160, %v9132
  %v9169 = vsel %vm2874, %v9161, %v9134
  %v9170 = vsel %vm2874, %v9162, %v9136
  %v9171 = vsel %vm2874, %v9163, %v9138
  %v9172 = vsel %vm2874, %v9164, %v9140
  %v9174 = vunpack.c.l.s4 1983009808
  %v9175 = vunpack.c.0.s8 %v9174
  %v9176 = vlaneseq
  %v9177 = vshrl.u32 %v9176, 7
  %v9178 = vsub.s32 %v9175, %v9177
  %v9179 = vrot.slane %v8833, %v9178
  %v9180 = vcombine.high %v9179, 0.0
  %v9182 = vunpack.c.l.s4 1934713408
  %v9183 = vunpack.c.0.s8 %v9182
  %v9184 = vlaneseq
  %v9185 = vshrl.u32 %v9184, 7
  %v9186 = vsub.s32 %v9183, %v9185
  %v9187 = vrot.slane %v9179, %v9186
  %v9189 = vunpack.c.l.s4 1934713408
  %v9190 = vunpack.c.0.s8 %v9189
  %v9191 = vlaneseq
  %v9192 = vshrl.u32 %v9191, 7
  %v9193 = vsub.s32 %v9190, %v9192
  %v9194 = vrot.slane %v9180, %v9193
  %v9195 = vcombine.high %v9187, 0.0
  %v9196 = vcombine.high %v9194, 0.0
  %v9197 = vcombine.high %v8833, 0.0
  %v9199 = vunpack.c.l.s4 1983009808
  %v9200 = vunpack.c.0.s8 %v9199
  %v9201 = vlaneseq
  %v9202 = vshrl.u32 %v9201, 7
  %v9203 = vsub.s32 %v9200, %v9202
  %v9204 = vrot.slane %v9197, %v9203
  %v9205 = vcombine.high %v9204, 0.0
  %v9207 = vunpack.c.l.s4 1934713408
  %v9208 = vunpack.c.0.s8 %v9207
  %v9209 = vlaneseq
  %v9210 = vshrl.u32 %v9209, 7
  %v9211 = vsub.s32 %v9208, %v9210
  %v9212 = vrot.slane %v9204, %v9211
  %v9214 = vunpack.c.l.s4 1934713408
  %v9215 = vunpack.c.0.s8 %v9214
  %v9216 = vlaneseq
  %v9217 = vshrl.u32 %v9216, 7
  %v9218 = vsub.s32 %v9215, %v9217
  %v9219 = vrot.slane %v9205, %v9218
  %v9220 = vcombine.high %v9212, 0.0
  %v9221 = vcombine.high %v9219, 0.0
  %v9223 = vunpack.c.l.s4 1983009808
  %v9224 = vunpack.c.0.s8 %v9223
  %v9225 = vlaneseq
  %v9226 = vshrl.u32 %v9225, 7
  %v9227 = vsub.s32 %v9224, %v9226
  %v9228 = vrot.slane %v8840, %v9227
  %v9229 = vcombine.high %v9228, 0.0
  %v9231 = vunpack.c.l.s4 1934713408
  %v9232 = vunpack.c.0.s8 %v9231
  %v9233 = vlaneseq
  %v9234 = vshrl.u32 %v9233, 7
  %v9235 = vsub.s32 %v9232, %v9234
  %v9236 = vrot.slane %v9228, %v9235
  %v9238 = vunpack.c.l.s4 1934713408
  %v9239 = vunpack.c.0.s8 %v9238
  %v9240 = vlaneseq
  %v9241 = vshrl.u32 %v9240, 7
  %v9242 = vsub.s32 %v9239, %v9241
  %v9243 = vrot.slane %v9229, %v9242
  %v9244 = vcombine.high %v9236, 0.0
  %v9245 = vcombine.high %v9243, 0.0
  %v9246 = vcombine.high %v8840, 0.0
  %v9248 = vunpack.c.l.s4 1983009808
  %v9249 = vunpack.c.0.s8 %v9248
  %v9250 = vlaneseq
  %v9251 = vshrl.u32 %v9250, 7
  %v9252 = vsub.s32 %v9249, %v9251
  %v9253 = vrot.slane %v9246, %v9252
  %v9254 = vcombine.high %v9253, 0.0
  %v9256 = vunpack.c.l.s4 1934713408
  %v9257 = vunpack.c.0.s8 %v9256
  %v9258 = vlaneseq
  %v9259 = vshrl.u32 %v9258, 7
  %v9260 = vsub.s32 %v9257, %v9259
  %v9261 = vrot.slane %v9253, %v9260
  %v9263 = vunpack.c.l.s4 1934713408
  %v9264 = vunpack.c.0.s8 %v9263
  %v9265 = vlaneseq
  %v9266 = vshrl.u32 %v9265, 7
  %v9267 = vsub.s32 %v9264, %v9266
  %v9268 = vrot.slane %v9254, %v9267
  %v9269 = vcombine.high %v9261, 0.0
  %v9270 = vcombine.high %v9268, 0.0
  %v9272 = vunpack.c.l.s4 1983009808
  %v9273 = vunpack.c.0.s8 %v9272
  %v9274 = vlaneseq
  %v9275 = vshrl.u32 %v9274, 7
  %v9276 = vsub.s32 %v9273, %v9275
  %v9277 = vrot.slane %v8849, %v9276
  %v9278 = vcombine.high %v9277, 0.0
  %v9280 = vunpack.c.l.s4 1934713408
  %v9281 = vunpack.c.0.s8 %v9280
  %v9282 = vlaneseq
  %v9283 = vshrl.u32 %v9282, 7
  %v9284 = vsub.s32 %v9281, %v9283
  %v9285 = vrot.slane %v9277, %v9284
  %v9287 = vunpack.c.l.s4 1934713408
  %v9288 = vunpack.c.0.s8 %v9287
  %v9289 = vlaneseq
  %v9290 = vshrl.u32 %v9289, 7
  %v9291 = vsub.s32 %v9288, %v9290
  %v9292 = vrot.slane %v9278, %v9291
  %v9293 = vcombine.high %v9285, 0.0
  %v9294 = vcombine.high %v9292, 0.0
  %v9295 = vcombine.high %v8849, 0.0
  %v9297 = vunpack.c.l.s4 1983009808
  %v9298 = vunpack.c.0.s8 %v9297
  %v9299 = vlaneseq
  %v9300 = vshrl.u32 %v9299, 7
  %v9301 = vsub.s32 %v9298, %v9300
  %v9302 = vrot.slane %v9295, %v9301
  %v9303 = vcombine.high %v9302, 0.0
  %v9305 = vunpack.c.l.s4 1934713408
  %v9306 = vunpack.c.0.s8 %v9305
  %v9307 = vlaneseq
  %v9308 = vshrl.u32 %v9307, 7
  %v9309 = vsub.s32 %v9306, %v9308
  %v9310 = vrot.slane %v9302, %v9309
  %v9312 = vunpack.c.l.s4 1934713408
  %v9313 = vunpack.c.0.s8 %v9312
  %v9314 = vlaneseq
  %v9315 = vshrl.u32 %v9314, 7
  %v9316 = vsub.s32 %v9313, %v9315
  %v9317 = vrot.slane %v9303, %v9316
  %v9318 = vcombine.high %v9310, 0.0
  %v9319 = vcombine.high %v9317, 0.0
  %v9321 = vunpack.c.l.s4 1983009808
  %v9322 = vunpack.c.0.s8 %v9321
  %v9323 = vlaneseq
  %v9324 = vshrl.u32 %v9323, 7
  %v9325 = vsub.s32 %v9322, %v9324
  %v9326 = vrot.slane %v8856, %v9325
  %v9327 = vcombine.high %v9326, 0.0
  %v9329 = vunpack.c.l.s4 1934713408
  %v9330 = vunpack.c.0.s8 %v9329
  %v9331 = vlaneseq
  %v9332 = vshrl.u32 %v9331, 7
  %v9333 = vsub.s32 %v9330, %v9332
  %v9334 = vrot.slane %v9326, %v9333
  %v9336 = vunpack.c.l.s4 1934713408
  %v9337 = vunpack.c.0.s8 %v9336
  %v9338 = vlaneseq
  %v9339 = vshrl.u32 %v9338, 7
  %v9340 = vsub.s32 %v9337, %v9339
  %v9341 = vrot.slane %v9327, %v9340
  %v9342 = vcombine.high %v9334, 0.0
  %v9343 = vcombine.high %v9341, 0.0
  %v9344 = vcombine.high %v8856, 0.0
  %v9346 = vunpack.c.l.s4 1983009808
  %v9347 = vunpack.c.0.s8 %v9346
  %v9348 = vlaneseq
  %v9349 = vshrl.u32 %v9348, 7
  %v9350 = vsub.s32 %v9347, %v9349
  %v9351 = vrot.slane %v9344, %v9350
  %v9352 = vcombine.high %v9351, 0.0
  %v9354 = vunpack.c.l.s4 1934713408
  %v9355 = vunpack.c.0.s8 %v9354
  %v9356 = vlaneseq
  %v9357 = vshrl.u32 %v9356, 7
  %v9358 = vsub.s32 %v9355, %v9357
  %v9359 = vrot.slane %v9351, %v9358
  %v9361 = vunpack.c.l.s4 1934713408
  %v9362 = vunpack.c.0.s8 %v9361
  %v9363 = vlaneseq
  %v9364 = vshrl.u32 %v9363, 7
  %v9365 = vsub.s32 %v9362, %v9364
  %v9366 = vrot.slane %v9352, %v9365
  %v9367 = vcombine.high %v9359, 0.0
  %v9368 = vcombine.high %v9366, 0.0
  %9377 = vrot.lane.b32.xlu0 %v9195, 16
  %v9378 = vpop.permute.xlu0 %9377
  %9379 = vrot.lane.b32.xlu0 %v9220, 16
  %v9380 = vpop.permute.xlu0 %9379
  %9381 = vrot.lane.b32.xlu0 %v9244, 16
  %v9382 = vpop.permute.xlu0 %9381
  %9383 = vrot.lane.b32.xlu0 %v9269, 16
  %v9384 = vpop.permute.xlu0 %9383
  %9385 = vrot.lane.b32.xlu0 %v9293, 16
  %v9386 = vpop.permute.xlu0 %9385
  %9387 = vrot.lane.b32.xlu0 %v9318, 16
  %v9388 = vpop.permute.xlu0 %9387
  %9389 = vrot.lane.b32.xlu0 %v9342, 16
  %v9390 = vpop.permute.xlu0 %9389
  %9391 = vrot.lane.b32.xlu0 %v9367, 16
  %v9392 = vpop.permute.xlu0 %9391
  %9409 = vrot.lane.b32.xlu0 %v9194, 32
  %v9410 = vpop.permute.xlu0 %9409
  %9411 = vrot.lane.b32.xlu0 %v9219, 32
  %v9412 = vpop.permute.xlu0 %9411
  %9413 = vrot.lane.b32.xlu0 %v9243, 32
  %v9414 = vpop.permute.xlu0 %9413
  %9415 = vrot.lane.b32.xlu0 %v9268, 32
  %v9416 = vpop.permute.xlu0 %9415
  %9417 = vrot.lane.b32.xlu0 %v9292, 32
  %v9418 = vpop.permute.xlu0 %9417
  %9419 = vrot.lane.b32.xlu0 %v9317, 32
  %v9420 = vpop.permute.xlu0 %9419
  %9421 = vrot.lane.b32.xlu0 %v9341, 32
  %v9422 = vpop.permute.xlu0 %9421
  %9423 = vrot.lane.b32.xlu0 %v9366, 32
  %v9424 = vpop.permute.xlu0 %9423
  %9441 = vrot.lane.b32.xlu0 %v9196, 48
  %v9442 = vpop.permute.xlu0 %9441
  %9443 = vrot.lane.b32.xlu0 %v9221, 48
  %v9444 = vpop.permute.xlu0 %9443
  %9445 = vrot.lane.b32.xlu0 %v9245, 48
  %v9446 = vpop.permute.xlu0 %9445
  %9447 = vrot.lane.b32.xlu0 %v9270, 48
  %v9448 = vpop.permute.xlu0 %9447
  %9449 = vrot.lane.b32.xlu0 %v9294, 48
  %v9450 = vpop.permute.xlu0 %9449
  %9451 = vrot.lane.b32.xlu0 %v9319, 48
  %v9452 = vpop.permute.xlu0 %9451
  %9453 = vrot.lane.b32.xlu0 %v9343, 48
  %v9454 = vpop.permute.xlu0 %9453
  %9455 = vrot.lane.b32.xlu0 %v9368, 48
  %v9456 = vpop.permute.xlu0 %9455
  %v9465 = vsel %vm951, %v9187, %v9378
  %v9466 = vsel %vm951, %v9212, %v9380
  %v9467 = vsel %vm951, %v9236, %v9382
  %v9468 = vsel %vm951, %v9261, %v9384
  %v9469 = vsel %vm951, %v9285, %v9386
  %v9470 = vsel %vm951, %v9310, %v9388
  %v9471 = vsel %vm951, %v9334, %v9390
  %v9472 = vsel %vm951, %v9359, %v9392
  %v9473 = vsel %vm2865, %v9465, %v9410
  %v9474 = vsel %vm2865, %v9466, %v9412
  %v9475 = vsel %vm2865, %v9467, %v9414
  %v9476 = vsel %vm2865, %v9468, %v9416
  %v9477 = vsel %vm2865, %v9469, %v9418
  %v9478 = vsel %vm2865, %v9470, %v9420
  %v9479 = vsel %vm2865, %v9471, %v9422
  %v9480 = vsel %vm2865, %v9472, %v9424
  %v9481 = vsel %vm2874, %v9473, %v9442
  %v9482 = vsel %vm2874, %v9474, %v9444
  %v9483 = vsel %vm2874, %v9475, %v9446
  %v9484 = vsel %vm2874, %v9476, %v9448
  %v9485 = vsel %vm2874, %v9477, %v9450
  %v9486 = vsel %vm2874, %v9478, %v9452
  %v9487 = vsel %vm2874, %v9479, %v9454
  %v9488 = vsel %vm2874, %v9480, %v9456
  %v9497 = vrot.slane %v9481, 7
  %v9498 = vrot.slane %v9482, 7
  %v9499 = vrot.slane %v9483, 7
  %v9500 = vrot.slane %v9484, 7
  %v9501 = vrot.slane %v9485, 7
  %v9502 = vrot.slane %v9486, 7
  %v9503 = vrot.slane %v9487, 7
  %v9504 = vrot.slane %v9488, 7
  %v9513 = vsel %vm3223, %v9165, %v9497
  %v9514 = vsel %vm3223, %v9166, %v9498
  %v9515 = vsel %vm3223, %v9167, %v9499
  %v9516 = vsel %vm3223, %v9168, %v9500
  %v9517 = vsel %vm3223, %v9169, %v9501
  %v9518 = vsel %vm3223, %v9170, %v9502
  %v9519 = vsel %vm3223, %v9171, %v9503
  %v9520 = vsel %vm3223, %v9172, %v9504
  %s9521 = scalar_lea.vmem %s4, 64
  %v9522 = vld [vmem:[%s9521] sm:$0xff]
  %v9523 = vld [vmem:[%s9521 + $0x8] sm:$0xff]
  %v9524 = vld [vmem:[%s9521 + $0x10] sm:$0xff]
  %v9525 = vld [vmem:[%s9521 + $0x18] sm:$0xff]
  %v9526 = vld [vmem:[%s9521 + $0x20] sm:$0xff]
  %v9527 = vld [vmem:[%s9521 + $0x28] sm:$0xff]
  %v9528 = vld [vmem:[%s9521 + $0x30] sm:$0xff]
  %v9529 = vld [vmem:[%s9521 + $0x38] sm:$0xff]
  %v9530 = vlaneseq
  %v9531 = vshrl.u32 %v9530, 7
  %v9532 = vsub.s32 0, %v9531
  %v9533 = vrot.slane %v6399, %v9532
  %v9542 = vcombine.low %v9513, %v9514
  %v9543 = vcombine.low %v9515, %v9516
  %v9545 = vunpack.c.l.s4 1983009808
  %v9546 = vunpack.c.0.s8 %v9545
  %v9547 = vlaneseq
  %v9548 = vshrl.u32 %v9547, 7
  %v9549 = vsub.s32 %v9546, %v9548
  %v9550 = vrot.slane %v9542, %v9549
  %v9552 = vunpack.c.l.s4 1983009808
  %v9553 = vunpack.c.0.s8 %v9552
  %v9554 = vlaneseq
  %v9555 = vshrl.u32 %v9554, 7
  %v9556 = vsub.s32 %v9553, %v9555
  %v9557 = vrot.slane %v9543, %v9556
  %v9558 = vcombine.low %v9550, %v9557
  %v9559 = vcombine.low %v9517, %v9518
  %v9560 = vcombine.low %v9519, %v9520
  %v9562 = vunpack.c.l.s4 1983009808
  %v9563 = vunpack.c.0.s8 %v9562
  %v9564 = vlaneseq
  %v9565 = vshrl.u32 %v9564, 7
  %v9566 = vsub.s32 %v9563, %v9565
  %v9567 = vrot.slane %v9559, %v9566
  %v9569 = vunpack.c.l.s4 1983009808
  %v9570 = vunpack.c.0.s8 %v9569
  %v9571 = vlaneseq
  %v9572 = vshrl.u32 %v9571, 7
  %v9573 = vsub.s32 %v9570, %v9572
  %v9574 = vrot.slane %v9560, %v9573
  %v9575 = vcombine.low %v9567, %v9574
  %v9576 = vsel %vm177, %v9558, 0
  %v9578 = vsel %vm177, %v9575, 0
  %9580 = vmatprep.subr.mxu0 0.0
  %9581 = vmatpush1.msra.mxu0 %v9522
  %9582 = vmatprep.subr.mxu0 0.0
  %9583 = vmatpush1.msra.mxu0 %v9523
  %9584 = vmatprep.subr.mxu0 0.0
  %9585 = vmatpush1.msra.mxu0 %v9524
  %9586 = vmatprep.subr.mxu0 0.0
  %9587 = vmatpush1.msra.mxu0 %v9525
  %9588 = vmatprep.subr.mxu0 0.0
  %9589 = vmatpush1.msra.mxu0 %v9526
  %9590 = vmatprep.subr.mxu0 0.0
  %9591 = vmatpush1.msra.mxu0 %v9527
  %9592 = vmatprep.subr.mxu0 0.0
  %9593 = vmatpush1.msra.mxu0 %v9528
  %9594 = vmatprep.subr.mxu0 0.0
  %9595 = vmatpush1.msra.mxu0 %v9529
  %9596 = vmatprep.subr.mxu0 0.0
  %9597 = vmatpush1.msra.mxu0 0.0
  %9598 = vmatprep.subr.mxu0 0.0
  %9599 = vmatpush1.msra.mxu0 0.0
  %9600 = vmatprep.subr.mxu0 0.0
  %9601 = vmatpush1.msra.mxu0 0.0
  %9602 = vmatprep.subr.mxu0 0.0
  %9603 = vmatpush1.msra.mxu0 0.0
  %9604 = vmatprep.subr.mxu0 0.0
  %9605 = vmatpush1.msra.mxu0 0.0
  %9606 = vmatprep.subr.mxu0 0.0
  %9607 = vmatpush1.msra.mxu0 0.0
  %9608 = vmatprep.subr.mxu0 0.0
  %9609 = vmatpush1.msra.mxu0 0.0
  %9610 = vmatprep.subr.mxu0 0.0
  %9611 = vmatpush1.msra.mxu0 0.0
  %9612 = vmatprep.subr.mxu0 0.0
  %9613 = vmatpush1.msra.mxu0 0.0
  %9614 = vmatprep.subr.mxu0 0.0
  %9615 = vmatpush1.msra.mxu0 0.0
  %9616 = vmatprep.subr.mxu0 0.0
  %9617 = vmatpush1.msra.mxu0 0.0
  %9618 = vmatprep.subr.mxu0 0.0
  %9619 = vmatpush1.msra.mxu0 0.0
  %9620 = vmatprep.subr.mxu0 0.0
  %9621 = vmatpush1.msra.mxu0 0.0
  %9622 = vmatprep.subr.mxu0 0.0
  %9623 = vmatpush1.msra.mxu0 0.0
  %9624 = vmatprep.subr.mxu0 0.0
  %9625 = vmatpush1.msra.mxu0 0.0
  %9626 = vmatprep.subr.mxu0 0.0
  %9627 = vmatpush1.msra.mxu0 0.0
  %9628 = vmatprep.subr.mxu0 0.0
  %9629 = vmatpush1.msra.mxu0 0.0
  %9630 = vmatprep.subr.mxu0 0.0
  %9631 = vmatpush1.msra.mxu0 0.0
  %9632 = vmatprep.subr.mxu0 0.0
  %9633 = vmatpush1.msra.mxu0 0.0
  %9634 = vmatprep.subr.mxu0 0.0
  %9635 = vmatpush1.msra.mxu0 0.0
  %9636 = vmatprep.subr.mxu0 0.0
  %9637 = vmatpush1.msra.mxu0 0.0
  %9638 = vmatprep.subr.mxu0 0.0
  %9639 = vmatpush1.msra.mxu0 0.0
  %9640 = vmatprep.subr.mxu0 0.0
  %9641 = vmatpush1.msra.mxu0 0.0
  %9642 = vmatprep.subr.mxu0 0.0
  %9643 = vmatpush1.msra.mxu0 0.0
  %9644 = vmatprep.mubr.f32.mxu0 0.0
  %9645 = vmatmul.mubr.f32.gmra.mrb[0].mxu0 %v9576
  %v9646 = vpop.f32.mrb[0].mxu0
  %v9647 = vadd.f32 %v9533, %v9646
  %v9648 = vpop.f32.mrb[0].mxu0
  %9649 = vmatprep.mubr.f32.mxu0 0.0
  %9650 = vmatmul.mubr.f32.gmra.mrb[0].mxu0 %v9578
  %v9651 = vpop.f32.mrb[0].mxu0
  %v9652 = vadd.f32 %v9533, %v9651
  %v9653 = vpop.f32.mrb[0].mxu0
  %9654 = vdwg.mxu0
  %v9657 = vcombine.high %v9647, %v9647
  %v9659 = vunpack.c.l.s4 1983009808
  %v9660 = vunpack.c.0.s8 %v9659
  %v9661 = vlaneseq
  %v9662 = vshrl.u32 %v9661, 7
  %v9663 = vsub.s32 %v9660, %v9662
  %v9664 = vrot.slane %v9647, %v9663
  %v9666 = vunpack.c.l.s4 1983009808
  %v9667 = vunpack.c.0.s8 %v9666
  %v9668 = vlaneseq
  %v9669 = vshrl.u32 %v9668, 7
  %v9670 = vsub.s32 %v9667, %v9669
  %v9671 = vrot.slane %v9657, %v9670
  %v9672 = vcombine.high %v9664, %v9664
  %v9673 = vcombine.high %v9671, %v9671
  %v9674 = vcombine.high %v9652, %v9652
  %v9676 = vunpack.c.l.s4 1983009808
  %v9677 = vunpack.c.0.s8 %v9676
  %v9678 = vlaneseq
  %v9679 = vshrl.u32 %v9678, 7
  %v9680 = vsub.s32 %v9677, %v9679
  %v9681 = vrot.slane %v9652, %v9680
  %v9683 = vunpack.c.l.s4 1983009808
  %v9684 = vunpack.c.0.s8 %v9683
  %v9685 = vlaneseq
  %v9686 = vshrl.u32 %v9685, 7
  %v9687 = vsub.s32 %v9684, %v9686
  %v9688 = vrot.slane %v9674, %v9687
  %v9689 = vcombine.high %v9681, %v9681
  %v9690 = vcombine.high %v9688, %v9688
  %v9699 = vadd.f32 %v6390, %v9664
  %v9700 = vadd.f32 %v6391, %v9672
  %v9701 = vadd.f32 %v6392, %v9671
  %v9702 = vadd.f32 %v6393, %v9673
  %v9703 = vadd.f32 %v6394, %v9681
  %v9704 = vadd.f32 %v6395, %v9689
  %v9705 = vadd.f32 %v6396, %v9688
  %v9706 = vadd.f32 %v6397, %v9690
  %v9715 = vcombine.low %v9699, %v9700
  %v9716 = vcombine.low %v9701, %v9702
  %v9718 = vunpack.c.l.s4 1983009808
  %v9719 = vunpack.c.0.s8 %v9718
  %v9720 = vlaneseq
  %v9721 = vshrl.u32 %v9720, 7
  %v9722 = vsub.s32 %v9719, %v9721
  %v9723 = vrot.slane %v9715, %v9722
  %v9725 = vunpack.c.l.s4 1983009808
  %v9726 = vunpack.c.0.s8 %v9725
  %v9727 = vlaneseq
  %v9728 = vshrl.u32 %v9727, 7
  %v9729 = vsub.s32 %v9726, %v9728
  %v9730 = vrot.slane %v9716, %v9729
  %v9731 = vcombine.low %v9723, %v9730
  %v9732 = vcombine.low %v9703, %v9704
  %v9733 = vcombine.low %v9705, %v9706
  %v9735 = vunpack.c.l.s4 1983009808
  %v9736 = vunpack.c.0.s8 %v9735
  %v9737 = vlaneseq
  %v9738 = vshrl.u32 %v9737, 7
  %v9739 = vsub.s32 %v9736, %v9738
  %v9740 = vrot.slane %v9732, %v9739
  %v9742 = vunpack.c.l.s4 1983009808
  %v9743 = vunpack.c.0.s8 %v9742
  %v9744 = vlaneseq
  %v9745 = vshrl.u32 %v9744, 7
  %v9746 = vsub.s32 %v9743, %v9745
  %v9747 = vrot.slane %v9733, %v9746
  %v9748 = vcombine.low %v9740, %v9747
  %v9751 = vsel %vm177, %v9731, 0.0
  %9752 = vadd.xlane.f32.xlu0 %v9751
  %v9753 = vpop.xlane.xlu0 %9752
  %v9754 = vsel %vm177, %v9748, 0.0
  %9755 = vadd.xlane.f32.xlu0 %v9754
  %v9756 = vpop.xlane.xlu0 %9755
  %v9757 = vmul.f32 %v9753, %v3467
  %v9758 = vmul.f32 %v9756, %v3467
  %v9762 = vunpack.c.l.s4 269488144
  %v9763 = vunpack.c.0.s8 %v9762
  %v9764 = vlaneseq
  %v9765 = vshrl.u32 %v9764, 7
  %v9766 = vsub.s32 %v9763, %v9765
  %v9767 = vrot.slane %v9757, %v9766
  %v9769 = vunpack.c.l.s4 842150450
  %v9770 = vunpack.c.0.s8 %v9769
  %v9771 = vlaneseq
  %v9772 = vshrl.u32 %v9771, 7
  %v9773 = vsub.s32 %v9770, %v9772
  %v9774 = vrot.slane %v9757, %v9773
  %v9776 = vunpack.c.l.s4 1414812756
  %v9777 = vunpack.c.0.s8 %v9776
  %v9778 = vlaneseq
  %v9779 = vshrl.u32 %v9778, 7
  %v9780 = vsub.s32 %v9777, %v9779
  %v9781 = vrot.slane %v9757, %v9780
  %v9783 = vunpack.c.l.s4 1987475062
  %v9784 = vunpack.c.0.s8 %v9783
  %v9785 = vlaneseq
  %v9786 = vshrl.u32 %v9785, 7
  %v9787 = vsub.s32 %v9784, %v9786
  %v9788 = vrot.slane %v9757, %v9787
  %v9790 = vunpack.c.l.s4 269488144
  %v9791 = vunpack.c.0.s8 %v9790
  %v9792 = vlaneseq
  %v9793 = vshrl.u32 %v9792, 7
  %v9794 = vsub.s32 %v9791, %v9793
  %v9795 = vrot.slane %v9758, %v9794
  %v9797 = vunpack.c.l.s4 842150450
  %v9798 = vunpack.c.0.s8 %v9797
  %v9799 = vlaneseq
  %v9800 = vshrl.u32 %v9799, 7
  %v9801 = vsub.s32 %v9798, %v9800
  %v9802 = vrot.slane %v9758, %v9801
  %v9804 = vunpack.c.l.s4 1414812756
  %v9805 = vunpack.c.0.s8 %v9804
  %v9806 = vlaneseq
  %v9807 = vshrl.u32 %v9806, 7
  %v9808 = vsub.s32 %v9805, %v9807
  %v9809 = vrot.slane %v9758, %v9808
  %v9811 = vunpack.c.l.s4 1987475062
  %v9812 = vunpack.c.0.s8 %v9811
  %v9813 = vlaneseq
  %v9814 = vshrl.u32 %v9813, 7
  %v9815 = vsub.s32 %v9812, %v9814
  %v9816 = vrot.slane %v9758, %v9815
  %v9825 = vsub.f32 %v9699, %v9767
  %v9826 = vsub.f32 %v9700, %v9774
  %v9827 = vsub.f32 %v9701, %v9781
  %v9828 = vsub.f32 %v9702, %v9788
  %v9829 = vsub.f32 %v9703, %v9795
  %v9830 = vsub.f32 %v9704, %v9802
  %v9831 = vsub.f32 %v9705, %v9809
  %v9832 = vsub.f32 %v9706, %v9816
  %v9833 = vmul.f32 %v9825, %v9825
  %v9834 = vmul.f32 %v9826, %v9826
  %v9835 = vmul.f32 %v9827, %v9827
  %v9836 = vmul.f32 %v9828, %v9828
  %v9837 = vmul.f32 %v9829, %v9829
  %v9838 = vmul.f32 %v9830, %v9830
  %v9839 = vmul.f32 %v9831, %v9831
  %v9840 = vmul.f32 %v9832, %v9832
  %v9849 = vcombine.low %v9833, %v9834
  %v9850 = vcombine.low %v9835, %v9836
  %v9852 = vunpack.c.l.s4 1983009808
  %v9853 = vunpack.c.0.s8 %v9852
  %v9854 = vlaneseq
  %v9855 = vshrl.u32 %v9854, 7
  %v9856 = vsub.s32 %v9853, %v9855
  %v9857 = vrot.slane %v9849, %v9856
  %v9859 = vunpack.c.l.s4 1983009808
  %v9860 = vunpack.c.0.s8 %v9859
  %v9861 = vlaneseq
  %v9862 = vshrl.u32 %v9861, 7
  %v9863 = vsub.s32 %v9860, %v9862
  %v9864 = vrot.slane %v9850, %v9863
  %v9865 = vcombine.low %v9857, %v9864
  %v9866 = vcombine.low %v9837, %v9838
  %v9867 = vcombine.low %v9839, %v9840
  %v9869 = vunpack.c.l.s4 1983009808
  %v9870 = vunpack.c.0.s8 %v9869
  %v9871 = vlaneseq
  %v9872 = vshrl.u32 %v9871, 7
  %v9873 = vsub.s32 %v9870, %v9872
  %v9874 = vrot.slane %v9866, %v9873
  %v9876 = vunpack.c.l.s4 1983009808
  %v9877 = vunpack.c.0.s8 %v9876
  %v9878 = vlaneseq
  %v9879 = vshrl.u32 %v9878, 7
  %v9880 = vsub.s32 %v9877, %v9879
  %v9881 = vrot.slane %v9867, %v9880
  %v9882 = vcombine.low %v9874, %v9881
  %v9885 = vsel %vm177, %v9865, 0.0
  %9886 = vadd.xlane.f32.xlu0 %v9885
  %v9887 = vpop.xlane.xlu0 %9886
  %v9888 = vsel %vm177, %v9882, 0.0
  %9889 = vadd.xlane.f32.xlu0 %v9888
  %v9890 = vpop.xlane.xlu0 %9889
  %v9891 = vmul.f32 %v9887, %v3467
  %v9892 = vmul.f32 %v9890, %v3467
  %v9893 = vadd.f32 %v9891, 1e-05
  %v9894 = vadd.f32 %v9892, 1e-05
  %v9895 = vrsqrt.pop %v9893
  %v9896 = vrsqrt.pop %v9894
  %v9900 = vunpack.c.l.s4 269488144
  %v9901 = vunpack.c.0.s8 %v9900
  %v9902 = vlaneseq
  %v9903 = vshrl.u32 %v9902, 7
  %v9904 = vsub.s32 %v9901, %v9903
  %v9905 = vrot.slane %v9895, %v9904
  %v9907 = vunpack.c.l.s4 842150450
  %v9908 = vunpack.c.0.s8 %v9907
  %v9909 = vlaneseq
  %v9910 = vshrl.u32 %v9909, 7
  %v9911 = vsub.s32 %v9908, %v9910
  %v9912 = vrot.slane %v9895, %v9911
  %v9914 = vunpack.c.l.s4 1414812756
  %v9915 = vunpack.c.0.s8 %v9914
  %v9916 = vlaneseq
  %v9917 = vshrl.u32 %v9916, 7
  %v9918 = vsub.s32 %v9915, %v9917
  %v9919 = vrot.slane %v9895, %v9918
  %v9921 = vunpack.c.l.s4 1987475062
  %v9922 = vunpack.c.0.s8 %v9921
  %v9923 = vlaneseq
  %v9924 = vshrl.u32 %v9923, 7
  %v9925 = vsub.s32 %v9922, %v9924
  %v9926 = vrot.slane %v9895, %v9925
  %v9928 = vunpack.c.l.s4 269488144
  %v9929 = vunpack.c.0.s8 %v9928
  %v9930 = vlaneseq
  %v9931 = vshrl.u32 %v9930, 7
  %v9932 = vsub.s32 %v9929, %v9931
  %v9933 = vrot.slane %v9896, %v9932
  %v9935 = vunpack.c.l.s4 842150450
  %v9936 = vunpack.c.0.s8 %v9935
  %v9937 = vlaneseq
  %v9938 = vshrl.u32 %v9937, 7
  %v9939 = vsub.s32 %v9936, %v9938
  %v9940 = vrot.slane %v9896, %v9939
  %v9942 = vunpack.c.l.s4 1414812756
  %v9943 = vunpack.c.0.s8 %v9942
  %v9944 = vlaneseq
  %v9945 = vshrl.u32 %v9944, 7
  %v9946 = vsub.s32 %v9943, %v9945
  %v9947 = vrot.slane %v9896, %v9946
  %v9949 = vunpack.c.l.s4 1987475062
  %v9950 = vunpack.c.0.s8 %v9949
  %v9951 = vlaneseq
  %v9952 = vshrl.u32 %v9951, 7
  %v9953 = vsub.s32 %v9950, %v9952
  %v9954 = vrot.slane %v9896, %v9953
  %v9963 = vmul.f32 %v9825, %v9905
  %v9964 = vmul.f32 %v9826, %v9912
  %v9965 = vmul.f32 %v9827, %v9919
  %v9966 = vmul.f32 %v9828, %v9926
  %v9967 = vmul.f32 %v9829, %v9933
  %v9968 = vmul.f32 %v9830, %v9940
  %v9969 = vmul.f32 %v9831, %v9947
  %v9970 = vmul.f32 %v9832, %v9954
  %v9971 = vlaneseq
  %v9972 = vshrl.u32 %v9971, 7
  %v9973 = vsub.s32 1, %v9972
  %v9974 = vrot.slane %v6399, %v9973
  %v9976 = vcombine.high %v9974, %v9974
  %v9978 = vunpack.c.l.s4 1983009808
  %v9979 = vunpack.c.0.s8 %v9978
  %v9980 = vlaneseq
  %v9981 = vshrl.u32 %v9980, 7
  %v9982 = vsub.s32 %v9979, %v9981
  %v9983 = vrot.slane %v9974, %v9982
  %v9985 = vunpack.c.l.s4 1983009808
  %v9986 = vunpack.c.0.s8 %v9985
  %v9987 = vlaneseq
  %v9988 = vshrl.u32 %v9987, 7
  %v9989 = vsub.s32 %v9986, %v9988
  %v9990 = vrot.slane %v9976, %v9989
  %v9991 = vcombine.high %v9983, %v9983
  %v9992 = vcombine.high %v9990, %v9990
  %v9997 = vmul.f32 %v9963, %v9983
  %v9998 = vmul.f32 %v9964, %v9991
  %v9999 = vmul.f32 %v9965, %v9990
  %v10000 = vmul.f32 %v9966, %v9992
  %v10001 = vmul.f32 %v9967, %v9983
  %v10002 = vmul.f32 %v9968, %v9991
  %v10003 = vmul.f32 %v9969, %v9990
  %v10004 = vmul.f32 %v9970, %v9992
  %v10005 = vlaneseq
  %v10006 = vshrl.u32 %v10005, 7
  %v10007 = vsub.s32 2, %v10006
  %v10008 = vrot.slane %v6399, %v10007
  %v10010 = vcombine.high %v10008, %v10008
  %v10012 = vunpack.c.l.s4 1983009808
  %v10013 = vunpack.c.0.s8 %v10012
  %v10014 = vlaneseq
  %v10015 = vshrl.u32 %v10014, 7
  %v10016 = vsub.s32 %v10013, %v10015
  %v10017 = vrot.slane %v10008, %v10016
  %v10019 = vunpack.c.l.s4 1983009808
  %v10020 = vunpack.c.0.s8 %v10019
  %v10021 = vlaneseq
  %v10022 = vshrl.u32 %v10021, 7
  %v10023 = vsub.s32 %v10020, %v10022
  %v10024 = vrot.slane %v10010, %v10023
  %v10025 = vcombine.high %v10017, %v10017
  %v10026 = vcombine.high %v10024, %v10024
  %v10031 = vadd.f32 %v9997, %v10017
  %v10032 = vadd.f32 %v9998, %v10025
  %v10033 = vadd.f32 %v9999, %v10024
  %v10034 = vadd.f32 %v10000, %v10026
  %v10035 = vadd.f32 %v10001, %v10017
  %v10036 = vadd.f32 %v10002, %v10025
  %v10037 = vadd.f32 %v10003, %v10024
  %v10038 = vadd.f32 %v10004, %v10026
  %v10047 = vcombine.low %v10031, %v10032
  %v10048 = vcombine.low %v10033, %v10034
  %v10050 = vunpack.c.l.s4 1983009808
  %v10051 = vunpack.c.0.s8 %v10050
  %v10052 = vlaneseq
  %v10053 = vshrl.u32 %v10052, 7
  %v10054 = vsub.s32 %v10051, %v10053
  %v10055 = vrot.slane %v10047, %v10054
  %v10057 = vunpack.c.l.s4 1983009808
  %v10058 = vunpack.c.0.s8 %v10057
  %v10059 = vlaneseq
  %v10060 = vshrl.u32 %v10059, 7
  %v10061 = vsub.s32 %v10058, %v10060
  %v10062 = vrot.slane %v10048, %v10061
  %v10063 = vcombine.low %v10055, %v10062
  %v10064 = vcombine.low %v10035, %v10036
  %v10065 = vcombine.low %v10037, %v10038
  %v10067 = vunpack.c.l.s4 1983009808
  %v10068 = vunpack.c.0.s8 %v10067
  %v10069 = vlaneseq
  %v10070 = vshrl.u32 %v10069, 7
  %v10071 = vsub.s32 %v10068, %v10070
  %v10072 = vrot.slane %v10064, %v10071
  %v10074 = vunpack.c.l.s4 1983009808
  %v10075 = vunpack.c.0.s8 %v10074
  %v10076 = vlaneseq
  %v10077 = vshrl.u32 %v10076, 7
  %v10078 = vsub.s32 %v10075, %v10077
  %v10079 = vrot.slane %v10065, %v10078
  %v10080 = vcombine.low %v10072, %v10079
  %v10083 = vpack.c.bf16 %v10080, %v10063
  %s10084 = scalar_lea.vmem %s6, 512
  %v10085 = vld [vmem:[%s10084] sm:$0xff]
  %v10086 = vld [vmem:[%s10084 + $0x8] sm:$0xff]
  %v10087 = vld [vmem:[%s10084 + $0x10] sm:$0xff]
  %v10088 = vld [vmem:[%s10084 + $0x18] sm:$0xff]
  %v10089 = vld [vmem:[%s10084 + $0x20] sm:$0xff]
  %v10090 = vld [vmem:[%s10084 + $0x28] sm:$0xff]
  %v10091 = vld [vmem:[%s10084 + $0x30] sm:$0xff]
  %v10092 = vld [vmem:[%s10084 + $0x38] sm:$0xff]
  %v10093 = vld [vmem:[%s10084 + $0x40] sm:$0xff]
  %v10094 = vld [vmem:[%s10084 + $0x48] sm:$0xff]
  %v10095 = vld [vmem:[%s10084 + $0x50] sm:$0xff]
  %v10096 = vld [vmem:[%s10084 + $0x58] sm:$0xff]
  %v10097 = vld [vmem:[%s10084 + $0x60] sm:$0xff]
  %v10098 = vld [vmem:[%s10084 + $0x68] sm:$0xff]
  %v10099 = vld [vmem:[%s10084 + $0x70] sm:$0xff]
  %v10100 = vld [vmem:[%s10084 + $0x78] sm:$0xff]
  %v10101 = vld [vmem:[%s10084 + $0x80] sm:$0xff]
  %v10102 = vld [vmem:[%s10084 + $0x88] sm:$0xff]
  %v10103 = vld [vmem:[%s10084 + $0x90] sm:$0xff]
  %v10104 = vld [vmem:[%s10084 + $0x98] sm:$0xff]
  %v10105 = vld [vmem:[%s10084 + $0xa0] sm:$0xff]
  %v10106 = vld [vmem:[%s10084 + $0xa8] sm:$0xff]
  %v10107 = vld [vmem:[%s10084 + $0xb0] sm:$0xff]
  %v10108 = vld [vmem:[%s10084 + $0xb8] sm:$0xff]
  %v10109 = vld [vmem:[%s10084 + $0xc0] sm:$0xff]
  %v10110 = vld [vmem:[%s10084 + $0xc8] sm:$0xff]
  %v10111 = vld [vmem:[%s10084 + $0xd0] sm:$0xff]
  %v10112 = vld [vmem:[%s10084 + $0xd8] sm:$0xff]
  %v10113 = vld [vmem:[%s10084 + $0xe0] sm:$0xff]
  %v10114 = vld [vmem:[%s10084 + $0xe8] sm:$0xff]
  %v10115 = vld [vmem:[%s10084 + $0xf0] sm:$0xff]
  %v10116 = vld [vmem:[%s10084 + $0xf8] sm:$0xff]
  %v10117 = vld [vmem:[%s10084 + $0x100] sm:$0xff]
  %v10118 = vld [vmem:[%s10084 + $0x108] sm:$0xff]
  %v10119 = vld [vmem:[%s10084 + $0x110] sm:$0xff]
  %v10120 = vld [vmem:[%s10084 + $0x118] sm:$0xff]
  %v10121 = vld [vmem:[%s10084 + $0x120] sm:$0xff]
  %v10122 = vld [vmem:[%s10084 + $0x128] sm:$0xff]
  %v10123 = vld [vmem:[%s10084 + $0x130] sm:$0xff]
  %v10124 = vld [vmem:[%s10084 + $0x138] sm:$0xff]
  %v10125 = vld [vmem:[%s10084 + $0x140] sm:$0xff]
  %v10126 = vld [vmem:[%s10084 + $0x148] sm:$0xff]
  %v10127 = vld [vmem:[%s10084 + $0x150] sm:$0xff]
  %v10128 = vld [vmem:[%s10084 + $0x158] sm:$0xff]
  %v10129 = vld [vmem:[%s10084 + $0x160] sm:$0xff]
  %v10130 = vld [vmem:[%s10084 + $0x168] sm:$0xff]
  %v10131 = vld [vmem:[%s10084 + $0x170] sm:$0xff]
  %v10132 = vld [vmem:[%s10084 + $0x178] sm:$0xff]
  %v10133 = vld [vmem:[%s10084 + $0x180] sm:$0xff]
  %v10134 = vld [vmem:[%s10084 + $0x188] sm:$0xff]
  %v10135 = vld [vmem:[%s10084 + $0x190] sm:$0xff]
  %v10136 = vld [vmem:[%s10084 + $0x198] sm:$0xff]
  %v10137 = vld [vmem:[%s10084 + $0x1a0] sm:$0xff]
  %v10138 = vld [vmem:[%s10084 + $0x1a8] sm:$0xff]
  %v10139 = vld [vmem:[%s10084 + $0x1b0] sm:$0xff]
  %v10140 = vld [vmem:[%s10084 + $0x1b8] sm:$0xff]
  %v10141 = vld [vmem:[%s10084 + $0x1c0] sm:$0xff]
  %v10142 = vld [vmem:[%s10084 + $0x1c8] sm:$0xff]
  %v10143 = vld [vmem:[%s10084 + $0x1d0] sm:$0xff]
  %v10144 = vld [vmem:[%s10084 + $0x1d8] sm:$0xff]
  %v10145 = vld [vmem:[%s10084 + $0x1e0] sm:$0xff]
  %v10146 = vld [vmem:[%s10084 + $0x1e8] sm:$0xff]
  %v10147 = vld [vmem:[%s10084 + $0x1f0] sm:$0xff]
  %v10148 = vld [vmem:[%s10084 + $0x1f8] sm:$0xff]
  %s10149 = scalar_lea.vmem %s7, 16
  %v10150 = vld [vmem:[%s10149] sm:$0xff]
  %v10151 = vld [vmem:[%s10149 + $0x8] sm:$0xff]
  %v10154 = vlaneseq
  %v10155 = vshrl.u32 %v10154, 7
  %v10156 = vsub.s32 0, %v10155
  %v10157 = vrot.slane %v10150, %v10156
  %v10158 = vlaneseq
  %v10159 = vshrl.u32 %v10158, 7
  %v10160 = vsub.s32 1, %v10159
  %v10161 = vrot.slane %v10150, %v10160
  %v10162 = vlaneseq
  %v10163 = vshrl.u32 %v10162, 7
  %v10164 = vsub.s32 2, %v10163
  %v10165 = vrot.slane %v10150, %v10164
  %v10166 = vlaneseq
  %v10167 = vshrl.u32 %v10166, 7
  %v10168 = vsub.s32 3, %v10167
  %v10169 = vrot.slane %v10150, %v10168
  %v10170 = vlaneseq
  %v10171 = vshrl.u32 %v10170, 7
  %v10172 = vsub.s32 4, %v10171
  %v10173 = vrot.slane %v10150, %v10172
  %v10174 = vlaneseq
  %v10175 = vshrl.u32 %v10174, 7
  %v10176 = vsub.s32 5, %v10175
  %v10177 = vrot.slane %v10150, %v10176
  %v10178 = vlaneseq
  %v10179 = vshrl.u32 %v10178, 7
  %v10180 = vsub.s32 6, %v10179
  %v10181 = vrot.slane %v10150, %v10180
  %v10182 = vlaneseq
  %v10183 = vshrl.u32 %v10182, 7
  %v10184 = vsub.s32 7, %v10183
  %v10185 = vrot.slane %v10150, %v10184
  %v10186 = vlaneseq
  %v10187 = vshrl.u32 %v10186, 7
  %v10188 = vsub.s32 0, %v10187
  %v10189 = vrot.slane %v10151, %v10188
  %v10190 = vlaneseq
  %v10191 = vshrl.u32 %v10190, 7
  %v10192 = vsub.s32 1, %v10191
  %v10193 = vrot.slane %v10151, %v10192
  %v10194 = vlaneseq
  %v10195 = vshrl.u32 %v10194, 7
  %v10196 = vsub.s32 2, %v10195
  %v10197 = vrot.slane %v10151, %v10196
  %v10198 = vlaneseq
  %v10199 = vshrl.u32 %v10198, 7
  %v10200 = vsub.s32 3, %v10199
  %v10201 = vrot.slane %v10151, %v10200
  %v10202 = vlaneseq
  %v10203 = vshrl.u32 %v10202, 7
  %v10204 = vsub.s32 4, %v10203
  %v10205 = vrot.slane %v10151, %v10204
  %v10206 = vlaneseq
  %v10207 = vshrl.u32 %v10206, 7
  %v10208 = vsub.s32 5, %v10207
  %v10209 = vrot.slane %v10151, %v10208
  %v10210 = vlaneseq
  %v10211 = vshrl.u32 %v10210, 7
  %v10212 = vsub.s32 6, %v10211
  %v10213 = vrot.slane %v10151, %v10212
  %v10214 = vlaneseq
  %v10215 = vshrl.u32 %v10214, 7
  %v10216 = vsub.s32 7, %v10215
  %v10217 = vrot.slane %v10151, %v10216
  %v10298 = vunpack.c.l.b16 %v10085
  %v10299 = vunpack.c.h.b16 %v10085
  %v10300 = vunpack.c.l.b16 %v10086
  %v10301 = vunpack.c.h.b16 %v10086
  %v10302 = vunpack.c.l.b16 %v10087
  %v10303 = vunpack.c.h.b16 %v10087
  %v10304 = vunpack.c.l.b16 %v10088
  %v10305 = vunpack.c.h.b16 %v10088
  %v10306 = vunpack.c.l.b16 %v10089
  %v10307 = vunpack.c.h.b16 %v10089
  %v10308 = vunpack.c.l.b16 %v10090
  %v10309 = vunpack.c.h.b16 %v10090
  %v10310 = vunpack.c.l.b16 %v10091
  %v10311 = vunpack.c.h.b16 %v10091
  %v10312 = vunpack.c.l.b16 %v10092
  %v10313 = vunpack.c.h.b16 %v10092
  %v10314 = vunpack.c.l.b16 %v10093
  %v10315 = vunpack.c.h.b16 %v10093
  %v10316 = vunpack.c.l.b16 %v10094
  %v10317 = vunpack.c.h.b16 %v10094
  %v10318 = vunpack.c.l.b16 %v10095
  %v10319 = vunpack.c.h.b16 %v10095
  %v10320 = vunpack.c.l.b16 %v10096
  %v10321 = vunpack.c.h.b16 %v10096
  %v10322 = vunpack.c.l.b16 %v10097
  %v10323 = vunpack.c.h.b16 %v10097
  %v10324 = vunpack.c.l.b16 %v10098
  %v10325 = vunpack.c.h.b16 %v10098
  %v10326 = vunpack.c.l.b16 %v10099
  %v10327 = vunpack.c.h.b16 %v10099
  %v10328 = vunpack.c.l.b16 %v10100
  %v10329 = vunpack.c.h.b16 %v10100
  %v10330 = vunpack.c.l.b16 %v10101
  %v10331 = vunpack.c.h.b16 %v10101
  %v10332 = vunpack.c.l.b16 %v10102
  %v10333 = vunpack.c.h.b16 %v10102
  %v10334 = vunpack.c.l.b16 %v10103
  %v10335 = vunpack.c.h.b16 %v10103
  %v10336 = vunpack.c.l.b16 %v10104
  %v10337 = vunpack.c.h.b16 %v10104
  %v10338 = vunpack.c.l.b16 %v10105
  %v10339 = vunpack.c.h.b16 %v10105
  %v10340 = vunpack.c.l.b16 %v10106
  %v10341 = vunpack.c.h.b16 %v10106
  %v10342 = vunpack.c.l.b16 %v10107
  %v10343 = vunpack.c.h.b16 %v10107
  %v10344 = vunpack.c.l.b16 %v10108
  %v10345 = vunpack.c.h.b16 %v10108
  %v10346 = vunpack.c.l.b16 %v10109
  %v10347 = vunpack.c.h.b16 %v10109
  %v10348 = vunpack.c.l.b16 %v10110
  %v10349 = vunpack.c.h.b16 %v10110
  %v10350 = vunpack.c.l.b16 %v10111
  %v10351 = vunpack.c.h.b16 %v10111
  %v10352 = vunpack.c.l.b16 %v10112
  %v10353 = vunpack.c.h.b16 %v10112
  %v10354 = vunpack.c.l.b16 %v10113
  %v10355 = vunpack.c.h.b16 %v10113
  %v10356 = vunpack.c.l.b16 %v10114
  %v10357 = vunpack.c.h.b16 %v10114
  %v10358 = vunpack.c.l.b16 %v10115
  %v10359 = vunpack.c.h.b16 %v10115
  %v10360 = vunpack.c.l.b16 %v10116
  %v10361 = vunpack.c.h.b16 %v10116
  %v10362 = vunpack.c.l.b16 %v10117
  %v10363 = vunpack.c.h.b16 %v10117
  %v10364 = vunpack.c.l.b16 %v10118
  %v10365 = vunpack.c.h.b16 %v10118
  %v10366 = vunpack.c.l.b16 %v10119
  %v10367 = vunpack.c.h.b16 %v10119
  %v10368 = vunpack.c.l.b16 %v10120
  %v10369 = vunpack.c.h.b16 %v10120
  %v10370 = vunpack.c.l.b16 %v10121
  %v10371 = vunpack.c.h.b16 %v10121
  %v10372 = vunpack.c.l.b16 %v10122
  %v10373 = vunpack.c.h.b16 %v10122
  %v10374 = vunpack.c.l.b16 %v10123
  %v10375 = vunpack.c.h.b16 %v10123
  %v10376 = vunpack.c.l.b16 %v10124
  %v10377 = vunpack.c.h.b16 %v10124
  %v10378 = vunpack.c.l.b16 %v10125
  %v10379 = vunpack.c.h.b16 %v10125
  %v10380 = vunpack.c.l.b16 %v10126
  %v10381 = vunpack.c.h.b16 %v10126
  %v10382 = vunpack.c.l.b16 %v10127
  %v10383 = vunpack.c.h.b16 %v10127
  %v10384 = vunpack.c.l.b16 %v10128
  %v10385 = vunpack.c.h.b16 %v10128
  %v10386 = vunpack.c.l.b16 %v10129
  %v10387 = vunpack.c.h.b16 %v10129
  %v10388 = vunpack.c.l.b16 %v10130
  %v10389 = vunpack.c.h.b16 %v10130
  %v10390 = vunpack.c.l.b16 %v10131
  %v10391 = vunpack.c.h.b16 %v10131
  %v10392 = vunpack.c.l.b16 %v10132
  %v10393 = vunpack.c.h.b16 %v10132
  %v10394 = vunpack.c.l.b16 %v10133
  %v10395 = vunpack.c.h.b16 %v10133
  %v10396 = vunpack.c.l.b16 %v10134
  %v10397 = vunpack.c.h.b16 %v10134
  %v10398 = vunpack.c.l.b16 %v10135
  %v10399 = vunpack.c.h.b16 %v10135
  %v10400 = vunpack.c.l.b16 %v10136
  %v10401 = vunpack.c.h.b16 %v10136
  %v10402 = vunpack.c.l.b16 %v10137
  %v10403 = vunpack.c.h.b16 %v10137
  %v10404 = vunpack.c.l.b16 %v10138
  %v10405 = vunpack.c.h.b16 %v10138
  %v10406 = vunpack.c.l.b16 %v10139
  %v10407 = vunpack.c.h.b16 %v10139
  %v10408 = vunpack.c.l.b16 %v10140
  %v10409 = vunpack.c.h.b16 %v10140
  %v10410 = vunpack.c.l.b16 %v10141
  %v10411 = vunpack.c.h.b16 %v10141
  %v10412 = vunpack.c.l.b16 %v10142
  %v10413 = vunpack.c.h.b16 %v10142
  %v10414 = vunpack.c.l.b16 %v10143
  %v10415 = vunpack.c.h.b16 %v10143
  %v10416 = vunpack.c.l.b16 %v10144
  %v10417 = vunpack.c.h.b16 %v10144
  %v10418 = vunpack.c.l.b16 %v10145
  %v10419 = vunpack.c.h.b16 %v10145
  %v10420 = vunpack.c.l.b16 %v10146
  %v10421 = vunpack.c.h.b16 %v10146
  %v10422 = vunpack.c.l.b16 %v10147
  %v10423 = vunpack.c.h.b16 %v10147
  %v10424 = vunpack.c.l.b16 %v10148
  %v10425 = vunpack.c.h.b16 %v10148
  %v10426 = vpack.c.b16 %v10314, %v10298
  %v10427 = vpack.c.b16 %v10315, %v10299
  %v10428 = vpack.c.b16 %v10316, %v10300
  %v10429 = vpack.c.b16 %v10317, %v10301
  %v10430 = vpack.c.b16 %v10318, %v10302
  %v10431 = vpack.c.b16 %v10319, %v10303
  %v10432 = vpack.c.b16 %v10320, %v10304
  %v10433 = vpack.c.b16 %v10321, %v10305
  %v10434 = vpack.c.b16 %v10322, %v10306
  %v10435 = vpack.c.b16 %v10323, %v10307
  %v10436 = vpack.c.b16 %v10324, %v10308
  %v10437 = vpack.c.b16 %v10325, %v10309
  %v10438 = vpack.c.b16 %v10326, %v10310
  %v10439 = vpack.c.b16 %v10327, %v10311
  %v10440 = vpack.c.b16 %v10328, %v10312
  %v10441 = vpack.c.b16 %v10329, %v10313
  %v10442 = vpack.c.b16 %v10346, %v10330
  %v10443 = vpack.c.b16 %v10347, %v10331
  %v10444 = vpack.c.b16 %v10348, %v10332
  %v10445 = vpack.c.b16 %v10349, %v10333
  %v10446 = vpack.c.b16 %v10350, %v10334
  %v10447 = vpack.c.b16 %v10351, %v10335
  %v10448 = vpack.c.b16 %v10352, %v10336
  %v10449 = vpack.c.b16 %v10353, %v10337
  %v10450 = vpack.c.b16 %v10354, %v10338
  %v10451 = vpack.c.b16 %v10355, %v10339
  %v10452 = vpack.c.b16 %v10356, %v10340
  %v10453 = vpack.c.b16 %v10357, %v10341
  %v10454 = vpack.c.b16 %v10358, %v10342
  %v10455 = vpack.c.b16 %v10359, %v10343
  %v10456 = vpack.c.b16 %v10360, %v10344
  %v10457 = vpack.c.b16 %v10361, %v10345
  %v10458 = vpack.c.b16 %v10378, %v10362
  %v10459 = vpack.c.b16 %v10379, %v10363
  %v10460 = vpack.c.b16 %v10380, %v10364
  %v10461 = vpack.c.b16 %v10381, %v10365
  %v10462 = vpack.c.b16 %v10382, %v10366
  %v10463 = vpack.c.b16 %v10383, %v10367
  %v10464 = vpack.c.b16 %v10384, %v10368
  %v10465 = vpack.c.b16 %v10385, %v10369
  %v10466 = vpack.c.b16 %v10386, %v10370
  %v10467 = vpack.c.b16 %v10387, %v10371
  %v10468 = vpack.c.b16 %v10388, %v10372
  %v10469 = vpack.c.b16 %v10389, %v10373
  %v10470 = vpack.c.b16 %v10390, %v10374
  %v10471 = vpack.c.b16 %v10391, %v10375
  %v10472 = vpack.c.b16 %v10392, %v10376
  %v10473 = vpack.c.b16 %v10393, %v10377
  %v10474 = vpack.c.b16 %v10410, %v10394
  %v10475 = vpack.c.b16 %v10411, %v10395
  %v10476 = vpack.c.b16 %v10412, %v10396
  %v10477 = vpack.c.b16 %v10413, %v10397
  %v10478 = vpack.c.b16 %v10414, %v10398
  %v10479 = vpack.c.b16 %v10415, %v10399
  %v10480 = vpack.c.b16 %v10416, %v10400
  %v10481 = vpack.c.b16 %v10417, %v10401
  %v10482 = vpack.c.b16 %v10418, %v10402
  %v10483 = vpack.c.b16 %v10419, %v10403
  %v10484 = vpack.c.b16 %v10420, %v10404
  %v10485 = vpack.c.b16 %v10421, %v10405
  %v10486 = vpack.c.b16 %v10422, %v10406
  %v10487 = vpack.c.b16 %v10423, %v10407
  %v10488 = vpack.c.b16 %v10424, %v10408
  %v10489 = vpack.c.b16 %v10425, %v10409
  %v10555 = vsel %vm177, %v10083, 0
  %10557 = vmatprep.subr.bf16.mxu0 %v10427
  %10558 = vmatpush1.bf16.msra.mxu0 %v10426
  %10559 = vmatprep.subr.bf16.mxu0 %v10443
  %10560 = vmatpush1.bf16.msra.mxu0 %v10442
  %10561 = vmatprep.subr.bf16.mxu0 %v10459
  %10562 = vmatpush1.bf16.msra.mxu0 %v10458
  %10563 = vmatprep.subr.bf16.mxu0 %v10475
  %10564 = vmatpush1.bf16.msra.mxu0 %v10474
  %10565 = vmatprep.subr.bf16.mxu0 0
  %10566 = vmatpush1.bf16.msra.mxu0 0
  %10567 = vmatprep.subr.bf16.mxu0 0
  %10568 = vmatpush1.bf16.msra.mxu0 0
  %10569 = vmatprep.subr.bf16.mxu0 0
  %10570 = vmatpush1.bf16.msra.mxu0 0
  %10571 = vmatprep.subr.bf16.mxu0 0
  %10572 = vmatpush1.bf16.msra.mxu0 0
  %10573 = vmatprep.subr.bf16.mxu0 0
  %10574 = vmatpush1.bf16.msra.mxu0 0
  %10575 = vmatprep.subr.bf16.mxu0 0
  %10576 = vmatpush1.bf16.msra.mxu0 0
  %10577 = vmatprep.subr.bf16.mxu0 0
  %10578 = vmatpush1.bf16.msra.mxu0 0
  %10579 = vmatprep.subr.bf16.mxu0 0
  %10580 = vmatpush1.bf16.msra.mxu0 0
  %10581 = vmatprep.subr.bf16.mxu0 0
  %10582 = vmatpush1.bf16.msra.mxu0 0
  %10583 = vmatprep.subr.bf16.mxu0 0
  %10584 = vmatpush1.bf16.msra.mxu0 0
  %10585 = vmatprep.subr.bf16.mxu0 0
  %10586 = vmatpush1.bf16.msra.mxu0 0
  %10587 = vmatprep.subr.bf16.mxu0 0
  %10588 = vmatpush1.bf16.msra.mxu0 0
  %10589 = vmatprep.mubr.bf16.mxu0 0
  %10590 = vmatmul.mubr.bf16.gmra.mrb[0].mxu0 %v10555
  %v10591 = vpop.f32.mrb[0].mxu0
  %v10592 = vadd.f32 %v10157, %v10591
  %v10593 = vpop.f32.mrb[0].mxu0
  %v10594 = vadd.f32 %v10161, %v10593
  %v10595 = vpop.f32.mrb[0].mxu0
  %v10596 = vadd.f32 %v10157, %v10595
  %v10597 = vpop.f32.mrb[0].mxu0
  %v10598 = vadd.f32 %v10161, %v10597
  %10599 = vdwg.mxu0
  %10600 = vmatprep.subr.bf16.mxu0 %v10429
  %10601 = vmatpush1.bf16.msra.mxu0 %v10428
  %10602 = vmatprep.subr.bf16.mxu0 %v10445
  %10603 = vmatpush1.bf16.msra.mxu0 %v10444
  %10604 = vmatprep.subr.bf16.mxu0 %v10461
  %10605 = vmatpush1.bf16.msra.mxu0 %v10460
  %10606 = vmatprep.subr.bf16.mxu0 %v10477
  %10607 = vmatpush1.bf16.msra.mxu0 %v10476
  %10608 = vmatprep.subr.bf16.mxu0 0
  %10609 = vmatpush1.bf16.msra.mxu0 0
  %10610 = vmatprep.subr.bf16.mxu0 0
  %10611 = vmatpush1.bf16.msra.mxu0 0
  %10612 = vmatprep.subr.bf16.mxu0 0
  %10613 = vmatpush1.bf16.msra.mxu0 0
  %10614 = vmatprep.subr.bf16.mxu0 0
  %10615 = vmatpush1.bf16.msra.mxu0 0
  %10616 = vmatprep.subr.bf16.mxu0 0
  %10617 = vmatpush1.bf16.msra.mxu0 0
  %10618 = vmatprep.subr.bf16.mxu0 0
  %10619 = vmatpush1.bf16.msra.mxu0 0
  %10620 = vmatprep.subr.bf16.mxu0 0
  %10621 = vmatpush1.bf16.msra.mxu0 0
  %10622 = vmatprep.subr.bf16.mxu0 0
  %10623 = vmatpush1.bf16.msra.mxu0 0
  %10624 = vmatprep.subr.bf16.mxu0 0
  %10625 = vmatpush1.bf16.msra.mxu0 0
  %10626 = vmatprep.subr.bf16.mxu0 0
  %10627 = vmatpush1.bf16.msra.mxu0 0
  %10628 = vmatprep.subr.bf16.mxu0 0
  %10629 = vmatpush1.bf16.msra.mxu0 0
  %10630 = vmatprep.subr.bf16.mxu0 0
  %10631 = vmatpush1.bf16.msra.mxu0 0
  %10632 = vmatprep.mubr.bf16.mxu0 0
  %10633 = vmatmul.mubr.bf16.gmra.mrb[0].mxu0 %v10555
  %v10634 = vpop.f32.mrb[0].mxu0
  %v10635 = vadd.f32 %v10165, %v10634
  %v10636 = vpop.f32.mrb[0].mxu0
  %v10637 = vadd.f32 %v10169, %v10636
  %v10638 = vpop.f32.mrb[0].mxu0
  %v10639 = vadd.f32 %v10165, %v10638
  %v10640 = vpop.f32.mrb[0].mxu0
  %v10641 = vadd.f32 %v10169, %v10640
  %10642 = vdwg.mxu0
  %10643 = vmatprep.subr.bf16.mxu0 %v10431
  %10644 = vmatpush1.bf16.msra.mxu0 %v10430
  %10645 = vmatprep.subr.bf16.mxu0 %v10447
  %10646 = vmatpush1.bf16.msra.mxu0 %v10446
  %10647 = vmatprep.subr.bf16.mxu0 %v10463
  %10648 = vmatpush1.bf16.msra.mxu0 %v10462
  %10649 = vmatprep.subr.bf16.mxu0 %v10479
  %10650 = vmatpush1.bf16.msra.mxu0 %v10478
  %10651 = vmatprep.subr.bf16.mxu0 0
  %10652 = vmatpush1.bf16.msra.mxu0 0
  %10653 = vmatprep.subr.bf16.mxu0 0
  %10654 = vmatpush1.bf16.msra.mxu0 0
  %10655 = vmatprep.subr.bf16.mxu0 0
  %10656 = vmatpush1.bf16.msra.mxu0 0
  %10657 = vmatprep.subr.bf16.mxu0 0
  %10658 = vmatpush1.bf16.msra.mxu0 0
  %10659 = vmatprep.subr.bf16.mxu0 0
  %10660 = vmatpush1.bf16.msra.mxu0 0
  %10661 = vmatprep.subr.bf16.mxu0 0
  %10662 = vmatpush1.bf16.msra.mxu0 0
  %10663 = vmatprep.subr.bf16.mxu0 0
  %10664 = vmatpush1.bf16.msra.mxu0 0
  %10665 = vmatprep.subr.bf16.mxu0 0
  %10666 = vmatpush1.bf16.msra.mxu0 0
  %10667 = vmatprep.subr.bf16.mxu0 0
  %10668 = vmatpush1.bf16.msra.mxu0 0
  %10669 = vmatprep.subr.bf16.mxu0 0
  %10670 = vmatpush1.bf16.msra.mxu0 0
  %10671 = vmatprep.subr.bf16.mxu0 0
  %10672 = vmatpush1.bf16.msra.mxu0 0
  %10673 = vmatprep.subr.bf16.mxu0 0
  %10674 = vmatpush1.bf16.msra.mxu0 0
  %10675 = vmatprep.mubr.bf16.mxu0 0
  %10676 = vmatmul.mubr.bf16.gmra.mrb[0].mxu0 %v10555
  %v10677 = vpop.f32.mrb[0].mxu0
  %v10678 = vadd.f32 %v10173, %v10677
  %v10679 = vpop.f32.mrb[0].mxu0
  %v10680 = vadd.f32 %v10177, %v10679
  %v10681 = vpop.f32.mrb[0].mxu0
  %v10682 = vadd.f32 %v10173, %v10681
  %v10683 = vpop.f32.mrb[0].mxu0
  %v10684 = vadd.f32 %v10177, %v10683
  %10685 = vdwg.mxu0
  %10686 = vmatprep.subr.bf16.mxu0 %v10433
  %10687 = vmatpush1.bf16.msra.mxu0 %v10432
  %10688 = vmatprep.subr.bf16.mxu0 %v10449
  %10689 = vmatpush1.bf16.msra.mxu0 %v10448
  %10690 = vmatprep.subr.bf16.mxu0 %v10465
  %10691 = vmatpush1.bf16.msra.mxu0 %v10464
  %10692 = vmatprep.subr.bf16.mxu0 %v10481
  %10693 = vmatpush1.bf16.msra.mxu0 %v10480
  %10694 = vmatprep.subr.bf16.mxu0 0
  %10695 = vmatpush1.bf16.msra.mxu0 0
  %10696 = vmatprep.subr.bf16.mxu0 0
  %10697 = vmatpush1.bf16.msra.mxu0 0
  %10698 = vmatprep.subr.bf16.mxu0 0
  %10699 = vmatpush1.bf16.msra.mxu0 0
  %10700 = vmatprep.subr.bf16.mxu0 0
  %10701 = vmatpush1.bf16.msra.mxu0 0
  %10702 = vmatprep.subr.bf16.mxu0 0
  %10703 = vmatpush1.bf16.msra.mxu0 0
  %10704 = vmatprep.subr.bf16.mxu0 0
  %10705 = vmatpush1.bf16.msra.mxu0 0
  %10706 = vmatprep.subr.bf16.mxu0 0
  %10707 = vmatpush1.bf16.msra.mxu0 0
  %10708 = vmatprep.subr.bf16.mxu0 0
  %10709 = vmatpush1.bf16.msra.mxu0 0
  %10710 = vmatprep.subr.bf16.mxu0 0
  %10711 = vmatpush1.bf16.msra.mxu0 0
  %10712 = vmatprep.subr.bf16.mxu0 0
  %10713 = vmatpush1.bf16.msra.mxu0 0
  %10714 = vmatprep.subr.bf16.mxu0 0
  %10715 = vmatpush1.bf16.msra.mxu0 0
  %10716 = vmatprep.subr.bf16.mxu0 0
  %10717 = vmatpush1.bf16.msra.mxu0 0
  %10718 = vmatprep.mubr.bf16.mxu0 0
  %10719 = vmatmul.mubr.bf16.gmra.mrb[0].mxu0 %v10555
  %v10720 = vpop.f32.mrb[0].mxu0
  %v10721 = vadd.f32 %v10181, %v10720
  %v10722 = vpop.f32.mrb[0].mxu0
  %v10723 = vadd.f32 %v10185, %v10722
  %v10724 = vpop.f32.mrb[0].mxu0
  %v10725 = vadd.f32 %v10181, %v10724
  %v10726 = vpop.f32.mrb[0].mxu0
  %v10727 = vadd.f32 %v10185, %v10726
  %10728 = vdwg.mxu0
  %10729 = vmatprep.subr.bf16.mxu0 %v10435
  %10730 = vmatpush1.bf16.msra.mxu0 %v10434
  %10731 = vmatprep.subr.bf16.mxu0 %v10451
  %10732 = vmatpush1.bf16.msra.mxu0 %v10450
  %10733 = vmatprep.subr.bf16.mxu0 %v10467
  %10734 = vmatpush1.bf16.msra.mxu0 %v10466
  %10735 = vmatprep.subr.bf16.mxu0 %v10483
  %10736 = vmatpush1.bf16.msra.mxu0 %v10482
  %10737 = vmatprep.subr.bf16.mxu0 0
  %10738 = vmatpush1.bf16.msra.mxu0 0
  %10739 = vmatprep.subr.bf16.mxu0 0
  %10740 = vmatpush1.bf16.msra.mxu0 0
  %10741 = vmatprep.subr.bf16.mxu0 0
  %10742 = vmatpush1.bf16.msra.mxu0 0
  %10743 = vmatprep.subr.bf16.mxu0 0
  %10744 = vmatpush1.bf16.msra.mxu0 0
  %10745 = vmatprep.subr.bf16.mxu0 0
  %10746 = vmatpush1.bf16.msra.mxu0 0
  %10747 = vmatprep.subr.bf16.mxu0 0
  %10748 = vmatpush1.bf16.msra.mxu0 0
  %10749 = vmatprep.subr.bf16.mxu0 0
  %10750 = vmatpush1.bf16.msra.mxu0 0
  %10751 = vmatprep.subr.bf16.mxu0 0
  %10752 = vmatpush1.bf16.msra.mxu0 0
  %10753 = vmatprep.subr.bf16.mxu0 0
  %10754 = vmatpush1.bf16.msra.mxu0 0
  %10755 = vmatprep.subr.bf16.mxu0 0
  %10756 = vmatpush1.bf16.msra.mxu0 0
  %10757 = vmatprep.subr.bf16.mxu0 0
  %10758 = vmatpush1.bf16.msra.mxu0 0
  %10759 = vmatprep.subr.bf16.mxu0 0
  %10760 = vmatpush1.bf16.msra.mxu0 0
  %10761 = vmatprep.mubr.bf16.mxu0 0
  %10762 = vmatmul.mubr.bf16.gmra.mrb[0].mxu0 %v10555
  %v10763 = vpop.f32.mrb[0].mxu0
  %v10764 = vadd.f32 %v10189, %v10763
  %v10765 = vpop.f32.mrb[0].mxu0
  %v10766 = vadd.f32 %v10193, %v10765
  %v10767 = vpop.f32.mrb[0].mxu0
  %v10768 = vadd.f32 %v10189, %v10767
  %v10769 = vpop.f32.mrb[0].mxu0
  %v10770 = vadd.f32 %v10193, %v10769
  %10771 = vdwg.mxu0
  %10772 = vmatprep.subr.bf16.mxu0 %v10437
  %10773 = vmatpush1.bf16.msra.mxu0 %v10436
  %10774 = vmatprep.subr.bf16.mxu0 %v10453
  %10775 = vmatpush1.bf16.msra.mxu0 %v10452
  %10776 = vmatprep.subr.bf16.mxu0 %v10469
  %10777 = vmatpush1.bf16.msra.mxu0 %v10468
  %10778 = vmatprep.subr.bf16.mxu0 %v10485
  %10779 = vmatpush1.bf16.msra.mxu0 %v10484
  %10780 = vmatprep.subr.bf16.mxu0 0
  %10781 = vmatpush1.bf16.msra.mxu0 0
  %10782 = vmatprep.subr.bf16.mxu0 0
  %10783 = vmatpush1.bf16.msra.mxu0 0
  %10784 = vmatprep.subr.bf16.mxu0 0
  %10785 = vmatpush1.bf16.msra.mxu0 0
  %10786 = vmatprep.subr.bf16.mxu0 0
  %10787 = vmatpush1.bf16.msra.mxu0 0
  %10788 = vmatprep.subr.bf16.mxu0 0
  %10789 = vmatpush1.bf16.msra.mxu0 0
  %10790 = vmatprep.subr.bf16.mxu0 0
  %10791 = vmatpush1.bf16.msra.mxu0 0
  %10792 = vmatprep.subr.bf16.mxu0 0
  %10793 = vmatpush1.bf16.msra.mxu0 0
  %10794 = vmatprep.subr.bf16.mxu0 0
  %10795 = vmatpush1.bf16.msra.mxu0 0
  %10796 = vmatprep.subr.bf16.mxu0 0
  %10797 = vmatpush1.bf16.msra.mxu0 0
  %10798 = vmatprep.subr.bf16.mxu0 0
  %10799 = vmatpush1.bf16.msra.mxu0 0
  %10800 = vmatprep.subr.bf16.mxu0 0
  %10801 = vmatpush1.bf16.msra.mxu0 0
  %10802 = vmatprep.subr.bf16.mxu0 0
  %10803 = vmatpush1.bf16.msra.mxu0 0
  %10804 = vmatprep.mubr.bf16.mxu0 0
  %10805 = vmatmul.mubr.bf16.gmra.mrb[0].mxu0 %v10555
  %v10806 = vpop.f32.mrb[0].mxu0
  %v10807 = vadd.f32 %v10197, %v10806
  %v10808 = vpop.f32.mrb[0].mxu0
  %v10809 = vadd.f32 %v10201, %v10808
  %v10810 = vpop.f32.mrb[0].mxu0
  %v10811 = vadd.f32 %v10197, %v10810
  %v10812 = vpop.f32.mrb[0].mxu0
  %v10813 = vadd.f32 %v10201, %v10812
  %10814 = vdwg.mxu0
  %10815 = vmatprep.subr.bf16.mxu0 %v10439
  %10816 = vmatpush1.bf16.msra.mxu0 %v10438
  %10817 = vmatprep.subr.bf16.mxu0 %v10455
  %10818 = vmatpush1.bf16.msra.mxu0 %v10454
  %10819 = vmatprep.subr.bf16.mxu0 %v10471
  %10820 = vmatpush1.bf16.msra.mxu0 %v10470
  %10821 = vmatprep.subr.bf16.mxu0 %v10487
  %10822 = vmatpush1.bf16.msra.mxu0 %v10486
  %10823 = vmatprep.subr.bf16.mxu0 0
  %10824 = vmatpush1.bf16.msra.mxu0 0
  %10825 = vmatprep.subr.bf16.mxu0 0
  %10826 = vmatpush1.bf16.msra.mxu0 0
  %10827 = vmatprep.subr.bf16.mxu0 0
  %10828 = vmatpush1.bf16.msra.mxu0 0
  %10829 = vmatprep.subr.bf16.mxu0 0
  %10830 = vmatpush1.bf16.msra.mxu0 0
  %10831 = vmatprep.subr.bf16.mxu0 0
  %10832 = vmatpush1.bf16.msra.mxu0 0
  %10833 = vmatprep.subr.bf16.mxu0 0
  %10834 = vmatpush1.bf16.msra.mxu0 0
  %10835 = vmatprep.subr.bf16.mxu0 0
  %10836 = vmatpush1.bf16.msra.mxu0 0
  %10837 = vmatprep.subr.bf16.mxu0 0
  %10838 = vmatpush1.bf16.msra.mxu0 0
  %10839 = vmatprep.subr.bf16.mxu0 0
  %10840 = vmatpush1.bf16.msra.mxu0 0
  %10841 = vmatprep.subr.bf16.mxu0 0
  %10842 = vmatpush1.bf16.msra.mxu0 0
  %10843 = vmatprep.subr.bf16.mxu0 0
  %10844 = vmatpush1.bf16.msra.mxu0 0
  %10845 = vmatprep.subr.bf16.mxu0 0
  %10846 = vmatpush1.bf16.msra.mxu0 0
  %10847 = vmatprep.mubr.bf16.mxu0 0
  %10848 = vmatmul.mubr.bf16.gmra.mrb[0].mxu0 %v10555
  %v10849 = vpop.f32.mrb[0].mxu0
  %v10850 = vadd.f32 %v10205, %v10849
  %v10851 = vpop.f32.mrb[0].mxu0
  %v10852 = vadd.f32 %v10209, %v10851
  %v10853 = vpop.f32.mrb[0].mxu0
  %v10854 = vadd.f32 %v10205, %v10853
  %v10855 = vpop.f32.mrb[0].mxu0
  %v10856 = vadd.f32 %v10209, %v10855
  %10857 = vdwg.mxu0
  %10858 = vmatprep.subr.bf16.mxu0 %v10441
  %10859 = vmatpush1.bf16.msra.mxu0 %v10440
  %10860 = vmatprep.subr.bf16.mxu0 %v10457
  %10861 = vmatpush1.bf16.msra.mxu0 %v10456
  %10862 = vmatprep.subr.bf16.mxu0 %v10473
  %10863 = vmatpush1.bf16.msra.mxu0 %v10472
  %10864 = vmatprep.subr.bf16.mxu0 %v10489
  %10865 = vmatpush1.bf16.msra.mxu0 %v10488
  %10866 = vmatprep.subr.bf16.mxu0 0
  %10867 = vmatpush1.bf16.msra.mxu0 0
  %10868 = vmatprep.subr.bf16.mxu0 0
  %10869 = vmatpush1.bf16.msra.mxu0 0
  %10870 = vmatprep.subr.bf16.mxu0 0
  %10871 = vmatpush1.bf16.msra.mxu0 0
  %10872 = vmatprep.subr.bf16.mxu0 0
  %10873 = vmatpush1.bf16.msra.mxu0 0
  %10874 = vmatprep.subr.bf16.mxu0 0
  %10875 = vmatpush1.bf16.msra.mxu0 0
  %10876 = vmatprep.subr.bf16.mxu0 0
  %10877 = vmatpush1.bf16.msra.mxu0 0
  %10878 = vmatprep.subr.bf16.mxu0 0
  %10879 = vmatpush1.bf16.msra.mxu0 0
  %10880 = vmatprep.subr.bf16.mxu0 0
  %10881 = vmatpush1.bf16.msra.mxu0 0
  %10882 = vmatprep.subr.bf16.mxu0 0
  %10883 = vmatpush1.bf16.msra.mxu0 0
  %10884 = vmatprep.subr.bf16.mxu0 0
  %10885 = vmatpush1.bf16.msra.mxu0 0
  %10886 = vmatprep.subr.bf16.mxu0 0
  %10887 = vmatpush1.bf16.msra.mxu0 0
  %10888 = vmatprep.subr.bf16.mxu0 0
  %10889 = vmatpush1.bf16.msra.mxu0 0
  %10890 = vmatprep.mubr.bf16.mxu0 0
  %10891 = vmatmul.mubr.bf16.gmra.mrb[0].mxu0 %v10555
  %v10892 = vpop.f32.mrb[0].mxu0
  %v10893 = vadd.f32 %v10213, %v10892
  %v10894 = vpop.f32.mrb[0].mxu0
  %v10895 = vadd.f32 %v10217, %v10894
  %v10896 = vpop.f32.mrb[0].mxu0
  %v10897 = vadd.f32 %v10213, %v10896
  %v10898 = vpop.f32.mrb[0].mxu0
  %v10899 = vadd.f32 %v10217, %v10898
  %10900 = vdwg.mxu0
  %v10901 = vmax.f32 %v10592, 0.0
  %v10902 = vmax.f32 %v10594, 0.0
  %v10903 = vmax.f32 %v10635, 0.0
  %v10904 = vmax.f32 %v10637, 0.0
  %v10905 = vmax.f32 %v10678, 0.0
  %v10906 = vmax.f32 %v10680, 0.0
  %v10907 = vmax.f32 %v10721, 0.0
  %v10908 = vmax.f32 %v10723, 0.0
  %v10909 = vmax.f32 %v10764, 0.0
  %v10910 = vmax.f32 %v10766, 0.0
  %v10911 = vmax.f32 %v10807, 0.0
  %v10912 = vmax.f32 %v10809, 0.0
  %v10913 = vmax.f32 %v10850, 0.0
  %v10914 = vmax.f32 %v10852, 0.0
  %v10915 = vmax.f32 %v10893, 0.0
  %v10916 = vmax.f32 %v10895, 0.0
  %v10917 = vmax.f32 %v10596, 0.0
  %v10918 = vmax.f32 %v10598, 0.0
  %v10919 = vmax.f32 %v10639, 0.0
  %v10920 = vmax.f32 %v10641, 0.0
  %v10921 = vmax.f32 %v10682, 0.0
  %v10922 = vmax.f32 %v10684, 0.0
  %v10923 = vmax.f32 %v10725, 0.0
  %v10924 = vmax.f32 %v10727, 0.0
  %v10925 = vmax.f32 %v10768, 0.0
  %v10926 = vmax.f32 %v10770, 0.0
  %v10927 = vmax.f32 %v10811, 0.0
  %v10928 = vmax.f32 %v10813, 0.0
  %v10929 = vmax.f32 %v10854, 0.0
  %v10930 = vmax.f32 %v10856, 0.0
  %v10931 = vmax.f32 %v10897, 0.0
  %v10932 = vmax.f32 %v10899, 0.0
  %v10933 = vpack.c.bf16 %v10917, %v10901
  %v10934 = vpack.c.bf16 %v10918, %v10902
  %v10935 = vpack.c.bf16 %v10919, %v10903
  %v10936 = vpack.c.bf16 %v10920, %v10904
  %v10937 = vpack.c.bf16 %v10921, %v10905
  %v10938 = vpack.c.bf16 %v10922, %v10906
  %v10939 = vpack.c.bf16 %v10923, %v10907
  %v10940 = vpack.c.bf16 %v10924, %v10908
  %v10941 = vpack.c.bf16 %v10925, %v10909
  %v10942 = vpack.c.bf16 %v10926, %v10910
  %v10943 = vpack.c.bf16 %v10927, %v10911
  %v10944 = vpack.c.bf16 %v10928, %v10912
  %v10945 = vpack.c.bf16 %v10929, %v10913
  %v10946 = vpack.c.bf16 %v10930, %v10914
  %v10947 = vpack.c.bf16 %v10931, %v10915
  %v10948 = vpack.c.bf16 %v10932, %v10916
  %s10949 = scalar_lea.vmem %s8, 1024
  %v10950 = vld [vmem:[%s10949] sm:$0xf]
  %v10951 = vld [vmem:[%s10949 + $0x4] sm:$0xf]
  %v10952 = vld [vmem:[%s10949 + $0x8] sm:$0xf]
  %v10953 = vld [vmem:[%s10949 + $0xc] sm:$0xf]
  %v10954 = vld [vmem:[%s10949 + $0x10] sm:$0xf]
  %v10955 = vld [vmem:[%s10949 + $0x14] sm:$0xf]
  %v10956 = vld [vmem:[%s10949 + $0x18] sm:$0xf]
  %v10957 = vld [vmem:[%s10949 + $0x1c] sm:$0xf]
  %v10958 = vld [vmem:[%s10949 + $0x20] sm:$0xf]
  %v10959 = vld [vmem:[%s10949 + $0x24] sm:$0xf]
  %v10960 = vld [vmem:[%s10949 + $0x28] sm:$0xf]
  %v10961 = vld [vmem:[%s10949 + $0x2c] sm:$0xf]
  %v10962 = vld [vmem:[%s10949 + $0x30] sm:$0xf]
  %v10963 = vld [vmem:[%s10949 + $0x34] sm:$0xf]
  %v10964 = vld [vmem:[%s10949 + $0x38] sm:$0xf]
  %v10965 = vld [vmem:[%s10949 + $0x3c] sm:$0xf]
  %v10966 = vld [vmem:[%s10949 + $0x40] sm:$0xf]
  %v10967 = vld [vmem:[%s10949 + $0x44] sm:$0xf]
  %v10968 = vld [vmem:[%s10949 + $0x48] sm:$0xf]
  %v10969 = vld [vmem:[%s10949 + $0x4c] sm:$0xf]
  %v10970 = vld [vmem:[%s10949 + $0x50] sm:$0xf]
  %v10971 = vld [vmem:[%s10949 + $0x54] sm:$0xf]
  %v10972 = vld [vmem:[%s10949 + $0x58] sm:$0xf]
  %v10973 = vld [vmem:[%s10949 + $0x5c] sm:$0xf]
  %v10974 = vld [vmem:[%s10949 + $0x60] sm:$0xf]
  %v10975 = vld [vmem:[%s10949 + $0x64] sm:$0xf]
  %v10976 = vld [vmem:[%s10949 + $0x68] sm:$0xf]
  %v10977 = vld [vmem:[%s10949 + $0x6c] sm:$0xf]
  %v10978 = vld [vmem:[%s10949 + $0x70] sm:$0xf]
  %v10979 = vld [vmem:[%s10949 + $0x74] sm:$0xf]
  %v10980 = vld [vmem:[%s10949 + $0x78] sm:$0xf]
  %v10981 = vld [vmem:[%s10949 + $0x7c] sm:$0xf]
  %v10982 = vld [vmem:[%s10949 + $0x80] sm:$0xf]
  %v10983 = vld [vmem:[%s10949 + $0x84] sm:$0xf]
  %v10984 = vld [vmem:[%s10949 + $0x88] sm:$0xf]
  %v10985 = vld [vmem:[%s10949 + $0x8c] sm:$0xf]
  %v10986 = vld [vmem:[%s10949 + $0x90] sm:$0xf]
  %v10987 = vld [vmem:[%s10949 + $0x94] sm:$0xf]
  %v10988 = vld [vmem:[%s10949 + $0x98] sm:$0xf]
  %v10989 = vld [vmem:[%s10949 + $0x9c] sm:$0xf]
  %v10990 = vld [vmem:[%s10949 + $0xa0] sm:$0xf]
  %v10991 = vld [vmem:[%s10949 + $0xa4] sm:$0xf]
  %v10992 = vld [vmem:[%s10949 + $0xa8] sm:$0xf]
  %v10993 = vld [vmem:[%s10949 + $0xac] sm:$0xf]
  %v10994 = vld [vmem:[%s10949 + $0xb0] sm:$0xf]
  %v10995 = vld [vmem:[%s10949 + $0xb4] sm:$0xf]
  %v10996 = vld [vmem:[%s10949 + $0xb8] sm:$0xf]
  %v10997 = vld [vmem:[%s10949 + $0xbc] sm:$0xf]
  %v10998 = vld [vmem:[%s10949 + $0xc0] sm:$0xf]
  %v10999 = vld [vmem:[%s10949 + $0xc4] sm:$0xf]
  %v11000 = vld [vmem:[%s10949 + $0xc8] sm:$0xf]
  %v11001 = vld [vmem:[%s10949 + $0xcc] sm:$0xf]
  %v11002 = vld [vmem:[%s10949 + $0xd0] sm:$0xf]
  %v11003 = vld [vmem:[%s10949 + $0xd4] sm:$0xf]
  %v11004 = vld [vmem:[%s10949 + $0xd8] sm:$0xf]
  %v11005 = vld [vmem:[%s10949 + $0xdc] sm:$0xf]
  %v11006 = vld [vmem:[%s10949 + $0xe0] sm:$0xf]
  %v11007 = vld [vmem:[%s10949 + $0xe4] sm:$0xf]
  %v11008 = vld [vmem:[%s10949 + $0xe8] sm:$0xf]
  %v11009 = vld [vmem:[%s10949 + $0xec] sm:$0xf]
  %v11010 = vld [vmem:[%s10949 + $0xf0] sm:$0xf]
  %v11011 = vld [vmem:[%s10949 + $0xf4] sm:$0xf]
  %v11012 = vld [vmem:[%s10949 + $0xf8] sm:$0xf]
  %v11013 = vld [vmem:[%s10949 + $0xfc] sm:$0xf]
  %v11014 = vld [vmem:[%s10949 + $0x100] sm:$0xf]
  %v11015 = vld [vmem:[%s10949 + $0x104] sm:$0xf]
  %v11016 = vld [vmem:[%s10949 + $0x108] sm:$0xf]
  %v11017 = vld [vmem:[%s10949 + $0x10c] sm:$0xf]
  %v11018 = vld [vmem:[%s10949 + $0x110] sm:$0xf]
  %v11019 = vld [vmem:[%s10949 + $0x114] sm:$0xf]
  %v11020 = vld [vmem:[%s10949 + $0x118] sm:$0xf]
  %v11021 = vld [vmem:[%s10949 + $0x11c] sm:$0xf]
  %v11022 = vld [vmem:[%s10949 + $0x120] sm:$0xf]
  %v11023 = vld [vmem:[%s10949 + $0x124] sm:$0xf]
  %v11024 = vld [vmem:[%s10949 + $0x128] sm:$0xf]
  %v11025 = vld [vmem:[%s10949 + $0x12c] sm:$0xf]
  %v11026 = vld [vmem:[%s10949 + $0x130] sm:$0xf]
  %v11027 = vld [vmem:[%s10949 + $0x134] sm:$0xf]
  %v11028 = vld [vmem:[%s10949 + $0x138] sm:$0xf]
  %v11029 = vld [vmem:[%s10949 + $0x13c] sm:$0xf]
  %v11030 = vld [vmem:[%s10949 + $0x140] sm:$0xf]
  %v11031 = vld [vmem:[%s10949 + $0x144] sm:$0xf]
  %v11032 = vld [vmem:[%s10949 + $0x148] sm:$0xf]
  %v11033 = vld [vmem:[%s10949 + $0x14c] sm:$0xf]
  %v11034 = vld [vmem:[%s10949 + $0x150] sm:$0xf]
  %v11035 = vld [vmem:[%s10949 + $0x154] sm:$0xf]
  %v11036 = vld [vmem:[%s10949 + $0x158] sm:$0xf]
  %v11037 = vld [vmem:[%s10949 + $0x15c] sm:$0xf]
  %v11038 = vld [vmem:[%s10949 + $0x160] sm:$0xf]
  %v11039 = vld [vmem:[%s10949 + $0x164] sm:$0xf]
  %v11040 = vld [vmem:[%s10949 + $0x168] sm:$0xf]
  %v11041 = vld [vmem:[%s10949 + $0x16c] sm:$0xf]
  %v11042 = vld [vmem:[%s10949 + $0x170] sm:$0xf]
  %v11043 = vld [vmem:[%s10949 + $0x174] sm:$0xf]
  %v11044 = vld [vmem:[%s10949 + $0x178] sm:$0xf]
  %v11045 = vld [vmem:[%s10949 + $0x17c] sm:$0xf]
  %v11046 = vld [vmem:[%s10949 + $0x180] sm:$0xf]
  %v11047 = vld [vmem:[%s10949 + $0x184] sm:$0xf]
  %v11048 = vld [vmem:[%s10949 + $0x188] sm:$0xf]
  %v11049 = vld [vmem:[%s10949 + $0x18c] sm:$0xf]
  %v11050 = vld [vmem:[%s10949 + $0x190] sm:$0xf]
  %v11051 = vld [vmem:[%s10949 + $0x194] sm:$0xf]
  %v11052 = vld [vmem:[%s10949 + $0x198] sm:$0xf]
  %v11053 = vld [vmem:[%s10949 + $0x19c] sm:$0xf]
  %v11054 = vld [vmem:[%s10949 + $0x1a0] sm:$0xf]
  %v11055 = vld [vmem:[%s10949 + $0x1a4] sm:$0xf]
  %v11056 = vld [vmem:[%s10949 + $0x1a8] sm:$0xf]
  %v11057 = vld [vmem:[%s10949 + $0x1ac] sm:$0xf]
  %v11058 = vld [vmem:[%s10949 + $0x1b0] sm:$0xf]
  %v11059 = vld [vmem:[%s10949 + $0x1b4] sm:$0xf]
  %v11060 = vld [vmem:[%s10949 + $0x1b8] sm:$0xf]
  %v11061 = vld [vmem:[%s10949 + $0x1bc] sm:$0xf]
  %v11062 = vld [vmem:[%s10949 + $0x1c0] sm:$0xf]
  %v11063 = vld [vmem:[%s10949 + $0x1c4] sm:$0xf]
  %v11064 = vld [vmem:[%s10949 + $0x1c8] sm:$0xf]
  %v11065 = vld [vmem:[%s10949 + $0x1cc] sm:$0xf]
  %v11066 = vld [vmem:[%s10949 + $0x1d0] sm:$0xf]
  %v11067 = vld [vmem:[%s10949 + $0x1d4] sm:$0xf]
  %v11068 = vld [vmem:[%s10949 + $0x1d8] sm:$0xf]
  %v11069 = vld [vmem:[%s10949 + $0x1dc] sm:$0xf]
  %v11070 = vld [vmem:[%s10949 + $0x1e0] sm:$0xf]
  %v11071 = vld [vmem:[%s10949 + $0x1e4] sm:$0xf]
  %v11072 = vld [vmem:[%s10949 + $0x1e8] sm:$0xf]
  %v11073 = vld [vmem:[%s10949 + $0x1ec] sm:$0xf]
  %v11074 = vld [vmem:[%s10949 + $0x1f0] sm:$0xf]
  %v11075 = vld [vmem:[%s10949 + $0x1f4] sm:$0xf]
  %v11076 = vld [vmem:[%s10949 + $0x1f8] sm:$0xf]
  %v11077 = vld [vmem:[%s10949 + $0x1fc] sm:$0xf]
  %v11078 = vld [vmem:[%s10949 + $0x200] sm:$0xf]
  %v11079 = vld [vmem:[%s10949 + $0x204] sm:$0xf]
  %v11080 = vld [vmem:[%s10949 + $0x208] sm:$0xf]
  %v11081 = vld [vmem:[%s10949 + $0x20c] sm:$0xf]
  %v11082 = vld [vmem:[%s10949 + $0x210] sm:$0xf]
  %v11083 = vld [vmem:[%s10949 + $0x214] sm:$0xf]
  %v11084 = vld [vmem:[%s10949 + $0x218] sm:$0xf]
  %v11085 = vld [vmem:[%s10949 + $0x21c] sm:$0xf]
  %v11086 = vld [vmem:[%s10949 + $0x220] sm:$0xf]
  %v11087 = vld [vmem:[%s10949 + $0x224] sm:$0xf]
  %v11088 = vld [vmem:[%s10949 + $0x228] sm:$0xf]
  %v11089 = vld [vmem:[%s10949 + $0x22c] sm:$0xf]
  %v11090 = vld [vmem:[%s10949 + $0x230] sm:$0xf]
  %v11091 = vld [vmem:[%s10949 + $0x234] sm:$0xf]
  %v11092 = vld [vmem:[%s10949 + $0x238] sm:$0xf]
  %v11093 = vld [vmem:[%s10949 + $0x23c] sm:$0xf]
  %v11094 = vld [vmem:[%s10949 + $0x240] sm:$0xf]
  %v11095 = vld [vmem:[%s10949 + $0x244] sm:$0xf]
  %v11096 = vld [vmem:[%s10949 + $0x248] sm:$0xf]
  %v11097 = vld [vmem:[%s10949 + $0x24c] sm:$0xf]
  %v11098 = vld [vmem:[%s10949 + $0x250] sm:$0xf]
  %v11099 = vld [vmem:[%s10949 + $0x254] sm:$0xf]
  %v11100 = vld [vmem:[%s10949 + $0x258] sm:$0xf]
  %v11101 = vld [vmem:[%s10949 + $0x25c] sm:$0xf]
  %v11102 = vld [vmem:[%s10949 + $0x260] sm:$0xf]
  %v11103 = vld [vmem:[%s10949 + $0x264] sm:$0xf]
  %v11104 = vld [vmem:[%s10949 + $0x268] sm:$0xf]
  %v11105 = vld [vmem:[%s10949 + $0x26c] sm:$0xf]
  %v11106 = vld [vmem:[%s10949 + $0x270] sm:$0xf]
  %v11107 = vld [vmem:[%s10949 + $0x274] sm:$0xf]
  %v11108 = vld [vmem:[%s10949 + $0x278] sm:$0xf]
  %v11109 = vld [vmem:[%s10949 + $0x27c] sm:$0xf]
  %v11110 = vld [vmem:[%s10949 + $0x280] sm:$0xf]
  %v11111 = vld [vmem:[%s10949 + $0x284] sm:$0xf]
  %v11112 = vld [vmem:[%s10949 + $0x288] sm:$0xf]
  %v11113 = vld [vmem:[%s10949 + $0x28c] sm:$0xf]
  %v11114 = vld [vmem:[%s10949 + $0x290] sm:$0xf]
  %v11115 = vld [vmem:[%s10949 + $0x294] sm:$0xf]
  %v11116 = vld [vmem:[%s10949 + $0x298] sm:$0xf]
  %v11117 = vld [vmem:[%s10949 + $0x29c] sm:$0xf]
  %v11118 = vld [vmem:[%s10949 + $0x2a0] sm:$0xf]
  %v11119 = vld [vmem:[%s10949 + $0x2a4] sm:$0xf]
  %v11120 = vld [vmem:[%s10949 + $0x2a8] sm:$0xf]
  %v11121 = vld [vmem:[%s10949 + $0x2ac] sm:$0xf]
  %v11122 = vld [vmem:[%s10949 + $0x2b0] sm:$0xf]
  %v11123 = vld [vmem:[%s10949 + $0x2b4] sm:$0xf]
  %v11124 = vld [vmem:[%s10949 + $0x2b8] sm:$0xf]
  %v11125 = vld [vmem:[%s10949 + $0x2bc] sm:$0xf]
  %v11126 = vld [vmem:[%s10949 + $0x2c0] sm:$0xf]
  %v11127 = vld [vmem:[%s10949 + $0x2c4] sm:$0xf]
  %v11128 = vld [vmem:[%s10949 + $0x2c8] sm:$0xf]
  %v11129 = vld [vmem:[%s10949 + $0x2cc] sm:$0xf]
  %v11130 = vld [vmem:[%s10949 + $0x2d0] sm:$0xf]
  %v11131 = vld [vmem:[%s10949 + $0x2d4] sm:$0xf]
  %v11132 = vld [vmem:[%s10949 + $0x2d8] sm:$0xf]
  %v11133 = vld [vmem:[%s10949 + $0x2dc] sm:$0xf]
  %v11134 = vld [vmem:[%s10949 + $0x2e0] sm:$0xf]
  %v11135 = vld [vmem:[%s10949 + $0x2e4] sm:$0xf]
  %v11136 = vld [vmem:[%s10949 + $0x2e8] sm:$0xf]
  %v11137 = vld [vmem:[%s10949 + $0x2ec] sm:$0xf]
  %v11138 = vld [vmem:[%s10949 + $0x2f0] sm:$0xf]
  %v11139 = vld [vmem:[%s10949 + $0x2f4] sm:$0xf]
  %v11140 = vld [vmem:[%s10949 + $0x2f8] sm:$0xf]
  %v11141 = vld [vmem:[%s10949 + $0x2fc] sm:$0xf]
  %v11142 = vld [vmem:[%s10949 + $0x300] sm:$0xf]
  %v11143 = vld [vmem:[%s10949 + $0x304] sm:$0xf]
  %v11144 = vld [vmem:[%s10949 + $0x308] sm:$0xf]
  %v11145 = vld [vmem:[%s10949 + $0x30c] sm:$0xf]
  %v11146 = vld [vmem:[%s10949 + $0x310] sm:$0xf]
  %v11147 = vld [vmem:[%s10949 + $0x314] sm:$0xf]
  %v11148 = vld [vmem:[%s10949 + $0x318] sm:$0xf]
  %v11149 = vld [vmem:[%s10949 + $0x31c] sm:$0xf]
  %v11150 = vld [vmem:[%s10949 + $0x320] sm:$0xf]
  %v11151 = vld [vmem:[%s10949 + $0x324] sm:$0xf]
  %v11152 = vld [vmem:[%s10949 + $0x328] sm:$0xf]
  %v11153 = vld [vmem:[%s10949 + $0x32c] sm:$0xf]
  %v11154 = vld [vmem:[%s10949 + $0x330] sm:$0xf]
  %v11155 = vld [vmem:[%s10949 + $0x334] sm:$0xf]
  %v11156 = vld [vmem:[%s10949 + $0x338] sm:$0xf]
  %v11157 = vld [vmem:[%s10949 + $0x33c] sm:$0xf]
  %v11158 = vld [vmem:[%s10949 + $0x340] sm:$0xf]
  %v11159 = vld [vmem:[%s10949 + $0x344] sm:$0xf]
  %v11160 = vld [vmem:[%s10949 + $0x348] sm:$0xf]
  %v11161 = vld [vmem:[%s10949 + $0x34c] sm:$0xf]
  %v11162 = vld [vmem:[%s10949 + $0x350] sm:$0xf]
  %v11163 = vld [vmem:[%s10949 + $0x354] sm:$0xf]
  %v11164 = vld [vmem:[%s10949 + $0x358] sm:$0xf]
  %v11165 = vld [vmem:[%s10949 + $0x35c] sm:$0xf]
  %v11166 = vld [vmem:[%s10949 + $0x360] sm:$0xf]
  %v11167 = vld [vmem:[%s10949 + $0x364] sm:$0xf]
  %v11168 = vld [vmem:[%s10949 + $0x368] sm:$0xf]
  %v11169 = vld [vmem:[%s10949 + $0x36c] sm:$0xf]
  %v11170 = vld [vmem:[%s10949 + $0x370] sm:$0xf]
  %v11171 = vld [vmem:[%s10949 + $0x374] sm:$0xf]
  %v11172 = vld [vmem:[%s10949 + $0x378] sm:$0xf]
  %v11173 = vld [vmem:[%s10949 + $0x37c] sm:$0xf]
  %v11174 = vld [vmem:[%s10949 + $0x380] sm:$0xf]
  %v11175 = vld [vmem:[%s10949 + $0x384] sm:$0xf]
  %v11176 = vld [vmem:[%s10949 + $0x388] sm:$0xf]
  %v11177 = vld [vmem:[%s10949 + $0x38c] sm:$0xf]
  %v11178 = vld [vmem:[%s10949 + $0x390] sm:$0xf]
  %v11179 = vld [vmem:[%s10949 + $0x394] sm:$0xf]
  %v11180 = vld [vmem:[%s10949 + $0x398] sm:$0xf]
  %v11181 = vld [vmem:[%s10949 + $0x39c] sm:$0xf]
  %v11182 = vld [vmem:[%s10949 + $0x3a0] sm:$0xf]
  %v11183 = vld [vmem:[%s10949 + $0x3a4] sm:$0xf]
  %v11184 = vld [vmem:[%s10949 + $0x3a8] sm:$0xf]
  %v11185 = vld [vmem:[%s10949 + $0x3ac] sm:$0xf]
  %v11186 = vld [vmem:[%s10949 + $0x3b0] sm:$0xf]
  %v11187 = vld [vmem:[%s10949 + $0x3b4] sm:$0xf]
  %v11188 = vld [vmem:[%s10949 + $0x3b8] sm:$0xf]
  %v11189 = vld [vmem:[%s10949 + $0x3bc] sm:$0xf]
  %v11190 = vld [vmem:[%s10949 + $0x3c0] sm:$0xf]
  %v11191 = vld [vmem:[%s10949 + $0x3c4] sm:$0xf]
  %v11192 = vld [vmem:[%s10949 + $0x3c8] sm:$0xf]
  %v11193 = vld [vmem:[%s10949 + $0x3cc] sm:$0xf]
  %v11194 = vld [vmem:[%s10949 + $0x3d0] sm:$0xf]
  %v11195 = vld [vmem:[%s10949 + $0x3d4] sm:$0xf]
  %v11196 = vld [vmem:[%s10949 + $0x3d8] sm:$0xf]
  %v11197 = vld [vmem:[%s10949 + $0x3dc] sm:$0xf]
  %v11198 = vld [vmem:[%s10949 + $0x3e0] sm:$0xf]
  %v11199 = vld [vmem:[%s10949 + $0x3e4] sm:$0xf]
  %v11200 = vld [vmem:[%s10949 + $0x3e8] sm:$0xf]
  %v11201 = vld [vmem:[%s10949 + $0x3ec] sm:$0xf]
  %v11202 = vld [vmem:[%s10949 + $0x3f0] sm:$0xf]
  %v11203 = vld [vmem:[%s10949 + $0x3f4] sm:$0xf]
  %v11204 = vld [vmem:[%s10949 + $0x3f8] sm:$0xf]
  %v11205 = vld [vmem:[%s10949 + $0x3fc] sm:$0xf]
  %v11206 = vlaneseq
  %v11207 = vshrl.u32 %v11206, 7
  %v11208 = vsub.s32 3, %v11207
  %v11209 = vrot.slane %v6399, %v11208
  %v11466 = vunpack.c.l.b16 %v10950
  %v11467 = vunpack.c.l.b16 %v10951
  %v11468 = vunpack.c.l.b16 %v10952
  %v11469 = vunpack.c.l.b16 %v10953
  %v11470 = vunpack.c.l.b16 %v10954
  %v11471 = vunpack.c.l.b16 %v10955
  %v11472 = vunpack.c.l.b16 %v10956
  %v11473 = vunpack.c.l.b16 %v10957
  %v11474 = vunpack.c.l.b16 %v10958
  %v11475 = vunpack.c.l.b16 %v10959
  %v11476 = vunpack.c.l.b16 %v10960
  %v11477 = vunpack.c.l.b16 %v10961
  %v11478 = vunpack.c.l.b16 %v10962
  %v11479 = vunpack.c.l.b16 %v10963
  %v11480 = vunpack.c.l.b16 %v10964
  %v11481 = vunpack.c.l.b16 %v10965
  %v11482 = vunpack.c.l.b16 %v10966
  %v11483 = vunpack.c.l.b16 %v10967
  %v11484 = vunpack.c.l.b16 %v10968
  %v11485 = vunpack.c.l.b16 %v10969
  %v11486 = vunpack.c.l.b16 %v10970
  %v11487 = vunpack.c.l.b16 %v10971
  %v11488 = vunpack.c.l.b16 %v10972
  %v11489 = vunpack.c.l.b16 %v10973
  %v11490 = vunpack.c.l.b16 %v10974
  %v11491 = vunpack.c.l.b16 %v10975
  %v11492 = vunpack.c.l.b16 %v10976
  %v11493 = vunpack.c.l.b16 %v10977
  %v11494 = vunpack.c.l.b16 %v10978
  %v11495 = vunpack.c.l.b16 %v10979
  %v11496 = vunpack.c.l.b16 %v10980
  %v11497 = vunpack.c.l.b16 %v10981
  %v11498 = vunpack.c.l.b16 %v10982
  %v11499 = vunpack.c.l.b16 %v10983
  %v11500 = vunpack.c.l.b16 %v10984
  %v11501 = vunpack.c.l.b16 %v10985
  %v11502 = vunpack.c.l.b16 %v10986
  %v11503 = vunpack.c.l.b16 %v10987
  %v11504 = vunpack.c.l.b16 %v10988
  %v11505 = vunpack.c.l.b16 %v10989
  %v11506 = vunpack.c.l.b16 %v10990
  %v11507 = vunpack.c.l.b16 %v10991
  %v11508 = vunpack.c.l.b16 %v10992
  %v11509 = vunpack.c.l.b16 %v10993
  %v11510 = vunpack.c.l.b16 %v10994
  %v11511 = vunpack.c.l.b16 %v10995
  %v11512 = vunpack.c.l.b16 %v10996
  %v11513 = vunpack.c.l.b16 %v10997
  %v11514 = vunpack.c.l.b16 %v10998
  %v11515 = vunpack.c.l.b16 %v10999
  %v11516 = vunpack.c.l.b16 %v11000
  %v11517 = vunpack.c.l.b16 %v11001
  %v11518 = vunpack.c.l.b16 %v11002
  %v11519 = vunpack.c.l.b16 %v11003
  %v11520 = vunpack.c.l.b16 %v11004
  %v11521 = vunpack.c.l.b16 %v11005
  %v11522 = vunpack.c.l.b16 %v11006
  %v11523 = vunpack.c.l.b16 %v11007
  %v11524 = vunpack.c.l.b16 %v11008
  %v11525 = vunpack.c.l.b16 %v11009
  %v11526 = vunpack.c.l.b16 %v11010
  %v11527 = vunpack.c.l.b16 %v11011
  %v11528 = vunpack.c.l.b16 %v11012
  %v11529 = vunpack.c.l.b16 %v11013
  %v11530 = vunpack.c.l.b16 %v11014
  %v11531 = vunpack.c.l.b16 %v11015
  %v11532 = vunpack.c.l.b16 %v11016
  %v11533 = vunpack.c.l.b16 %v11017
  %v11534 = vunpack.c.l.b16 %v11018
  %v11535 = vunpack.c.l.b16 %v11019
  %v11536 = vunpack.c.l.b16 %v11020
  %v11537 = vunpack.c.l.b16 %v11021
  %v11538 = vunpack.c.l.b16 %v11022
  %v11539 = vunpack.c.l.b16 %v11023
  %v11540 = vunpack.c.l.b16 %v11024
  %v11541 = vunpack.c.l.b16 %v11025
  %v11542 = vunpack.c.l.b16 %v11026
  %v11543 = vunpack.c.l.b16 %v11027
  %v11544 = vunpack.c.l.b16 %v11028
  %v11545 = vunpack.c.l.b16 %v11029
  %v11546 = vunpack.c.l.b16 %v11030
  %v11547 = vunpack.c.l.b16 %v11031
  %v11548 = vunpack.c.l.b16 %v11032
  %v11549 = vunpack.c.l.b16 %v11033
  %v11550 = vunpack.c.l.b16 %v11034
  %v11551 = vunpack.c.l.b16 %v11035
  %v11552 = vunpack.c.l.b16 %v11036
  %v11553 = vunpack.c.l.b16 %v11037
  %v11554 = vunpack.c.l.b16 %v11038
  %v11555 = vunpack.c.l.b16 %v11039
  %v11556 = vunpack.c.l.b16 %v11040
  %v11557 = vunpack.c.l.b16 %v11041
  %v11558 = vunpack.c.l.b16 %v11042
  %v11559 = vunpack.c.l.b16 %v11043
  %v11560 = vunpack.c.l.b16 %v11044
  %v11561 = vunpack.c.l.b16 %v11045
  %v11562 = vunpack.c.l.b16 %v11046
  %v11563 = vunpack.c.l.b16 %v11047
  %v11564 = vunpack.c.l.b16 %v11048
  %v11565 = vunpack.c.l.b16 %v11049
  %v11566 = vunpack.c.l.b16 %v11050
  %v11567 = vunpack.c.l.b16 %v11051
  %v11568 = vunpack.c.l.b16 %v11052
  %v11569 = vunpack.c.l.b16 %v11053
  %v11570 = vunpack.c.l.b16 %v11054
  %v11571 = vunpack.c.l.b16 %v11055
  %v11572 = vunpack.c.l.b16 %v11056
  %v11573 = vunpack.c.l.b16 %v11057
  %v11574 = vunpack.c.l.b16 %v11058
  %v11575 = vunpack.c.l.b16 %v11059
  %v11576 = vunpack.c.l.b16 %v11060
  %v11577 = vunpack.c.l.b16 %v11061
  %v11578 = vunpack.c.l.b16 %v11062
  %v11579 = vunpack.c.l.b16 %v11063
  %v11580 = vunpack.c.l.b16 %v11064
  %v11581 = vunpack.c.l.b16 %v11065
  %v11582 = vunpack.c.l.b16 %v11066
  %v11583 = vunpack.c.l.b16 %v11067
  %v11584 = vunpack.c.l.b16 %v11068
  %v11585 = vunpack.c.l.b16 %v11069
  %v11586 = vunpack.c.l.b16 %v11070
  %v11587 = vunpack.c.l.b16 %v11071
  %v11588 = vunpack.c.l.b16 %v11072
  %v11589 = vunpack.c.l.b16 %v11073
  %v11590 = vunpack.c.l.b16 %v11074
  %v11591 = vunpack.c.l.b16 %v11075
  %v11592 = vunpack.c.l.b16 %v11076
  %v11593 = vunpack.c.l.b16 %v11077
  %v11594 = vunpack.c.l.b16 %v11078
  %v11595 = vunpack.c.l.b16 %v11079
  %v11596 = vunpack.c.l.b16 %v11080
  %v11597 = vunpack.c.l.b16 %v11081
  %v11598 = vunpack.c.l.b16 %v11082
  %v11599 = vunpack.c.l.b16 %v11083
  %v11600 = vunpack.c.l.b16 %v11084
  %v11601 = vunpack.c.l.b16 %v11085
  %v11602 = vunpack.c.l.b16 %v11086
  %v11603 = vunpack.c.l.b16 %v11087
  %v11604 = vunpack.c.l.b16 %v11088
  %v11605 = vunpack.c.l.b16 %v11089
  %v11606 = vunpack.c.l.b16 %v11090
  %v11607 = vunpack.c.l.b16 %v11091
  %v11608 = vunpack.c.l.b16 %v11092
  %v11609 = vunpack.c.l.b16 %v11093
  %v11610 = vunpack.c.l.b16 %v11094
  %v11611 = vunpack.c.l.b16 %v11095
  %v11612 = vunpack.c.l.b16 %v11096
  %v11613 = vunpack.c.l.b16 %v11097
  %v11614 = vunpack.c.l.b16 %v11098
  %v11615 = vunpack.c.l.b16 %v11099
  %v11616 = vunpack.c.l.b16 %v11100
  %v11617 = vunpack.c.l.b16 %v11101
  %v11618 = vunpack.c.l.b16 %v11102
  %v11619 = vunpack.c.l.b16 %v11103
  %v11620 = vunpack.c.l.b16 %v11104
  %v11621 = vunpack.c.l.b16 %v11105
  %v11622 = vunpack.c.l.b16 %v11106
  %v11623 = vunpack.c.l.b16 %v11107
  %v11624 = vunpack.c.l.b16 %v11108
  %v11625 = vunpack.c.l.b16 %v11109
  %v11626 = vunpack.c.l.b16 %v11110
  %v11627 = vunpack.c.l.b16 %v11111
  %v11628 = vunpack.c.l.b16 %v11112
  %v11629 = vunpack.c.l.b16 %v11113
  %v11630 = vunpack.c.l.b16 %v11114
  %v11631 = vunpack.c.l.b16 %v11115
  %v11632 = vunpack.c.l.b16 %v11116
  %v11633 = vunpack.c.l.b16 %v11117
  %v11634 = vunpack.c.l.b16 %v11118
  %v11635 = vunpack.c.l.b16 %v11119
  %v11636 = vunpack.c.l.b16 %v11120
  %v11637 = vunpack.c.l.b16 %v11121
  %v11638 = vunpack.c.l.b16 %v11122
  %v11639 = vunpack.c.l.b16 %v11123
  %v11640 = vunpack.c.l.b16 %v11124
  %v11641 = vunpack.c.l.b16 %v11125
  %v11642 = vunpack.c.l.b16 %v11126
  %v11643 = vunpack.c.l.b16 %v11127
  %v11644 = vunpack.c.l.b16 %v11128
  %v11645 = vunpack.c.l.b16 %v11129
  %v11646 = vunpack.c.l.b16 %v11130
  %v11647 = vunpack.c.l.b16 %v11131
  %v11648 = vunpack.c.l.b16 %v11132
  %v11649 = vunpack.c.l.b16 %v11133
  %v11650 = vunpack.c.l.b16 %v11134
  %v11651 = vunpack.c.l.b16 %v11135
  %v11652 = vunpack.c.l.b16 %v11136
  %v11653 = vunpack.c.l.b16 %v11137
  %v11654 = vunpack.c.l.b16 %v11138
  %v11655 = vunpack.c.l.b16 %v11139
  %v11656 = vunpack.c.l.b16 %v11140
  %v11657 = vunpack.c.l.b16 %v11141
  %v11658 = vunpack.c.l.b16 %v11142
  %v11659 = vunpack.c.l.b16 %v11143
  %v11660 = vunpack.c.l.b16 %v11144
  %v11661 = vunpack.c.l.b16 %v11145
  %v11662 = vunpack.c.l.b16 %v11146
  %v11663 = vunpack.c.l.b16 %v11147
  %v11664 = vunpack.c.l.b16 %v11148
  %v11665 = vunpack.c.l.b16 %v11149
  %v11666 = vunpack.c.l.b16 %v11150
  %v11667 = vunpack.c.l.b16 %v11151
  %v11668 = vunpack.c.l.b16 %v11152
  %v11669 = vunpack.c.l.b16 %v11153
  %v11670 = vunpack.c.l.b16 %v11154
  %v11671 = vunpack.c.l.b16 %v11155
  %v11672 = vunpack.c.l.b16 %v11156
  %v11673 = vunpack.c.l.b16 %v11157
  %v11674 = vunpack.c.l.b16 %v11158
  %v11675 = vunpack.c.l.b16 %v11159
  %v11676 = vunpack.c.l.b16 %v11160
  %v11677 = vunpack.c.l.b16 %v11161
  %v11678 = vunpack.c.l.b16 %v11162
  %v11679 = vunpack.c.l.b16 %v11163
  %v11680 = vunpack.c.l.b16 %v11164
  %v11681 = vunpack.c.l.b16 %v11165
  %v11682 = vunpack.c.l.b16 %v11166
  %v11683 = vunpack.c.l.b16 %v11167
  %v11684 = vunpack.c.l.b16 %v11168
  %v11685 = vunpack.c.l.b16 %v11169
  %v11686 = vunpack.c.l.b16 %v11170
  %v11687 = vunpack.c.l.b16 %v11171
  %v11688 = vunpack.c.l.b16 %v11172
  %v11689 = vunpack.c.l.b16 %v11173
  %v11690 = vunpack.c.l.b16 %v11174
  %v11691 = vunpack.c.l.b16 %v11175
  %v11692 = vunpack.c.l.b16 %v11176
  %v11693 = vunpack.c.l.b16 %v11177
  %v11694 = vunpack.c.l.b16 %v11178
  %v11695 = vunpack.c.l.b16 %v11179
  %v11696 = vunpack.c.l.b16 %v11180
  %v11697 = vunpack.c.l.b16 %v11181
  %v11698 = vunpack.c.l.b16 %v11182
  %v11699 = vunpack.c.l.b16 %v11183
  %v11700 = vunpack.c.l.b16 %v11184
  %v11701 = vunpack.c.l.b16 %v11185
  %v11702 = vunpack.c.l.b16 %v11186
  %v11703 = vunpack.c.l.b16 %v11187
  %v11704 = vunpack.c.l.b16 %v11188
  %v11705 = vunpack.c.l.b16 %v11189
  %v11706 = vunpack.c.l.b16 %v11190
  %v11707 = vunpack.c.l.b16 %v11191
  %v11708 = vunpack.c.l.b16 %v11192
  %v11709 = vunpack.c.l.b16 %v11193
  %v11710 = vunpack.c.l.b16 %v11194
  %v11711 = vunpack.c.l.b16 %v11195
  %v11712 = vunpack.c.l.b16 %v11196
  %v11713 = vunpack.c.l.b16 %v11197
  %v11714 = vunpack.c.l.b16 %v11198
  %v11715 = vunpack.c.l.b16 %v11199
  %v11716 = vunpack.c.l.b16 %v11200
  %v11717 = vunpack.c.l.b16 %v11201
  %v11718 = vunpack.c.l.b16 %v11202
  %v11719 = vunpack.c.l.b16 %v11203
  %v11720 = vunpack.c.l.b16 %v11204
  %v11721 = vunpack.c.l.b16 %v11205
  %v11722 = vpack.c.b16 %v11467, %v11466
  %v11723 = vpack.c.b16 %v11469, %v11468
  %v11724 = vpack.c.b16 %v11471, %v11470
  %v11725 = vpack.c.b16 %v11473, %v11472
  %v11726 = vpack.c.b16 %v11475, %v11474
  %v11727 = vpack.c.b16 %v11477, %v11476
  %v11728 = vpack.c.b16 %v11479, %v11478
  %v11729 = vpack.c.b16 %v11481, %v11480
  %v11730 = vpack.c.b16 %v11483, %v11482
  %v11731 = vpack.c.b16 %v11485, %v11484
  %v11732 = vpack.c.b16 %v11487, %v11486
  %v11733 = vpack.c.b16 %v11489, %v11488
  %v11734 = vpack.c.b16 %v11491, %v11490
  %v11735 = vpack.c.b16 %v11493, %v11492
  %v11736 = vpack.c.b16 %v11495, %v11494
  %v11737 = vpack.c.b16 %v11497, %v11496
  %v11738 = vpack.c.b16 %v11499, %v11498
  %v11739 = vpack.c.b16 %v11501, %v11500
  %v11740 = vpack.c.b16 %v11503, %v11502
  %v11741 = vpack.c.b16 %v11505, %v11504
  %v11742 = vpack.c.b16 %v11507, %v11506
  %v11743 = vpack.c.b16 %v11509, %v11508
  %v11744 = vpack.c.b16 %v11511, %v11510
  %v11745 = vpack.c.b16 %v11513, %v11512
  %v11746 = vpack.c.b16 %v11515, %v11514
  %v11747 = vpack.c.b16 %v11517, %v11516
  %v11748 = vpack.c.b16 %v11519, %v11518
  %v11749 = vpack.c.b16 %v11521, %v11520
  %v11750 = vpack.c.b16 %v11523, %v11522
  %v11751 = vpack.c.b16 %v11525, %v11524
  %v11752 = vpack.c.b16 %v11527, %v11526
  %v11753 = vpack.c.b16 %v11529, %v11528
  %v11754 = vpack.c.b16 %v11531, %v11530
  %v11755 = vpack.c.b16 %v11533, %v11532
  %v11756 = vpack.c.b16 %v11535, %v11534
  %v11757 = vpack.c.b16 %v11537, %v11536
  %v11758 = vpack.c.b16 %v11539, %v11538
  %v11759 = vpack.c.b16 %v11541, %v11540
  %v11760 = vpack.c.b16 %v11543, %v11542
  %v11761 = vpack.c.b16 %v11545, %v11544
  %v11762 = vpack.c.b16 %v11547, %v11546
  %v11763 = vpack.c.b16 %v11549, %v11548
  %v11764 = vpack.c.b16 %v11551, %v11550
  %v11765 = vpack.c.b16 %v11553, %v11552
  %v11766 = vpack.c.b16 %v11555, %v11554
  %v11767 = vpack.c.b16 %v11557, %v11556
  %v11768 = vpack.c.b16 %v11559, %v11558
  %v11769 = vpack.c.b16 %v11561, %v11560
  %v11770 = vpack.c.b16 %v11563, %v11562
  %v11771 = vpack.c.b16 %v11565, %v11564
  %v11772 = vpack.c.b16 %v11567, %v11566
  %v11773 = vpack.c.b16 %v11569, %v11568
  %v11774 = vpack.c.b16 %v11571, %v11570
  %v11775 = vpack.c.b16 %v11573, %v11572
  %v11776 = vpack.c.b16 %v11575, %v11574
  %v11777 = vpack.c.b16 %v11577, %v11576
  %v11778 = vpack.c.b16 %v11579, %v11578
  %v11779 = vpack.c.b16 %v11581, %v11580
  %v11780 = vpack.c.b16 %v11583, %v11582
  %v11781 = vpack.c.b16 %v11585, %v11584
  %v11782 = vpack.c.b16 %v11587, %v11586
  %v11783 = vpack.c.b16 %v11589, %v11588
  %v11784 = vpack.c.b16 %v11591, %v11590
  %v11785 = vpack.c.b16 %v11593, %v11592
  %v11786 = vpack.c.b16 %v11595, %v11594
  %v11787 = vpack.c.b16 %v11597, %v11596
  %v11788 = vpack.c.b16 %v11599, %v11598
  %v11789 = vpack.c.b16 %v11601, %v11600
  %v11790 = vpack.c.b16 %v11603, %v11602
  %v11791 = vpack.c.b16 %v11605, %v11604
  %v11792 = vpack.c.b16 %v11607, %v11606
  %v11793 = vpack.c.b16 %v11609, %v11608
  %v11794 = vpack.c.b16 %v11611, %v11610
  %v11795 = vpack.c.b16 %v11613, %v11612
  %v11796 = vpack.c.b16 %v11615, %v11614
  %v11797 = vpack.c.b16 %v11617, %v11616
  %v11798 = vpack.c.b16 %v11619, %v11618
  %v11799 = vpack.c.b16 %v11621, %v11620
  %v11800 = vpack.c.b16 %v11623, %v11622
  %v11801 = vpack.c.b16 %v11625, %v11624
  %v11802 = vpack.c.b16 %v11627, %v11626
  %v11803 = vpack.c.b16 %v11629, %v11628
  %v11804 = vpack.c.b16 %v11631, %v11630
  %v11805 = vpack.c.b16 %v11633, %v11632
  %v11806 = vpack.c.b16 %v11635, %v11634
  %v11807 = vpack.c.b16 %v11637, %v11636
  %v11808 = vpack.c.b16 %v11639, %v11638
  %v11809 = vpack.c.b16 %v11641, %v11640
  %v11810 = vpack.c.b16 %v11643, %v11642
  %v11811 = vpack.c.b16 %v11645, %v11644
  %v11812 = vpack.c.b16 %v11647, %v11646
  %v11813 = vpack.c.b16 %v11649, %v11648
  %v11814 = vpack.c.b16 %v11651, %v11650
  %v11815 = vpack.c.b16 %v11653, %v11652
  %v11816 = vpack.c.b16 %v11655, %v11654
  %v11817 = vpack.c.b16 %v11657, %v11656
  %v11818 = vpack.c.b16 %v11659, %v11658
  %v11819 = vpack.c.b16 %v11661, %v11660
  %v11820 = vpack.c.b16 %v11663, %v11662
  %v11821 = vpack.c.b16 %v11665, %v11664
  %v11822 = vpack.c.b16 %v11667, %v11666
  %v11823 = vpack.c.b16 %v11669, %v11668
  %v11824 = vpack.c.b16 %v11671, %v11670
  %v11825 = vpack.c.b16 %v11673, %v11672
  %v11826 = vpack.c.b16 %v11675, %v11674
  %v11827 = vpack.c.b16 %v11677, %v11676
  %v11828 = vpack.c.b16 %v11679, %v11678
  %v11829 = vpack.c.b16 %v11681, %v11680
  %v11830 = vpack.c.b16 %v11683, %v11682
  %v11831 = vpack.c.b16 %v11685, %v11684
  %v11832 = vpack.c.b16 %v11687, %v11686
  %v11833 = vpack.c.b16 %v11689, %v11688
  %v11834 = vpack.c.b16 %v11691, %v11690
  %v11835 = vpack.c.b16 %v11693, %v11692
  %v11836 = vpack.c.b16 %v11695, %v11694
  %v11837 = vpack.c.b16 %v11697, %v11696
  %v11838 = vpack.c.b16 %v11699, %v11698
  %v11839 = vpack.c.b16 %v11701, %v11700
  %v11840 = vpack.c.b16 %v11703, %v11702
  %v11841 = vpack.c.b16 %v11705, %v11704
  %v11842 = vpack.c.b16 %v11707, %v11706
  %v11843 = vpack.c.b16 %v11709, %v11708
  %v11844 = vpack.c.b16 %v11711, %v11710
  %v11845 = vpack.c.b16 %v11713, %v11712
  %v11846 = vpack.c.b16 %v11715, %v11714
  %v11847 = vpack.c.b16 %v11717, %v11716
  %v11848 = vpack.c.b16 %v11719, %v11718
  %v11849 = vpack.c.b16 %v11721, %v11720
  %11978 = vmatprep.subr.bf16.mxu0 0
  %11979 = vmatpush1.bf16.msra.mxu0 %v11722
  %11980 = vmatprep.subr.bf16.mxu0 0
  %11981 = vmatpush1.bf16.msra.mxu0 %v11723
  %11982 = vmatprep.subr.bf16.mxu0 0
  %11983 = vmatpush1.bf16.msra.mxu0 %v11724
  %11984 = vmatprep.subr.bf16.mxu0 0
  %11985 = vmatpush1.bf16.msra.mxu0 %v11725
  %11986 = vmatprep.subr.bf16.mxu0 0
  %11987 = vmatpush1.bf16.msra.mxu0 %v11726
  %11988 = vmatprep.subr.bf16.mxu0 0
  %11989 = vmatpush1.bf16.msra.mxu0 %v11727
  %11990 = vmatprep.subr.bf16.mxu0 0
  %11991 = vmatpush1.bf16.msra.mxu0 %v11728
  %11992 = vmatprep.subr.bf16.mxu0 0
  %11993 = vmatpush1.bf16.msra.mxu0 %v11729
  %11994 = vmatprep.subr.bf16.mxu0 0
  %11995 = vmatpush1.bf16.msra.mxu0 %v11730
  %11996 = vmatprep.subr.bf16.mxu0 0
  %11997 = vmatpush1.bf16.msra.mxu0 %v11731
  %11998 = vmatprep.subr.bf16.mxu0 0
  %11999 = vmatpush1.bf16.msra.mxu0 %v11732
  %12000 = vmatprep.subr.bf16.mxu0 0
  %12001 = vmatpush1.bf16.msra.mxu0 %v11733
  %12002 = vmatprep.subr.bf16.mxu0 0
  %12003 = vmatpush1.bf16.msra.mxu0 %v11734
  %12004 = vmatprep.subr.bf16.mxu0 0
  %12005 = vmatpush1.bf16.msra.mxu0 %v11735
  %12006 = vmatprep.subr.bf16.mxu0 0
  %12007 = vmatpush1.bf16.msra.mxu0 %v11736
  %12008 = vmatprep.subr.bf16.mxu0 0
  %12009 = vmatpush1.bf16.msra.mxu0 %v11737
  %12010 = vmatprep.mubr.bf16.mxu0 %v10934
  %12011 = vmatmul.mubr.bf16.gmra.mrb[0].mxu0 %v10933
  %v12012 = vpop.f32.mrb[0].mxu0
  %v12013 = vpop.f32.mrb[0].mxu0
  %v12014 = vpop.f32.mrb[0].mxu0
  %v12015 = vadd.f32 %v11209, %v12014
  %v12016 = vpop.f32.mrb[0].mxu0
  %12017 = vdwg.mxu0
  %12018 = vmatprep.subr.bf16.mxu0 0
  %12019 = vmatpush1.bf16.msra.mxu0 %v11738
  %12020 = vmatprep.subr.bf16.mxu0 0
  %12021 = vmatpush1.bf16.msra.mxu0 %v11739
  %12022 = vmatprep.subr.bf16.mxu0 0
  %12023 = vmatpush1.bf16.msra.mxu0 %v11740
  %12024 = vmatprep.subr.bf16.mxu0 0
  %12025 = vmatpush1.bf16.msra.mxu0 %v11741
  %12026 = vmatprep.subr.bf16.mxu0 0
  %12027 = vmatpush1.bf16.msra.mxu0 %v11742
  %12028 = vmatprep.subr.bf16.mxu0 0
  %12029 = vmatpush1.bf16.msra.mxu0 %v11743
  %12030 = vmatprep.subr.bf16.mxu0 0
  %12031 = vmatpush1.bf16.msra.mxu0 %v11744
  %12032 = vmatprep.subr.bf16.mxu0 0
  %12033 = vmatpush1.bf16.msra.mxu0 %v11745
  %12034 = vmatprep.subr.bf16.mxu0 0
  %12035 = vmatpush1.bf16.msra.mxu0 %v11746
  %12036 = vmatprep.subr.bf16.mxu0 0
  %12037 = vmatpush1.bf16.msra.mxu0 %v11747
  %12038 = vmatprep.subr.bf16.mxu0 0
  %12039 = vmatpush1.bf16.msra.mxu0 %v11748
  %12040 = vmatprep.subr.bf16.mxu0 0
  %12041 = vmatpush1.bf16.msra.mxu0 %v11749
  %12042 = vmatprep.subr.bf16.mxu0 0
  %12043 = vmatpush1.bf16.msra.mxu0 %v11750
  %12044 = vmatprep.subr.bf16.mxu0 0
  %12045 = vmatpush1.bf16.msra.mxu0 %v11751
  %12046 = vmatprep.subr.bf16.mxu0 0
  %12047 = vmatpush1.bf16.msra.mxu0 %v11752
  %12048 = vmatprep.subr.bf16.mxu0 0
  %12049 = vmatpush1.bf16.msra.mxu0 %v11753
  %12050 = vmatprep.mubr.bf16.mxu0 %v10936
  %12051 = vmatmul.mubr.bf16.gmra.mrb[0].mxu0 %v10935
  %v12052 = vpop.f32.mrb[0].mxu0
  %v12053 = vpop.f32.mrb[0].mxu0
  %v12054 = vpop.f32.mrb[0].mxu0
  %v12055 = vadd.f32 %v12015, %v12054
  %v12056 = vpop.f32.mrb[0].mxu0
  %12057 = vdwg.mxu0
  %12058 = vmatprep.subr.bf16.mxu0 0
  %12059 = vmatpush1.bf16.msra.mxu0 %v11754
  %12060 = vmatprep.subr.bf16.mxu0 0
  %12061 = vmatpush1.bf16.msra.mxu0 %v11755
  %12062 = vmatprep.subr.bf16.mxu0 0
  %12063 = vmatpush1.bf16.msra.mxu0 %v11756
  %12064 = vmatprep.subr.bf16.mxu0 0
  %12065 = vmatpush1.bf16.msra.mxu0 %v11757
  %12066 = vmatprep.subr.bf16.mxu0 0
  %12067 = vmatpush1.bf16.msra.mxu0 %v11758
  %12068 = vmatprep.subr.bf16.mxu0 0
  %12069 = vmatpush1.bf16.msra.mxu0 %v11759
  %12070 = vmatprep.subr.bf16.mxu0 0
  %12071 = vmatpush1.bf16.msra.mxu0 %v11760
  %12072 = vmatprep.subr.bf16.mxu0 0
  %12073 = vmatpush1.bf16.msra.mxu0 %v11761
  %12074 = vmatprep.subr.bf16.mxu0 0
  %12075 = vmatpush1.bf16.msra.mxu0 %v11762
  %12076 = vmatprep.subr.bf16.mxu0 0
  %12077 = vmatpush1.bf16.msra.mxu0 %v11763
  %12078 = vmatprep.subr.bf16.mxu0 0
  %12079 = vmatpush1.bf16.msra.mxu0 %v11764
  %12080 = vmatprep.subr.bf16.mxu0 0
  %12081 = vmatpush1.bf16.msra.mxu0 %v11765
  %12082 = vmatprep.subr.bf16.mxu0 0
  %12083 = vmatpush1.bf16.msra.mxu0 %v11766
  %12084 = vmatprep.subr.bf16.mxu0 0
  %12085 = vmatpush1.bf16.msra.mxu0 %v11767
  %12086 = vmatprep.subr.bf16.mxu0 0
  %12087 = vmatpush1.bf16.msra.mxu0 %v11768
  %12088 = vmatprep.subr.bf16.mxu0 0
  %12089 = vmatpush1.bf16.msra.mxu0 %v11769
  %12090 = vmatprep.mubr.bf16.mxu0 %v10938
  %12091 = vmatmul.mubr.bf16.gmra.mrb[0].mxu0 %v10937
  %v12092 = vpop.f32.mrb[0].mxu0
  %v12093 = vpop.f32.mrb[0].mxu0
  %v12094 = vpop.f32.mrb[0].mxu0
  %v12095 = vadd.f32 %v12055, %v12094
  %v12096 = vpop.f32.mrb[0].mxu0
  %12097 = vdwg.mxu0
  %12098 = vmatprep.subr.bf16.mxu0 0
  %12099 = vmatpush1.bf16.msra.mxu0 %v11770
  %12100 = vmatprep.subr.bf16.mxu0 0
  %12101 = vmatpush1.bf16.msra.mxu0 %v11771
  %12102 = vmatprep.subr.bf16.mxu0 0
  %12103 = vmatpush1.bf16.msra.mxu0 %v11772
  %12104 = vmatprep.subr.bf16.mxu0 0
  %12105 = vmatpush1.bf16.msra.mxu0 %v11773
  %12106 = vmatprep.subr.bf16.mxu0 0
  %12107 = vmatpush1.bf16.msra.mxu0 %v11774
  %12108 = vmatprep.subr.bf16.mxu0 0
  %12109 = vmatpush1.bf16.msra.mxu0 %v11775
  %12110 = vmatprep.subr.bf16.mxu0 0
  %12111 = vmatpush1.bf16.msra.mxu0 %v11776
  %12112 = vmatprep.subr.bf16.mxu0 0
  %12113 = vmatpush1.bf16.msra.mxu0 %v11777
  %12114 = vmatprep.subr.bf16.mxu0 0
  %12115 = vmatpush1.bf16.msra.mxu0 %v11778
  %12116 = vmatprep.subr.bf16.mxu0 0
  %12117 = vmatpush1.bf16.msra.mxu0 %v11779
  %12118 = vmatprep.subr.bf16.mxu0 0
  %12119 = vmatpush1.bf16.msra.mxu0 %v11780
  %12120 = vmatprep.subr.bf16.mxu0 0
  %12121 = vmatpush1.bf16.msra.mxu0 %v11781
  %12122 = vmatprep.subr.bf16.mxu0 0
  %12123 = vmatpush1.bf16.msra.mxu0 %v11782
  %12124 = vmatprep.subr.bf16.mxu0 0
  %12125 = vmatpush1.bf16.msra.mxu0 %v11783
  %12126 = vmatprep.subr.bf16.mxu0 0
  %12127 = vmatpush1.bf16.msra.mxu0 %v11784
  %12128 = vmatprep.subr.bf16.mxu0 0
  %12129 = vmatpush1.bf16.msra.mxu0 %v11785
  %12130 = vmatprep.mubr.bf16.mxu0 %v10940
  %12131 = vmatmul.mubr.bf16.gmra.mrb[0].mxu0 %v10939
  %v12132 = vpop.f32.mrb[0].mxu0
  %v12133 = vpop.f32.mrb[0].mxu0
  %v12134 = vpop.f32.mrb[0].mxu0
  %v12135 = vadd.f32 %v12095, %v12134
  %v12136 = vpop.f32.mrb[0].mxu0
  %12137 = vdwg.mxu0
  %12138 = vmatprep.subr.bf16.mxu0 0
  %12139 = vmatpush1.bf16.msra.mxu0 %v11786
  %12140 = vmatprep.subr.bf16.mxu0 0
  %12141 = vmatpush1.bf16.msra.mxu0 %v11787
  %12142 = vmatprep.subr.bf16.mxu0 0
  %12143 = vmatpush1.bf16.msra.mxu0 %v11788
  %12144 = vmatprep.subr.bf16.mxu0 0
  %12145 = vmatpush1.bf16.msra.mxu0 %v11789
  %12146 = vmatprep.subr.bf16.mxu0 0
  %12147 = vmatpush1.bf16.msra.mxu0 %v11790
  %12148 = vmatprep.subr.bf16.mxu0 0
  %12149 = vmatpush1.bf16.msra.mxu0 %v11791
  %12150 = vmatprep.subr.bf16.mxu0 0
  %12151 = vmatpush1.bf16.msra.mxu0 %v11792
  %12152 = vmatprep.subr.bf16.mxu0 0
  %12153 = vmatpush1.bf16.msra.mxu0 %v11793
  %12154 = vmatprep.subr.bf16.mxu0 0
  %12155 = vmatpush1.bf16.msra.mxu0 %v11794
  %12156 = vmatprep.subr.bf16.mxu0 0
  %12157 = vmatpush1.bf16.msra.mxu0 %v11795
  %12158 = vmatprep.subr.bf16.mxu0 0
  %12159 = vmatpush1.bf16.msra.mxu0 %v11796
  %12160 = vmatprep.subr.bf16.mxu0 0
  %12161 = vmatpush1.bf16.msra.mxu0 %v11797
  %12162 = vmatprep.subr.bf16.mxu0 0
  %12163 = vmatpush1.bf16.msra.mxu0 %v11798
  %12164 = vmatprep.subr.bf16.mxu0 0
  %12165 = vmatpush1.bf16.msra.mxu0 %v11799
  %12166 = vmatprep.subr.bf16.mxu0 0
  %12167 = vmatpush1.bf16.msra.mxu0 %v11800
  %12168 = vmatprep.subr.bf16.mxu0 0
  %12169 = vmatpush1.bf16.msra.mxu0 %v11801
  %12170 = vmatprep.mubr.bf16.mxu0 %v10942
  %12171 = vmatmul.mubr.bf16.gmra.mrb[0].mxu0 %v10941
  %v12172 = vpop.f32.mrb[0].mxu0
  %v12173 = vpop.f32.mrb[0].mxu0
  %v12174 = vpop.f32.mrb[0].mxu0
  %v12175 = vadd.f32 %v12135, %v12174
  %v12176 = vpop.f32.mrb[0].mxu0
  %12177 = vdwg.mxu0
  %12178 = vmatprep.subr.bf16.mxu0 0
  %12179 = vmatpush1.bf16.msra.mxu0 %v11802
  %12180 = vmatprep.subr.bf16.mxu0 0
  %12181 = vmatpush1.bf16.msra.mxu0 %v11803
  %12182 = vmatprep.subr.bf16.mxu0 0
  %12183 = vmatpush1.bf16.msra.mxu0 %v11804
  %12184 = vmatprep.subr.bf16.mxu0 0
  %12185 = vmatpush1.bf16.msra.mxu0 %v11805
  %12186 = vmatprep.subr.bf16.mxu0 0
  %12187 = vmatpush1.bf16.msra.mxu0 %v11806
  %12188 = vmatprep.subr.bf16.mxu0 0
  %12189 = vmatpush1.bf16.msra.mxu0 %v11807
  %12190 = vmatprep.subr.bf16.mxu0 0
  %12191 = vmatpush1.bf16.msra.mxu0 %v11808
  %12192 = vmatprep.subr.bf16.mxu0 0
  %12193 = vmatpush1.bf16.msra.mxu0 %v11809
  %12194 = vmatprep.subr.bf16.mxu0 0
  %12195 = vmatpush1.bf16.msra.mxu0 %v11810
  %12196 = vmatprep.subr.bf16.mxu0 0
  %12197 = vmatpush1.bf16.msra.mxu0 %v11811
  %12198 = vmatprep.subr.bf16.mxu0 0
  %12199 = vmatpush1.bf16.msra.mxu0 %v11812
  %12200 = vmatprep.subr.bf16.mxu0 0
  %12201 = vmatpush1.bf16.msra.mxu0 %v11813
  %12202 = vmatprep.subr.bf16.mxu0 0
  %12203 = vmatpush1.bf16.msra.mxu0 %v11814
  %12204 = vmatprep.subr.bf16.mxu0 0
  %12205 = vmatpush1.bf16.msra.mxu0 %v11815
  %12206 = vmatprep.subr.bf16.mxu0 0
  %12207 = vmatpush1.bf16.msra.mxu0 %v11816
  %12208 = vmatprep.subr.bf16.mxu0 0
  %12209 = vmatpush1.bf16.msra.mxu0 %v11817
  %12210 = vmatprep.mubr.bf16.mxu0 %v10944
  %12211 = vmatmul.mubr.bf16.gmra.mrb[0].mxu0 %v10943
  %v12212 = vpop.f32.mrb[0].mxu0
  %v12213 = vpop.f32.mrb[0].mxu0
  %v12214 = vpop.f32.mrb[0].mxu0
  %v12215 = vadd.f32 %v12175, %v12214
  %v12216 = vpop.f32.mrb[0].mxu0
  %12217 = vdwg.mxu0
  %12218 = vmatprep.subr.bf16.mxu0 0
  %12219 = vmatpush1.bf16.msra.mxu0 %v11818
  %12220 = vmatprep.subr.bf16.mxu0 0
  %12221 = vmatpush1.bf16.msra.mxu0 %v11819
  %12222 = vmatprep.subr.bf16.mxu0 0
  %12223 = vmatpush1.bf16.msra.mxu0 %v11820
  %12224 = vmatprep.subr.bf16.mxu0 0
  %12225 = vmatpush1.bf16.msra.mxu0 %v11821
  %12226 = vmatprep.subr.bf16.mxu0 0
  %12227 = vmatpush1.bf16.msra.mxu0 %v11822
  %12228 = vmatprep.subr.bf16.mxu0 0
  %12229 = vmatpush1.bf16.msra.mxu0 %v11823
  %12230 = vmatprep.subr.bf16.mxu0 0
  %12231 = vmatpush1.bf16.msra.mxu0 %v11824
  %12232 = vmatprep.subr.bf16.mxu0 0
  %12233 = vmatpush1.bf16.msra.mxu0 %v11825
  %12234 = vmatprep.subr.bf16.mxu0 0
  %12235 = vmatpush1.bf16.msra.mxu0 %v11826
  %12236 = vmatprep.subr.bf16.mxu0 0
  %12237 = vmatpush1.bf16.msra.mxu0 %v11827
  %12238 = vmatprep.subr.bf16.mxu0 0
  %12239 = vmatpush1.bf16.msra.mxu0 %v11828
  %12240 = vmatprep.subr.bf16.mxu0 0
  %12241 = vmatpush1.bf16.msra.mxu0 %v11829
  %12242 = vmatprep.subr.bf16.mxu0 0
  %12243 = vmatpush1.bf16.msra.mxu0 %v11830
  %12244 = vmatprep.subr.bf16.mxu0 0
  %12245 = vmatpush1.bf16.msra.mxu0 %v11831
  %12246 = vmatprep.subr.bf16.mxu0 0
  %12247 = vmatpush1.bf16.msra.mxu0 %v11832
  %12248 = vmatprep.subr.bf16.mxu0 0
  %12249 = vmatpush1.bf16.msra.mxu0 %v11833
  %12250 = vmatprep.mubr.bf16.mxu0 %v10946
  %12251 = vmatmul.mubr.bf16.gmra.mrb[0].mxu0 %v10945
  %v12252 = vpop.f32.mrb[0].mxu0
  %v12253 = vpop.f32.mrb[0].mxu0
  %v12254 = vpop.f32.mrb[0].mxu0
  %v12255 = vadd.f32 %v12215, %v12254
  %v12256 = vpop.f32.mrb[0].mxu0
  %12257 = vdwg.mxu0
  %12258 = vmatprep.subr.bf16.mxu0 0
  %12259 = vmatpush1.bf16.msra.mxu0 %v11834
  %12260 = vmatprep.subr.bf16.mxu0 0
  %12261 = vmatpush1.bf16.msra.mxu0 %v11835
  %12262 = vmatprep.subr.bf16.mxu0 0
  %12263 = vmatpush1.bf16.msra.mxu0 %v11836
  %12264 = vmatprep.subr.bf16.mxu0 0
  %12265 = vmatpush1.bf16.msra.mxu0 %v11837
  %12266 = vmatprep.subr.bf16.mxu0 0
  %12267 = vmatpush1.bf16.msra.mxu0 %v11838
  %12268 = vmatprep.subr.bf16.mxu0 0
  %12269 = vmatpush1.bf16.msra.mxu0 %v11839
  %12270 = vmatprep.subr.bf16.mxu0 0
  %12271 = vmatpush1.bf16.msra.mxu0 %v11840
  %12272 = vmatprep.subr.bf16.mxu0 0
  %12273 = vmatpush1.bf16.msra.mxu0 %v11841
  %12274 = vmatprep.subr.bf16.mxu0 0
  %12275 = vmatpush1.bf16.msra.mxu0 %v11842
  %12276 = vmatprep.subr.bf16.mxu0 0
  %12277 = vmatpush1.bf16.msra.mxu0 %v11843
  %12278 = vmatprep.subr.bf16.mxu0 0
  %12279 = vmatpush1.bf16.msra.mxu0 %v11844
  %12280 = vmatprep.subr.bf16.mxu0 0
  %12281 = vmatpush1.bf16.msra.mxu0 %v11845
  %12282 = vmatprep.subr.bf16.mxu0 0
  %12283 = vmatpush1.bf16.msra.mxu0 %v11846
  %12284 = vmatprep.subr.bf16.mxu0 0
  %12285 = vmatpush1.bf16.msra.mxu0 %v11847
  %12286 = vmatprep.subr.bf16.mxu0 0
  %12287 = vmatpush1.bf16.msra.mxu0 %v11848
  %12288 = vmatprep.subr.bf16.mxu0 0
  %12289 = vmatpush1.bf16.msra.mxu0 %v11849
  %12290 = vmatprep.mubr.bf16.mxu0 %v10948
  %12291 = vmatmul.mubr.bf16.gmra.mrb[0].mxu0 %v10947
  %v12292 = vpop.f32.mrb[0].mxu0
  %v12293 = vpop.f32.mrb[0].mxu0
  %v12294 = vpop.f32.mrb[0].mxu0
  %v12295 = vadd.f32 %v12255, %v12294
  %v12296 = vpop.f32.mrb[0].mxu0
  %12297 = vdwg.mxu0
  %v12299 = vcombine.high %v12295, %v12295
  %v12301 = vunpack.c.l.s4 1983009808
  %v12302 = vunpack.c.0.s8 %v12301
  %v12303 = vlaneseq
  %v12304 = vshrl.u32 %v12303, 7
  %v12305 = vsub.s32 %v12302, %v12304
  %v12306 = vrot.slane %v12295, %v12305
  %v12308 = vunpack.c.l.s4 1983009808
  %v12309 = vunpack.c.0.s8 %v12308
  %v12310 = vlaneseq
  %v12311 = vshrl.u32 %v12310, 7
  %v12312 = vsub.s32 %v12309, %v12311
  %v12313 = vrot.slane %v12299, %v12312
  %v12314 = vcombine.high %v12306, %v12306
  %v12315 = vcombine.high %v12313, %v12313
  %v12320 = vadd.f32 %v10035, %v12306
  %v12321 = vadd.f32 %v10036, %v12314
  %v12322 = vadd.f32 %v10037, %v12313
  %v12323 = vadd.f32 %v10038, %v12315
  %v12328 = vcombine.low %v12320, %v12321
  %v12329 = vcombine.low %v12322, %v12323
  %v12331 = vunpack.c.l.s4 1983009808
  %v12332 = vunpack.c.0.s8 %v12331
  %v12333 = vlaneseq
  %v12334 = vshrl.u32 %v12333, 7
  %v12335 = vsub.s32 %v12332, %v12334
  %v12336 = vrot.slane %v12328, %v12335
  %v12338 = vunpack.c.l.s4 1983009808
  %v12339 = vunpack.c.0.s8 %v12338
  %v12340 = vlaneseq
  %v12341 = vshrl.u32 %v12340, 7
  %v12342 = vsub.s32 %v12339, %v12341
  %v12343 = vrot.slane %v12329, %v12342
  %v12344 = vcombine.low %v12336, %v12343
  %v12346 = vsel %vm177, %v12344, 0.0
  %12347 = vadd.xlane.f32.xlu0 %v12346
  %v12348 = vpop.xlane.xlu0 %12347
  %v12349 = vmul.f32 %v12348, %v3467
  %v12352 = vunpack.c.l.s4 269488144
  %v12353 = vunpack.c.0.s8 %v12352
  %v12354 = vlaneseq
  %v12355 = vshrl.u32 %v12354, 7
  %v12356 = vsub.s32 %v12353, %v12355
  %v12357 = vrot.slane %v12349, %v12356
  %v12359 = vunpack.c.l.s4 842150450
  %v12360 = vunpack.c.0.s8 %v12359
  %v12361 = vlaneseq
  %v12362 = vshrl.u32 %v12361, 7
  %v12363 = vsub.s32 %v12360, %v12362
  %v12364 = vrot.slane %v12349, %v12363
  %v12366 = vunpack.c.l.s4 1414812756
  %v12367 = vunpack.c.0.s8 %v12366
  %v12368 = vlaneseq
  %v12369 = vshrl.u32 %v12368, 7
  %v12370 = vsub.s32 %v12367, %v12369
  %v12371 = vrot.slane %v12349, %v12370
  %v12373 = vunpack.c.l.s4 1987475062
  %v12374 = vunpack.c.0.s8 %v12373
  %v12375 = vlaneseq
  %v12376 = vshrl.u32 %v12375, 7
  %v12377 = vsub.s32 %v12374, %v12376
  %v12378 = vrot.slane %v12349, %v12377
  %v12383 = vsub.f32 %v12320, %v12357
  %v12384 = vsub.f32 %v12321, %v12364
  %v12385 = vsub.f32 %v12322, %v12371
  %v12386 = vsub.f32 %v12323, %v12378
  %v12387 = vmul.f32 %v12383, %v12383
  %v12388 = vmul.f32 %v12384, %v12384
  %v12389 = vmul.f32 %v12385, %v12385
  %v12390 = vmul.f32 %v12386, %v12386
  %v12395 = vcombine.low %v12387, %v12388
  %v12396 = vcombine.low %v12389, %v12390
  %v12398 = vunpack.c.l.s4 1983009808
  %v12399 = vunpack.c.0.s8 %v12398
  %v12400 = vlaneseq
  %v12401 = vshrl.u32 %v12400, 7
  %v12402 = vsub.s32 %v12399, %v12401
  %v12403 = vrot.slane %v12395, %v12402
  %v12405 = vunpack.c.l.s4 1983009808
  %v12406 = vunpack.c.0.s8 %v12405
  %v12407 = vlaneseq
  %v12408 = vshrl.u32 %v12407, 7
  %v12409 = vsub.s32 %v12406, %v12408
  %v12410 = vrot.slane %v12396, %v12409
  %v12411 = vcombine.low %v12403, %v12410
  %v12413 = vsel %vm177, %v12411, 0.0
  %12414 = vadd.xlane.f32.xlu0 %v12413
  %v12415 = vpop.xlane.xlu0 %12414
  %v12416 = vmul.f32 %v12415, %v3467
  %v12417 = vadd.f32 %v12416, 1e-05
  %v12418 = vrsqrt.pop %v12417
  %v12421 = vunpack.c.l.s4 1987475062
  %v12422 = vunpack.c.0.s8 %v12421
  %v12423 = vlaneseq
  %v12424 = vshrl.u32 %v12423, 7
  %v12425 = vsub.s32 %v12422, %v12424
  %v12426 = vrot.slane %v12418, %v12425
  %v12428 = vmul.f32 %v12386, %v12426
  %v12429 = vlaneseq
  %v12430 = vshrl.u32 %v12429, 7
  %v12431 = vsub.s32 4, %v12430
  %v12432 = vrot.slane %v6399, %v12431
  %v12434 = vcombine.high %v12432, %v12432
  %v12436 = vunpack.c.l.s4 1983009808
  %v12437 = vunpack.c.0.s8 %v12436
  %v12438 = vlaneseq
  %v12439 = vshrl.u32 %v12438, 7
  %v12440 = vsub.s32 %v12437, %v12439
  %v12441 = vrot.slane %v12434, %v12440
  %v12442 = vcombine.high %v12441, %v12441
  %v12444 = vmul.f32 %v12428, %v12442
  %v12445 = vlaneseq
  %v12446 = vshrl.u32 %v12445, 7
  %v12447 = vsub.s32 5, %v12446
  %v12448 = vrot.slane %v6399, %v12447
  %v12450 = vcombine.high %v12448, %v12448
  %v12452 = vunpack.c.l.s4 1983009808
  %v12453 = vunpack.c.0.s8 %v12452
  %v12454 = vlaneseq
  %v12455 = vshrl.u32 %v12454, 7
  %v12456 = vsub.s32 %v12453, %v12455
  %v12457 = vrot.slane %v12450, %v12456
  %v12458 = vcombine.high %v12457, %v12457
  %v12460 = vadd.f32 %v12444, %v12458
  %v12461 = vlaneseq
  %v12462 = vshrl.u32 %v12461, 7
  %v12463 = vsub.s32 2, %v12462
  %v12464 = vrot.slane %v33, %v12463
  %v12465 = vmul.f32 %v12460, %v12464
  %v12466 = vlaneseq
  %v12467 = vshrl.u32 %v12466, 7
  %v12468 = vsub.s32 3, %v12467
  %v12469 = vrot.slane %v33, %v12468
  %v12470 = vadd.f32 %v12465, %v12469
  %vm12471 = vcmask 517120
  %v12472 = vsel %vm12471, %v12470, 0.0
  %12473 = vadd.xlane.f32.xlu0 %v12472
  %v12474 = vpop.xlane.xlu0 %12473
  %vm12475 = vcmask 1024
  %12476 = vst.msk [vmem:[%s9] sm:$0x3] %vm12475, %v12474
  // Predicated region
  $region38: #{transformer_time_series.1} parent=0 // pred_check
    _
  $region39: #{transformer_time_series.1} parent=0 // pred_check_branch
    %12478 = sbr.rel (0) target = $region41
  $region40: #{transformer_time_series.1} parent=0 // pred_region
    _
  $region41: #{transformer_time_series.1} parent=0 // pred_fallthru
    _
  // Predicated region
  $region42: #{transformer_time_series.1} parent=0 // pred_check
    _
  $region43: #{transformer_time_series.1} parent=0 // pred_check_branch
    %12480 = sbr.rel (0) target = $region45
  $region44: #{transformer_time_series.1} parent=0 // pred_region
    _
  $region45: #{transformer_time_series.1} parent=0 // pred_fallthru
    _

</llo_original>
